<compile_context>
chip_gen: v7x
topology: tpu7x:2x2x1
jax: 0.10.0
libtpu: 0.0.40
codegen_flags: <defaults>
</compile_context>

<pallas_src>
import functools

import jax
import jax.numpy as jnp
from jax import lax
from jax.experimental import pallas as pl
from jax.experimental.pallas import tpu as pltpu


VMEM_LIMIT = 48 * 1024 * 1024        # fits v7x 64 MiB physical; > v5e 16 MiB scoped default
WEIGHT_DTYPE = jnp.bfloat16          # MXU-native; accumulation stays f32
TT_DEFAULT = 8                       # timesteps per LSTM grid step


def _round_up(x, m):
    return (x + m - 1) // m * m


def _pick_tile(dim, candidates):
    """Largest candidate tile that evenly divides `dim`."""
    for c in candidates:
        if dim % c == 0:
            return c
    return dim


# ----------------------------------------------------------------------------
# Tiled matmul + bias kernel (used for the hoisted input projection and the
# decoder).  grid = (M/TM, N/TN, K/TK); f32 accumulator scratch.
# ----------------------------------------------------------------------------
def _matmul_bias_kernel(x_ref, w_ref, b_ref, o_ref, acc_ref):
    k = pl.program_id(2)

    @pl.when(k == 0)
    def _():
        acc_ref[...] = jnp.zeros_like(acc_ref)

    acc_ref[...] += jnp.dot(x_ref[...].astype(w_ref.dtype), w_ref[...],
                            preferred_element_type=jnp.float32)

    @pl.when(k == pl.num_programs(2) - 1)
    def _():
        o_ref[...] = (acc_ref[...] + b_ref[...]).astype(o_ref.dtype)


def matmul_bias(x, w, b, *, out_dtype=jnp.float32):
    """x: (N, K) f32; w: (K, V) bf16/f32; b: (1, V) f32 -> (N, V)."""
    N, K = x.shape
    K2, V = w.shape
    assert K == K2
    TM = _pick_tile(N, (256, 128, 64, 32, 16, 8))
    TN = _pick_tile(V, (512, 256, 128))
    TK = _pick_tile(K, (512, 256, 128))
    grid = (N // TM, V // TN, K // TK)
    return pl.pallas_call(
        _matmul_bias_kernel,
        out_shape=jax.ShapeDtypeStruct((N, V), out_dtype),
        grid_spec=pltpu.PrefetchScalarGridSpec(
            num_scalar_prefetch=0,
            grid=grid,
            in_specs=[
                pl.BlockSpec((TM, TK), lambda i, j, k: (i, k)),
                pl.BlockSpec((TK, TN), lambda i, j, k: (k, j)),
                pl.BlockSpec((1, TN), lambda i, j, k: (0, j)),
            ],
            out_specs=pl.BlockSpec((TM, TN), lambda i, j, k: (i, j)),
            scratch_shapes=[pltpu.VMEM((TM, TN), jnp.float32)],
        ),
        compiler_params=pltpu.CompilerParams(
            dimension_semantics=("parallel", "parallel", "arbitrary"),
            vmem_limit_bytes=VMEM_LIMIT),
    )(x, w, b)


# ----------------------------------------------------------------------------
# Fused 2-layer LSTM kernel.
#   grid = (batch_blocks [parallel], time_blocks [arbitrary, sequential])
#   per grid step: TT timesteps, fully unrolled; per timestep:
#     gates1 = ih1[t] (precomputed x@W_ih1+b1) + h1 @ W_hh1
#     gates2 = h1_new @ W_ih2 + h2 @ W_hh2 + b2
#   Only y2 and the final (h,c) states are written to HBM.
# ----------------------------------------------------------------------------
def fused_lstm2(ih1, w_hh1, w_ih2, w_hh2, b2, h10, c10, h20, c20,
                *, t_real, tt=TT_DEFAULT):
    """ih1: (T_pad, B_pad, 4Hp) f32;  weights: (Hp, 4Hp);  b2: (1, 4Hp) f32;
    h/c: (B_pad, Hp) f32.  Returns (y2, h1N, c1N, h2N, c2N)."""
    T_pad, B_pad, G = ih1.shape
    Hp = G // 4
    assert T_pad % tt == 0
    TB = _pick_tile(B_pad, (128, 64, 32, 16, 8))
    nb, nt = B_pad // TB, T_pad // tt
    f32 = jnp.float32
    mask_tail = (t_real != T_pad)

    def kernel(ih1_ref, whh1_ref, wih2_ref, whh2_ref, b2_ref,
               h10_ref, c10_ref, h20_ref, c20_ref,
               y_ref, h1N_ref, c1N_ref, h2N_ref, c2N_ref,
               h1_sc, c1_sc, h2_sc, c2_sc):
        tb = pl.program_id(1)

        @pl.when(tb == 0)
        def _():
            h1_sc[...] = h10_ref[...]
            c1_sc[...] = c10_ref[...]
            h2_sc[...] = h20_ref[...]
            c2_sc[...] = c20_ref[...]

        wdt = whh1_ref.dtype
        bias2 = b2_ref[...]                      # hoisted broadcast (1, 4Hp)

        def cell(gates, c_prev):
            i_g = jax.nn.sigmoid(gates[:, 0 * Hp:1 * Hp])
            f_g = jax.nn.sigmoid(gates[:, 1 * Hp:2 * Hp])
            g_g = jnp.tanh(gates[:, 2 * Hp:3 * Hp])
            o_g = jax.nn.sigmoid(gates[:, 3 * Hp:4 * Hp])
            c_new = f_g * c_prev + i_g * g_g
            h_new = o_g * jnp.tanh(c_new)
            return h_new, c_new

        h1, c1 = h1_sc[...], c1_sc[...]
        h2, c2 = h2_sc[...], c2_sc[...]

        # TT is small & static -> fully unrolled time-block loop.
        for i in range(tt):
            g1 = ih1_ref[i] + jnp.dot(h1.astype(wdt), whh1_ref[...],
                                      preferred_element_type=f32)
            h1n, c1n = cell(g1, c1)
            g2 = (bias2
                  + jnp.dot(h1n.astype(wdt), wih2_ref[...],
                            preferred_element_type=f32)
                  + jnp.dot(h2.astype(wdt), whh2_ref[...],
                            preferred_element_type=f32))
            h2n, c2n = cell(g2, c2)
            if mask_tail:
                valid = (tb * tt + i) < t_real      # padded tail steps are no-ops
                h1n = jnp.where(valid, h1n, h1)
                c1n = jnp.where(valid, c1n, c1)
                h2n = jnp.where(valid, h2n, h2)
                c2n = jnp.where(valid, c2n, c2)
            y_ref[i] = h2n
            h1, c1, h2, c2 = h1n, c1n, h2n, c2n

        h1_sc[...] = h1
        c1_sc[...] = c1
        h2_sc[...] = h2
        c2_sc[...] = c2

        @pl.when(tb == pl.num_programs(1) - 1)
        def _():
            h1N_ref[...] = h1
            c1N_ref[...] = c1
            h2N_ref[...] = h2
            c2N_ref[...] = c2

    grid_spec = pltpu.PrefetchScalarGridSpec(
        num_scalar_prefetch=0,
        grid=(nb, nt),
        in_specs=[
            pl.BlockSpec((tt, TB, 4 * Hp), lambda b, t: (t, b, 0)),   # ih1 block
            pl.BlockSpec((Hp, 4 * Hp), lambda b, t: (0, 0)),          # W_hh1
            pl.BlockSpec((Hp, 4 * Hp), lambda b, t: (0, 0)),          # W_ih2
            pl.BlockSpec((Hp, 4 * Hp), lambda b, t: (0, 0)),          # W_hh2
            pl.BlockSpec((1, 4 * Hp), lambda b, t: (0, 0)),           # b2
            pl.BlockSpec((TB, Hp), lambda b, t: (b, 0)),              # h1_0
            pl.BlockSpec((TB, Hp), lambda b, t: (b, 0)),              # c1_0
            pl.BlockSpec((TB, Hp), lambda b, t: (b, 0)),              # h2_0
            pl.BlockSpec((TB, Hp), lambda b, t: (b, 0)),              # c2_0
        ],
        out_specs=[
            pl.BlockSpec((tt, TB, Hp), lambda b, t: (t, b, 0)),       # y2 block
            pl.BlockSpec((TB, Hp), lambda b, t: (b, 0)),              # h1_N (resident)
            pl.BlockSpec((TB, Hp), lambda b, t: (b, 0)),              # c1_N
            pl.BlockSpec((TB, Hp), lambda b, t: (b, 0)),              # h2_N
            pl.BlockSpec((TB, Hp), lambda b, t: (b, 0)),              # c2_N
        ],
        scratch_shapes=[pltpu.VMEM((TB, Hp), f32)] * 4,               # h1,c1,h2,c2 carries
    )
    out_shapes = (
        jax.ShapeDtypeStruct((T_pad, B_pad, Hp), f32),
        jax.ShapeDtypeStruct((B_pad, Hp), f32),
        jax.ShapeDtypeStruct((B_pad, Hp), f32),
        jax.ShapeDtypeStruct((B_pad, Hp), f32),
        jax.ShapeDtypeStruct((B_pad, Hp), f32),
    )
    return pl.pallas_call(
        kernel,
        out_shape=out_shapes,
        grid_spec=grid_spec,
        compiler_params=pltpu.CompilerParams(
            dimension_semantics=("parallel", "arbitrary"),   # batch blocks parallel, time sequential
            vmem_limit_bytes=VMEM_LIMIT),
    )(ih1, w_hh1, w_ih2, w_hh2, b2, h10, c10, h20, c20)


# ----------------------------------------------------------------------------
# Parameter init (matches PyTorch init; stored padded / transposed / bf16).
# ----------------------------------------------------------------------------
def init_params(key, vocab_size, hidden_size, *, weight_dtype=WEIGHT_DTYPE):
    initrange = 0.1
    H, V = hidden_size, vocab_size
    Hp, Vp = _round_up(H, 128), _round_up(V, 128)
    keys = jax.random.split(key, 6)
    u = lambda k, shape: jax.random.uniform(k, shape, jnp.float32,
                                            -initrange, initrange)

    def pad_gates(w):
        # (H, 4H) PyTorch-gate-order (i,f,g,o) -> (Hp, 4Hp) with each gate block
        # re-aligned to a 128-lane (Hp) boundary; padding is zeros.
        out = jnp.zeros((Hp, 4 * Hp), jnp.float32)
        for g in range(4):
            out = out.at[:H, g * Hp:g * Hp + H].set(w[:, g * H:(g + 1) * H])
        return out

    enc = u(keys[0], (V, H))
    w_ih1 = u(keys[1], (H, 4 * H))   # transpose of PyTorch (4H, H)
    w_hh1 = u(keys[2], (H, 4 * H))
    w_ih2 = u(keys[3], (H, 4 * H))
    w_hh2 = u(keys[4], (H, 4 * H))
    lin_w = u(keys[5], (H, V))       # transpose of PyTorch (V, H)

    params = {
        "encoder": jnp.zeros((V, Hp), jnp.float32).at[:, :H].set(enc),
        "rnn1_w_ih": pad_gates(w_ih1).astype(weight_dtype),
        "rnn1_w_hh": pad_gates(w_hh1).astype(weight_dtype),
        "rnn1_b": jnp.zeros((1, 4 * Hp), jnp.float32),   # b_ih + b_hh (zeros)
        "rnn2_w_ih": pad_gates(w_ih2).astype(weight_dtype),
        "rnn2_w_hh": pad_gates(w_hh2).astype(weight_dtype),
        "rnn2_b": jnp.zeros((1, 4 * Hp), jnp.float32),
        "lin_w": jnp.zeros((Hp, Vp), jnp.float32).at[:H, :V].set(lin_w).astype(weight_dtype),
        "lin_b": jnp.zeros((1, Vp), jnp.float32),
    }
    return params


def init_hidden(batch_size, hidden_size):
    z = jnp.zeros((1, batch_size, hidden_size), jnp.float32)
    return ((z, z), (z, z))


# ----------------------------------------------------------------------------
# Full model forward (eval / mean-field-inference path).
# ----------------------------------------------------------------------------
@functools.partial(jax.jit, static_argnames=("vocab_size",))
def language_model_forward(params, x_ids, hidden, *, vocab_size):
    """x_ids: (T, B) int32; hidden = ((h1, c1), (h2, c2)), each (1, B, H)."""
    (h1, c1), (h2, c2) = hidden
    T, B = x_ids.shape
    H = h1.shape[-1]
    Hp = params["rnn1_w_hh"].shape[0]
    Vp = params["lin_w"].shape[1]
    V = vocab_size

    TT = TT_DEFAULT
    B_pad = _round_up(B, 8)
    T_pad = _round_up(T, TT)

    # Embedding lookup (gather) stays in plain JAX glue; edrop/idrop/odrop are
    # identity in mean-field-inference mode.
    emb = params["encoder"][x_ids]                                   # (T, B, Hp)
    emb = jnp.pad(emb, ((0, T_pad - T), (0, B_pad - B), (0, 0)))

    # Hoisted layer-1 input projection: one large MXU matmul over all T*B rows.
    ih1 = matmul_bias(emb.reshape(T_pad * B_pad, Hp),
                      params["rnn1_w_ih"], params["rnn1_b"])
    ih1 = ih1.reshape(T_pad, B_pad, 4 * Hp)

    def pad_state(s):   # (1, B, H) -> (B_pad, Hp)
        return jnp.pad(s[0], ((0, B_pad - B), (0, Hp - H)))

    y2, h1n, c1n, h2n, c2n = fused_lstm2(
        ih1, params["rnn1_w_hh"], params["rnn2_w_ih"], params["rnn2_w_hh"],
        params["rnn2_b"],
        pad_state(h1), pad_state(c1), pad_state(h2), pad_state(c2),
        t_real=T, tt=TT)

    # Tiled decoder matmul over all T*B rows.
    logits = matmul_bias(y2.reshape(T_pad * B_pad, Hp),
                         params["lin_w"], params["lin_b"])
    logits = logits.reshape(T_pad, B_pad, Vp)[:T, :B, :V]

    def unpad_state(s):  # (B_pad, Hp) -> (1, B, H)
        return s[:B, :H][None]

    new_hidden = ((unpad_state(h1n), unpad_state(c1n)),
                  (unpad_state(h2n), unpad_state(c2n)))
    return logits, new_hidden


# ----------------------------------------------------------------------------
# Pure-JAX reference (same padded/bf16 params up-cast to f32) for a sanity check.
# ----------------------------------------------------------------------------
def _reference_forward(params, x_ids, hidden, vocab_size, hidden_size):
    H, V = hidden_size, vocab_size
    Hp = params["rnn1_w_hh"].shape[0]
    f32 = jnp.float32

    def unpad_w(w):
        w = w.astype(f32)
        return jnp.concatenate([w[:H, g * Hp:g * Hp + H] for g in range(4)], 1)

    def unpad_b(b):
        b = b.astype(f32)
        return jnp.concatenate([b[:, g * Hp:g * Hp + H] for g in range(4)], 1)

    def lstm(x, w_ih, w_hh, b, h0, c0):
        def step(carry, xt):
            h, c = carry
            g = xt @ w_ih + h @ w_hh + b
            i = jax.nn.sigmoid(g[:, 0 * H:1 * H])
            f = jax.nn.sigmoid(g[:, 1 * H:2 * H])
            gg = jnp.tanh(g[:, 2 * H:3 * H])
            o = jax.nn.sigmoid(g[:, 3 * H:4 * H])
            c = f * c + i * gg
            h = o * jnp.tanh(c)
            return (h, c), h
        (hN, cN), y = lax.scan(step, (h0, c0), x)
        return y, hN, cN

    (h1, c1), (h2, c2) = hidden
    emb = params["encoder"][:, :H][x_ids].astype(f32)
    y1, h1n, c1n = lstm(emb, unpad_w(params["rnn1_w_ih"]),
                        unpad_w(params["rnn1_w_hh"]),
                        unpad_b(params["rnn1_b"]), h1[0], c1[0])
    y2, h2n, c2n = lstm(y1, unpad_w(params["rnn2_w_ih"]),
                        unpad_w(params["rnn2_w_hh"]),
                        unpad_b(params["rnn2_b"]), h2[0], c2[0])
    lin_w = params["lin_w"].astype(f32)[:H, :V]
    lin_b = params["lin_b"].astype(f32)[:, :V]
    logits = y2 @ lin_w + lin_b
    return logits, ((h1n[None], c1n[None]), (h2n[None], c2n[None]))


if __name__ == "__main__":
    VOCAB, HIDDEN, SEQ, BATCH = 64, 32, 8, 2

    key = jax.random.PRNGKey(0)
    pkey, xkey = jax.random.split(key)
    params = init_params(pkey, VOCAB, HIDDEN)

    x_ids = jax.random.randint(xkey, (SEQ, BATCH), 0, VOCAB, dtype=jnp.int32)
    hidden = init_hidden(BATCH, HIDDEN)

    logits, new_hidden = language_model_forward(params, x_ids, hidden,
                                                vocab_size=VOCAB)
    jax.block_until_ready(logits)
    jax.block_until_ready(new_hidden)

    assert logits.shape == (SEQ, BATCH, VOCAB)
    assert new_hidden[0][0].shape == (1, BATCH, HIDDEN)

    # Numerical sanity check vs pure-JAX reference (bf16 MXU inputs -> loose tol).
    ref_logits, ref_hidden = _reference_forward(params, x_ids, hidden,
                                                VOCAB, HIDDEN)
    assert float(jnp.max(jnp.abs(logits - ref_logits))) < 5e-2
    assert float(jnp.max(jnp.abs(new_hidden[0][0] - ref_hidden[0][0]))) < 5e-2
    assert float(jnp.max(jnp.abs(new_hidden[1][1] - ref_hidden[1][1]))) < 5e-2

    print("KERNEL_OK")
</pallas_src>

<mosaic_0001>
module attributes {stable_mosaic.version = 11 : i64} {
  func.func @_matmul_bias_kernel(%arg0: i32, %arg1: i32, %arg2: i32, %arg3: memref<64x128xf32, #tpu.memory_space<vmem>>, %arg4: memref<128x512xbf16, #tpu.memory_space<vmem>>, %arg5: memref<1x512xf32, #tpu.memory_space<vmem>>, %arg6: memref<64x512xf32, #tpu.memory_space<vmem>>, %arg7: memref<64x512xf32, #tpu.memory_space<vmem>>) attributes {dimension_semantics = [#tpu.dimension_semantics<parallel>, #tpu.dimension_semantics<parallel>, #tpu.dimension_semantics<arbitrary>], iteration_bounds = array<i64: 1, 1, 1>, scalar_prefetch = 0 : i64, scratch_operands = 1 : i64, tpu.core_type = #tpu.core_type<tc>, window_params = [{transform_indices = @transform_0, window_bounds = array<i64: 64, 128>}, {transform_indices = @transform_1, window_bounds = array<i64: 128, 512>}, {transform_indices = @transform_2, window_bounds = array<i64: 1, 512>}, {transform_indices = @transform_3, window_bounds = array<i64: 64, 512>}]} {
    %c0_i32 = arith.constant 0 : i32
    %0 = arith.cmpi eq, %arg2, %c0_i32 : i32
    %1 = arith.extui %0 : i1 to i32
    %c0_i32_0 = arith.constant 0 : i32
    %2 = arith.cmpi ne, %1, %c0_i32_0 : i32
    scf.if %2 {
      %cst_10 = arith.constant 0.000000e+00 : f32
      %13 = vector.broadcast %cst_10 : f32 to vector<64x512xf32>
      %c0_11 = arith.constant 0 : index
      %c0_12 = arith.constant 0 : index
      %14 = vector.load %arg7[%c0_11, %c0_12] : memref<64x512xf32, #tpu.memory_space<vmem>>, vector<64x512xf32>
      tpu.vector_store %arg7[%c0_11, %c0_12], %13 {strides = array<i32>} : memref<64x512xf32, #tpu.memory_space<vmem>>, vector<64x512xf32>,
    } else {
    }
    %c0 = arith.constant 0 : index
    %c0_1 = arith.constant 0 : index
    %3 = vector.load %arg7[%c0, %c0_1] : memref<64x512xf32, #tpu.memory_space<vmem>>, vector<64x512xf32>
    %c0_2 = arith.constant 0 : index
    %c0_3 = arith.constant 0 : index
    %4 = vector.load %arg3[%c0_2, %c0_3] : memref<64x128xf32, #tpu.memory_space<vmem>>, vector<64x128xf32>
    %5 = arith.truncf %4 : vector<64x128xf32> to vector<64x128xbf16>
    %c0_4 = arith.constant 0 : index
    %c0_5 = arith.constant 0 : index
    %6 = vector.load %arg4[%c0_4, %c0_5] : memref<128x512xbf16, #tpu.memory_space<vmem>>, vector<128x512xbf16>
    %cst = arith.constant dense<0.000000e+00> : vector<64x512xf32>
    %7 = tpu.matmul %5, %6, %cst {dimension_numbers = #tpu.dot_dimension_numbers<[1], [0], [0], [1], [0, 0, 1, 1], [], []>} : vector<64x128xbf16>, vector<128x512xbf16>, vector<64x512xf32> -> vector<64x512xf32>
    %8 = arith.addf %3, %7 : vector<64x512xf32>
    %c0_6 = arith.constant 0 : index
    %c0_7 = arith.constant 0 : index
    %9 = vector.load %arg7[%c0_6, %c0_7] : memref<64x512xf32, #tpu.memory_space<vmem>>, vector<64x512xf32>
    tpu.vector_store %arg7[%c0_6, %c0_7], %8 {strides = array<i32>} : memref<64x512xf32, #tpu.memory_space<vmem>>, vector<64x512xf32>,
    %c0_i32_8 = arith.constant 0 : i32
    %10 = arith.cmpi eq, %arg2, %c0_i32_8 : i32
    %11 = arith.extui %10 : i1 to i32
    %c0_i32_9 = arith.constant 0 : i32
    %12 = arith.cmpi ne, %11, %c0_i32_9 : i32
    scf.if %12 {
      %c0_10 = arith.constant 0 : index
      %c0_11 = arith.constant 0 : index
      %13 = vector.load %arg7[%c0_10, %c0_11] : memref<64x512xf32, #tpu.memory_space<vmem>>, vector<64x512xf32>
      %c0_12 = arith.constant 0 : index
      %c0_13 = arith.constant 0 : index
      %14 = vector.load %arg5[%c0_12, %c0_13] : memref<1x512xf32, #tpu.memory_space<vmem>>, vector<1x512xf32>
      %15 = vector.broadcast %14 : vector<1x512xf32> to vector<64x512xf32>
      %16 = arith.addf %13, %15 : vector<64x512xf32>
      %c0_14 = arith.constant 0 : index
      %c0_15 = arith.constant 0 : index
      %17 = vector.load %arg6[%c0_14, %c0_15] : memref<64x512xf32, #tpu.memory_space<vmem>>, vector<64x512xf32>
      tpu.vector_store %arg6[%c0_14, %c0_15], %16 {strides = array<i32>} : memref<64x512xf32, #tpu.memory_space<vmem>>, vector<64x512xf32>,
    } else {
    }
    return
  }
  func.func @transform_0(%arg0: i32, %arg1: i32, %arg2: i32) -> (i32, i32) {
    %c0_i32 = arith.constant 0 : i32
    return %arg0, %arg2 : i32, i32
  }
  func.func @transform_1(%arg0: i32, %arg1: i32, %arg2: i32) -> (i32, i32) {
    %c0_i32 = arith.constant 0 : i32
    return %arg2, %arg1 : i32, i32
  }
  func.func @transform_2(%arg0: i32, %arg1: i32, %arg2: i32) -> (i32, i32) {
    %c0_i32 = arith.constant 0 : i32
    %c0_i32_0 = arith.constant 0 : i32
    return %c0_i32, %arg1 : i32, i32
  }
  func.func @transform_3(%arg0: i32, %arg1: i32, %arg2: i32) -> (i32, i32) {
    %c0_i32 = arith.constant 0 : i32
    return %arg0, %arg1 : i32, i32
  }
}

module attributes {stable_mosaic.version = 11 : i64} {
  func.func @_matmul_bias_kernel(%arg0: i32, %arg1: i32, %arg2: i32, %arg3: memref<64x128xf32, #tpu.memory_space<vmem>>, %arg4: memref<128x128xbf16, #tpu.memory_space<vmem>>, %arg5: memref<1x128xf32, #tpu.memory_space<vmem>>, %arg6: memref<64x128xf32, #tpu.memory_space<vmem>>, %arg7: memref<64x128xf32, #tpu.memory_space<vmem>>) attributes {dimension_semantics = [#tpu.dimension_semantics<parallel>, #tpu.dimension_semantics<parallel>, #tpu.dimension_semantics<arbitrary>], iteration_bounds = array<i64: 1, 1, 1>, scalar_prefetch = 0 : i64, scratch_operands = 1 : i64, tpu.core_type = #tpu.core_type<tc>, window_params = [{transform_indices = @transform_0, window_bounds = array<i64: 64, 128>}, {transform_indices = @transform_1, window_bounds = array<i64: 128, 128>}, {transform_indices = @transform_2, window_bounds = array<i64: 1, 128>}, {transform_indices = @transform_3, window_bounds = array<i64: 64, 128>}]} {
    %c0_i32 = arith.constant 0 : i32
    %0 = arith.cmpi eq, %arg2, %c0_i32 : i32
    %1 = arith.extui %0 : i1 to i32
    %c0_i32_0 = arith.constant 0 : i32
    %2 = arith.cmpi ne, %1, %c0_i32_0 : i32
    scf.if %2 {
      %cst_10 = arith.constant 0.000000e+00 : f32
      %13 = vector.broadcast %cst_10 : f32 to vector<64x128xf32>
      %c0_11 = arith.constant 0 : index
      %c0_12 = arith.constant 0 : index
      %14 = vector.load %arg7[%c0_11, %c0_12] : memref<64x128xf32, #tpu.memory_space<vmem>>, vector<64x128xf32>
      tpu.vector_store %arg7[%c0_11, %c0_12], %13 {strides = array<i32>} : memref<64x128xf32, #tpu.memory_space<vmem>>, vector<64x128xf32>,
    } else {
    }
    %c0 = arith.constant 0 : index
    %c0_1 = arith.constant 0 : index
    %3 = vector.load %arg7[%c0, %c0_1] : memref<64x128xf32, #tpu.memory_space<vmem>>, vector<64x128xf32>
    %c0_2 = arith.constant 0 : index
    %c0_3 = arith.constant 0 : index
    %4 = vector.load %arg3[%c0_2, %c0_3] : memref<64x128xf32, #tpu.memory_space<vmem>>, vector<64x128xf32>
    %5 = arith.truncf %4 : vector<64x128xf32> to vector<64x128xbf16>
    %c0_4 = arith.constant 0 : index
    %c0_5 = arith.constant 0 : index
    %6 = vector.load %arg4[%c0_4, %c0_5] : memref<128x128xbf16, #tpu.memory_space<vmem>>, vector<128x128xbf16>
    %cst = arith.constant dense<0.000000e+00> : vector<64x128xf32>
    %7 = tpu.matmul %5, %6, %cst {dimension_numbers = #tpu.dot_dimension_numbers<[1], [0], [0], [1], [0, 0, 1, 1], [], []>} : vector<64x128xbf16>, vector<128x128xbf16>, vector<64x128xf32> -> vector<64x128xf32>
    %8 = arith.addf %3, %7 : vector<64x128xf32>
    %c0_6 = arith.constant 0 : index
    %c0_7 = arith.constant 0 : index
    %9 = vector.load %arg7[%c0_6, %c0_7] : memref<64x128xf32, #tpu.memory_space<vmem>>, vector<64x128xf32>
    tpu.vector_store %arg7[%c0_6, %c0_7], %8 {strides = array<i32>} : memref<64x128xf32, #tpu.memory_space<vmem>>, vector<64x128xf32>,
    %c0_i32_8 = arith.constant 0 : i32
    %10 = arith.cmpi eq, %arg2, %c0_i32_8 : i32
    %11 = arith.extui %10 : i1 to i32
    %c0_i32_9 = arith.constant 0 : i32
    %12 = arith.cmpi ne, %11, %c0_i32_9 : i32
    scf.if %12 {
      %c0_10 = arith.constant 0 : index
      %c0_11 = arith.constant 0 : index
      %13 = vector.load %arg7[%c0_10, %c0_11] : memref<64x128xf32, #tpu.memory_space<vmem>>, vector<64x128xf32>
      %c0_12 = arith.constant 0 : index
      %c0_13 = arith.constant 0 : index
      %14 = vector.load %arg5[%c0_12, %c0_13] : memref<1x128xf32, #tpu.memory_space<vmem>>, vector<1x128xf32>
      %15 = vector.broadcast %14 : vector<1x128xf32> to vector<64x128xf32>
      %16 = arith.addf %13, %15 : vector<64x128xf32>
      %c0_14 = arith.constant 0 : index
      %c0_15 = arith.constant 0 : index
      %17 = vector.load %arg6[%c0_14, %c0_15] : memref<64x128xf32, #tpu.memory_space<vmem>>, vector<64x128xf32>
      tpu.vector_store %arg6[%c0_14, %c0_15], %16 {strides = array<i32>} : memref<64x128xf32, #tpu.memory_space<vmem>>, vector<64x128xf32>,
    } else {
    }
    return
  }
  func.func @transform_0(%arg0: i32, %arg1: i32, %arg2: i32) -> (i32, i32) {
    %c0_i32 = arith.constant 0 : i32
    return %arg0, %arg2 : i32, i32
  }
  func.func @transform_1(%arg0: i32, %arg1: i32, %arg2: i32) -> (i32, i32) {
    %c0_i32 = arith.constant 0 : i32
    return %arg2, %arg1 : i32, i32
  }
  func.func @transform_2(%arg0: i32, %arg1: i32, %arg2: i32) -> (i32, i32) {
    %c0_i32 = arith.constant 0 : i32
    %c0_i32_0 = arith.constant 0 : i32
    return %c0_i32, %arg1 : i32, i32
  }
  func.func @transform_3(%arg0: i32, %arg1: i32, %arg2: i32) -> (i32, i32) {
    %c0_i32 = arith.constant 0 : i32
    return %arg0, %arg1 : i32, i32
  }
}

module attributes {stable_mosaic.version = 11 : i64} {
  func.func @kernel(%arg0: i32, %arg1: i32, %arg2: memref<8x8x512xf32, #tpu.memory_space<vmem>>, %arg3: memref<128x512xbf16, #tpu.memory_space<vmem>>, %arg4: memref<128x512xbf16, #tpu.memory_space<vmem>>, %arg5: memref<128x512xbf16, #tpu.memory_space<vmem>>, %arg6: memref<1x512xf32, #tpu.memory_space<vmem>>, %arg7: memref<8x128xf32, #tpu.memory_space<vmem>>, %arg8: memref<8x128xf32, #tpu.memory_space<vmem>>, %arg9: memref<8x128xf32, #tpu.memory_space<vmem>>, %arg10: memref<8x128xf32, #tpu.memory_space<vmem>>, %arg11: memref<8x8x128xf32, #tpu.memory_space<vmem>>, %arg12: memref<8x128xf32, #tpu.memory_space<vmem>>, %arg13: memref<8x128xf32, #tpu.memory_space<vmem>>, %arg14: memref<8x128xf32, #tpu.memory_space<vmem>>, %arg15: memref<8x128xf32, #tpu.memory_space<vmem>>, %arg16: memref<8x128xf32, #tpu.memory_space<vmem>>, %arg17: memref<8x128xf32, #tpu.memory_space<vmem>>, %arg18: memref<8x128xf32, #tpu.memory_space<vmem>>, %arg19: memref<8x128xf32, #tpu.memory_space<vmem>>) attributes {dimension_semantics = [#tpu.dimension_semantics<parallel>, #tpu.dimension_semantics<arbitrary>], iteration_bounds = array<i64: 1, 1>, scalar_prefetch = 0 : i64, scratch_operands = 4 : i64, tpu.core_type = #tpu.core_type<tc>, window_params = [{transform_indices = @transform_0, window_bounds = array<i64: 8, 8, 512>}, {pipeline_mode = #tpu.pipeline_mode<synchronous>, transform_indices = @transform_1, window_bounds = array<i64: 128, 512>}, {pipeline_mode = #tpu.pipeline_mode<synchronous>, transform_indices = @transform_2, window_bounds = array<i64: 128, 512>}, {pipeline_mode = #tpu.pipeline_mode<synchronous>, transform_indices = @transform_3, window_bounds = array<i64: 128, 512>}, {pipeline_mode = #tpu.pipeline_mode<synchronous>, transform_indices = @transform_4, window_bounds = array<i64: 1, 512>}, {transform_indices = @transform_5, window_bounds = array<i64: 8, 128>}, {transform_indices = @transform_6, window_bounds = array<i64: 8, 128>}, {transform_indices = @transform_7, window_bounds = array<i64: 8, 128>}, {transform_indices = @transform_8, window_bounds = array<i64: 8, 128>}, {transform_indices = @transform_9, window_bounds = array<i64: 8, 8, 128>}, {transform_indices = @transform_10, window_bounds = array<i64: 8, 128>}, {transform_indices = @transform_11, window_bounds = array<i64: 8, 128>}, {transform_indices = @transform_12, window_bounds = array<i64: 8, 128>}, {transform_indices = @transform_13, window_bounds = array<i64: 8, 128>}]} {
    %c0_i32 = arith.constant 0 : i32
    %0 = arith.cmpi eq, %arg1, %c0_i32 : i32
    %1 = arith.extui %0 : i1 to i32
    %c0_i32_0 = arith.constant 0 : i32
    %2 = arith.cmpi ne, %1, %c0_i32_0 : i32
    scf.if %2 {
      %c0_180 = arith.constant 0 : index
      %c0_181 = arith.constant 0 : index
      %559 = vector.load %arg7[%c0_180, %c0_181] : memref<8x128xf32, #tpu.memory_space<vmem>>, vector<8x128xf32>
      %c0_182 = arith.constant 0 : index
      %c0_183 = arith.constant 0 : index
      %560 = vector.load %arg16[%c0_182, %c0_183] : memref<8x128xf32, #tpu.memory_space<vmem>>, vector<8x128xf32>
      tpu.vector_store %arg16[%c0_182, %c0_183], %559 {strides = array<i32>} : memref<8x128xf32, #tpu.memory_space<vmem>>, vector<8x128xf32>,
      %c0_184 = arith.constant 0 : index
      %c0_185 = arith.constant 0 : index
      %561 = vector.load %arg8[%c0_184, %c0_185] : memref<8x128xf32, #tpu.memory_space<vmem>>, vector<8x128xf32>
      %c0_186 = arith.constant 0 : index
      %c0_187 = arith.constant 0 : index
      %562 = vector.load %arg17[%c0_186, %c0_187] : memref<8x128xf32, #tpu.memory_space<vmem>>, vector<8x128xf32>
      tpu.vector_store %arg17[%c0_186, %c0_187], %561 {strides = array<i32>} : memref<8x128xf32, #tpu.memory_space<vmem>>, vector<8x128xf32>,
      %c0_188 = arith.constant 0 : index
      %c0_189 = arith.constant 0 : index
      %563 = vector.load %arg9[%c0_188, %c0_189] : memref<8x128xf32, #tpu.memory_space<vmem>>, vector<8x128xf32>
      %c0_190 = arith.constant 0 : index
      %c0_191 = arith.constant 0 : index
      %564 = vector.load %arg18[%c0_190, %c0_191] : memref<8x128xf32, #tpu.memory_space<vmem>>, vector<8x128xf32>
      tpu.vector_store %arg18[%c0_190, %c0_191], %563 {strides = array<i32>} : memref<8x128xf32, #tpu.memory_space<vmem>>, vector<8x128xf32>,
      %c0_192 = arith.constant 0 : index
      %c0_193 = arith.constant 0 : index
      %565 = vector.load %arg10[%c0_192, %c0_193] : memref<8x128xf32, #tpu.memory_space<vmem>>, vector<8x128xf32>
      %c0_194 = arith.constant 0 : index
      %c0_195 = arith.constant 0 : index
      %566 = vector.load %arg19[%c0_194, %c0_195] : memref<8x128xf32, #tpu.memory_space<vmem>>, vector<8x128xf32>
      tpu.vector_store %arg19[%c0_194, %c0_195], %565 {strides = array<i32>} : memref<8x128xf32, #tpu.memory_space<vmem>>, vector<8x128xf32>,
    } else {
    }
    %c0 = arith.constant 0 : index
    %c0_1 = arith.constant 0 : index
    %3 = vector.load %arg6[%c0, %c0_1] : memref<1x512xf32, #tpu.memory_space<vmem>>, vector<1x512xf32>
    %c0_2 = arith.constant 0 : index
    %c0_3 = arith.constant 0 : index
    %4 = vector.load %arg16[%c0_2, %c0_3] : memref<8x128xf32, #tpu.memory_space<vmem>>, vector<8x128xf32>
    %c0_4 = arith.constant 0 : index
    %c0_5 = arith.constant 0 : index
    %5 = vector.load %arg17[%c0_4, %c0_5] : memref<8x128xf32, #tpu.memory_space<vmem>>, vector<8x128xf32>
    %c0_6 = arith.constant 0 : index
    %c0_7 = arith.constant 0 : index
    %6 = vector.load %arg18[%c0_6, %c0_7] : memref<8x128xf32, #tpu.memory_space<vmem>>, vector<8x128xf32>
    %c0_8 = arith.constant 0 : index
    %c0_9 = arith.constant 0 : index
    %7 = vector.load %arg19[%c0_8, %c0_9] : memref<8x128xf32, #tpu.memory_space<vmem>>, vector<8x128xf32>
    %c0_10 = arith.constant 0 : index
    %c0_11 = arith.constant 0 : index
    %c0_12 = arith.constant 0 : index
    %8 = vector.load %arg2[%c0_10, %c0_11, %c0_12] : memref<8x8x512xf32, #tpu.memory_space<vmem>>, vector<1x8x512xf32>
    %9 = vector.shape_cast %8 : vector<1x8x512xf32> to vector<8x512xf32>
    %10 = arith.truncf %4 : vector<8x128xf32> to vector<8x128xbf16>
    %c0_13 = arith.constant 0 : index
    %c0_14 = arith.constant 0 : index
    %11 = vector.load %arg3[%c0_13, %c0_14] : memref<128x512xbf16, #tpu.memory_space<vmem>>, vector<128x512xbf16>
    %cst = arith.constant dense<0.000000e+00> : vector<8x512xf32>
    %12 = tpu.matmul %10, %11, %cst {dimension_numbers = #tpu.dot_dimension_numbers<[1], [0], [0], [1], [0, 0, 1, 1], [], []>} : vector<8x128xbf16>, vector<128x512xbf16>, vector<8x512xf32> -> vector<8x512xf32>
    %13 = arith.addf %9, %12 : vector<8x512xf32>
    %14 = vector.extract_strided_slice %13 {offsets = [0, 0], sizes = [8, 128], strides = [1, 1]} : vector<8x512xf32> to vector<8x128xf32>
    %15 = arith.negf %14 : vector<8x128xf32>
    %16 = math.exp %15 : vector<8x128xf32>
    %cst_15 = arith.constant 1.000000e+00 : f32
    %17 = vector.broadcast %cst_15 : f32 to vector<8x128xf32>
    %18 = arith.addf %17, %16 : vector<8x128xf32>
    %19 = arith.divf %17, %18 : vector<8x128xf32>
    %20 = vector.extract_strided_slice %13 {offsets = [0, 128], sizes = [8, 128], strides = [1, 1]} : vector<8x512xf32> to vector<8x128xf32>
    %21 = arith.negf %20 : vector<8x128xf32>
    %22 = math.exp %21 : vector<8x128xf32>
    %cst_16 = arith.constant 1.000000e+00 : f32
    %23 = vector.broadcast %cst_16 : f32 to vector<8x128xf32>
    %24 = arith.addf %23, %22 : vector<8x128xf32>
    %25 = arith.divf %23, %24 : vector<8x128xf32>
    %26 = vector.extract_strided_slice %13 {offsets = [0, 256], sizes = [8, 128], strides = [1, 1]} : vector<8x512xf32> to vector<8x128xf32>
    %27 = math.tanh %26 : vector<8x128xf32>
    %28 = vector.extract_strided_slice %13 {offsets = [0, 384], sizes = [8, 128], strides = [1, 1]} : vector<8x512xf32> to vector<8x128xf32>
    %29 = arith.negf %28 : vector<8x128xf32>
    %30 = math.exp %29 : vector<8x128xf32>
    %cst_17 = arith.constant 1.000000e+00 : f32
    %31 = vector.broadcast %cst_17 : f32 to vector<8x128xf32>
    %32 = arith.addf %31, %30 : vector<8x128xf32>
    %33 = arith.divf %31, %32 : vector<8x128xf32>
    %34 = arith.mulf %25, %5 : vector<8x128xf32>
    %35 = arith.mulf %19, %27 : vector<8x128xf32>
    %36 = arith.addf %34, %35 : vector<8x128xf32>
    %37 = math.tanh %36 : vector<8x128xf32>
    %38 = arith.mulf %33, %37 : vector<8x128xf32>
    %39 = arith.truncf %38 : vector<8x128xf32> to vector<8x128xbf16>
    %c0_18 = arith.constant 0 : index
    %c0_19 = arith.constant 0 : index
    %40 = vector.load %arg4[%c0_18, %c0_19] : memref<128x512xbf16, #tpu.memory_space<vmem>>, vector<128x512xbf16>
    %cst_20 = arith.constant dense<0.000000e+00> : vector<8x512xf32>
    %41 = tpu.matmul %39, %40, %cst_20 {dimension_numbers = #tpu.dot_dimension_numbers<[1], [0], [0], [1], [0, 0, 1, 1], [], []>} : vector<8x128xbf16>, vector<128x512xbf16>, vector<8x512xf32> -> vector<8x512xf32>
    %42 = vector.broadcast %3 : vector<1x512xf32> to vector<8x512xf32>
    %43 = arith.addf %42, %41 : vector<8x512xf32>
    %44 = arith.truncf %6 : vector<8x128xf32> to vector<8x128xbf16>
    %c0_21 = arith.constant 0 : index
    %c0_22 = arith.constant 0 : index
    %45 = vector.load %arg5[%c0_21, %c0_22] : memref<128x512xbf16, #tpu.memory_space<vmem>>, vector<128x512xbf16>
    %cst_23 = arith.constant dense<0.000000e+00> : vector<8x512xf32>
    %46 = tpu.matmul %44, %45, %cst_23 {dimension_numbers = #tpu.dot_dimension_numbers<[1], [0], [0], [1], [0, 0, 1, 1], [], []>} : vector<8x128xbf16>, vector<128x512xbf16>, vector<8x512xf32> -> vector<8x512xf32>
    %47 = arith.addf %43, %46 : vector<8x512xf32>
    %48 = vector.extract_strided_slice %47 {offsets = [0, 0], sizes = [8, 128], strides = [1, 1]} : vector<8x512xf32> to vector<8x128xf32>
    %49 = arith.negf %48 : vector<8x128xf32>
    %50 = math.exp %49 : vector<8x128xf32>
    %cst_24 = arith.constant 1.000000e+00 : f32
    %51 = vector.broadcast %cst_24 : f32 to vector<8x128xf32>
    %52 = arith.addf %51, %50 : vector<8x128xf32>
    %53 = arith.divf %51, %52 : vector<8x128xf32>
    %54 = vector.extract_strided_slice %47 {offsets = [0, 128], sizes = [8, 128], strides = [1, 1]} : vector<8x512xf32> to vector<8x128xf32>
    %55 = arith.negf %54 : vector<8x128xf32>
    %56 = math.exp %55 : vector<8x128xf32>
    %cst_25 = arith.constant 1.000000e+00 : f32
    %57 = vector.broadcast %cst_25 : f32 to vector<8x128xf32>
    %58 = arith.addf %57, %56 : vector<8x128xf32>
    %59 = arith.divf %57, %58 : vector<8x128xf32>
    %60 = vector.extract_strided_slice %47 {offsets = [0, 256], sizes = [8, 128], strides = [1, 1]} : vector<8x512xf32> to vector<8x128xf32>
    %61 = math.tanh %60 : vector<8x128xf32>
    %62 = vector.extract_strided_slice %47 {offsets = [0, 384], sizes = [8, 128], strides = [1, 1]} : vector<8x512xf32> to vector<8x128xf32>
    %63 = arith.negf %62 : vector<8x128xf32>
    %64 = math.exp %63 : vector<8x128xf32>
    %cst_26 = arith.constant 1.000000e+00 : f32
    %65 = vector.broadcast %cst_26 : f32 to vector<8x128xf32>
    %66 = arith.addf %65, %64 : vector<8x128xf32>
    %67 = arith.divf %65, %66 : vector<8x128xf32>
    %68 = arith.mulf %59, %7 : vector<8x128xf32>
    %69 = arith.mulf %53, %61 : vector<8x128xf32>
    %70 = arith.addf %68, %69 : vector<8x128xf32>
    %71 = math.tanh %70 : vector<8x128xf32>
    %72 = arith.mulf %67, %71 : vector<8x128xf32>
    %c0_27 = arith.constant 0 : index
    %c0_28 = arith.constant 0 : index
    %c0_29 = arith.constant 0 : index
    %73 = vector.load %arg11[%c0_27, %c0_28, %c0_29] : memref<8x8x128xf32, #tpu.memory_space<vmem>>, vector<1x8x128xf32>
    %74 = vector.shape_cast %73 : vector<1x8x128xf32> to vector<8x128xf32>
    %75 = vector.shape_cast %72 : vector<8x128xf32> to vector<1x8x128xf32>
    tpu.vector_store %arg11[%c0_27, %c0_28, %c0_29], %75 {strides = array<i32>} : memref<8x8x128xf32, #tpu.memory_space<vmem>>, vector<1x8x128xf32>,
    %c1 = arith.constant 1 : index
    %c0_30 = arith.constant 0 : index
    %c0_31 = arith.constant 0 : index
    %76 = vector.load %arg2[%c1, %c0_30, %c0_31] : memref<8x8x512xf32, #tpu.memory_space<vmem>>, vector<1x8x512xf32>
    %77 = vector.shape_cast %76 : vector<1x8x512xf32> to vector<8x512xf32>
    %78 = arith.truncf %38 : vector<8x128xf32> to vector<8x128xbf16>
    %c0_32 = arith.constant 0 : index
    %c0_33 = arith.constant 0 : index
    %79 = vector.load %arg3[%c0_32, %c0_33] : memref<128x512xbf16, #tpu.memory_space<vmem>>, vector<128x512xbf16>
    %cst_34 = arith.constant dense<0.000000e+00> : vector<8x512xf32>
    %80 = tpu.matmul %78, %79, %cst_34 {dimension_numbers = #tpu.dot_dimension_numbers<[1], [0], [0], [1], [0, 0, 1, 1], [], []>} : vector<8x128xbf16>, vector<128x512xbf16>, vector<8x512xf32> -> vector<8x512xf32>
    %81 = arith.addf %77, %80 : vector<8x512xf32>
    %82 = vector.extract_strided_slice %81 {offsets = [0, 0], sizes = [8, 128], strides = [1, 1]} : vector<8x512xf32> to vector<8x128xf32>
    %83 = arith.negf %82 : vector<8x128xf32>
    %84 = math.exp %83 : vector<8x128xf32>
    %cst_35 = arith.constant 1.000000e+00 : f32
    %85 = vector.broadcast %cst_35 : f32 to vector<8x128xf32>
    %86 = arith.addf %85, %84 : vector<8x128xf32>
    %87 = arith.divf %85, %86 : vector<8x128xf32>
    %88 = vector.extract_strided_slice %81 {offsets = [0, 128], sizes = [8, 128], strides = [1, 1]} : vector<8x512xf32> to vector<8x128xf32>
    %89 = arith.negf %88 : vector<8x128xf32>
    %90 = math.exp %89 : vector<8x128xf32>
    %cst_36 = arith.constant 1.000000e+00 : f32
    %91 = vector.broadcast %cst_36 : f32 to vector<8x128xf32>
    %92 = arith.addf %91, %90 : vector<8x128xf32>
    %93 = arith.divf %91, %92 : vector<8x128xf32>
    %94 = vector.extract_strided_slice %81 {offsets = [0, 256], sizes = [8, 128], strides = [1, 1]} : vector<8x512xf32> to vector<8x128xf32>
    %95 = math.tanh %94 : vector<8x128xf32>
    %96 = vector.extract_strided_slice %81 {offsets = [0, 384], sizes = [8, 128], strides = [1, 1]} : vector<8x512xf32> to vector<8x128xf32>
    %97 = arith.negf %96 : vector<8x128xf32>
    %98 = math.exp %97 : vector<8x128xf32>
    %cst_37 = arith.constant 1.000000e+00 : f32
    %99 = vector.broadcast %cst_37 : f32 to vector<8x128xf32>
    %100 = arith.addf %99, %98 : vector<8x128xf32>
    %101 = arith.divf %99, %100 : vector<8x128xf32>
    %102 = arith.mulf %93, %36 : vector<8x128xf32>
    %103 = arith.mulf %87, %95 : vector<8x128xf32>
    %104 = arith.addf %102, %103 : vector<8x128xf32>
    %105 = math.tanh %104 : vector<8x128xf32>
    %106 = arith.mulf %101, %105 : vector<8x128xf32>
    %107 = arith.truncf %106 : vector<8x128xf32> to vector<8x128xbf16>
    %c0_38 = arith.constant 0 : index
    %c0_39 = arith.constant 0 : index
    %108 = vector.load %arg4[%c0_38, %c0_39] : memref<128x512xbf16, #tpu.memory_space<vmem>>, vector<128x512xbf16>
    %cst_40 = arith.constant dense<0.000000e+00> : vector<8x512xf32>
    %109 = tpu.matmul %107, %108, %cst_40 {dimension_numbers = #tpu.dot_dimension_numbers<[1], [0], [0], [1], [0, 0, 1, 1], [], []>} : vector<8x128xbf16>, vector<128x512xbf16>, vector<8x512xf32> -> vector<8x512xf32>
    %110 = vector.broadcast %3 : vector<1x512xf32> to vector<8x512xf32>
    %111 = arith.addf %110, %109 : vector<8x512xf32>
    %112 = arith.truncf %72 : vector<8x128xf32> to vector<8x128xbf16>
    %c0_41 = arith.constant 0 : index
    %c0_42 = arith.constant 0 : index
    %113 = vector.load %arg5[%c0_41, %c0_42] : memref<128x512xbf16, #tpu.memory_space<vmem>>, vector<128x512xbf16>
    %cst_43 = arith.constant dense<0.000000e+00> : vector<8x512xf32>
    %114 = tpu.matmul %112, %113, %cst_43 {dimension_numbers = #tpu.dot_dimension_numbers<[1], [0], [0], [1], [0, 0, 1, 1], [], []>} : vector<8x128xbf16>, vector<128x512xbf16>, vector<8x512xf32> -> vector<8x512xf32>
    %115 = arith.addf %111, %114 : vector<8x512xf32>
    %116 = vector.extract_strided_slice %115 {offsets = [0, 0], sizes = [8, 128], strides = [1, 1]} : vector<8x512xf32> to vector<8x128xf32>
    %117 = arith.negf %116 : vector<8x128xf32>
    %118 = math.exp %117 : vector<8x128xf32>
    %cst_44 = arith.constant 1.000000e+00 : f32
    %119 = vector.broadcast %cst_44 : f32 to vector<8x128xf32>
    %120 = arith.addf %119, %118 : vector<8x128xf32>
    %121 = arith.divf %119, %120 : vector<8x128xf32>
    %122 = vector.extract_strided_slice %115 {offsets = [0, 128], sizes = [8, 128], strides = [1, 1]} : vector<8x512xf32> to vector<8x128xf32>
    %123 = arith.negf %122 : vector<8x128xf32>
    %124 = math.exp %123 : vector<8x128xf32>
    %cst_45 = arith.constant 1.000000e+00 : f32
    %125 = vector.broadcast %cst_45 : f32 to vector<8x128xf32>
    %126 = arith.addf %125, %124 : vector<8x128xf32>
    %127 = arith.divf %125, %126 : vector<8x128xf32>
    %128 = vector.extract_strided_slice %115 {offsets = [0, 256], sizes = [8, 128], strides = [1, 1]} : vector<8x512xf32> to vector<8x128xf32>
    %129 = math.tanh %128 : vector<8x128xf32>
    %130 = vector.extract_strided_slice %115 {offsets = [0, 384], sizes = [8, 128], strides = [1, 1]} : vector<8x512xf32> to vector<8x128xf32>
    %131 = arith.negf %130 : vector<8x128xf32>
    %132 = math.exp %131 : vector<8x128xf32>
    %cst_46 = arith.constant 1.000000e+00 : f32
    %133 = vector.broadcast %cst_46 : f32 to vector<8x128xf32>
    %134 = arith.addf %133, %132 : vector<8x128xf32>
    %135 = arith.divf %133, %134 : vector<8x128xf32>
    %136 = arith.mulf %127, %70 : vector<8x128xf32>
    %137 = arith.mulf %121, %129 : vector<8x128xf32>
    %138 = arith.addf %136, %137 : vector<8x128xf32>
    %139 = math.tanh %138 : vector<8x128xf32>
    %140 = arith.mulf %135, %139 : vector<8x128xf32>
    %c1_47 = arith.constant 1 : index
    %c0_48 = arith.constant 0 : index
    %c0_49 = arith.constant 0 : index
    %141 = vector.load %arg11[%c1_47, %c0_48, %c0_49] : memref<8x8x128xf32, #tpu.memory_space<vmem>>, vector<1x8x128xf32>
    %142 = vector.shape_cast %141 : vector<1x8x128xf32> to vector<8x128xf32>
    %143 = vector.shape_cast %140 : vector<8x128xf32> to vector<1x8x128xf32>
    tpu.vector_store %arg11[%c1_47, %c0_48, %c0_49], %143 {strides = array<i32>} : memref<8x8x128xf32, #tpu.memory_space<vmem>>, vector<1x8x128xf32>,
    %c2 = arith.constant 2 : index
    %c0_50 = arith.constant 0 : index
    %c0_51 = arith.constant 0 : index
    %144 = vector.load %arg2[%c2, %c0_50, %c0_51] : memref<8x8x512xf32, #tpu.memory_space<vmem>>, vector<1x8x512xf32>
    %145 = vector.shape_cast %144 : vector<1x8x512xf32> to vector<8x512xf32>
    %146 = arith.truncf %106 : vector<8x128xf32> to vector<8x128xbf16>
    %c0_52 = arith.constant 0 : index
    %c0_53 = arith.constant 0 : index
    %147 = vector.load %arg3[%c0_52, %c0_53] : memref<128x512xbf16, #tpu.memory_space<vmem>>, vector<128x512xbf16>
    %cst_54 = arith.constant dense<0.000000e+00> : vector<8x512xf32>
    %148 = tpu.matmul %146, %147, %cst_54 {dimension_numbers = #tpu.dot_dimension_numbers<[1], [0], [0], [1], [0, 0, 1, 1], [], []>} : vector<8x128xbf16>, vector<128x512xbf16>, vector<8x512xf32> -> vector<8x512xf32>
    %149 = arith.addf %145, %148 : vector<8x512xf32>
    %150 = vector.extract_strided_slice %149 {offsets = [0, 0], sizes = [8, 128], strides = [1, 1]} : vector<8x512xf32> to vector<8x128xf32>
    %151 = arith.negf %150 : vector<8x128xf32>
    %152 = math.exp %151 : vector<8x128xf32>
    %cst_55 = arith.constant 1.000000e+00 : f32
    %153 = vector.broadcast %cst_55 : f32 to vector<8x128xf32>
    %154 = arith.addf %153, %152 : vector<8x128xf32>
    %155 = arith.divf %153, %154 : vector<8x128xf32>
    %156 = vector.extract_strided_slice %149 {offsets = [0, 128], sizes = [8, 128], strides = [1, 1]} : vector<8x512xf32> to vector<8x128xf32>
    %157 = arith.negf %156 : vector<8x128xf32>
    %158 = math.exp %157 : vector<8x128xf32>
    %cst_56 = arith.constant 1.000000e+00 : f32
    %159 = vector.broadcast %cst_56 : f32 to vector<8x128xf32>
    %160 = arith.addf %159, %158 : vector<8x128xf32>
    %161 = arith.divf %159, %160 : vector<8x128xf32>
    %162 = vector.extract_strided_slice %149 {offsets = [0, 256], sizes = [8, 128], strides = [1, 1]} : vector<8x512xf32> to vector<8x128xf32>
    %163 = math.tanh %162 : vector<8x128xf32>
    %164 = vector.extract_strided_slice %149 {offsets = [0, 384], sizes = [8, 128], strides = [1, 1]} : vector<8x512xf32> to vector<8x128xf32>
    %165 = arith.negf %164 : vector<8x128xf32>
    %166 = math.exp %165 : vector<8x128xf32>
    %cst_57 = arith.constant 1.000000e+00 : f32
    %167 = vector.broadcast %cst_57 : f32 to vector<8x128xf32>
    %168 = arith.addf %167, %166 : vector<8x128xf32>
    %169 = arith.divf %167, %168 : vector<8x128xf32>
    %170 = arith.mulf %161, %104 : vector<8x128xf32>
    %171 = arith.mulf %155, %163 : vector<8x128xf32>
    %172 = arith.addf %170, %171 : vector<8x128xf32>
    %173 = math.tanh %172 : vector<8x128xf32>
    %174 = arith.mulf %169, %173 : vector<8x128xf32>
    %175 = arith.truncf %174 : vector<8x128xf32> to vector<8x128xbf16>
    %c0_58 = arith.constant 0 : index
    %c0_59 = arith.constant 0 : index
    %176 = vector.load %arg4[%c0_58, %c0_59] : memref<128x512xbf16, #tpu.memory_space<vmem>>, vector<128x512xbf16>
    %cst_60 = arith.constant dense<0.000000e+00> : vector<8x512xf32>
    %177 = tpu.matmul %175, %176, %cst_60 {dimension_numbers = #tpu.dot_dimension_numbers<[1], [0], [0], [1], [0, 0, 1, 1], [], []>} : vector<8x128xbf16>, vector<128x512xbf16>, vector<8x512xf32> -> vector<8x512xf32>
    %178 = vector.broadcast %3 : vector<1x512xf32> to vector<8x512xf32>
    %179 = arith.addf %178, %177 : vector<8x512xf32>
    %180 = arith.truncf %140 : vector<8x128xf32> to vector<8x128xbf16>
    %c0_61 = arith.constant 0 : index
    %c0_62 = arith.constant 0 : index
    %181 = vector.load %arg5[%c0_61, %c0_62] : memref<128x512xbf16, #tpu.memory_space<vmem>>, vector<128x512xbf16>
    %cst_63 = arith.constant dense<0.000000e+00> : vector<8x512xf32>
    %182 = tpu.matmul %180, %181, %cst_63 {dimension_numbers = #tpu.dot_dimension_numbers<[1], [0], [0], [1], [0, 0, 1, 1], [], []>} : vector<8x128xbf16>, vector<128x512xbf16>, vector<8x512xf32> -> vector<8x512xf32>
    %183 = arith.addf %179, %182 : vector<8x512xf32>
    %184 = vector.extract_strided_slice %183 {offsets = [0, 0], sizes = [8, 128], strides = [1, 1]} : vector<8x512xf32> to vector<8x128xf32>
    %185 = arith.negf %184 : vector<8x128xf32>
    %186 = math.exp %185 : vector<8x128xf32>
    %cst_64 = arith.constant 1.000000e+00 : f32
    %187 = vector.broadcast %cst_64 : f32 to vector<8x128xf32>
    %188 = arith.addf %187, %186 : vector<8x128xf32>
    %189 = arith.divf %187, %188 : vector<8x128xf32>
    %190 = vector.extract_strided_slice %183 {offsets = [0, 128], sizes = [8, 128], strides = [1, 1]} : vector<8x512xf32> to vector<8x128xf32>
    %191 = arith.negf %190 : vector<8x128xf32>
    %192 = math.exp %191 : vector<8x128xf32>
    %cst_65 = arith.constant 1.000000e+00 : f32
    %193 = vector.broadcast %cst_65 : f32 to vector<8x128xf32>
    %194 = arith.addf %193, %192 : vector<8x128xf32>
    %195 = arith.divf %193, %194 : vector<8x128xf32>
    %196 = vector.extract_strided_slice %183 {offsets = [0, 256], sizes = [8, 128], strides = [1, 1]} : vector<8x512xf32> to vector<8x128xf32>
    %197 = math.tanh %196 : vector<8x128xf32>
    %198 = vector.extract_strided_slice %183 {offsets = [0, 384], sizes = [8, 128], strides = [1, 1]} : vector<8x512xf32> to vector<8x128xf32>
    %199 = arith.negf %198 : vector<8x128xf32>
    %200 = math.exp %199 : vector<8x128xf32>
    %cst_66 = arith.constant 1.000000e+00 : f32
    %201 = vector.broadcast %cst_66 : f32 to vector<8x128xf32>
    %202 = arith.addf %201, %200 : vector<8x128xf32>
    %203 = arith.divf %201, %202 : vector<8x128xf32>
    %204 = arith.mulf %195, %138 : vector<8x128xf32>
    %205 = arith.mulf %189, %197 : vector<8x128xf32>
    %206 = arith.addf %204, %205 : vector<8x128xf32>
    %207 = math.tanh %206 : vector<8x128xf32>
    %208 = arith.mulf %203, %207 : vector<8x128xf32>
    %c2_67 = arith.constant 2 : index
    %c0_68 = arith.constant 0 : index
    %c0_69 = arith.constant 0 : index
    %209 = vector.load %arg11[%c2_67, %c0_68, %c0_69] : memref<8x8x128xf32, #tpu.memory_space<vmem>>, vector<1x8x128xf32>
    %210 = vector.shape_cast %209 : vector<1x8x128xf32> to vector<8x128xf32>
    %211 = vector.shape_cast %208 : vector<8x128xf32> to vector<1x8x128xf32>
    tpu.vector_store %arg11[%c2_67, %c0_68, %c0_69], %211 {strides = array<i32>} : memref<8x8x128xf32, #tpu.memory_space<vmem>>, vector<1x8x128xf32>,
    %c3 = arith.constant 3 : index
    %c0_70 = arith.constant 0 : index
    %c0_71 = arith.constant 0 : index
    %212 = vector.load %arg2[%c3, %c0_70, %c0_71] : memref<8x8x512xf32, #tpu.memory_space<vmem>>, vector<1x8x512xf32>
    %213 = vector.shape_cast %212 : vector<1x8x512xf32> to vector<8x512xf32>
    %214 = arith.truncf %174 : vector<8x128xf32> to vector<8x128xbf16>
    %c0_72 = arith.constant 0 : index
    %c0_73 = arith.constant 0 : index
    %215 = vector.load %arg3[%c0_72, %c0_73] : memref<128x512xbf16, #tpu.memory_space<vmem>>, vector<128x512xbf16>
    %cst_74 = arith.constant dense<0.000000e+00> : vector<8x512xf32>
    %216 = tpu.matmul %214, %215, %cst_74 {dimension_numbers = #tpu.dot_dimension_numbers<[1], [0], [0], [1], [0, 0, 1, 1], [], []>} : vector<8x128xbf16>, vector<128x512xbf16>, vector<8x512xf32> -> vector<8x512xf32>
    %217 = arith.addf %213, %216 : vector<8x512xf32>
    %218 = vector.extract_strided_slice %217 {offsets = [0, 0], sizes = [8, 128], strides = [1, 1]} : vector<8x512xf32> to vector<8x128xf32>
    %219 = arith.negf %218 : vector<8x128xf32>
    %220 = math.exp %219 : vector<8x128xf32>
    %cst_75 = arith.constant 1.000000e+00 : f32
    %221 = vector.broadcast %cst_75 : f32 to vector<8x128xf32>
    %222 = arith.addf %221, %220 : vector<8x128xf32>
    %223 = arith.divf %221, %222 : vector<8x128xf32>
    %224 = vector.extract_strided_slice %217 {offsets = [0, 128], sizes = [8, 128], strides = [1, 1]} : vector<8x512xf32> to vector<8x128xf32>
    %225 = arith.negf %224 : vector<8x128xf32>
    %226 = math.exp %225 : vector<8x128xf32>
    %cst_76 = arith.constant 1.000000e+00 : f32
    %227 = vector.broadcast %cst_76 : f32 to vector<8x128xf32>
    %228 = arith.addf %227, %226 : vector<8x128xf32>
    %229 = arith.divf %227, %228 : vector<8x128xf32>
    %230 = vector.extract_strided_slice %217 {offsets = [0, 256], sizes = [8, 128], strides = [1, 1]} : vector<8x512xf32> to vector<8x128xf32>
    %231 = math.tanh %230 : vector<8x128xf32>
    %232 = vector.extract_strided_slice %217 {offsets = [0, 384], sizes = [8, 128], strides = [1, 1]} : vector<8x512xf32> to vector<8x128xf32>
    %233 = arith.negf %232 : vector<8x128xf32>
    %234 = math.exp %233 : vector<8x128xf32>
    %cst_77 = arith.constant 1.000000e+00 : f32
    %235 = vector.broadcast %cst_77 : f32 to vector<8x128xf32>
    %236 = arith.addf %235, %234 : vector<8x128xf32>
    %237 = arith.divf %235, %236 : vector<8x128xf32>
    %238 = arith.mulf %229, %172 : vector<8x128xf32>
    %239 = arith.mulf %223, %231 : vector<8x128xf32>
    %240 = arith.addf %238, %239 : vector<8x128xf32>
    %241 = math.tanh %240 : vector<8x128xf32>
    %242 = arith.mulf %237, %241 : vector<8x128xf32>
    %243 = arith.truncf %242 : vector<8x128xf32> to vector<8x128xbf16>
    %c0_78 = arith.constant 0 : index
    %c0_79 = arith.constant 0 : index
    %244 = vector.load %arg4[%c0_78, %c0_79] : memref<128x512xbf16, #tpu.memory_space<vmem>>, vector<128x512xbf16>
    %cst_80 = arith.constant dense<0.000000e+00> : vector<8x512xf32>
    %245 = tpu.matmul %243, %244, %cst_80 {dimension_numbers = #tpu.dot_dimension_numbers<[1], [0], [0], [1], [0, 0, 1, 1], [], []>} : vector<8x128xbf16>, vector<128x512xbf16>, vector<8x512xf32> -> vector<8x512xf32>
    %246 = vector.broadcast %3 : vector<1x512xf32> to vector<8x512xf32>
    %247 = arith.addf %246, %245 : vector<8x512xf32>
    %248 = arith.truncf %208 : vector<8x128xf32> to vector<8x128xbf16>
    %c0_81 = arith.constant 0 : index
    %c0_82 = arith.constant 0 : index
    %249 = vector.load %arg5[%c0_81, %c0_82] : memref<128x512xbf16, #tpu.memory_space<vmem>>, vector<128x512xbf16>
    %cst_83 = arith.constant dense<0.000000e+00> : vector<8x512xf32>
    %250 = tpu.matmul %248, %249, %cst_83 {dimension_numbers = #tpu.dot_dimension_numbers<[1], [0], [0], [1], [0, 0, 1, 1], [], []>} : vector<8x128xbf16>, vector<128x512xbf16>, vector<8x512xf32> -> vector<8x512xf32>
    %251 = arith.addf %247, %250 : vector<8x512xf32>
    %252 = vector.extract_strided_slice %251 {offsets = [0, 0], sizes = [8, 128], strides = [1, 1]} : vector<8x512xf32> to vector<8x128xf32>
    %253 = arith.negf %252 : vector<8x128xf32>
    %254 = math.exp %253 : vector<8x128xf32>
    %cst_84 = arith.constant 1.000000e+00 : f32
    %255 = vector.broadcast %cst_84 : f32 to vector<8x128xf32>
    %256 = arith.addf %255, %254 : vector<8x128xf32>
    %257 = arith.divf %255, %256 : vector<8x128xf32>
    %258 = vector.extract_strided_slice %251 {offsets = [0, 128], sizes = [8, 128], strides = [1, 1]} : vector<8x512xf32> to vector<8x128xf32>
    %259 = arith.negf %258 : vector<8x128xf32>
    %260 = math.exp %259 : vector<8x128xf32>
    %cst_85 = arith.constant 1.000000e+00 : f32
    %261 = vector.broadcast %cst_85 : f32 to vector<8x128xf32>
    %262 = arith.addf %261, %260 : vector<8x128xf32>
    %263 = arith.divf %261, %262 : vector<8x128xf32>
    %264 = vector.extract_strided_slice %251 {offsets = [0, 256], sizes = [8, 128], strides = [1, 1]} : vector<8x512xf32> to vector<8x128xf32>
    %265 = math.tanh %264 : vector<8x128xf32>
    %266 = vector.extract_strided_slice %251 {offsets = [0, 384], sizes = [8, 128], strides = [1, 1]} : vector<8x512xf32> to vector<8x128xf32>
    %267 = arith.negf %266 : vector<8x128xf32>
    %268 = math.exp %267 : vector<8x128xf32>
    %cst_86 = arith.constant 1.000000e+00 : f32
    %269 = vector.broadcast %cst_86 : f32 to vector<8x128xf32>
    %270 = arith.addf %269, %268 : vector<8x128xf32>
    %271 = arith.divf %269, %270 : vector<8x128xf32>
    %272 = arith.mulf %263, %206 : vector<8x128xf32>
    %273 = arith.mulf %257, %265 : vector<8x128xf32>
    %274 = arith.addf %272, %273 : vector<8x128xf32>
    %275 = math.tanh %274 : vector<8x128xf32>
    %276 = arith.mulf %271, %275 : vector<8x128xf32>
    %c3_87 = arith.constant 3 : index
    %c0_88 = arith.constant 0 : index
    %c0_89 = arith.constant 0 : index
    %277 = vector.load %arg11[%c3_87, %c0_88, %c0_89] : memref<8x8x128xf32, #tpu.memory_space<vmem>>, vector<1x8x128xf32>
    %278 = vector.shape_cast %277 : vector<1x8x128xf32> to vector<8x128xf32>
    %279 = vector.shape_cast %276 : vector<8x128xf32> to vector<1x8x128xf32>
    tpu.vector_store %arg11[%c3_87, %c0_88, %c0_89], %279 {strides = array<i32>} : memref<8x8x128xf32, #tpu.memory_space<vmem>>, vector<1x8x128xf32>,
    %c4 = arith.constant 4 : index
    %c0_90 = arith.constant 0 : index
    %c0_91 = arith.constant 0 : index
    %280 = vector.load %arg2[%c4, %c0_90, %c0_91] : memref<8x8x512xf32, #tpu.memory_space<vmem>>, vector<1x8x512xf32>
    %281 = vector.shape_cast %280 : vector<1x8x512xf32> to vector<8x512xf32>
    %282 = arith.truncf %242 : vector<8x128xf32> to vector<8x128xbf16>
    %c0_92 = arith.constant 0 : index
    %c0_93 = arith.constant 0 : index
    %283 = vector.load %arg3[%c0_92, %c0_93] : memref<128x512xbf16, #tpu.memory_space<vmem>>, vector<128x512xbf16>
    %cst_94 = arith.constant dense<0.000000e+00> : vector<8x512xf32>
    %284 = tpu.matmul %282, %283, %cst_94 {dimension_numbers = #tpu.dot_dimension_numbers<[1], [0], [0], [1], [0, 0, 1, 1], [], []>} : vector<8x128xbf16>, vector<128x512xbf16>, vector<8x512xf32> -> vector<8x512xf32>
    %285 = arith.addf %281, %284 : vector<8x512xf32>
    %286 = vector.extract_strided_slice %285 {offsets = [0, 0], sizes = [8, 128], strides = [1, 1]} : vector<8x512xf32> to vector<8x128xf32>
    %287 = arith.negf %286 : vector<8x128xf32>
    %288 = math.exp %287 : vector<8x128xf32>
    %cst_95 = arith.constant 1.000000e+00 : f32
    %289 = vector.broadcast %cst_95 : f32 to vector<8x128xf32>
    %290 = arith.addf %289, %288 : vector<8x128xf32>
    %291 = arith.divf %289, %290 : vector<8x128xf32>
    %292 = vector.extract_strided_slice %285 {offsets = [0, 128], sizes = [8, 128], strides = [1, 1]} : vector<8x512xf32> to vector<8x128xf32>
    %293 = arith.negf %292 : vector<8x128xf32>
    %294 = math.exp %293 : vector<8x128xf32>
    %cst_96 = arith.constant 1.000000e+00 : f32
    %295 = vector.broadcast %cst_96 : f32 to vector<8x128xf32>
    %296 = arith.addf %295, %294 : vector<8x128xf32>
    %297 = arith.divf %295, %296 : vector<8x128xf32>
    %298 = vector.extract_strided_slice %285 {offsets = [0, 256], sizes = [8, 128], strides = [1, 1]} : vector<8x512xf32> to vector<8x128xf32>
    %299 = math.tanh %298 : vector<8x128xf32>
    %300 = vector.extract_strided_slice %285 {offsets = [0, 384], sizes = [8, 128], strides = [1, 1]} : vector<8x512xf32> to vector<8x128xf32>
    %301 = arith.negf %300 : vector<8x128xf32>
    %302 = math.exp %301 : vector<8x128xf32>
    %cst_97 = arith.constant 1.000000e+00 : f32
    %303 = vector.broadcast %cst_97 : f32 to vector<8x128xf32>
    %304 = arith.addf %303, %302 : vector<8x128xf32>
    %305 = arith.divf %303, %304 : vector<8x128xf32>
    %306 = arith.mulf %297, %240 : vector<8x128xf32>
    %307 = arith.mulf %291, %299 : vector<8x128xf32>
    %308 = arith.addf %306, %307 : vector<8x128xf32>
    %309 = math.tanh %308 : vector<8x128xf32>
    %310 = arith.mulf %305, %309 : vector<8x128xf32>
    %311 = arith.truncf %310 : vector<8x128xf32> to vector<8x128xbf16>
    %c0_98 = arith.constant 0 : index
    %c0_99 = arith.constant 0 : index
    %312 = vector.load %arg4[%c0_98, %c0_99] : memref<128x512xbf16, #tpu.memory_space<vmem>>, vector<128x512xbf16>
    %cst_100 = arith.constant dense<0.000000e+00> : vector<8x512xf32>
    %313 = tpu.matmul %311, %312, %cst_100 {dimension_numbers = #tpu.dot_dimension_numbers<[1], [0], [0], [1], [0, 0, 1, 1], [], []>} : vector<8x128xbf16>, vector<128x512xbf16>, vector<8x512xf32> -> vector<8x512xf32>
    %314 = vector.broadcast %3 : vector<1x512xf32> to vector<8x512xf32>
    %315 = arith.addf %314, %313 : vector<8x512xf32>
    %316 = arith.truncf %276 : vector<8x128xf32> to vector<8x128xbf16>
    %c0_101 = arith.constant 0 : index
    %c0_102 = arith.constant 0 : index
    %317 = vector.load %arg5[%c0_101, %c0_102] : memref<128x512xbf16, #tpu.memory_space<vmem>>, vector<128x512xbf16>
    %cst_103 = arith.constant dense<0.000000e+00> : vector<8x512xf32>
    %318 = tpu.matmul %316, %317, %cst_103 {dimension_numbers = #tpu.dot_dimension_numbers<[1], [0], [0], [1], [0, 0, 1, 1], [], []>} : vector<8x128xbf16>, vector<128x512xbf16>, vector<8x512xf32> -> vector<8x512xf32>
    %319 = arith.addf %315, %318 : vector<8x512xf32>
    %320 = vector.extract_strided_slice %319 {offsets = [0, 0], sizes = [8, 128], strides = [1, 1]} : vector<8x512xf32> to vector<8x128xf32>
    %321 = arith.negf %320 : vector<8x128xf32>
    %322 = math.exp %321 : vector<8x128xf32>
    %cst_104 = arith.constant 1.000000e+00 : f32
    %323 = vector.broadcast %cst_104 : f32 to vector<8x128xf32>
    %324 = arith.addf %323, %322 : vector<8x128xf32>
    %325 = arith.divf %323, %324 : vector<8x128xf32>
    %326 = vector.extract_strided_slice %319 {offsets = [0, 128], sizes = [8, 128], strides = [1, 1]} : vector<8x512xf32> to vector<8x128xf32>
    %327 = arith.negf %326 : vector<8x128xf32>
    %328 = math.exp %327 : vector<8x128xf32>
    %cst_105 = arith.constant 1.000000e+00 : f32
    %329 = vector.broadcast %cst_105 : f32 to vector<8x128xf32>
    %330 = arith.addf %329, %328 : vector<8x128xf32>
    %331 = arith.divf %329, %330 : vector<8x128xf32>
    %332 = vector.extract_strided_slice %319 {offsets = [0, 256], sizes = [8, 128], strides = [1, 1]} : vector<8x512xf32> to vector<8x128xf32>
    %333 = math.tanh %332 : vector<8x128xf32>
    %334 = vector.extract_strided_slice %319 {offsets = [0, 384], sizes = [8, 128], strides = [1, 1]} : vector<8x512xf32> to vector<8x128xf32>
    %335 = arith.negf %334 : vector<8x128xf32>
    %336 = math.exp %335 : vector<8x128xf32>
    %cst_106 = arith.constant 1.000000e+00 : f32
    %337 = vector.broadcast %cst_106 : f32 to vector<8x128xf32>
    %338 = arith.addf %337, %336 : vector<8x128xf32>
    %339 = arith.divf %337, %338 : vector<8x128xf32>
    %340 = arith.mulf %331, %274 : vector<8x128xf32>
    %341 = arith.mulf %325, %333 : vector<8x128xf32>
    %342 = arith.addf %340, %341 : vector<8x128xf32>
    %343 = math.tanh %342 : vector<8x128xf32>
    %344 = arith.mulf %339, %343 : vector<8x128xf32>
    %c4_107 = arith.constant 4 : index
    %c0_108 = arith.constant 0 : index
    %c0_109 = arith.constant 0 : index
    %345 = vector.load %arg11[%c4_107, %c0_108, %c0_109] : memref<8x8x128xf32, #tpu.memory_space<vmem>>, vector<1x8x128xf32>
    %346 = vector.shape_cast %345 : vector<1x8x128xf32> to vector<8x128xf32>
    %347 = vector.shape_cast %344 : vector<8x128xf32> to vector<1x8x128xf32>
    tpu.vector_store %arg11[%c4_107, %c0_108, %c0_109], %347 {strides = array<i32>} : memref<8x8x128xf32, #tpu.memory_space<vmem>>, vector<1x8x128xf32>,
    %c5 = arith.constant 5 : index
    %c0_110 = arith.constant 0 : index
    %c0_111 = arith.constant 0 : index
    %348 = vector.load %arg2[%c5, %c0_110, %c0_111] : memref<8x8x512xf32, #tpu.memory_space<vmem>>, vector<1x8x512xf32>
    %349 = vector.shape_cast %348 : vector<1x8x512xf32> to vector<8x512xf32>
    %350 = arith.truncf %310 : vector<8x128xf32> to vector<8x128xbf16>
    %c0_112 = arith.constant 0 : index
    %c0_113 = arith.constant 0 : index
    %351 = vector.load %arg3[%c0_112, %c0_113] : memref<128x512xbf16, #tpu.memory_space<vmem>>, vector<128x512xbf16>
    %cst_114 = arith.constant dense<0.000000e+00> : vector<8x512xf32>
    %352 = tpu.matmul %350, %351, %cst_114 {dimension_numbers = #tpu.dot_dimension_numbers<[1], [0], [0], [1], [0, 0, 1, 1], [], []>} : vector<8x128xbf16>, vector<128x512xbf16>, vector<8x512xf32> -> vector<8x512xf32>
    %353 = arith.addf %349, %352 : vector<8x512xf32>
    %354 = vector.extract_strided_slice %353 {offsets = [0, 0], sizes = [8, 128], strides = [1, 1]} : vector<8x512xf32> to vector<8x128xf32>
    %355 = arith.negf %354 : vector<8x128xf32>
    %356 = math.exp %355 : vector<8x128xf32>
    %cst_115 = arith.constant 1.000000e+00 : f32
    %357 = vector.broadcast %cst_115 : f32 to vector<8x128xf32>
    %358 = arith.addf %357, %356 : vector<8x128xf32>
    %359 = arith.divf %357, %358 : vector<8x128xf32>
    %360 = vector.extract_strided_slice %353 {offsets = [0, 128], sizes = [8, 128], strides = [1, 1]} : vector<8x512xf32> to vector<8x128xf32>
    %361 = arith.negf %360 : vector<8x128xf32>
    %362 = math.exp %361 : vector<8x128xf32>
    %cst_116 = arith.constant 1.000000e+00 : f32
    %363 = vector.broadcast %cst_116 : f32 to vector<8x128xf32>
    %364 = arith.addf %363, %362 : vector<8x128xf32>
    %365 = arith.divf %363, %364 : vector<8x128xf32>
    %366 = vector.extract_strided_slice %353 {offsets = [0, 256], sizes = [8, 128], strides = [1, 1]} : vector<8x512xf32> to vector<8x128xf32>
    %367 = math.tanh %366 : vector<8x128xf32>
    %368 = vector.extract_strided_slice %353 {offsets = [0, 384], sizes = [8, 128], strides = [1, 1]} : vector<8x512xf32> to vector<8x128xf32>
    %369 = arith.negf %368 : vector<8x128xf32>
    %370 = math.exp %369 : vector<8x128xf32>
    %cst_117 = arith.constant 1.000000e+00 : f32
    %371 = vector.broadcast %cst_117 : f32 to vector<8x128xf32>
    %372 = arith.addf %371, %370 : vector<8x128xf32>
    %373 = arith.divf %371, %372 : vector<8x128xf32>
    %374 = arith.mulf %365, %308 : vector<8x128xf32>
    %375 = arith.mulf %359, %367 : vector<8x128xf32>
    %376 = arith.addf %374, %375 : vector<8x128xf32>
    %377 = math.tanh %376 : vector<8x128xf32>
    %378 = arith.mulf %373, %377 : vector<8x128xf32>
    %379 = arith.truncf %378 : vector<8x128xf32> to vector<8x128xbf16>
    %c0_118 = arith.constant 0 : index
    %c0_119 = arith.constant 0 : index
    %380 = vector.load %arg4[%c0_118, %c0_119] : memref<128x512xbf16, #tpu.memory_space<vmem>>, vector<128x512xbf16>
    %cst_120 = arith.constant dense<0.000000e+00> : vector<8x512xf32>
    %381 = tpu.matmul %379, %380, %cst_120 {dimension_numbers = #tpu.dot_dimension_numbers<[1], [0], [0], [1], [0, 0, 1, 1], [], []>} : vector<8x128xbf16>, vector<128x512xbf16>, vector<8x512xf32> -> vector<8x512xf32>
    %382 = vector.broadcast %3 : vector<1x512xf32> to vector<8x512xf32>
    %383 = arith.addf %382, %381 : vector<8x512xf32>
    %384 = arith.truncf %344 : vector<8x128xf32> to vector<8x128xbf16>
    %c0_121 = arith.constant 0 : index
    %c0_122 = arith.constant 0 : index
    %385 = vector.load %arg5[%c0_121, %c0_122] : memref<128x512xbf16, #tpu.memory_space<vmem>>, vector<128x512xbf16>
    %cst_123 = arith.constant dense<0.000000e+00> : vector<8x512xf32>
    %386 = tpu.matmul %384, %385, %cst_123 {dimension_numbers = #tpu.dot_dimension_numbers<[1], [0], [0], [1], [0, 0, 1, 1], [], []>} : vector<8x128xbf16>, vector<128x512xbf16>, vector<8x512xf32> -> vector<8x512xf32>
    %387 = arith.addf %383, %386 : vector<8x512xf32>
    %388 = vector.extract_strided_slice %387 {offsets = [0, 0], sizes = [8, 128], strides = [1, 1]} : vector<8x512xf32> to vector<8x128xf32>
    %389 = arith.negf %388 : vector<8x128xf32>
    %390 = math.exp %389 : vector<8x128xf32>
    %cst_124 = arith.constant 1.000000e+00 : f32
    %391 = vector.broadcast %cst_124 : f32 to vector<8x128xf32>
    %392 = arith.addf %391, %390 : vector<8x128xf32>
    %393 = arith.divf %391, %392 : vector<8x128xf32>
    %394 = vector.extract_strided_slice %387 {offsets = [0, 128], sizes = [8, 128], strides = [1, 1]} : vector<8x512xf32> to vector<8x128xf32>
    %395 = arith.negf %394 : vector<8x128xf32>
    %396 = math.exp %395 : vector<8x128xf32>
    %cst_125 = arith.constant 1.000000e+00 : f32
    %397 = vector.broadcast %cst_125 : f32 to vector<8x128xf32>
    %398 = arith.addf %397, %396 : vector<8x128xf32>
    %399 = arith.divf %397, %398 : vector<8x128xf32>
    %400 = vector.extract_strided_slice %387 {offsets = [0, 256], sizes = [8, 128], strides = [1, 1]} : vector<8x512xf32> to vector<8x128xf32>
    %401 = math.tanh %400 : vector<8x128xf32>
    %402 = vector.extract_strided_slice %387 {offsets = [0, 384], sizes = [8, 128], strides = [1, 1]} : vector<8x512xf32> to vector<8x128xf32>
    %403 = arith.negf %402 : vector<8x128xf32>
    %404 = math.exp %403 : vector<8x128xf32>
    %cst_126 = arith.constant 1.000000e+00 : f32
    %405 = vector.broadcast %cst_126 : f32 to vector<8x128xf32>
    %406 = arith.addf %405, %404 : vector<8x128xf32>
    %407 = arith.divf %405, %406 : vector<8x128xf32>
    %408 = arith.mulf %399, %342 : vector<8x128xf32>
    %409 = arith.mulf %393, %401 : vector<8x128xf32>
    %410 = arith.addf %408, %409 : vector<8x128xf32>
    %411 = math.tanh %410 : vector<8x128xf32>
    %412 = arith.mulf %407, %411 : vector<8x128xf32>
    %c5_127 = arith.constant 5 : index
    %c0_128 = arith.constant 0 : index
    %c0_129 = arith.constant 0 : index
    %413 = vector.load %arg11[%c5_127, %c0_128, %c0_129] : memref<8x8x128xf32, #tpu.memory_space<vmem>>, vector<1x8x128xf32>
    %414 = vector.shape_cast %413 : vector<1x8x128xf32> to vector<8x128xf32>
    %415 = vector.shape_cast %412 : vector<8x128xf32> to vector<1x8x128xf32>
    tpu.vector_store %arg11[%c5_127, %c0_128, %c0_129], %415 {strides = array<i32>} : memref<8x8x128xf32, #tpu.memory_space<vmem>>, vector<1x8x128xf32>,
    %c6 = arith.constant 6 : index
    %c0_130 = arith.constant 0 : index
    %c0_131 = arith.constant 0 : index
    %416 = vector.load %arg2[%c6, %c0_130, %c0_131] : memref<8x8x512xf32, #tpu.memory_space<vmem>>, vector<1x8x512xf32>
    %417 = vector.shape_cast %416 : vector<1x8x512xf32> to vector<8x512xf32>
    %418 = arith.truncf %378 : vector<8x128xf32> to vector<8x128xbf16>
    %c0_132 = arith.constant 0 : index
    %c0_133 = arith.constant 0 : index
    %419 = vector.load %arg3[%c0_132, %c0_133] : memref<128x512xbf16, #tpu.memory_space<vmem>>, vector<128x512xbf16>
    %cst_134 = arith.constant dense<0.000000e+00> : vector<8x512xf32>
    %420 = tpu.matmul %418, %419, %cst_134 {dimension_numbers = #tpu.dot_dimension_numbers<[1], [0], [0], [1], [0, 0, 1, 1], [], []>} : vector<8x128xbf16>, vector<128x512xbf16>, vector<8x512xf32> -> vector<8x512xf32>
    %421 = arith.addf %417, %420 : vector<8x512xf32>
    %422 = vector.extract_strided_slice %421 {offsets = [0, 0], sizes = [8, 128], strides = [1, 1]} : vector<8x512xf32> to vector<8x128xf32>
    %423 = arith.negf %422 : vector<8x128xf32>
    %424 = math.exp %423 : vector<8x128xf32>
    %cst_135 = arith.constant 1.000000e+00 : f32
    %425 = vector.broadcast %cst_135 : f32 to vector<8x128xf32>
    %426 = arith.addf %425, %424 : vector<8x128xf32>
    %427 = arith.divf %425, %426 : vector<8x128xf32>
    %428 = vector.extract_strided_slice %421 {offsets = [0, 128], sizes = [8, 128], strides = [1, 1]} : vector<8x512xf32> to vector<8x128xf32>
    %429 = arith.negf %428 : vector<8x128xf32>
    %430 = math.exp %429 : vector<8x128xf32>
    %cst_136 = arith.constant 1.000000e+00 : f32
    %431 = vector.broadcast %cst_136 : f32 to vector<8x128xf32>
    %432 = arith.addf %431, %430 : vector<8x128xf32>
    %433 = arith.divf %431, %432 : vector<8x128xf32>
    %434 = vector.extract_strided_slice %421 {offsets = [0, 256], sizes = [8, 128], strides = [1, 1]} : vector<8x512xf32> to vector<8x128xf32>
    %435 = math.tanh %434 : vector<8x128xf32>
    %436 = vector.extract_strided_slice %421 {offsets = [0, 384], sizes = [8, 128], strides = [1, 1]} : vector<8x512xf32> to vector<8x128xf32>
    %437 = arith.negf %436 : vector<8x128xf32>
    %438 = math.exp %437 : vector<8x128xf32>
    %cst_137 = arith.constant 1.000000e+00 : f32
    %439 = vector.broadcast %cst_137 : f32 to vector<8x128xf32>
    %440 = arith.addf %439, %438 : vector<8x128xf32>
    %441 = arith.divf %439, %440 : vector<8x128xf32>
    %442 = arith.mulf %433, %376 : vector<8x128xf32>
    %443 = arith.mulf %427, %435 : vector<8x128xf32>
    %444 = arith.addf %442, %443 : vector<8x128xf32>
    %445 = math.tanh %444 : vector<8x128xf32>
    %446 = arith.mulf %441, %445 : vector<8x128xf32>
    %447 = arith.truncf %446 : vector<8x128xf32> to vector<8x128xbf16>
    %c0_138 = arith.constant 0 : index
    %c0_139 = arith.constant 0 : index
    %448 = vector.load %arg4[%c0_138, %c0_139] : memref<128x512xbf16, #tpu.memory_space<vmem>>, vector<128x512xbf16>
    %cst_140 = arith.constant dense<0.000000e+00> : vector<8x512xf32>
    %449 = tpu.matmul %447, %448, %cst_140 {dimension_numbers = #tpu.dot_dimension_numbers<[1], [0], [0], [1], [0, 0, 1, 1], [], []>} : vector<8x128xbf16>, vector<128x512xbf16>, vector<8x512xf32> -> vector<8x512xf32>
    %450 = vector.broadcast %3 : vector<1x512xf32> to vector<8x512xf32>
    %451 = arith.addf %450, %449 : vector<8x512xf32>
    %452 = arith.truncf %412 : vector<8x128xf32> to vector<8x128xbf16>
    %c0_141 = arith.constant 0 : index
    %c0_142 = arith.constant 0 : index
    %453 = vector.load %arg5[%c0_141, %c0_142] : memref<128x512xbf16, #tpu.memory_space<vmem>>, vector<128x512xbf16>
    %cst_143 = arith.constant dense<0.000000e+00> : vector<8x512xf32>
    %454 = tpu.matmul %452, %453, %cst_143 {dimension_numbers = #tpu.dot_dimension_numbers<[1], [0], [0], [1], [0, 0, 1, 1], [], []>} : vector<8x128xbf16>, vector<128x512xbf16>, vector<8x512xf32> -> vector<8x512xf32>
    %455 = arith.addf %451, %454 : vector<8x512xf32>
    %456 = vector.extract_strided_slice %455 {offsets = [0, 0], sizes = [8, 128], strides = [1, 1]} : vector<8x512xf32> to vector<8x128xf32>
    %457 = arith.negf %456 : vector<8x128xf32>
    %458 = math.exp %457 : vector<8x128xf32>
    %cst_144 = arith.constant 1.000000e+00 : f32
    %459 = vector.broadcast %cst_144 : f32 to vector<8x128xf32>
    %460 = arith.addf %459, %458 : vector<8x128xf32>
    %461 = arith.divf %459, %460 : vector<8x128xf32>
    %462 = vector.extract_strided_slice %455 {offsets = [0, 128], sizes = [8, 128], strides = [1, 1]} : vector<8x512xf32> to vector<8x128xf32>
    %463 = arith.negf %462 : vector<8x128xf32>
    %464 = math.exp %463 : vector<8x128xf32>
    %cst_145 = arith.constant 1.000000e+00 : f32
    %465 = vector.broadcast %cst_145 : f32 to vector<8x128xf32>
    %466 = arith.addf %465, %464 : vector<8x128xf32>
    %467 = arith.divf %465, %466 : vector<8x128xf32>
    %468 = vector.extract_strided_slice %455 {offsets = [0, 256], sizes = [8, 128], strides = [1, 1]} : vector<8x512xf32> to vector<8x128xf32>
    %469 = math.tanh %468 : vector<8x128xf32>
    %470 = vector.extract_strided_slice %455 {offsets = [0, 384], sizes = [8, 128], strides = [1, 1]} : vector<8x512xf32> to vector<8x128xf32>
    %471 = arith.negf %470 : vector<8x128xf32>
    %472 = math.exp %471 : vector<8x128xf32>
    %cst_146 = arith.constant 1.000000e+00 : f32
    %473 = vector.broadcast %cst_146 : f32 to vector<8x128xf32>
    %474 = arith.addf %473, %472 : vector<8x128xf32>
    %475 = arith.divf %473, %474 : vector<8x128xf32>
    %476 = arith.mulf %467, %410 : vector<8x128xf32>
    %477 = arith.mulf %461, %469 : vector<8x128xf32>
    %478 = arith.addf %476, %477 : vector<8x128xf32>
    %479 = math.tanh %478 : vector<8x128xf32>
    %480 = arith.mulf %475, %479 : vector<8x128xf32>
    %c6_147 = arith.constant 6 : index
    %c0_148 = arith.constant 0 : index
    %c0_149 = arith.constant 0 : index
    %481 = vector.load %arg11[%c6_147, %c0_148, %c0_149] : memref<8x8x128xf32, #tpu.memory_space<vmem>>, vector<1x8x128xf32>
    %482 = vector.shape_cast %481 : vector<1x8x128xf32> to vector<8x128xf32>
    %483 = vector.shape_cast %480 : vector<8x128xf32> to vector<1x8x128xf32>
    tpu.vector_store %arg11[%c6_147, %c0_148, %c0_149], %483 {strides = array<i32>} : memref<8x8x128xf32, #tpu.memory_space<vmem>>, vector<1x8x128xf32>,
    %c7 = arith.constant 7 : index
    %c0_150 = arith.constant 0 : index
    %c0_151 = arith.constant 0 : index
    %484 = vector.load %arg2[%c7, %c0_150, %c0_151] : memref<8x8x512xf32, #tpu.memory_space<vmem>>, vector<1x8x512xf32>
    %485 = vector.shape_cast %484 : vector<1x8x512xf32> to vector<8x512xf32>
    %486 = arith.truncf %446 : vector<8x128xf32> to vector<8x128xbf16>
    %c0_152 = arith.constant 0 : index
    %c0_153 = arith.constant 0 : index
    %487 = vector.load %arg3[%c0_152, %c0_153] : memref<128x512xbf16, #tpu.memory_space<vmem>>, vector<128x512xbf16>
    %cst_154 = arith.constant dense<0.000000e+00> : vector<8x512xf32>
    %488 = tpu.matmul %486, %487, %cst_154 {dimension_numbers = #tpu.dot_dimension_numbers<[1], [0], [0], [1], [0, 0, 1, 1], [], []>} : vector<8x128xbf16>, vector<128x512xbf16>, vector<8x512xf32> -> vector<8x512xf32>
    %489 = arith.addf %485, %488 : vector<8x512xf32>
    %490 = vector.extract_strided_slice %489 {offsets = [0, 0], sizes = [8, 128], strides = [1, 1]} : vector<8x512xf32> to vector<8x128xf32>
    %491 = arith.negf %490 : vector<8x128xf32>
    %492 = math.exp %491 : vector<8x128xf32>
    %cst_155 = arith.constant 1.000000e+00 : f32
    %493 = vector.broadcast %cst_155 : f32 to vector<8x128xf32>
    %494 = arith.addf %493, %492 : vector<8x128xf32>
    %495 = arith.divf %493, %494 : vector<8x128xf32>
    %496 = vector.extract_strided_slice %489 {offsets = [0, 128], sizes = [8, 128], strides = [1, 1]} : vector<8x512xf32> to vector<8x128xf32>
    %497 = arith.negf %496 : vector<8x128xf32>
    %498 = math.exp %497 : vector<8x128xf32>
    %cst_156 = arith.constant 1.000000e+00 : f32
    %499 = vector.broadcast %cst_156 : f32 to vector<8x128xf32>
    %500 = arith.addf %499, %498 : vector<8x128xf32>
    %501 = arith.divf %499, %500 : vector<8x128xf32>
    %502 = vector.extract_strided_slice %489 {offsets = [0, 256], sizes = [8, 128], strides = [1, 1]} : vector<8x512xf32> to vector<8x128xf32>
    %503 = math.tanh %502 : vector<8x128xf32>
    %504 = vector.extract_strided_slice %489 {offsets = [0, 384], sizes = [8, 128], strides = [1, 1]} : vector<8x512xf32> to vector<8x128xf32>
    %505 = arith.negf %504 : vector<8x128xf32>
    %506 = math.exp %505 : vector<8x128xf32>
    %cst_157 = arith.constant 1.000000e+00 : f32
    %507 = vector.broadcast %cst_157 : f32 to vector<8x128xf32>
    %508 = arith.addf %507, %506 : vector<8x128xf32>
    %509 = arith.divf %507, %508 : vector<8x128xf32>
    %510 = arith.mulf %501, %444 : vector<8x128xf32>
    %511 = arith.mulf %495, %503 : vector<8x128xf32>
    %512 = arith.addf %510, %511 : vector<8x128xf32>
    %513 = math.tanh %512 : vector<8x128xf32>
    %514 = arith.mulf %509, %513 : vector<8x128xf32>
    %515 = arith.truncf %514 : vector<8x128xf32> to vector<8x128xbf16>
    %c0_158 = arith.constant 0 : index
    %c0_159 = arith.constant 0 : index
    %516 = vector.load %arg4[%c0_158, %c0_159] : memref<128x512xbf16, #tpu.memory_space<vmem>>, vector<128x512xbf16>
    %cst_160 = arith.constant dense<0.000000e+00> : vector<8x512xf32>
    %517 = tpu.matmul %515, %516, %cst_160 {dimension_numbers = #tpu.dot_dimension_numbers<[1], [0], [0], [1], [0, 0, 1, 1], [], []>} : vector<8x128xbf16>, vector<128x512xbf16>, vector<8x512xf32> -> vector<8x512xf32>
    %518 = vector.broadcast %3 : vector<1x512xf32> to vector<8x512xf32>
    %519 = arith.addf %518, %517 : vector<8x512xf32>
    %520 = arith.truncf %480 : vector<8x128xf32> to vector<8x128xbf16>
    %c0_161 = arith.constant 0 : index
    %c0_162 = arith.constant 0 : index
    %521 = vector.load %arg5[%c0_161, %c0_162] : memref<128x512xbf16, #tpu.memory_space<vmem>>, vector<128x512xbf16>
    %cst_163 = arith.constant dense<0.000000e+00> : vector<8x512xf32>
    %522 = tpu.matmul %520, %521, %cst_163 {dimension_numbers = #tpu.dot_dimension_numbers<[1], [0], [0], [1], [0, 0, 1, 1], [], []>} : vector<8x128xbf16>, vector<128x512xbf16>, vector<8x512xf32> -> vector<8x512xf32>
    %523 = arith.addf %519, %522 : vector<8x512xf32>
    %524 = vector.extract_strided_slice %523 {offsets = [0, 0], sizes = [8, 128], strides = [1, 1]} : vector<8x512xf32> to vector<8x128xf32>
    %525 = arith.negf %524 : vector<8x128xf32>
    %526 = math.exp %525 : vector<8x128xf32>
    %cst_164 = arith.constant 1.000000e+00 : f32
    %527 = vector.broadcast %cst_164 : f32 to vector<8x128xf32>
    %528 = arith.addf %527, %526 : vector<8x128xf32>
    %529 = arith.divf %527, %528 : vector<8x128xf32>
    %530 = vector.extract_strided_slice %523 {offsets = [0, 128], sizes = [8, 128], strides = [1, 1]} : vector<8x512xf32> to vector<8x128xf32>
    %531 = arith.negf %530 : vector<8x128xf32>
    %532 = math.exp %531 : vector<8x128xf32>
    %cst_165 = arith.constant 1.000000e+00 : f32
    %533 = vector.broadcast %cst_165 : f32 to vector<8x128xf32>
    %534 = arith.addf %533, %532 : vector<8x128xf32>
    %535 = arith.divf %533, %534 : vector<8x128xf32>
    %536 = vector.extract_strided_slice %523 {offsets = [0, 256], sizes = [8, 128], strides = [1, 1]} : vector<8x512xf32> to vector<8x128xf32>
    %537 = math.tanh %536 : vector<8x128xf32>
    %538 = vector.extract_strided_slice %523 {offsets = [0, 384], sizes = [8, 128], strides = [1, 1]} : vector<8x512xf32> to vector<8x128xf32>
    %539 = arith.negf %538 : vector<8x128xf32>
    %540 = math.exp %539 : vector<8x128xf32>
    %cst_166 = arith.constant 1.000000e+00 : f32
    %541 = vector.broadcast %cst_166 : f32 to vector<8x128xf32>
    %542 = arith.addf %541, %540 : vector<8x128xf32>
    %543 = arith.divf %541, %542 : vector<8x128xf32>
    %544 = arith.mulf %535, %478 : vector<8x128xf32>
    %545 = arith.mulf %529, %537 : vector<8x128xf32>
    %546 = arith.addf %544, %545 : vector<8x128xf32>
    %547 = math.tanh %546 : vector<8x128xf32>
    %548 = arith.mulf %543, %547 : vector<8x128xf32>
    %c7_167 = arith.constant 7 : index
    %c0_168 = arith.constant 0 : index
    %c0_169 = arith.constant 0 : index
    %549 = vector.load %arg11[%c7_167, %c0_168, %c0_169] : memref<8x8x128xf32, #tpu.memory_space<vmem>>, vector<1x8x128xf32>
    %550 = vector.shape_cast %549 : vector<1x8x128xf32> to vector<8x128xf32>
    %551 = vector.shape_cast %548 : vector<8x128xf32> to vector<1x8x128xf32>
    tpu.vector_store %arg11[%c7_167, %c0_168, %c0_169], %551 {strides = array<i32>} : memref<8x8x128xf32, #tpu.memory_space<vmem>>, vector<1x8x128xf32>,
    %c0_170 = arith.constant 0 : index
    %c0_171 = arith.constant 0 : index
    %552 = vector.load %arg16[%c0_170, %c0_171] : memref<8x128xf32, #tpu.memory_space<vmem>>, vector<8x128xf32>
    tpu.vector_store %arg16[%c0_170, %c0_171], %514 {strides = array<i32>} : memref<8x128xf32, #tpu.memory_space<vmem>>, vector<8x128xf32>,
    %c0_172 = arith.constant 0 : index
    %c0_173 = arith.constant 0 : index
    %553 = vector.load %arg17[%c0_172, %c0_173] : memref<8x128xf32, #tpu.memory_space<vmem>>, vector<8x128xf32>
    tpu.vector_store %arg17[%c0_172, %c0_173], %512 {strides = array<i32>} : memref<8x128xf32, #tpu.memory_space<vmem>>, vector<8x128xf32>,
    %c0_174 = arith.constant 0 : index
    %c0_175 = arith.constant 0 : index
    %554 = vector.load %arg18[%c0_174, %c0_175] : memref<8x128xf32, #tpu.memory_space<vmem>>, vector<8x128xf32>
    tpu.vector_store %arg18[%c0_174, %c0_175], %548 {strides = array<i32>} : memref<8x128xf32, #tpu.memory_space<vmem>>, vector<8x128xf32>,
    %c0_176 = arith.constant 0 : index
    %c0_177 = arith.constant 0 : index
    %555 = vector.load %arg19[%c0_176, %c0_177] : memref<8x128xf32, #tpu.memory_space<vmem>>, vector<8x128xf32>
    tpu.vector_store %arg19[%c0_176, %c0_177], %546 {strides = array<i32>} : memref<8x128xf32, #tpu.memory_space<vmem>>, vector<8x128xf32>,
    %c0_i32_178 = arith.constant 0 : i32
    %556 = arith.cmpi eq, %arg1, %c0_i32_178 : i32
    %557 = arith.extui %556 : i1 to i32
    %c0_i32_179 = arith.constant 0 : i32
    %558 = arith.cmpi ne, %557, %c0_i32_179 : i32
    scf.if %558 {
      %c0_180 = arith.constant 0 : index
      %c0_181 = arith.constant 0 : index
      %559 = vector.load %arg12[%c0_180, %c0_181] : memref<8x128xf32, #tpu.memory_space<vmem>>, vector<8x128xf32>
      tpu.vector_store %arg12[%c0_180, %c0_181], %514 {strides = array<i32>} : memref<8x128xf32, #tpu.memory_space<vmem>>, vector<8x128xf32>,
      %c0_182 = arith.constant 0 : index
      %c0_183 = arith.constant 0 : index
      %560 = vector.load %arg13[%c0_182, %c0_183] : memref<8x128xf32, #tpu.memory_space<vmem>>, vector<8x128xf32>
      tpu.vector_store %arg13[%c0_182, %c0_183], %512 {strides = array<i32>} : memref<8x128xf32, #tpu.memory_space<vmem>>, vector<8x128xf32>,
      %c0_184 = arith.constant 0 : index
      %c0_185 = arith.constant 0 : index
      %561 = vector.load %arg14[%c0_184, %c0_185] : memref<8x128xf32, #tpu.memory_space<vmem>>, vector<8x128xf32>
      tpu.vector_store %arg14[%c0_184, %c0_185], %548 {strides = array<i32>} : memref<8x128xf32, #tpu.memory_space<vmem>>, vector<8x128xf32>,
      %c0_186 = arith.constant 0 : index
      %c0_187 = arith.constant 0 : index
      %562 = vector.load %arg15[%c0_186, %c0_187] : memref<8x128xf32, #tpu.memory_space<vmem>>, vector<8x128xf32>
      tpu.vector_store %arg15[%c0_186, %c0_187], %546 {strides = array<i32>} : memref<8x128xf32, #tpu.memory_space<vmem>>, vector<8x128xf32>,
    } else {
    }
    return
  }
  func.func @transform_0(%arg0: i32, %arg1: i32) -> (i32, i32, i32) {
    %c0_i32 = arith.constant 0 : i32
    %c0_i32_0 = arith.constant 0 : i32
    return %arg1, %arg0, %c0_i32 : i32, i32, i32
  }
  func.func @transform_1(%arg0: i32, %arg1: i32) -> (i32, i32) {
    %c0_i32 = arith.constant 0 : i32
    %c0_i32_0 = arith.constant 0 : i32
    %c0_i32_1 = arith.constant 0 : i32
    return %c0_i32, %c0_i32_0 : i32, i32
  }
  func.func @transform_2(%arg0: i32, %arg1: i32) -> (i32, i32) {
    %c0_i32 = arith.constant 0 : i32
    %c0_i32_0 = arith.constant 0 : i32
    %c0_i32_1 = arith.constant 0 : i32
    return %c0_i32, %c0_i32_0 : i32, i32
  }
  func.func @transform_3(%arg0: i32, %arg1: i32) -> (i32, i32) {
    %c0_i32 = arith.constant 0 : i32
    %c0_i32_0 = arith.constant 0 : i32
    %c0_i32_1 = arith.constant 0 : i32
    return %c0_i32, %c0_i32_0 : i32, i32
  }
  func.func @transform_4(%arg0: i32, %arg1: i32) -> (i32, i32) {
    %c0_i32 = arith.constant 0 : i32
    %c0_i32_0 = arith.constant 0 : i32
    %c0_i32_1 = arith.constant 0 : i32
    return %c0_i32, %c0_i32_0 : i32, i32
  }
  func.func @transform_5(%arg0: i32, %arg1: i32) -> (i32, i32) {
    %c0_i32 = arith.constant 0 : i32
    %c0_i32_0 = arith.constant 0 : i32
    return %arg0, %c0_i32 : i32, i32
  }
  func.func @transform_6(%arg0: i32, %arg1: i32) -> (i32, i32) {
    %c0_i32 = arith.constant 0 : i32
    %c0_i32_0 = arith.constant 0 : i32
    return %arg0, %c0_i32 : i32, i32
  }
  func.func @transform_7(%arg0: i32, %arg1: i32) -> (i32, i32) {
    %c0_i32 = arith.constant 0 : i32
    %c0_i32_0 = arith.constant 0 : i32
    return %arg0, %c0_i32 : i32, i32
  }
  func.func @transform_8(%arg0: i32, %arg1: i32) -> (i32, i32) {
    %c0_i32 = arith.constant 0 : i32
    %c0_i32_0 = arith.constant 0 : i32
    return %arg0, %c0_i32 : i32, i32
  }
  func.func @transform_9(%arg0: i32, %arg1: i32) -> (i32, i32, i32) {
    %c0_i32 = arith.constant 0 : i32
    %c0_i32_0 = arith.constant 0 : i32
    return %arg1, %arg0, %c0_i32 : i32, i32, i32
  }
  func.func @transform_10(%arg0: i32, %arg1: i32) -> (i32, i32) {
    %c0_i32 = arith.constant 0 : i32
    %c0_i32_0 = arith.constant 0 : i32
    return %arg0, %c0_i32 : i32, i32
  }
  func.func @transform_11(%arg0: i32, %arg1: i32) -> (i32, i32) {
    %c0_i32 = arith.constant 0 : i32
    %c0_i32_0 = arith.constant 0 : i32
    return %arg0, %c0_i32 : i32, i32
  }
  func.func @transform_12(%arg0: i32, %arg1: i32) -> (i32, i32) {
    %c0_i32 = arith.constant 0 : i32
    %c0_i32_0 = arith.constant 0 : i32
    return %arg0, %c0_i32 : i32, i32
  }
  func.func @transform_13(%arg0: i32, %arg1: i32) -> (i32, i32) {
    %c0_i32 = arith.constant 0 : i32
    %c0_i32_0 = arith.constant 0 : i32
    return %arg0, %c0_i32 : i32, i32
  }
}

</mosaic_0001>

<llo_original>
// kernel: language_model_forward.5
$region0: #{language_model_forward.5}
  #allocation0 [shape = 'u32[]', space=smem, size = 0x4, offset = 0x4, fixed_abs, tag = 'smem constant byte address 0x4 - core index']
  #allocation1 [shape = 'u32[144,128]{1,0:T(1,128)}', space=vmem, size = 0x12000, scoped, tag = 'internal scratch']
  #allocation2 [shape = 'f32[64,128]{1,0:T(8,128)}', space=vmem, size = 0x8000, scoped, tag = 'scratch operand']
  %s0 = inlined_call_operand.vmem [shape: f32[64,128], index: 0, kind: input, shape index: {}]
  %s1 = inlined_call_operand.vmem [shape: bf16[128,128], index: 1, kind: input, shape index: {}]
  %s2 = inlined_call_operand.vmem [shape: f32[1,128], index: 2, kind: input, shape index: {}]
  %s3 = inlined_call_operand.vmem [shape: f32[64,128], index: 3, kind: output, shape index: {}]
  %s4 = sld [smem:[#allocation0]]
  $region30: #{language_model_forward.5} parent=0
    _
  %s6 = ssub.s32 1, %s4
  %s7 = scalar_select 0, %s6, %s4
  // Predicated region
  $region2: #{language_model_forward.5} parent=0 // pred_check
    _
  $region3: #{language_model_forward.5} parent=0 // pred_check_branch
    %9 = sbr.rel (0) target = $region5
  $region4: #{language_model_forward.5} parent=0 // pred_region
    _
  $region5: #{language_model_forward.5} parent=0 // pred_fallthru
    _
  // Predicated region
  $region6: #{language_model_forward.5} parent=0 // pred_check
    _
  $region7: #{language_model_forward.5} parent=0 // pred_check_branch
    %11 = sbr.rel (0) target = $region9
  $region8: #{language_model_forward.5} parent=0 // pred_region
    _
  $region9: #{language_model_forward.5} parent=0 // pred_fallthru
    _
  // Predicated region
  $region10: #{language_model_forward.5} parent=0 // pred_check
    _
  $region11: #{language_model_forward.5} parent=0 // pred_check_branch
    %13 = sbr.rel (0) target = $region13
  $region12: #{language_model_forward.5} parent=0 // pred_region
    _
  $region13: #{language_model_forward.5} parent=0 // pred_fallthru
    _
  %p15 = scmp.eq.s32.totalorder 0, 0
  // Predicated region
  $region14: #{language_model_forward.5} parent=0 // pred_check
    %p16 = pneg %p15
  $region15: #{language_model_forward.5} parent=0 // pred_check_branch
    %18 = sbr.rel (%p16) target = $region17
  $region16: #{language_model_forward.5} parent=0 // pred_region
    %19 = vst [vmem:[#allocation2] sm:$0xff] 0.0
    %20 = vst [vmem:[#allocation2 + $0x8] sm:$0xff] 0.0
    %21 = vst [vmem:[#allocation2 + $0x10] sm:$0xff] 0.0
    %22 = vst [vmem:[#allocation2 + $0x18] sm:$0xff] 0.0
    %23 = vst [vmem:[#allocation2 + $0x20] sm:$0xff] 0.0
    %24 = vst [vmem:[#allocation2 + $0x28] sm:$0xff] 0.0
    %25 = vst [vmem:[#allocation2 + $0x30] sm:$0xff] 0.0
    %26 = vst [vmem:[#allocation2 + $0x38] sm:$0xff] 0.0
  $region17: #{language_model_forward.5} parent=0 // pred_fallthru
    _
  %v27 = vld [vmem:[#allocation2] sm:$0xff]
  %v28 = vld [vmem:[#allocation2 + $0x8] sm:$0xff]
  %v29 = vld [vmem:[#allocation2 + $0x10] sm:$0xff]
  %v30 = vld [vmem:[#allocation2 + $0x18] sm:$0xff]
  %v31 = vld [vmem:[#allocation2 + $0x20] sm:$0xff]
  %v32 = vld [vmem:[#allocation2 + $0x28] sm:$0xff]
  %v33 = vld [vmem:[#allocation2 + $0x30] sm:$0xff]
  %v34 = vld [vmem:[#allocation2 + $0x38] sm:$0xff]
  %v35 = vld [vmem:[%s0] sm:$0xff]
  %v36 = vld [vmem:[%s0 + $0x8] sm:$0xff]
  %v37 = vld [vmem:[%s0 + $0x10] sm:$0xff]
  %v38 = vld [vmem:[%s0 + $0x18] sm:$0xff]
  %v39 = vld [vmem:[%s0 + $0x20] sm:$0xff]
  %v40 = vld [vmem:[%s0 + $0x28] sm:$0xff]
  %v41 = vld [vmem:[%s0 + $0x30] sm:$0xff]
  %v42 = vld [vmem:[%s0 + $0x38] sm:$0xff]
  %v43 = vpack.c.bf16 %v36, %v35
  %v44 = vpack.c.bf16 %v38, %v37
  %v45 = vpack.c.bf16 %v40, %v39
  %v46 = vpack.c.bf16 %v42, %v41
  %v47 = vld [vmem:[%s1] sm:$0xf]
  %v48 = vld [vmem:[%s1 + $0x4] sm:$0xf]
  %v49 = vld [vmem:[%s1 + $0x8] sm:$0xf]
  %v50 = vld [vmem:[%s1 + $0xc] sm:$0xf]
  %v51 = vld [vmem:[%s1 + $0x10] sm:$0xf]
  %v52 = vld [vmem:[%s1 + $0x14] sm:$0xf]
  %v53 = vld [vmem:[%s1 + $0x18] sm:$0xf]
  %v54 = vld [vmem:[%s1 + $0x1c] sm:$0xf]
  %v55 = vld [vmem:[%s1 + $0x20] sm:$0xf]
  %v56 = vld [vmem:[%s1 + $0x24] sm:$0xf]
  %v57 = vld [vmem:[%s1 + $0x28] sm:$0xf]
  %v58 = vld [vmem:[%s1 + $0x2c] sm:$0xf]
  %v59 = vld [vmem:[%s1 + $0x30] sm:$0xf]
  %v60 = vld [vmem:[%s1 + $0x34] sm:$0xf]
  %v61 = vld [vmem:[%s1 + $0x38] sm:$0xf]
  %v62 = vld [vmem:[%s1 + $0x3c] sm:$0xf]
  %v79 = vunpack.c.l.b16 %v47
  %v80 = vunpack.c.l.b16 %v48
  %v81 = vunpack.c.l.b16 %v49
  %v82 = vunpack.c.l.b16 %v50
  %v83 = vunpack.c.l.b16 %v51
  %v84 = vunpack.c.l.b16 %v52
  %v85 = vunpack.c.l.b16 %v53
  %v86 = vunpack.c.l.b16 %v54
  %v87 = vunpack.c.l.b16 %v55
  %v88 = vunpack.c.l.b16 %v56
  %v89 = vunpack.c.l.b16 %v57
  %v90 = vunpack.c.l.b16 %v58
  %v91 = vunpack.c.l.b16 %v59
  %v92 = vunpack.c.l.b16 %v60
  %v93 = vunpack.c.l.b16 %v61
  %v94 = vunpack.c.l.b16 %v62
  %v95 = vpack.c.b16 %v80, %v79
  %v96 = vpack.c.b16 %v82, %v81
  %v97 = vpack.c.b16 %v84, %v83
  %v98 = vpack.c.b16 %v86, %v85
  %v99 = vpack.c.b16 %v88, %v87
  %v100 = vpack.c.b16 %v90, %v89
  %v101 = vpack.c.b16 %v92, %v91
  %v102 = vpack.c.b16 %v94, %v93
  %111 = vmatprep.subr.bf16.mxu0 0
  %112 = vmatpush1.bf16.msra.mxu0 %v95
  %113 = vmatprep.subr.bf16.mxu0 0
  %114 = vmatpush1.bf16.msra.mxu0 %v96
  %115 = vmatprep.subr.bf16.mxu0 0
  %116 = vmatpush1.bf16.msra.mxu0 %v97
  %117 = vmatprep.subr.bf16.mxu0 0
  %118 = vmatpush1.bf16.msra.mxu0 %v98
  %119 = vmatprep.subr.bf16.mxu0 0
  %120 = vmatpush1.bf16.msra.mxu0 %v99
  %121 = vmatprep.subr.bf16.mxu0 0
  %122 = vmatpush1.bf16.msra.mxu0 %v100
  %123 = vmatprep.subr.bf16.mxu0 0
  %124 = vmatpush1.bf16.msra.mxu0 %v101
  %125 = vmatprep.subr.bf16.mxu0 0
  %126 = vmatpush1.bf16.msra.mxu0 %v102
  %127 = vmatprep.subr.bf16.mxu0 0
  %128 = vmatpush1.bf16.msra.mxu0 0
  %129 = vmatprep.subr.bf16.mxu0 0
  %130 = vmatpush1.bf16.msra.mxu0 0
  %131 = vmatprep.subr.bf16.mxu0 0
  %132 = vmatpush1.bf16.msra.mxu0 0
  %133 = vmatprep.subr.bf16.mxu0 0
  %134 = vmatpush1.bf16.msra.mxu0 0
  %135 = vmatprep.subr.bf16.mxu0 0
  %136 = vmatpush1.bf16.msra.mxu0 0
  %137 = vmatprep.subr.bf16.mxu0 0
  %138 = vmatpush1.bf16.msra.mxu0 0
  %139 = vmatprep.subr.bf16.mxu0 0
  %140 = vmatpush1.bf16.msra.mxu0 0
  %141 = vmatprep.subr.bf16.mxu0 0
  %142 = vmatpush1.bf16.msra.mxu0 0
  %143 = vmatprep.mubr.bf16.mxu0 0
  %144 = vmatmul.mubr.bf16.gmra.mrb[0].mxu0 %v43
  %v145 = vpop.f32.mrb[0].mxu0
  %v146 = vadd.f32 0.0, %v145
  %v147 = vpop.f32.mrb[0].mxu0
  %v148 = vpop.f32.mrb[0].mxu0
  %v149 = vadd.f32 0.0, %v148
  %v150 = vpop.f32.mrb[0].mxu0
  %151 = vmatprep.mubr.bf16.mxu0 0
  %152 = vmatmul.mubr.bf16.gmra.mrb[0].mxu0 %v44
  %v153 = vpop.f32.mrb[0].mxu0
  %v154 = vadd.f32 0.0, %v153
  %v155 = vpop.f32.mrb[0].mxu0
  %v156 = vpop.f32.mrb[0].mxu0
  %v157 = vadd.f32 0.0, %v156
  %v158 = vpop.f32.mrb[0].mxu0
  %159 = vmatprep.mubr.bf16.mxu0 0
  %160 = vmatmul.mubr.bf16.gmra.mrb[0].mxu0 %v45
  %v161 = vpop.f32.mrb[0].mxu0
  %v162 = vadd.f32 0.0, %v161
  %v163 = vpop.f32.mrb[0].mxu0
  %v164 = vpop.f32.mrb[0].mxu0
  %v165 = vadd.f32 0.0, %v164
  %v166 = vpop.f32.mrb[0].mxu0
  %167 = vmatprep.mubr.bf16.mxu0 0
  %168 = vmatmul.mubr.bf16.gmra.mrb[0].mxu0 %v46
  %v169 = vpop.f32.mrb[0].mxu0
  %v170 = vadd.f32 0.0, %v169
  %v171 = vpop.f32.mrb[0].mxu0
  %v172 = vpop.f32.mrb[0].mxu0
  %v173 = vadd.f32 0.0, %v172
  %v174 = vpop.f32.mrb[0].mxu0
  %175 = vdwg.mxu0
  %v176 = vadd.f32 %v27, %v146
  %v177 = vadd.f32 %v28, %v149
  %v178 = vadd.f32 %v29, %v154
  %v179 = vadd.f32 %v30, %v157
  %v180 = vadd.f32 %v31, %v162
  %v181 = vadd.f32 %v32, %v165
  %v182 = vadd.f32 %v33, %v170
  %v183 = vadd.f32 %v34, %v173
  %184 = vst [vmem:[#allocation2] sm:$0xff] %v176
  %185 = vst [vmem:[#allocation2 + $0x8] sm:$0xff] %v177
  %186 = vst [vmem:[#allocation2 + $0x10] sm:$0xff] %v178
  %187 = vst [vmem:[#allocation2 + $0x18] sm:$0xff] %v179
  %188 = vst [vmem:[#allocation2 + $0x20] sm:$0xff] %v180
  %189 = vst [vmem:[#allocation2 + $0x28] sm:$0xff] %v181
  %190 = vst [vmem:[#allocation2 + $0x30] sm:$0xff] %v182
  %191 = vst [vmem:[#allocation2 + $0x38] sm:$0xff] %v183
  // Predicated region
  $region18: #{language_model_forward.5} parent=0 // pred_check
    %p192 = pneg %p15
  $region19: #{language_model_forward.5} parent=0 // pred_check_branch
    %194 = sbr.rel (%p192) target = $region21
  $region20: #{language_model_forward.5} parent=0 // pred_region
    %v195 = vld [vmem:[#allocation2] sm:$0xff]
    %v196 = vld [vmem:[#allocation2 + $0x8] sm:$0xff]
    %v197 = vld [vmem:[#allocation2 + $0x10] sm:$0xff]
    %v198 = vld [vmem:[#allocation2 + $0x18] sm:$0xff]
    %v199 = vld [vmem:[#allocation2 + $0x20] sm:$0xff]
    %v200 = vld [vmem:[#allocation2 + $0x28] sm:$0xff]
    %v201 = vld [vmem:[#allocation2 + $0x30] sm:$0xff]
    %v202 = vld [vmem:[#allocation2 + $0x38] sm:$0xff]
    %v203 = vld [vmem:[%s2] sm:$0x1]
    %v205 = vlaneseq
    %v206 = vshrl.u32 %v205, 7
    %v207 = vsub.s32 0, %v206
    %v208 = vrot.slane %v203, %v207
    %v210 = vadd.f32 %v195, %v208
    %v211 = vadd.f32 %v196, %v208
    %v212 = vadd.f32 %v197, %v208
    %v213 = vadd.f32 %v198, %v208
    %v214 = vadd.f32 %v199, %v208
    %v215 = vadd.f32 %v200, %v208
    %v216 = vadd.f32 %v201, %v208
    %v217 = vadd.f32 %v202, %v208
    %218 = vst [vmem:[%s3] sm:$0xff] %v210
    %219 = vst [vmem:[%s3 + $0x8] sm:$0xff] %v211
    %220 = vst [vmem:[%s3 + $0x10] sm:$0xff] %v212
    %221 = vst [vmem:[%s3 + $0x18] sm:$0xff] %v213
    %222 = vst [vmem:[%s3 + $0x20] sm:$0xff] %v214
    %223 = vst [vmem:[%s3 + $0x28] sm:$0xff] %v215
    %224 = vst [vmem:[%s3 + $0x30] sm:$0xff] %v216
    %225 = vst [vmem:[%s3 + $0x38] sm:$0xff] %v217
  $region21: #{language_model_forward.5} parent=0 // pred_fallthru
    _
  // Predicated region
  $region22: #{language_model_forward.5} parent=0 // pred_check
    _
  $region23: #{language_model_forward.5} parent=0 // pred_check_branch
    %227 = sbr.rel (0) target = $region25
  $region24: #{language_model_forward.5} parent=0 // pred_region
    _
  $region25: #{language_model_forward.5} parent=0 // pred_fallthru
    _
  // Predicated region
  $region26: #{language_model_forward.5} parent=0 // pred_check
    _
  $region27: #{language_model_forward.5} parent=0 // pred_check_branch
    %229 = sbr.rel (0) target = $region29
  $region28: #{language_model_forward.5} parent=0 // pred_region
    _
  $region29: #{language_model_forward.5} parent=0 // pred_fallthru
    _

// kernel: language_model_forward.3
$region0: #{language_model_forward.3}
  #allocation0 [shape = 'u32[]', space=smem, size = 0x4, offset = 0x4, fixed_abs, tag = 'smem constant byte address 0x4 - core index']
  #allocation1 [shape = 'u32[144,128]{1,0:T(1,128)}', space=vmem, size = 0x12000, scoped, tag = 'internal scratch']
  #allocation2 [shape = 'f32[64,512]{1,0:T(8,128)}', space=vmem, size = 0x20000, scoped, tag = 'scratch operand']
  %s0 = inlined_call_operand.vmem [shape: f32[64,128], index: 0, kind: input, shape index: {}]
  %s1 = inlined_call_operand.vmem [shape: bf16[128,512], index: 1, kind: input, shape index: {}]
  %s2 = inlined_call_operand.vmem [shape: f32[1,512], index: 2, kind: input, shape index: {}]
  %s3 = inlined_call_operand.vmem [shape: f32[64,512], index: 3, kind: output, shape index: {}]
  %s4 = sld [smem:[#allocation0]]
  $region30: #{language_model_forward.3} parent=0
    _
  %s6 = ssub.s32 1, %s4
  %s7 = scalar_select 0, %s6, %s4
  // Predicated region
  $region2: #{language_model_forward.3} parent=0 // pred_check
    _
  $region3: #{language_model_forward.3} parent=0 // pred_check_branch
    %9 = sbr.rel (0) target = $region5
  $region4: #{language_model_forward.3} parent=0 // pred_region
    _
  $region5: #{language_model_forward.3} parent=0 // pred_fallthru
    _
  // Predicated region
  $region6: #{language_model_forward.3} parent=0 // pred_check
    _
  $region7: #{language_model_forward.3} parent=0 // pred_check_branch
    %11 = sbr.rel (0) target = $region9
  $region8: #{language_model_forward.3} parent=0 // pred_region
    _
  $region9: #{language_model_forward.3} parent=0 // pred_fallthru
    _
  // Predicated region
  $region10: #{language_model_forward.3} parent=0 // pred_check
    _
  $region11: #{language_model_forward.3} parent=0 // pred_check_branch
    %13 = sbr.rel (0) target = $region13
  $region12: #{language_model_forward.3} parent=0 // pred_region
    _
  $region13: #{language_model_forward.3} parent=0 // pred_fallthru
    _
  %p15 = scmp.eq.s32.totalorder 0, 0
  // Predicated region
  $region14: #{language_model_forward.3} parent=0 // pred_check
    %p16 = pneg %p15
  $region15: #{language_model_forward.3} parent=0 // pred_check_branch
    %18 = sbr.rel (%p16) target = $region17
  $region16: #{language_model_forward.3} parent=0 // pred_region
    %19 = vst [vmem:[#allocation2] sm:$0xff] 0.0
    %20 = vst [vmem:[#allocation2 + $0x8] sm:$0xff] 0.0
    %21 = vst [vmem:[#allocation2 + $0x10] sm:$0xff] 0.0
    %22 = vst [vmem:[#allocation2 + $0x18] sm:$0xff] 0.0
    %23 = vst [vmem:[#allocation2 + $0x20] sm:$0xff] 0.0
    %24 = vst [vmem:[#allocation2 + $0x28] sm:$0xff] 0.0
    %25 = vst [vmem:[#allocation2 + $0x30] sm:$0xff] 0.0
    %26 = vst [vmem:[#allocation2 + $0x38] sm:$0xff] 0.0
    %27 = vst [vmem:[#allocation2 + $0x40] sm:$0xff] 0.0
    %28 = vst [vmem:[#allocation2 + $0x48] sm:$0xff] 0.0
    %29 = vst [vmem:[#allocation2 + $0x50] sm:$0xff] 0.0
    %30 = vst [vmem:[#allocation2 + $0x58] sm:$0xff] 0.0
    %31 = vst [vmem:[#allocation2 + $0x60] sm:$0xff] 0.0
    %32 = vst [vmem:[#allocation2 + $0x68] sm:$0xff] 0.0
    %33 = vst [vmem:[#allocation2 + $0x70] sm:$0xff] 0.0
    %34 = vst [vmem:[#allocation2 + $0x78] sm:$0xff] 0.0
    %35 = vst [vmem:[#allocation2 + $0x80] sm:$0xff] 0.0
    %36 = vst [vmem:[#allocation2 + $0x88] sm:$0xff] 0.0
    %37 = vst [vmem:[#allocation2 + $0x90] sm:$0xff] 0.0
    %38 = vst [vmem:[#allocation2 + $0x98] sm:$0xff] 0.0
    %39 = vst [vmem:[#allocation2 + $0xa0] sm:$0xff] 0.0
    %40 = vst [vmem:[#allocation2 + $0xa8] sm:$0xff] 0.0
    %41 = vst [vmem:[#allocation2 + $0xb0] sm:$0xff] 0.0
    %42 = vst [vmem:[#allocation2 + $0xb8] sm:$0xff] 0.0
    %43 = vst [vmem:[#allocation2 + $0xc0] sm:$0xff] 0.0
    %44 = vst [vmem:[#allocation2 + $0xc8] sm:$0xff] 0.0
    %45 = vst [vmem:[#allocation2 + $0xd0] sm:$0xff] 0.0
    %46 = vst [vmem:[#allocation2 + $0xd8] sm:$0xff] 0.0
    %47 = vst [vmem:[#allocation2 + $0xe0] sm:$0xff] 0.0
    %48 = vst [vmem:[#allocation2 + $0xe8] sm:$0xff] 0.0
    %49 = vst [vmem:[#allocation2 + $0xf0] sm:$0xff] 0.0
    %50 = vst [vmem:[#allocation2 + $0xf8] sm:$0xff] 0.0
  $region17: #{language_model_forward.3} parent=0 // pred_fallthru
    _
  %v51 = vld [vmem:[#allocation2] sm:$0xff]
  %v52 = vld [vmem:[#allocation2 + $0x8] sm:$0xff]
  %v53 = vld [vmem:[#allocation2 + $0x10] sm:$0xff]
  %v54 = vld [vmem:[#allocation2 + $0x18] sm:$0xff]
  %v55 = vld [vmem:[#allocation2 + $0x20] sm:$0xff]
  %v56 = vld [vmem:[#allocation2 + $0x28] sm:$0xff]
  %v57 = vld [vmem:[#allocation2 + $0x30] sm:$0xff]
  %v58 = vld [vmem:[#allocation2 + $0x38] sm:$0xff]
  %v59 = vld [vmem:[#allocation2 + $0x40] sm:$0xff]
  %v60 = vld [vmem:[#allocation2 + $0x48] sm:$0xff]
  %v61 = vld [vmem:[#allocation2 + $0x50] sm:$0xff]
  %v62 = vld [vmem:[#allocation2 + $0x58] sm:$0xff]
  %v63 = vld [vmem:[#allocation2 + $0x60] sm:$0xff]
  %v64 = vld [vmem:[#allocation2 + $0x68] sm:$0xff]
  %v65 = vld [vmem:[#allocation2 + $0x70] sm:$0xff]
  %v66 = vld [vmem:[#allocation2 + $0x78] sm:$0xff]
  %v67 = vld [vmem:[#allocation2 + $0x80] sm:$0xff]
  %v68 = vld [vmem:[#allocation2 + $0x88] sm:$0xff]
  %v69 = vld [vmem:[#allocation2 + $0x90] sm:$0xff]
  %v70 = vld [vmem:[#allocation2 + $0x98] sm:$0xff]
  %v71 = vld [vmem:[#allocation2 + $0xa0] sm:$0xff]
  %v72 = vld [vmem:[#allocation2 + $0xa8] sm:$0xff]
  %v73 = vld [vmem:[#allocation2 + $0xb0] sm:$0xff]
  %v74 = vld [vmem:[#allocation2 + $0xb8] sm:$0xff]
  %v75 = vld [vmem:[#allocation2 + $0xc0] sm:$0xff]
  %v76 = vld [vmem:[#allocation2 + $0xc8] sm:$0xff]
  %v77 = vld [vmem:[#allocation2 + $0xd0] sm:$0xff]
  %v78 = vld [vmem:[#allocation2 + $0xd8] sm:$0xff]
  %v79 = vld [vmem:[#allocation2 + $0xe0] sm:$0xff]
  %v80 = vld [vmem:[#allocation2 + $0xe8] sm:$0xff]
  %v81 = vld [vmem:[#allocation2 + $0xf0] sm:$0xff]
  %v82 = vld [vmem:[#allocation2 + $0xf8] sm:$0xff]
  %v83 = vld [vmem:[%s0] sm:$0xff]
  %v84 = vld [vmem:[%s0 + $0x8] sm:$0xff]
  %v85 = vld [vmem:[%s0 + $0x10] sm:$0xff]
  %v86 = vld [vmem:[%s0 + $0x18] sm:$0xff]
  %v87 = vld [vmem:[%s0 + $0x20] sm:$0xff]
  %v88 = vld [vmem:[%s0 + $0x28] sm:$0xff]
  %v89 = vld [vmem:[%s0 + $0x30] sm:$0xff]
  %v90 = vld [vmem:[%s0 + $0x38] sm:$0xff]
  %v91 = vpack.c.bf16 %v84, %v83
  %v92 = vpack.c.bf16 %v86, %v85
  %v93 = vpack.c.bf16 %v88, %v87
  %v94 = vpack.c.bf16 %v90, %v89
  %v95 = vld [vmem:[%s1] sm:$0xff]
  %v96 = vld [vmem:[%s1 + $0x8] sm:$0xff]
  %v97 = vld [vmem:[%s1 + $0x10] sm:$0xff]
  %v98 = vld [vmem:[%s1 + $0x18] sm:$0xff]
  %v99 = vld [vmem:[%s1 + $0x20] sm:$0xff]
  %v100 = vld [vmem:[%s1 + $0x28] sm:$0xff]
  %v101 = vld [vmem:[%s1 + $0x30] sm:$0xff]
  %v102 = vld [vmem:[%s1 + $0x38] sm:$0xff]
  %v103 = vld [vmem:[%s1 + $0x40] sm:$0xff]
  %v104 = vld [vmem:[%s1 + $0x48] sm:$0xff]
  %v105 = vld [vmem:[%s1 + $0x50] sm:$0xff]
  %v106 = vld [vmem:[%s1 + $0x58] sm:$0xff]
  %v107 = vld [vmem:[%s1 + $0x60] sm:$0xff]
  %v108 = vld [vmem:[%s1 + $0x68] sm:$0xff]
  %v109 = vld [vmem:[%s1 + $0x70] sm:$0xff]
  %v110 = vld [vmem:[%s1 + $0x78] sm:$0xff]
  %v111 = vld [vmem:[%s1 + $0x80] sm:$0xff]
  %v112 = vld [vmem:[%s1 + $0x88] sm:$0xff]
  %v113 = vld [vmem:[%s1 + $0x90] sm:$0xff]
  %v114 = vld [vmem:[%s1 + $0x98] sm:$0xff]
  %v115 = vld [vmem:[%s1 + $0xa0] sm:$0xff]
  %v116 = vld [vmem:[%s1 + $0xa8] sm:$0xff]
  %v117 = vld [vmem:[%s1 + $0xb0] sm:$0xff]
  %v118 = vld [vmem:[%s1 + $0xb8] sm:$0xff]
  %v119 = vld [vmem:[%s1 + $0xc0] sm:$0xff]
  %v120 = vld [vmem:[%s1 + $0xc8] sm:$0xff]
  %v121 = vld [vmem:[%s1 + $0xd0] sm:$0xff]
  %v122 = vld [vmem:[%s1 + $0xd8] sm:$0xff]
  %v123 = vld [vmem:[%s1 + $0xe0] sm:$0xff]
  %v124 = vld [vmem:[%s1 + $0xe8] sm:$0xff]
  %v125 = vld [vmem:[%s1 + $0xf0] sm:$0xff]
  %v126 = vld [vmem:[%s1 + $0xf8] sm:$0xff]
  %v159 = vunpack.c.l.b16 %v95
  %v160 = vunpack.c.h.b16 %v95
  %v161 = vunpack.c.l.b16 %v96
  %v162 = vunpack.c.h.b16 %v96
  %v163 = vunpack.c.l.b16 %v97
  %v164 = vunpack.c.h.b16 %v97
  %v165 = vunpack.c.l.b16 %v98
  %v166 = vunpack.c.h.b16 %v98
  %v167 = vunpack.c.l.b16 %v99
  %v168 = vunpack.c.h.b16 %v99
  %v169 = vunpack.c.l.b16 %v100
  %v170 = vunpack.c.h.b16 %v100
  %v171 = vunpack.c.l.b16 %v101
  %v172 = vunpack.c.h.b16 %v101
  %v173 = vunpack.c.l.b16 %v102
  %v174 = vunpack.c.h.b16 %v102
  %v175 = vunpack.c.l.b16 %v103
  %v176 = vunpack.c.h.b16 %v103
  %v177 = vunpack.c.l.b16 %v104
  %v178 = vunpack.c.h.b16 %v104
  %v179 = vunpack.c.l.b16 %v105
  %v180 = vunpack.c.h.b16 %v105
  %v181 = vunpack.c.l.b16 %v106
  %v182 = vunpack.c.h.b16 %v106
  %v183 = vunpack.c.l.b16 %v107
  %v184 = vunpack.c.h.b16 %v107
  %v185 = vunpack.c.l.b16 %v108
  %v186 = vunpack.c.h.b16 %v108
  %v187 = vunpack.c.l.b16 %v109
  %v188 = vunpack.c.h.b16 %v109
  %v189 = vunpack.c.l.b16 %v110
  %v190 = vunpack.c.h.b16 %v110
  %v191 = vunpack.c.l.b16 %v111
  %v192 = vunpack.c.h.b16 %v111
  %v193 = vunpack.c.l.b16 %v112
  %v194 = vunpack.c.h.b16 %v112
  %v195 = vunpack.c.l.b16 %v113
  %v196 = vunpack.c.h.b16 %v113
  %v197 = vunpack.c.l.b16 %v114
  %v198 = vunpack.c.h.b16 %v114
  %v199 = vunpack.c.l.b16 %v115
  %v200 = vunpack.c.h.b16 %v115
  %v201 = vunpack.c.l.b16 %v116
  %v202 = vunpack.c.h.b16 %v116
  %v203 = vunpack.c.l.b16 %v117
  %v204 = vunpack.c.h.b16 %v117
  %v205 = vunpack.c.l.b16 %v118
  %v206 = vunpack.c.h.b16 %v118
  %v207 = vunpack.c.l.b16 %v119
  %v208 = vunpack.c.h.b16 %v119
  %v209 = vunpack.c.l.b16 %v120
  %v210 = vunpack.c.h.b16 %v120
  %v211 = vunpack.c.l.b16 %v121
  %v212 = vunpack.c.h.b16 %v121
  %v213 = vunpack.c.l.b16 %v122
  %v214 = vunpack.c.h.b16 %v122
  %v215 = vunpack.c.l.b16 %v123
  %v216 = vunpack.c.h.b16 %v123
  %v217 = vunpack.c.l.b16 %v124
  %v218 = vunpack.c.h.b16 %v124
  %v219 = vunpack.c.l.b16 %v125
  %v220 = vunpack.c.h.b16 %v125
  %v221 = vunpack.c.l.b16 %v126
  %v222 = vunpack.c.h.b16 %v126
  %v223 = vpack.c.b16 %v163, %v159
  %v224 = vpack.c.b16 %v164, %v160
  %v225 = vpack.c.b16 %v165, %v161
  %v226 = vpack.c.b16 %v166, %v162
  %v227 = vpack.c.b16 %v171, %v167
  %v228 = vpack.c.b16 %v172, %v168
  %v229 = vpack.c.b16 %v173, %v169
  %v230 = vpack.c.b16 %v174, %v170
  %v231 = vpack.c.b16 %v179, %v175
  %v232 = vpack.c.b16 %v180, %v176
  %v233 = vpack.c.b16 %v181, %v177
  %v234 = vpack.c.b16 %v182, %v178
  %v235 = vpack.c.b16 %v187, %v183
  %v236 = vpack.c.b16 %v188, %v184
  %v237 = vpack.c.b16 %v189, %v185
  %v238 = vpack.c.b16 %v190, %v186
  %v239 = vpack.c.b16 %v195, %v191
  %v240 = vpack.c.b16 %v196, %v192
  %v241 = vpack.c.b16 %v197, %v193
  %v242 = vpack.c.b16 %v198, %v194
  %v243 = vpack.c.b16 %v203, %v199
  %v244 = vpack.c.b16 %v204, %v200
  %v245 = vpack.c.b16 %v205, %v201
  %v246 = vpack.c.b16 %v206, %v202
  %v247 = vpack.c.b16 %v211, %v207
  %v248 = vpack.c.b16 %v212, %v208
  %v249 = vpack.c.b16 %v213, %v209
  %v250 = vpack.c.b16 %v214, %v210
  %v251 = vpack.c.b16 %v219, %v215
  %v252 = vpack.c.b16 %v220, %v216
  %v253 = vpack.c.b16 %v221, %v217
  %v254 = vpack.c.b16 %v222, %v218
  %287 = vmatprep.subr.bf16.mxu0 %v224
  %288 = vmatpush1.bf16.msra.mxu0 %v223
  %289 = vmatprep.subr.bf16.mxu0 %v228
  %290 = vmatpush1.bf16.msra.mxu0 %v227
  %291 = vmatprep.subr.bf16.mxu0 %v232
  %292 = vmatpush1.bf16.msra.mxu0 %v231
  %293 = vmatprep.subr.bf16.mxu0 %v236
  %294 = vmatpush1.bf16.msra.mxu0 %v235
  %295 = vmatprep.subr.bf16.mxu0 %v240
  %296 = vmatpush1.bf16.msra.mxu0 %v239
  %297 = vmatprep.subr.bf16.mxu0 %v244
  %298 = vmatpush1.bf16.msra.mxu0 %v243
  %299 = vmatprep.subr.bf16.mxu0 %v248
  %300 = vmatpush1.bf16.msra.mxu0 %v247
  %301 = vmatprep.subr.bf16.mxu0 %v252
  %302 = vmatpush1.bf16.msra.mxu0 %v251
  %303 = vmatprep.subr.bf16.mxu0 0
  %304 = vmatpush1.bf16.msra.mxu0 0
  %305 = vmatprep.subr.bf16.mxu0 0
  %306 = vmatpush1.bf16.msra.mxu0 0
  %307 = vmatprep.subr.bf16.mxu0 0
  %308 = vmatpush1.bf16.msra.mxu0 0
  %309 = vmatprep.subr.bf16.mxu0 0
  %310 = vmatpush1.bf16.msra.mxu0 0
  %311 = vmatprep.subr.bf16.mxu0 0
  %312 = vmatpush1.bf16.msra.mxu0 0
  %313 = vmatprep.subr.bf16.mxu0 0
  %314 = vmatpush1.bf16.msra.mxu0 0
  %315 = vmatprep.subr.bf16.mxu0 0
  %316 = vmatpush1.bf16.msra.mxu0 0
  %317 = vmatprep.subr.bf16.mxu0 0
  %318 = vmatpush1.bf16.msra.mxu0 0
  %319 = vmatprep.mubr.bf16.mxu0 0
  %320 = vmatmul.mubr.bf16.gmra.mrb[0].mxu0 %v91
  %v321 = vpop.f32.mrb[0].mxu0
  %v322 = vadd.f32 0.0, %v321
  %v323 = vpop.f32.mrb[0].mxu0
  %v324 = vadd.f32 0.0, %v323
  %v325 = vpop.f32.mrb[0].mxu0
  %v326 = vadd.f32 0.0, %v325
  %v327 = vpop.f32.mrb[0].mxu0
  %v328 = vadd.f32 0.0, %v327
  %329 = vmatprep.mubr.bf16.mxu0 0
  %330 = vmatmul.mubr.bf16.gmra.mrb[0].mxu0 %v92
  %v331 = vpop.f32.mrb[0].mxu0
  %v332 = vadd.f32 0.0, %v331
  %v333 = vpop.f32.mrb[0].mxu0
  %v334 = vadd.f32 0.0, %v333
  %v335 = vpop.f32.mrb[0].mxu0
  %v336 = vadd.f32 0.0, %v335
  %v337 = vpop.f32.mrb[0].mxu0
  %v338 = vadd.f32 0.0, %v337
  %339 = vmatprep.mubr.bf16.mxu0 0
  %340 = vmatmul.mubr.bf16.gmra.mrb[0].mxu0 %v93
  %v341 = vpop.f32.mrb[0].mxu0
  %v342 = vadd.f32 0.0, %v341
  %v343 = vpop.f32.mrb[0].mxu0
  %v344 = vadd.f32 0.0, %v343
  %v345 = vpop.f32.mrb[0].mxu0
  %v346 = vadd.f32 0.0, %v345
  %v347 = vpop.f32.mrb[0].mxu0
  %v348 = vadd.f32 0.0, %v347
  %349 = vmatprep.mubr.bf16.mxu0 0
  %350 = vmatmul.mubr.bf16.gmra.mrb[0].mxu0 %v94
  %v351 = vpop.f32.mrb[0].mxu0
  %v352 = vadd.f32 0.0, %v351
  %v353 = vpop.f32.mrb[0].mxu0
  %v354 = vadd.f32 0.0, %v353
  %v355 = vpop.f32.mrb[0].mxu0
  %v356 = vadd.f32 0.0, %v355
  %v357 = vpop.f32.mrb[0].mxu0
  %v358 = vadd.f32 0.0, %v357
  %359 = vdwg.mxu0
  %360 = vmatprep.subr.bf16.mxu0 %v226
  %361 = vmatpush1.bf16.msra.mxu0 %v225
  %362 = vmatprep.subr.bf16.mxu0 %v230
  %363 = vmatpush1.bf16.msra.mxu0 %v229
  %364 = vmatprep.subr.bf16.mxu0 %v234
  %365 = vmatpush1.bf16.msra.mxu0 %v233
  %366 = vmatprep.subr.bf16.mxu0 %v238
  %367 = vmatpush1.bf16.msra.mxu0 %v237
  %368 = vmatprep.subr.bf16.mxu0 %v242
  %369 = vmatpush1.bf16.msra.mxu0 %v241
  %370 = vmatprep.subr.bf16.mxu0 %v246
  %371 = vmatpush1.bf16.msra.mxu0 %v245
  %372 = vmatprep.subr.bf16.mxu0 %v250
  %373 = vmatpush1.bf16.msra.mxu0 %v249
  %374 = vmatprep.subr.bf16.mxu0 %v254
  %375 = vmatpush1.bf16.msra.mxu0 %v253
  %376 = vmatprep.subr.bf16.mxu0 0
  %377 = vmatpush1.bf16.msra.mxu0 0
  %378 = vmatprep.subr.bf16.mxu0 0
  %379 = vmatpush1.bf16.msra.mxu0 0
  %380 = vmatprep.subr.bf16.mxu0 0
  %381 = vmatpush1.bf16.msra.mxu0 0
  %382 = vmatprep.subr.bf16.mxu0 0
  %383 = vmatpush1.bf16.msra.mxu0 0
  %384 = vmatprep.subr.bf16.mxu0 0
  %385 = vmatpush1.bf16.msra.mxu0 0
  %386 = vmatprep.subr.bf16.mxu0 0
  %387 = vmatpush1.bf16.msra.mxu0 0
  %388 = vmatprep.subr.bf16.mxu0 0
  %389 = vmatpush1.bf16.msra.mxu0 0
  %390 = vmatprep.subr.bf16.mxu0 0
  %391 = vmatpush1.bf16.msra.mxu0 0
  %392 = vmatprep.mubr.bf16.mxu0 0
  %393 = vmatmul.mubr.bf16.gmra.mrb[0].mxu0 %v91
  %v394 = vpop.f32.mrb[0].mxu0
  %v395 = vadd.f32 0.0, %v394
  %v396 = vpop.f32.mrb[0].mxu0
  %v397 = vadd.f32 0.0, %v396
  %v398 = vpop.f32.mrb[0].mxu0
  %v399 = vadd.f32 0.0, %v398
  %v400 = vpop.f32.mrb[0].mxu0
  %v401 = vadd.f32 0.0, %v400
  %402 = vmatprep.mubr.bf16.mxu0 0
  %403 = vmatmul.mubr.bf16.gmra.mrb[0].mxu0 %v92
  %v404 = vpop.f32.mrb[0].mxu0
  %v405 = vadd.f32 0.0, %v404
  %v406 = vpop.f32.mrb[0].mxu0
  %v407 = vadd.f32 0.0, %v406
  %v408 = vpop.f32.mrb[0].mxu0
  %v409 = vadd.f32 0.0, %v408
  %v410 = vpop.f32.mrb[0].mxu0
  %v411 = vadd.f32 0.0, %v410
  %412 = vmatprep.mubr.bf16.mxu0 0
  %413 = vmatmul.mubr.bf16.gmra.mrb[0].mxu0 %v93
  %v414 = vpop.f32.mrb[0].mxu0
  %v415 = vadd.f32 0.0, %v414
  %v416 = vpop.f32.mrb[0].mxu0
  %v417 = vadd.f32 0.0, %v416
  %v418 = vpop.f32.mrb[0].mxu0
  %v419 = vadd.f32 0.0, %v418
  %v420 = vpop.f32.mrb[0].mxu0
  %v421 = vadd.f32 0.0, %v420
  %422 = vmatprep.mubr.bf16.mxu0 0
  %423 = vmatmul.mubr.bf16.gmra.mrb[0].mxu0 %v94
  %v424 = vpop.f32.mrb[0].mxu0
  %v425 = vadd.f32 0.0, %v424
  %v426 = vpop.f32.mrb[0].mxu0
  %v427 = vadd.f32 0.0, %v426
  %v428 = vpop.f32.mrb[0].mxu0
  %v429 = vadd.f32 0.0, %v428
  %v430 = vpop.f32.mrb[0].mxu0
  %v431 = vadd.f32 0.0, %v430
  %432 = vdwg.mxu0
  %v433 = vadd.f32 %v51, %v322
  %v434 = vadd.f32 %v52, %v324
  %v435 = vadd.f32 %v53, %v395
  %v436 = vadd.f32 %v54, %v397
  %v437 = vadd.f32 %v55, %v326
  %v438 = vadd.f32 %v56, %v328
  %v439 = vadd.f32 %v57, %v399
  %v440 = vadd.f32 %v58, %v401
  %v441 = vadd.f32 %v59, %v332
  %v442 = vadd.f32 %v60, %v334
  %v443 = vadd.f32 %v61, %v405
  %v444 = vadd.f32 %v62, %v407
  %v445 = vadd.f32 %v63, %v336
  %v446 = vadd.f32 %v64, %v338
  %v447 = vadd.f32 %v65, %v409
  %v448 = vadd.f32 %v66, %v411
  %v449 = vadd.f32 %v67, %v342
  %v450 = vadd.f32 %v68, %v344
  %v451 = vadd.f32 %v69, %v415
  %v452 = vadd.f32 %v70, %v417
  %v453 = vadd.f32 %v71, %v346
  %v454 = vadd.f32 %v72, %v348
  %v455 = vadd.f32 %v73, %v419
  %v456 = vadd.f32 %v74, %v421
  %v457 = vadd.f32 %v75, %v352
  %v458 = vadd.f32 %v76, %v354
  %v459 = vadd.f32 %v77, %v425
  %v460 = vadd.f32 %v78, %v427
  %v461 = vadd.f32 %v79, %v356
  %v462 = vadd.f32 %v80, %v358
  %v463 = vadd.f32 %v81, %v429
  %v464 = vadd.f32 %v82, %v431
  %465 = vst [vmem:[#allocation2] sm:$0xff] %v433
  %466 = vst [vmem:[#allocation2 + $0x8] sm:$0xff] %v434
  %467 = vst [vmem:[#allocation2 + $0x10] sm:$0xff] %v435
  %468 = vst [vmem:[#allocation2 + $0x18] sm:$0xff] %v436
  %469 = vst [vmem:[#allocation2 + $0x20] sm:$0xff] %v437
  %470 = vst [vmem:[#allocation2 + $0x28] sm:$0xff] %v438
  %471 = vst [vmem:[#allocation2 + $0x30] sm:$0xff] %v439
  %472 = vst [vmem:[#allocation2 + $0x38] sm:$0xff] %v440
  %473 = vst [vmem:[#allocation2 + $0x40] sm:$0xff] %v441
  %474 = vst [vmem:[#allocation2 + $0x48] sm:$0xff] %v442
  %475 = vst [vmem:[#allocation2 + $0x50] sm:$0xff] %v443
  %476 = vst [vmem:[#allocation2 + $0x58] sm:$0xff] %v444
  %477 = vst [vmem:[#allocation2 + $0x60] sm:$0xff] %v445
  %478 = vst [vmem:[#allocation2 + $0x68] sm:$0xff] %v446
  %479 = vst [vmem:[#allocation2 + $0x70] sm:$0xff] %v447
  %480 = vst [vmem:[#allocation2 + $0x78] sm:$0xff] %v448
  %481 = vst [vmem:[#allocation2 + $0x80] sm:$0xff] %v449
  %482 = vst [vmem:[#allocation2 + $0x88] sm:$0xff] %v450
  %483 = vst [vmem:[#allocation2 + $0x90] sm:$0xff] %v451
  %484 = vst [vmem:[#allocation2 + $0x98] sm:$0xff] %v452
  %485 = vst [vmem:[#allocation2 + $0xa0] sm:$0xff] %v453
  %486 = vst [vmem:[#allocation2 + $0xa8] sm:$0xff] %v454
  %487 = vst [vmem:[#allocation2 + $0xb0] sm:$0xff] %v455
  %488 = vst [vmem:[#allocation2 + $0xb8] sm:$0xff] %v456
  %489 = vst [vmem:[#allocation2 + $0xc0] sm:$0xff] %v457
  %490 = vst [vmem:[#allocation2 + $0xc8] sm:$0xff] %v458
  %491 = vst [vmem:[#allocation2 + $0xd0] sm:$0xff] %v459
  %492 = vst [vmem:[#allocation2 + $0xd8] sm:$0xff] %v460
  %493 = vst [vmem:[#allocation2 + $0xe0] sm:$0xff] %v461
  %494 = vst [vmem:[#allocation2 + $0xe8] sm:$0xff] %v462
  %495 = vst [vmem:[#allocation2 + $0xf0] sm:$0xff] %v463
  %496 = vst [vmem:[#allocation2 + $0xf8] sm:$0xff] %v464
  // Predicated region
  $region18: #{language_model_forward.3} parent=0 // pred_check
    %p497 = pneg %p15
  $region19: #{language_model_forward.3} parent=0 // pred_check_branch
    %499 = sbr.rel (%p497) target = $region21
  $region20: #{language_model_forward.3} parent=0 // pred_region
    %v500 = vld [vmem:[#allocation2] sm:$0xff]
    %v501 = vld [vmem:[#allocation2 + $0x8] sm:$0xff]
    %v502 = vld [vmem:[#allocation2 + $0x10] sm:$0xff]
    %v503 = vld [vmem:[#allocation2 + $0x18] sm:$0xff]
    %v504 = vld [vmem:[#allocation2 + $0x20] sm:$0xff]
    %v505 = vld [vmem:[#allocation2 + $0x28] sm:$0xff]
    %v506 = vld [vmem:[#allocation2 + $0x30] sm:$0xff]
    %v507 = vld [vmem:[#allocation2 + $0x38] sm:$0xff]
    %v508 = vld [vmem:[#allocation2 + $0x40] sm:$0xff]
    %v509 = vld [vmem:[#allocation2 + $0x48] sm:$0xff]
    %v510 = vld [vmem:[#allocation2 + $0x50] sm:$0xff]
    %v511 = vld [vmem:[#allocation2 + $0x58] sm:$0xff]
    %v512 = vld [vmem:[#allocation2 + $0x60] sm:$0xff]
    %v513 = vld [vmem:[#allocation2 + $0x68] sm:$0xff]
    %v514 = vld [vmem:[#allocation2 + $0x70] sm:$0xff]
    %v515 = vld [vmem:[#allocation2 + $0x78] sm:$0xff]
    %v516 = vld [vmem:[#allocation2 + $0x80] sm:$0xff]
    %v517 = vld [vmem:[#allocation2 + $0x88] sm:$0xff]
    %v518 = vld [vmem:[#allocation2 + $0x90] sm:$0xff]
    %v519 = vld [vmem:[#allocation2 + $0x98] sm:$0xff]
    %v520 = vld [vmem:[#allocation2 + $0xa0] sm:$0xff]
    %v521 = vld [vmem:[#allocation2 + $0xa8] sm:$0xff]
    %v522 = vld [vmem:[#allocation2 + $0xb0] sm:$0xff]
    %v523 = vld [vmem:[#allocation2 + $0xb8] sm:$0xff]
    %v524 = vld [vmem:[#allocation2 + $0xc0] sm:$0xff]
    %v525 = vld [vmem:[#allocation2 + $0xc8] sm:$0xff]
    %v526 = vld [vmem:[#allocation2 + $0xd0] sm:$0xff]
    %v527 = vld [vmem:[#allocation2 + $0xd8] sm:$0xff]
    %v528 = vld [vmem:[#allocation2 + $0xe0] sm:$0xff]
    %v529 = vld [vmem:[#allocation2 + $0xe8] sm:$0xff]
    %v530 = vld [vmem:[#allocation2 + $0xf0] sm:$0xff]
    %v531 = vld [vmem:[#allocation2 + $0xf8] sm:$0xff]
    %v532 = vld [vmem:[%s2] sm:$0xf]
    %v534 = vlaneseq
    %v535 = vshrl.u32 %v534, 7
    %v536 = vsub.s32 0, %v535
    %v537 = vrot.slane %v532, %v536
    %v538 = vlaneseq
    %v539 = vshrl.u32 %v538, 7
    %v540 = vsub.s32 1, %v539
    %v541 = vrot.slane %v532, %v540
    %v542 = vlaneseq
    %v543 = vshrl.u32 %v542, 7
    %v544 = vsub.s32 2, %v543
    %v545 = vrot.slane %v532, %v544
    %v546 = vlaneseq
    %v547 = vshrl.u32 %v546, 7
    %v548 = vsub.s32 3, %v547
    %v549 = vrot.slane %v532, %v548
    %v554 = vadd.f32 %v500, %v537
    %v555 = vadd.f32 %v501, %v541
    %v556 = vadd.f32 %v502, %v545
    %v557 = vadd.f32 %v503, %v549
    %v558 = vadd.f32 %v504, %v537
    %v559 = vadd.f32 %v505, %v541
    %v560 = vadd.f32 %v506, %v545
    %v561 = vadd.f32 %v507, %v549
    %v562 = vadd.f32 %v508, %v537
    %v563 = vadd.f32 %v509, %v541
    %v564 = vadd.f32 %v510, %v545
    %v565 = vadd.f32 %v511, %v549
    %v566 = vadd.f32 %v512, %v537
    %v567 = vadd.f32 %v513, %v541
    %v568 = vadd.f32 %v514, %v545
    %v569 = vadd.f32 %v515, %v549
    %v570 = vadd.f32 %v516, %v537
    %v571 = vadd.f32 %v517, %v541
    %v572 = vadd.f32 %v518, %v545
    %v573 = vadd.f32 %v519, %v549
    %v574 = vadd.f32 %v520, %v537
    %v575 = vadd.f32 %v521, %v541
    %v576 = vadd.f32 %v522, %v545
    %v577 = vadd.f32 %v523, %v549
    %v578 = vadd.f32 %v524, %v537
    %v579 = vadd.f32 %v525, %v541
    %v580 = vadd.f32 %v526, %v545
    %v581 = vadd.f32 %v527, %v549
    %v582 = vadd.f32 %v528, %v537
    %v583 = vadd.f32 %v529, %v541
    %v584 = vadd.f32 %v530, %v545
    %v585 = vadd.f32 %v531, %v549
    %586 = vst [vmem:[%s3] sm:$0xff] %v554
    %587 = vst [vmem:[%s3 + $0x8] sm:$0xff] %v555
    %588 = vst [vmem:[%s3 + $0x10] sm:$0xff] %v556
    %589 = vst [vmem:[%s3 + $0x18] sm:$0xff] %v557
    %590 = vst [vmem:[%s3 + $0x20] sm:$0xff] %v558
    %591 = vst [vmem:[%s3 + $0x28] sm:$0xff] %v559
    %592 = vst [vmem:[%s3 + $0x30] sm:$0xff] %v560
    %593 = vst [vmem:[%s3 + $0x38] sm:$0xff] %v561
    %594 = vst [vmem:[%s3 + $0x40] sm:$0xff] %v562
    %595 = vst [vmem:[%s3 + $0x48] sm:$0xff] %v563
    %596 = vst [vmem:[%s3 + $0x50] sm:$0xff] %v564
    %597 = vst [vmem:[%s3 + $0x58] sm:$0xff] %v565
    %598 = vst [vmem:[%s3 + $0x60] sm:$0xff] %v566
    %599 = vst [vmem:[%s3 + $0x68] sm:$0xff] %v567
    %600 = vst [vmem:[%s3 + $0x70] sm:$0xff] %v568
    %601 = vst [vmem:[%s3 + $0x78] sm:$0xff] %v569
    %602 = vst [vmem:[%s3 + $0x80] sm:$0xff] %v570
    %603 = vst [vmem:[%s3 + $0x88] sm:$0xff] %v571
    %604 = vst [vmem:[%s3 + $0x90] sm:$0xff] %v572
    %605 = vst [vmem:[%s3 + $0x98] sm:$0xff] %v573
    %606 = vst [vmem:[%s3 + $0xa0] sm:$0xff] %v574
    %607 = vst [vmem:[%s3 + $0xa8] sm:$0xff] %v575
    %608 = vst [vmem:[%s3 + $0xb0] sm:$0xff] %v576
    %609 = vst [vmem:[%s3 + $0xb8] sm:$0xff] %v577
    %610 = vst [vmem:[%s3 + $0xc0] sm:$0xff] %v578
    %611 = vst [vmem:[%s3 + $0xc8] sm:$0xff] %v579
    %612 = vst [vmem:[%s3 + $0xd0] sm:$0xff] %v580
    %613 = vst [vmem:[%s3 + $0xd8] sm:$0xff] %v581
    %614 = vst [vmem:[%s3 + $0xe0] sm:$0xff] %v582
    %615 = vst [vmem:[%s3 + $0xe8] sm:$0xff] %v583
    %616 = vst [vmem:[%s3 + $0xf0] sm:$0xff] %v584
    %617 = vst [vmem:[%s3 + $0xf8] sm:$0xff] %v585
  $region21: #{language_model_forward.3} parent=0 // pred_fallthru
    _
  // Predicated region
  $region22: #{language_model_forward.3} parent=0 // pred_check
    _
  $region23: #{language_model_forward.3} parent=0 // pred_check_branch
    %619 = sbr.rel (0) target = $region25
  $region24: #{language_model_forward.3} parent=0 // pred_region
    _
  $region25: #{language_model_forward.3} parent=0 // pred_fallthru
    _
  // Predicated region
  $region26: #{language_model_forward.3} parent=0 // pred_check
    _
  $region27: #{language_model_forward.3} parent=0 // pred_check_branch
    %621 = sbr.rel (0) target = $region29
  $region28: #{language_model_forward.3} parent=0 // pred_region
    _
  $region29: #{language_model_forward.3} parent=0 // pred_fallthru
    _

// kernel: language_model_forward.4
$region0: #{language_model_forward.4}
  #allocation0 [shape = 'u32[]', space=smem, size = 0x4, offset = 0x4, fixed_abs, tag = 'smem constant byte address 0x4 - core index']
  #allocation1 [shape = 'u32[144,128]{1,0:T(1,128)}', space=vmem, size = 0x12000, scoped, tag = 'internal scratch']
  #allocation2 [shape = 'f32[8,128]{1,0:T(8,128)}', space=vmem, size = 0x1000, scoped, tag = 'scratch operand']
  #allocation3 [shape = 'f32[8,128]{1,0:T(8,128)}', space=vmem, size = 0x1000, scoped, tag = 'scratch operand']
  #allocation4 [shape = 'f32[8,128]{1,0:T(8,128)}', space=vmem, size = 0x1000, scoped, tag = 'scratch operand']
  #allocation5 [shape = 'f32[8,128]{1,0:T(8,128)}', space=vmem, size = 0x1000, scoped, tag = 'scratch operand']
  %s0 = inlined_call_operand.vmem [shape: f32[8,8,512], index: 0, kind: input, shape index: {}]
  %s1 = inlined_call_operand.vmem [shape: bf16[128,512], index: 1, kind: input, shape index: {}]
  %s2 = inlined_call_operand.vmem [shape: bf16[128,512], index: 2, kind: input, shape index: {}]
  %s3 = inlined_call_operand.hbm [shape: bf16[128,512], index: 3, kind: input, shape index: {}]
  %s4 = inlined_call_operand.vmem [shape: f32[1,512], index: 4, kind: input, shape index: {}]
  %s5 = inlined_call_operand.vmem [shape: f32[8,128], index: 5, kind: input, shape index: {}]
  %s6 = inlined_call_operand.vmem [shape: f32[8,128], index: 6, kind: input, shape index: {}]
  %s7 = inlined_call_operand.vmem [shape: f32[8,128], index: 7, kind: input, shape index: {}]
  %s8 = inlined_call_operand.vmem [shape: f32[8,128], index: 8, kind: input, shape index: {}]
  %s9 = inlined_call_operand.vmem [shape: f32[8,8,128], index: 9, kind: output, shape index: {0}]
  %s10 = inlined_call_operand.vmem [shape: f32[8,128], index: 10, kind: output, shape index: {1}]
  %s11 = inlined_call_operand.vmem [shape: f32[8,128], index: 11, kind: output, shape index: {2}]
  %s12 = inlined_call_operand.vmem [shape: f32[8,128], index: 12, kind: output, shape index: {3}]
  %s13 = inlined_call_operand.vmem [shape: f32[8,128], index: 13, kind: output, shape index: {4}]
  %14 = xla_tuple %s9, %s10, %s11, %s12, %s13
  %s15 = sld [smem:[#allocation0]]
  $region90: #{language_model_forward.4} parent=0
    _
  %s17 = ssub.s32 1, %s15
  %s18 = scalar_select 0, %s17, %s15
  $region1: #{language_model_forward.4} parent=0
    #allocation6 [shape = 'u8[131072]{0}', space=vmem, size = 0x20000, scoped, tag = 'input window, operand 3, single buffered']
    #allocation7 [shape = 's32[1]{0}', space=sflag, size = 0x4, scoped, tag = 'scoped memory for language_model_forward.4']
    %19 = vsyncpa [#allocation7], 0
    // Predicated region
    $region2: #{language_model_forward.4} parent=1 // pred_check
      _
    $region3: #{language_model_forward.4} parent=1 // pred_check_branch
      %21 = sbr.rel (0) target = $region5
    $region4: #{language_model_forward.4} parent=1 // pred_region
      _
    $region5: #{language_model_forward.4} parent=1 // pred_fallthru
      _
    // Predicated region
    $region6: #{language_model_forward.4} parent=1 // pred_check
      _
    $region7: #{language_model_forward.4} parent=1 // pred_check_branch
      %23 = sbr.rel (0) target = $region9
    $region8: #{language_model_forward.4} parent=1 // pred_region
      _
    $region9: #{language_model_forward.4} parent=1 // pred_fallthru
      _
    // Predicated region
    $region10: #{language_model_forward.4} parent=1 // pred_check
      _
    $region11: #{language_model_forward.4} parent=1 // pred_check_branch
      %25 = sbr.rel (0) target = $region13
    $region12: #{language_model_forward.4} parent=1 // pred_region
      _
    $region13: #{language_model_forward.4} parent=1 // pred_fallthru
      _
    // Predicated region
    $region14: #{language_model_forward.4} parent=1 // pred_check
      _
    $region15: #{language_model_forward.4} parent=1 // pred_check_branch
      %27 = sbr.rel (0) target = $region17
    $region16: #{language_model_forward.4} parent=1 // pred_region
      %s29 = ssub.s32 4096, 4096
      %30 = vsyncadd [#allocation7], %s29
      %s31 = sshll.u32 [#allocation6], 4
      %s32 = int_to_ptr.vmem [resolvable:$true] %s31
      %37 = dma.hbm_to_vmem [thread:$0]  %s3, 4096, %s32, [#allocation7], 256, 256, 16
    $region17: #{language_model_forward.4} parent=1 // pred_fallthru
      _
    // Predicated region
    $region18: #{language_model_forward.4} parent=1 // pred_check
      _
    $region19: #{language_model_forward.4} parent=1 // pred_check_branch
      %39 = sbr.rel (0) target = $region21
    $region20: #{language_model_forward.4} parent=1 // pred_region
      _
    $region21: #{language_model_forward.4} parent=1 // pred_fallthru
      _
    // Predicated region
    $region22: #{language_model_forward.4} parent=1 // pred_check
      _
    $region23: #{language_model_forward.4} parent=1 // pred_check_branch
      %41 = sbr.rel (0) target = $region25
    $region24: #{language_model_forward.4} parent=1 // pred_region
      _
    $region25: #{language_model_forward.4} parent=1 // pred_fallthru
      _
    // Predicated region
    $region26: #{language_model_forward.4} parent=1 // pred_check
      _
    $region27: #{language_model_forward.4} parent=1 // pred_check_branch
      %43 = sbr.rel (0) target = $region29
    $region28: #{language_model_forward.4} parent=1 // pred_region
      _
    $region29: #{language_model_forward.4} parent=1 // pred_fallthru
      _
    // Predicated region
    $region30: #{language_model_forward.4} parent=1 // pred_check
      _
    $region31: #{language_model_forward.4} parent=1 // pred_check_branch
      %45 = sbr.rel (0) target = $region33
    $region32: #{language_model_forward.4} parent=1 // pred_region
      _
    $region33: #{language_model_forward.4} parent=1 // pred_fallthru
      _
    // Predicated region
    $region34: #{language_model_forward.4} parent=1 // pred_check
      _
    $region35: #{language_model_forward.4} parent=1 // pred_check_branch
      %47 = sbr.rel (0) target = $region37
    $region36: #{language_model_forward.4} parent=1 // pred_region
      _
    $region37: #{language_model_forward.4} parent=1 // pred_fallthru
      _
    // Predicated region
    $region38: #{language_model_forward.4} parent=1 // pred_check
      _
    $region39: #{language_model_forward.4} parent=1 // pred_check_branch
      %49 = sbr.rel (0) target = $region41
    $region40: #{language_model_forward.4} parent=1 // pred_region
      %50 = dma.done [#allocation7], 4096
    $region41: #{language_model_forward.4} parent=1 // pred_fallthru
      _
    %p52 = scmp.eq.s32.totalorder 0, 0
    // Predicated region
    $region42: #{language_model_forward.4} parent=1 // pred_check
      %p53 = pneg %p52
    $region43: #{language_model_forward.4} parent=1 // pred_check_branch
      %55 = sbr.rel (%p53) target = $region45
    $region44: #{language_model_forward.4} parent=1 // pred_region
      %v56 = vld [vmem:[%s5] sm:$0xff]
      %57 = vst [vmem:[#allocation2] sm:$0xff] %v56
      %v58 = vld [vmem:[%s6] sm:$0xff]
      %59 = vst [vmem:[#allocation3] sm:$0xff] %v58
      %v60 = vld [vmem:[%s7] sm:$0xff]
      %61 = vst [vmem:[#allocation4] sm:$0xff] %v60
      %v62 = vld [vmem:[%s8] sm:$0xff]
      %63 = vst [vmem:[#allocation5] sm:$0xff] %v62
    $region45: #{language_model_forward.4} parent=1 // pred_fallthru
      _
    %v64 = vld [vmem:[%s4] sm:$0xf]
    %v65 = vld [vmem:[#allocation2] sm:$0xff]
    %v66 = vld [vmem:[#allocation3] sm:$0xff]
    %v67 = vld [vmem:[#allocation4] sm:$0xff]
    %v68 = vld [vmem:[#allocation5] sm:$0xff]
    %v69 = vld [vmem:[%s0] sm:$0xff]
    %v70 = vld [vmem:[%s0 + $0x8] sm:$0xff]
    %v71 = vld [vmem:[%s0 + $0x10] sm:$0xff]
    %v72 = vld [vmem:[%s0 + $0x18] sm:$0xff]
    %v73 = vpack.c.bf16 %v65, %v65
    %v74 = vld [vmem:[%s1] sm:$0xff]
    %v75 = vld [vmem:[%s1 + $0x8] sm:$0xff]
    %v76 = vld [vmem:[%s1 + $0x10] sm:$0xff]
    %v77 = vld [vmem:[%s1 + $0x18] sm:$0xff]
    %v78 = vld [vmem:[%s1 + $0x20] sm:$0xff]
    %v79 = vld [vmem:[%s1 + $0x28] sm:$0xff]
    %v80 = vld [vmem:[%s1 + $0x30] sm:$0xff]
    %v81 = vld [vmem:[%s1 + $0x38] sm:$0xff]
    %v82 = vld [vmem:[%s1 + $0x40] sm:$0xff]
    %v83 = vld [vmem:[%s1 + $0x48] sm:$0xff]
    %v84 = vld [vmem:[%s1 + $0x50] sm:$0xff]
    %v85 = vld [vmem:[%s1 + $0x58] sm:$0xff]
    %v86 = vld [vmem:[%s1 + $0x60] sm:$0xff]
    %v87 = vld [vmem:[%s1 + $0x68] sm:$0xff]
    %v88 = vld [vmem:[%s1 + $0x70] sm:$0xff]
    %v89 = vld [vmem:[%s1 + $0x78] sm:$0xff]
    %v90 = vld [vmem:[%s1 + $0x80] sm:$0xff]
    %v91 = vld [vmem:[%s1 + $0x88] sm:$0xff]
    %v92 = vld [vmem:[%s1 + $0x90] sm:$0xff]
    %v93 = vld [vmem:[%s1 + $0x98] sm:$0xff]
    %v94 = vld [vmem:[%s1 + $0xa0] sm:$0xff]
    %v95 = vld [vmem:[%s1 + $0xa8] sm:$0xff]
    %v96 = vld [vmem:[%s1 + $0xb0] sm:$0xff]
    %v97 = vld [vmem:[%s1 + $0xb8] sm:$0xff]
    %v98 = vld [vmem:[%s1 + $0xc0] sm:$0xff]
    %v99 = vld [vmem:[%s1 + $0xc8] sm:$0xff]
    %v100 = vld [vmem:[%s1 + $0xd0] sm:$0xff]
    %v101 = vld [vmem:[%s1 + $0xd8] sm:$0xff]
    %v102 = vld [vmem:[%s1 + $0xe0] sm:$0xff]
    %v103 = vld [vmem:[%s1 + $0xe8] sm:$0xff]
    %v104 = vld [vmem:[%s1 + $0xf0] sm:$0xff]
    %v105 = vld [vmem:[%s1 + $0xf8] sm:$0xff]
    %v138 = vunpack.c.l.b16 %v74
    %v139 = vunpack.c.h.b16 %v74
    %v140 = vunpack.c.l.b16 %v75
    %v141 = vunpack.c.h.b16 %v75
    %v142 = vunpack.c.l.b16 %v76
    %v143 = vunpack.c.h.b16 %v76
    %v144 = vunpack.c.l.b16 %v77
    %v145 = vunpack.c.h.b16 %v77
    %v146 = vunpack.c.l.b16 %v78
    %v147 = vunpack.c.h.b16 %v78
    %v148 = vunpack.c.l.b16 %v79
    %v149 = vunpack.c.h.b16 %v79
    %v150 = vunpack.c.l.b16 %v80
    %v151 = vunpack.c.h.b16 %v80
    %v152 = vunpack.c.l.b16 %v81
    %v153 = vunpack.c.h.b16 %v81
    %v154 = vunpack.c.l.b16 %v82
    %v155 = vunpack.c.h.b16 %v82
    %v156 = vunpack.c.l.b16 %v83
    %v157 = vunpack.c.h.b16 %v83
    %v158 = vunpack.c.l.b16 %v84
    %v159 = vunpack.c.h.b16 %v84
    %v160 = vunpack.c.l.b16 %v85
    %v161 = vunpack.c.h.b16 %v85
    %v162 = vunpack.c.l.b16 %v86
    %v163 = vunpack.c.h.b16 %v86
    %v164 = vunpack.c.l.b16 %v87
    %v165 = vunpack.c.h.b16 %v87
    %v166 = vunpack.c.l.b16 %v88
    %v167 = vunpack.c.h.b16 %v88
    %v168 = vunpack.c.l.b16 %v89
    %v169 = vunpack.c.h.b16 %v89
    %v170 = vunpack.c.l.b16 %v90
    %v171 = vunpack.c.h.b16 %v90
    %v172 = vunpack.c.l.b16 %v91
    %v173 = vunpack.c.h.b16 %v91
    %v174 = vunpack.c.l.b16 %v92
    %v175 = vunpack.c.h.b16 %v92
    %v176 = vunpack.c.l.b16 %v93
    %v177 = vunpack.c.h.b16 %v93
    %v178 = vunpack.c.l.b16 %v94
    %v179 = vunpack.c.h.b16 %v94
    %v180 = vunpack.c.l.b16 %v95
    %v181 = vunpack.c.h.b16 %v95
    %v182 = vunpack.c.l.b16 %v96
    %v183 = vunpack.c.h.b16 %v96
    %v184 = vunpack.c.l.b16 %v97
    %v185 = vunpack.c.h.b16 %v97
    %v186 = vunpack.c.l.b16 %v98
    %v187 = vunpack.c.h.b16 %v98
    %v188 = vunpack.c.l.b16 %v99
    %v189 = vunpack.c.h.b16 %v99
    %v190 = vunpack.c.l.b16 %v100
    %v191 = vunpack.c.h.b16 %v100
    %v192 = vunpack.c.l.b16 %v101
    %v193 = vunpack.c.h.b16 %v101
    %v194 = vunpack.c.l.b16 %v102
    %v195 = vunpack.c.h.b16 %v102
    %v196 = vunpack.c.l.b16 %v103
    %v197 = vunpack.c.h.b16 %v103
    %v198 = vunpack.c.l.b16 %v104
    %v199 = vunpack.c.h.b16 %v104
    %v200 = vunpack.c.l.b16 %v105
    %v201 = vunpack.c.h.b16 %v105
    %v202 = vpack.c.b16 %v142, %v138
    %v203 = vpack.c.b16 %v143, %v139
    %v204 = vpack.c.b16 %v144, %v140
    %v205 = vpack.c.b16 %v145, %v141
    %v206 = vpack.c.b16 %v150, %v146
    %v207 = vpack.c.b16 %v151, %v147
    %v208 = vpack.c.b16 %v152, %v148
    %v209 = vpack.c.b16 %v153, %v149
    %v210 = vpack.c.b16 %v158, %v154
    %v211 = vpack.c.b16 %v159, %v155
    %v212 = vpack.c.b16 %v160, %v156
    %v213 = vpack.c.b16 %v161, %v157
    %v214 = vpack.c.b16 %v166, %v162
    %v215 = vpack.c.b16 %v167, %v163
    %v216 = vpack.c.b16 %v168, %v164
    %v217 = vpack.c.b16 %v169, %v165
    %v218 = vpack.c.b16 %v174, %v170
    %v219 = vpack.c.b16 %v175, %v171
    %v220 = vpack.c.b16 %v176, %v172
    %v221 = vpack.c.b16 %v177, %v173
    %v222 = vpack.c.b16 %v182, %v178
    %v223 = vpack.c.b16 %v183, %v179
    %v224 = vpack.c.b16 %v184, %v180
    %v225 = vpack.c.b16 %v185, %v181
    %v226 = vpack.c.b16 %v190, %v186
    %v227 = vpack.c.b16 %v191, %v187
    %v228 = vpack.c.b16 %v192, %v188
    %v229 = vpack.c.b16 %v193, %v189
    %v230 = vpack.c.b16 %v198, %v194
    %v231 = vpack.c.b16 %v199, %v195
    %v232 = vpack.c.b16 %v200, %v196
    %v233 = vpack.c.b16 %v201, %v197
    %266 = vmatprep.subr.bf16.mxu0 %v203
    %267 = vmatpush1.bf16.msra.mxu0 %v202
    %268 = vmatprep.subr.bf16.mxu0 %v207
    %269 = vmatpush1.bf16.msra.mxu0 %v206
    %270 = vmatprep.subr.bf16.mxu0 %v211
    %271 = vmatpush1.bf16.msra.mxu0 %v210
    %272 = vmatprep.subr.bf16.mxu0 %v215
    %273 = vmatpush1.bf16.msra.mxu0 %v214
    %274 = vmatprep.subr.bf16.mxu0 %v219
    %275 = vmatpush1.bf16.msra.mxu0 %v218
    %276 = vmatprep.subr.bf16.mxu0 %v223
    %277 = vmatpush1.bf16.msra.mxu0 %v222
    %278 = vmatprep.subr.bf16.mxu0 %v227
    %279 = vmatpush1.bf16.msra.mxu0 %v226
    %280 = vmatprep.subr.bf16.mxu0 %v231
    %281 = vmatpush1.bf16.msra.mxu0 %v230
    %282 = vmatprep.subr.bf16.mxu0 0
    %283 = vmatpush1.bf16.msra.mxu0 0
    %284 = vmatprep.subr.bf16.mxu0 0
    %285 = vmatpush1.bf16.msra.mxu0 0
    %286 = vmatprep.subr.bf16.mxu0 0
    %287 = vmatpush1.bf16.msra.mxu0 0
    %288 = vmatprep.subr.bf16.mxu0 0
    %289 = vmatpush1.bf16.msra.mxu0 0
    %290 = vmatprep.subr.bf16.mxu0 0
    %291 = vmatpush1.bf16.msra.mxu0 0
    %292 = vmatprep.subr.bf16.mxu0 0
    %293 = vmatpush1.bf16.msra.mxu0 0
    %294 = vmatprep.subr.bf16.mxu0 0
    %295 = vmatpush1.bf16.msra.mxu0 0
    %296 = vmatprep.subr.bf16.mxu0 0
    %297 = vmatpush1.bf16.msra.mxu0 0
    %298 = vmatprep.mubr.bf16.mxu0 0
    %299 = vmatmul.mubr.bf16.gmra.mrb[0].mxu0 %v73
    %v300 = vpop.f32.mrb[0].mxu0
    %v301 = vadd.f32 0.0, %v300
    %v302 = vpop.f32.mrb[0].mxu0
    %v303 = vadd.f32 0.0, %v302
    %v304 = vpop.f32.mrb[0].mxu0
    %v305 = vpop.f32.mrb[0].mxu0
    %306 = vdwg.mxu0
    %307 = vmatprep.subr.bf16.mxu0 %v205
    %308 = vmatpush1.bf16.msra.mxu0 %v204
    %309 = vmatprep.subr.bf16.mxu0 %v209
    %310 = vmatpush1.bf16.msra.mxu0 %v208
    %311 = vmatprep.subr.bf16.mxu0 %v213
    %312 = vmatpush1.bf16.msra.mxu0 %v212
    %313 = vmatprep.subr.bf16.mxu0 %v217
    %314 = vmatpush1.bf16.msra.mxu0 %v216
    %315 = vmatprep.subr.bf16.mxu0 %v221
    %316 = vmatpush1.bf16.msra.mxu0 %v220
    %317 = vmatprep.subr.bf16.mxu0 %v225
    %318 = vmatpush1.bf16.msra.mxu0 %v224
    %319 = vmatprep.subr.bf16.mxu0 %v229
    %320 = vmatpush1.bf16.msra.mxu0 %v228
    %321 = vmatprep.subr.bf16.mxu0 %v233
    %322 = vmatpush1.bf16.msra.mxu0 %v232
    %323 = vmatprep.subr.bf16.mxu0 0
    %324 = vmatpush1.bf16.msra.mxu0 0
    %325 = vmatprep.subr.bf16.mxu0 0
    %326 = vmatpush1.bf16.msra.mxu0 0
    %327 = vmatprep.subr.bf16.mxu0 0
    %328 = vmatpush1.bf16.msra.mxu0 0
    %329 = vmatprep.subr.bf16.mxu0 0
    %330 = vmatpush1.bf16.msra.mxu0 0
    %331 = vmatprep.subr.bf16.mxu0 0
    %332 = vmatpush1.bf16.msra.mxu0 0
    %333 = vmatprep.subr.bf16.mxu0 0
    %334 = vmatpush1.bf16.msra.mxu0 0
    %335 = vmatprep.subr.bf16.mxu0 0
    %336 = vmatpush1.bf16.msra.mxu0 0
    %337 = vmatprep.subr.bf16.mxu0 0
    %338 = vmatpush1.bf16.msra.mxu0 0
    %339 = vmatprep.mubr.bf16.mxu0 0
    %340 = vmatmul.mubr.bf16.gmra.mrb[0].mxu0 %v73
    %v341 = vpop.f32.mrb[0].mxu0
    %v342 = vadd.f32 0.0, %v341
    %v343 = vpop.f32.mrb[0].mxu0
    %v344 = vadd.f32 0.0, %v343
    %v345 = vpop.f32.mrb[0].mxu0
    %v346 = vpop.f32.mrb[0].mxu0
    %347 = vdwg.mxu0
    %v348 = vadd.f32 %v69, %v301
    %v349 = vadd.f32 %v70, %v303
    %v350 = vadd.f32 %v71, %v342
    %v351 = vadd.f32 %v72, %v344
    %v352 = vxor.u32 %v348, 2147483648
    %v353 = vmul.f32 %v352, 1.442695
    %v354 = vpow.pop %v353
    %v355 = vadd.f32 %v354, 1.0
    %v356 = vrcp.pop %v355
    %v357 = vmul.f32 1.0, %v356
    %v358 = vxor.u32 %v349, 2147483648
    %v359 = vmul.f32 %v358, 1.442695
    %v360 = vpow.pop %v359
    %v361 = vadd.f32 %v360, 1.0
    %v362 = vrcp.pop %v361
    %v363 = vmul.f32 1.0, %v362
    %v364 = vtanh.pop %v350
    %v365 = vxor.u32 %v351, 2147483648
    %v366 = vmul.f32 %v365, 1.442695
    %v367 = vpow.pop %v366
    %v368 = vadd.f32 %v367, 1.0
    %v369 = vrcp.pop %v368
    %v370 = vmul.f32 1.0, %v369
    %v371 = vmul.f32 %v363, %v66
    %v372 = vmul.f32 %v357, %v364
    %v373 = vadd.f32 %v371, %v372
    %v374 = vtanh.pop %v373
    %v375 = vmul.f32 %v370, %v374
    %v376 = vpack.c.bf16 %v375, %v375
    %v377 = vld [vmem:[%s2] sm:$0xff]
    %v378 = vld [vmem:[%s2 + $0x8] sm:$0xff]
    %v379 = vld [vmem:[%s2 + $0x10] sm:$0xff]
    %v380 = vld [vmem:[%s2 + $0x18] sm:$0xff]
    %v381 = vld [vmem:[%s2 + $0x20] sm:$0xff]
    %v382 = vld [vmem:[%s2 + $0x28] sm:$0xff]
    %v383 = vld [vmem:[%s2 + $0x30] sm:$0xff]
    %v384 = vld [vmem:[%s2 + $0x38] sm:$0xff]
    %v385 = vld [vmem:[%s2 + $0x40] sm:$0xff]
    %v386 = vld [vmem:[%s2 + $0x48] sm:$0xff]
    %v387 = vld [vmem:[%s2 + $0x50] sm:$0xff]
    %v388 = vld [vmem:[%s2 + $0x58] sm:$0xff]
    %v389 = vld [vmem:[%s2 + $0x60] sm:$0xff]
    %v390 = vld [vmem:[%s2 + $0x68] sm:$0xff]
    %v391 = vld [vmem:[%s2 + $0x70] sm:$0xff]
    %v392 = vld [vmem:[%s2 + $0x78] sm:$0xff]
    %v393 = vld [vmem:[%s2 + $0x80] sm:$0xff]
    %v394 = vld [vmem:[%s2 + $0x88] sm:$0xff]
    %v395 = vld [vmem:[%s2 + $0x90] sm:$0xff]
    %v396 = vld [vmem:[%s2 + $0x98] sm:$0xff]
    %v397 = vld [vmem:[%s2 + $0xa0] sm:$0xff]
    %v398 = vld [vmem:[%s2 + $0xa8] sm:$0xff]
    %v399 = vld [vmem:[%s2 + $0xb0] sm:$0xff]
    %v400 = vld [vmem:[%s2 + $0xb8] sm:$0xff]
    %v401 = vld [vmem:[%s2 + $0xc0] sm:$0xff]
    %v402 = vld [vmem:[%s2 + $0xc8] sm:$0xff]
    %v403 = vld [vmem:[%s2 + $0xd0] sm:$0xff]
    %v404 = vld [vmem:[%s2 + $0xd8] sm:$0xff]
    %v405 = vld [vmem:[%s2 + $0xe0] sm:$0xff]
    %v406 = vld [vmem:[%s2 + $0xe8] sm:$0xff]
    %v407 = vld [vmem:[%s2 + $0xf0] sm:$0xff]
    %v408 = vld [vmem:[%s2 + $0xf8] sm:$0xff]
    %v441 = vunpack.c.l.b16 %v377
    %v442 = vunpack.c.h.b16 %v377
    %v443 = vunpack.c.l.b16 %v378
    %v444 = vunpack.c.h.b16 %v378
    %v445 = vunpack.c.l.b16 %v379
    %v446 = vunpack.c.h.b16 %v379
    %v447 = vunpack.c.l.b16 %v380
    %v448 = vunpack.c.h.b16 %v380
    %v449 = vunpack.c.l.b16 %v381
    %v450 = vunpack.c.h.b16 %v381
    %v451 = vunpack.c.l.b16 %v382
    %v452 = vunpack.c.h.b16 %v382
    %v453 = vunpack.c.l.b16 %v383
    %v454 = vunpack.c.h.b16 %v383
    %v455 = vunpack.c.l.b16 %v384
    %v456 = vunpack.c.h.b16 %v384
    %v457 = vunpack.c.l.b16 %v385
    %v458 = vunpack.c.h.b16 %v385
    %v459 = vunpack.c.l.b16 %v386
    %v460 = vunpack.c.h.b16 %v386
    %v461 = vunpack.c.l.b16 %v387
    %v462 = vunpack.c.h.b16 %v387
    %v463 = vunpack.c.l.b16 %v388
    %v464 = vunpack.c.h.b16 %v388
    %v465 = vunpack.c.l.b16 %v389
    %v466 = vunpack.c.h.b16 %v389
    %v467 = vunpack.c.l.b16 %v390
    %v468 = vunpack.c.h.b16 %v390
    %v469 = vunpack.c.l.b16 %v391
    %v470 = vunpack.c.h.b16 %v391
    %v471 = vunpack.c.l.b16 %v392
    %v472 = vunpack.c.h.b16 %v392
    %v473 = vunpack.c.l.b16 %v393
    %v474 = vunpack.c.h.b16 %v393
    %v475 = vunpack.c.l.b16 %v394
    %v476 = vunpack.c.h.b16 %v394
    %v477 = vunpack.c.l.b16 %v395
    %v478 = vunpack.c.h.b16 %v395
    %v479 = vunpack.c.l.b16 %v396
    %v480 = vunpack.c.h.b16 %v396
    %v481 = vunpack.c.l.b16 %v397
    %v482 = vunpack.c.h.b16 %v397
    %v483 = vunpack.c.l.b16 %v398
    %v484 = vunpack.c.h.b16 %v398
    %v485 = vunpack.c.l.b16 %v399
    %v486 = vunpack.c.h.b16 %v399
    %v487 = vunpack.c.l.b16 %v400
    %v488 = vunpack.c.h.b16 %v400
    %v489 = vunpack.c.l.b16 %v401
    %v490 = vunpack.c.h.b16 %v401
    %v491 = vunpack.c.l.b16 %v402
    %v492 = vunpack.c.h.b16 %v402
    %v493 = vunpack.c.l.b16 %v403
    %v494 = vunpack.c.h.b16 %v403
    %v495 = vunpack.c.l.b16 %v404
    %v496 = vunpack.c.h.b16 %v404
    %v497 = vunpack.c.l.b16 %v405
    %v498 = vunpack.c.h.b16 %v405
    %v499 = vunpack.c.l.b16 %v406
    %v500 = vunpack.c.h.b16 %v406
    %v501 = vunpack.c.l.b16 %v407
    %v502 = vunpack.c.h.b16 %v407
    %v503 = vunpack.c.l.b16 %v408
    %v504 = vunpack.c.h.b16 %v408
    %v505 = vpack.c.b16 %v445, %v441
    %v506 = vpack.c.b16 %v446, %v442
    %v507 = vpack.c.b16 %v447, %v443
    %v508 = vpack.c.b16 %v448, %v444
    %v509 = vpack.c.b16 %v453, %v449
    %v510 = vpack.c.b16 %v454, %v450
    %v511 = vpack.c.b16 %v455, %v451
    %v512 = vpack.c.b16 %v456, %v452
    %v513 = vpack.c.b16 %v461, %v457
    %v514 = vpack.c.b16 %v462, %v458
    %v515 = vpack.c.b16 %v463, %v459
    %v516 = vpack.c.b16 %v464, %v460
    %v517 = vpack.c.b16 %v469, %v465
    %v518 = vpack.c.b16 %v470, %v466
    %v519 = vpack.c.b16 %v471, %v467
    %v520 = vpack.c.b16 %v472, %v468
    %v521 = vpack.c.b16 %v477, %v473
    %v522 = vpack.c.b16 %v478, %v474
    %v523 = vpack.c.b16 %v479, %v475
    %v524 = vpack.c.b16 %v480, %v476
    %v525 = vpack.c.b16 %v485, %v481
    %v526 = vpack.c.b16 %v486, %v482
    %v527 = vpack.c.b16 %v487, %v483
    %v528 = vpack.c.b16 %v488, %v484
    %v529 = vpack.c.b16 %v493, %v489
    %v530 = vpack.c.b16 %v494, %v490
    %v531 = vpack.c.b16 %v495, %v491
    %v532 = vpack.c.b16 %v496, %v492
    %v533 = vpack.c.b16 %v501, %v497
    %v534 = vpack.c.b16 %v502, %v498
    %v535 = vpack.c.b16 %v503, %v499
    %v536 = vpack.c.b16 %v504, %v500
    %569 = vmatprep.subr.bf16.mxu0 %v506
    %570 = vmatpush1.bf16.msra.mxu0 %v505
    %571 = vmatprep.subr.bf16.mxu0 %v510
    %572 = vmatpush1.bf16.msra.mxu0 %v509
    %573 = vmatprep.subr.bf16.mxu0 %v514
    %574 = vmatpush1.bf16.msra.mxu0 %v513
    %575 = vmatprep.subr.bf16.mxu0 %v518
    %576 = vmatpush1.bf16.msra.mxu0 %v517
    %577 = vmatprep.subr.bf16.mxu0 %v522
    %578 = vmatpush1.bf16.msra.mxu0 %v521
    %579 = vmatprep.subr.bf16.mxu0 %v526
    %580 = vmatpush1.bf16.msra.mxu0 %v525
    %581 = vmatprep.subr.bf16.mxu0 %v530
    %582 = vmatpush1.bf16.msra.mxu0 %v529
    %583 = vmatprep.subr.bf16.mxu0 %v534
    %584 = vmatpush1.bf16.msra.mxu0 %v533
    %585 = vmatprep.subr.bf16.mxu0 0
    %586 = vmatpush1.bf16.msra.mxu0 0
    %587 = vmatprep.subr.bf16.mxu0 0
    %588 = vmatpush1.bf16.msra.mxu0 0
    %589 = vmatprep.subr.bf16.mxu0 0
    %590 = vmatpush1.bf16.msra.mxu0 0
    %591 = vmatprep.subr.bf16.mxu0 0
    %592 = vmatpush1.bf16.msra.mxu0 0
    %593 = vmatprep.subr.bf16.mxu0 0
    %594 = vmatpush1.bf16.msra.mxu0 0
    %595 = vmatprep.subr.bf16.mxu0 0
    %596 = vmatpush1.bf16.msra.mxu0 0
    %597 = vmatprep.subr.bf16.mxu0 0
    %598 = vmatpush1.bf16.msra.mxu0 0
    %599 = vmatprep.subr.bf16.mxu0 0
    %600 = vmatpush1.bf16.msra.mxu0 0
    %601 = vmatprep.mubr.bf16.mxu0 0
    %602 = vmatmul.mubr.bf16.gmra.mrb[0].mxu0 %v376
    %v603 = vpop.f32.mrb[0].mxu0
    %v604 = vadd.f32 0.0, %v603
    %v605 = vpop.f32.mrb[0].mxu0
    %v606 = vadd.f32 0.0, %v605
    %v607 = vpop.f32.mrb[0].mxu0
    %v608 = vpop.f32.mrb[0].mxu0
    %609 = vdwg.mxu0
    %610 = vmatprep.subr.bf16.mxu0 %v508
    %611 = vmatpush1.bf16.msra.mxu0 %v507
    %612 = vmatprep.subr.bf16.mxu0 %v512
    %613 = vmatpush1.bf16.msra.mxu0 %v511
    %614 = vmatprep.subr.bf16.mxu0 %v516
    %615 = vmatpush1.bf16.msra.mxu0 %v515
    %616 = vmatprep.subr.bf16.mxu0 %v520
    %617 = vmatpush1.bf16.msra.mxu0 %v519
    %618 = vmatprep.subr.bf16.mxu0 %v524
    %619 = vmatpush1.bf16.msra.mxu0 %v523
    %620 = vmatprep.subr.bf16.mxu0 %v528
    %621 = vmatpush1.bf16.msra.mxu0 %v527
    %622 = vmatprep.subr.bf16.mxu0 %v532
    %623 = vmatpush1.bf16.msra.mxu0 %v531
    %624 = vmatprep.subr.bf16.mxu0 %v536
    %625 = vmatpush1.bf16.msra.mxu0 %v535
    %626 = vmatprep.subr.bf16.mxu0 0
    %627 = vmatpush1.bf16.msra.mxu0 0
    %628 = vmatprep.subr.bf16.mxu0 0
    %629 = vmatpush1.bf16.msra.mxu0 0
    %630 = vmatprep.subr.bf16.mxu0 0
    %631 = vmatpush1.bf16.msra.mxu0 0
    %632 = vmatprep.subr.bf16.mxu0 0
    %633 = vmatpush1.bf16.msra.mxu0 0
    %634 = vmatprep.subr.bf16.mxu0 0
    %635 = vmatpush1.bf16.msra.mxu0 0
    %636 = vmatprep.subr.bf16.mxu0 0
    %637 = vmatpush1.bf16.msra.mxu0 0
    %638 = vmatprep.subr.bf16.mxu0 0
    %639 = vmatpush1.bf16.msra.mxu0 0
    %640 = vmatprep.subr.bf16.mxu0 0
    %641 = vmatpush1.bf16.msra.mxu0 0
    %642 = vmatprep.mubr.bf16.mxu0 0
    %643 = vmatmul.mubr.bf16.gmra.mrb[0].mxu0 %v376
    %v644 = vpop.f32.mrb[0].mxu0
    %v645 = vadd.f32 0.0, %v644
    %v646 = vpop.f32.mrb[0].mxu0
    %v647 = vadd.f32 0.0, %v646
    %v648 = vpop.f32.mrb[0].mxu0
    %v649 = vpop.f32.mrb[0].mxu0
    %650 = vdwg.mxu0
    %v652 = vlaneseq
    %v653 = vshrl.u32 %v652, 7
    %v654 = vsub.s32 0, %v653
    %v655 = vrot.slane %v64, %v654
    %v656 = vlaneseq
    %v657 = vshrl.u32 %v656, 7
    %v658 = vsub.s32 1, %v657
    %v659 = vrot.slane %v64, %v658
    %v660 = vlaneseq
    %v661 = vshrl.u32 %v660, 7
    %v662 = vsub.s32 2, %v661
    %v663 = vrot.slane %v64, %v662
    %v664 = vlaneseq
    %v665 = vshrl.u32 %v664, 7
    %v666 = vsub.s32 3, %v665
    %v667 = vrot.slane %v64, %v666
    %v672 = vadd.f32 %v655, %v604
    %v673 = vadd.f32 %v659, %v606
    %v674 = vadd.f32 %v663, %v645
    %v675 = vadd.f32 %v667, %v647
    %v676 = vpack.c.bf16 %v67, %v67
    %v677 = vld [vmem:[#allocation6] sm:$0xff]
    %v678 = vld [vmem:[#allocation6 + $0x8] sm:$0xff]
    %v679 = vld [vmem:[#allocation6 + $0x10] sm:$0xff]
    %v680 = vld [vmem:[#allocation6 + $0x18] sm:$0xff]
    %v681 = vld [vmem:[#allocation6 + $0x20] sm:$0xff]
    %v682 = vld [vmem:[#allocation6 + $0x28] sm:$0xff]
    %v683 = vld [vmem:[#allocation6 + $0x30] sm:$0xff]
    %v684 = vld [vmem:[#allocation6 + $0x38] sm:$0xff]
    %v685 = vld [vmem:[#allocation6 + $0x40] sm:$0xff]
    %v686 = vld [vmem:[#allocation6 + $0x48] sm:$0xff]
    %v687 = vld [vmem:[#allocation6 + $0x50] sm:$0xff]
    %v688 = vld [vmem:[#allocation6 + $0x58] sm:$0xff]
    %v689 = vld [vmem:[#allocation6 + $0x60] sm:$0xff]
    %v690 = vld [vmem:[#allocation6 + $0x68] sm:$0xff]
    %v691 = vld [vmem:[#allocation6 + $0x70] sm:$0xff]
    %v692 = vld [vmem:[#allocation6 + $0x78] sm:$0xff]
    %v693 = vld [vmem:[#allocation6 + $0x80] sm:$0xff]
    %v694 = vld [vmem:[#allocation6 + $0x88] sm:$0xff]
    %v695 = vld [vmem:[#allocation6 + $0x90] sm:$0xff]
    %v696 = vld [vmem:[#allocation6 + $0x98] sm:$0xff]
    %v697 = vld [vmem:[#allocation6 + $0xa0] sm:$0xff]
    %v698 = vld [vmem:[#allocation6 + $0xa8] sm:$0xff]
    %v699 = vld [vmem:[#allocation6 + $0xb0] sm:$0xff]
    %v700 = vld [vmem:[#allocation6 + $0xb8] sm:$0xff]
    %v701 = vld [vmem:[#allocation6 + $0xc0] sm:$0xff]
    %v702 = vld [vmem:[#allocation6 + $0xc8] sm:$0xff]
    %v703 = vld [vmem:[#allocation6 + $0xd0] sm:$0xff]
    %v704 = vld [vmem:[#allocation6 + $0xd8] sm:$0xff]
    %v705 = vld [vmem:[#allocation6 + $0xe0] sm:$0xff]
    %v706 = vld [vmem:[#allocation6 + $0xe8] sm:$0xff]
    %v707 = vld [vmem:[#allocation6 + $0xf0] sm:$0xff]
    %v708 = vld [vmem:[#allocation6 + $0xf8] sm:$0xff]
    %v741 = vunpack.c.l.b16 %v677
    %v742 = vunpack.c.h.b16 %v677
    %v743 = vunpack.c.l.b16 %v678
    %v744 = vunpack.c.h.b16 %v678
    %v745 = vunpack.c.l.b16 %v679
    %v746 = vunpack.c.h.b16 %v679
    %v747 = vunpack.c.l.b16 %v680
    %v748 = vunpack.c.h.b16 %v680
    %v749 = vunpack.c.l.b16 %v681
    %v750 = vunpack.c.h.b16 %v681
    %v751 = vunpack.c.l.b16 %v682
    %v752 = vunpack.c.h.b16 %v682
    %v753 = vunpack.c.l.b16 %v683
    %v754 = vunpack.c.h.b16 %v683
    %v755 = vunpack.c.l.b16 %v684
    %v756 = vunpack.c.h.b16 %v684
    %v757 = vunpack.c.l.b16 %v685
    %v758 = vunpack.c.h.b16 %v685
    %v759 = vunpack.c.l.b16 %v686
    %v760 = vunpack.c.h.b16 %v686
    %v761 = vunpack.c.l.b16 %v687
    %v762 = vunpack.c.h.b16 %v687
    %v763 = vunpack.c.l.b16 %v688
    %v764 = vunpack.c.h.b16 %v688
    %v765 = vunpack.c.l.b16 %v689
    %v766 = vunpack.c.h.b16 %v689
    %v767 = vunpack.c.l.b16 %v690
    %v768 = vunpack.c.h.b16 %v690
    %v769 = vunpack.c.l.b16 %v691
    %v770 = vunpack.c.h.b16 %v691
    %v771 = vunpack.c.l.b16 %v692
    %v772 = vunpack.c.h.b16 %v692
    %v773 = vunpack.c.l.b16 %v693
    %v774 = vunpack.c.h.b16 %v693
    %v775 = vunpack.c.l.b16 %v694
    %v776 = vunpack.c.h.b16 %v694
    %v777 = vunpack.c.l.b16 %v695
    %v778 = vunpack.c.h.b16 %v695
    %v779 = vunpack.c.l.b16 %v696
    %v780 = vunpack.c.h.b16 %v696
    %v781 = vunpack.c.l.b16 %v697
    %v782 = vunpack.c.h.b16 %v697
    %v783 = vunpack.c.l.b16 %v698
    %v784 = vunpack.c.h.b16 %v698
    %v785 = vunpack.c.l.b16 %v699
    %v786 = vunpack.c.h.b16 %v699
    %v787 = vunpack.c.l.b16 %v700
    %v788 = vunpack.c.h.b16 %v700
    %v789 = vunpack.c.l.b16 %v701
    %v790 = vunpack.c.h.b16 %v701
    %v791 = vunpack.c.l.b16 %v702
    %v792 = vunpack.c.h.b16 %v702
    %v793 = vunpack.c.l.b16 %v703
    %v794 = vunpack.c.h.b16 %v703
    %v795 = vunpack.c.l.b16 %v704
    %v796 = vunpack.c.h.b16 %v704
    %v797 = vunpack.c.l.b16 %v705
    %v798 = vunpack.c.h.b16 %v705
    %v799 = vunpack.c.l.b16 %v706
    %v800 = vunpack.c.h.b16 %v706
    %v801 = vunpack.c.l.b16 %v707
    %v802 = vunpack.c.h.b16 %v707
    %v803 = vunpack.c.l.b16 %v708
    %v804 = vunpack.c.h.b16 %v708
    %v805 = vpack.c.b16 %v745, %v741
    %v806 = vpack.c.b16 %v746, %v742
    %v807 = vpack.c.b16 %v747, %v743
    %v808 = vpack.c.b16 %v748, %v744
    %v809 = vpack.c.b16 %v753, %v749
    %v810 = vpack.c.b16 %v754, %v750
    %v811 = vpack.c.b16 %v755, %v751
    %v812 = vpack.c.b16 %v756, %v752
    %v813 = vpack.c.b16 %v761, %v757
    %v814 = vpack.c.b16 %v762, %v758
    %v815 = vpack.c.b16 %v763, %v759
    %v816 = vpack.c.b16 %v764, %v760
    %v817 = vpack.c.b16 %v769, %v765
    %v818 = vpack.c.b16 %v770, %v766
    %v819 = vpack.c.b16 %v771, %v767
    %v820 = vpack.c.b16 %v772, %v768
    %v821 = vpack.c.b16 %v777, %v773
    %v822 = vpack.c.b16 %v778, %v774
    %v823 = vpack.c.b16 %v779, %v775
    %v824 = vpack.c.b16 %v780, %v776
    %v825 = vpack.c.b16 %v785, %v781
    %v826 = vpack.c.b16 %v786, %v782
    %v827 = vpack.c.b16 %v787, %v783
    %v828 = vpack.c.b16 %v788, %v784
    %v829 = vpack.c.b16 %v793, %v789
    %v830 = vpack.c.b16 %v794, %v790
    %v831 = vpack.c.b16 %v795, %v791
    %v832 = vpack.c.b16 %v796, %v792
    %v833 = vpack.c.b16 %v801, %v797
    %v834 = vpack.c.b16 %v802, %v798
    %v835 = vpack.c.b16 %v803, %v799
    %v836 = vpack.c.b16 %v804, %v800
    %869 = vmatprep.subr.bf16.mxu0 %v806
    %870 = vmatpush1.bf16.msra.mxu0 %v805
    %871 = vmatprep.subr.bf16.mxu0 %v810
    %872 = vmatpush1.bf16.msra.mxu0 %v809
    %873 = vmatprep.subr.bf16.mxu0 %v814
    %874 = vmatpush1.bf16.msra.mxu0 %v813
    %875 = vmatprep.subr.bf16.mxu0 %v818
    %876 = vmatpush1.bf16.msra.mxu0 %v817
    %877 = vmatprep.subr.bf16.mxu0 %v822
    %878 = vmatpush1.bf16.msra.mxu0 %v821
    %879 = vmatprep.subr.bf16.mxu0 %v826
    %880 = vmatpush1.bf16.msra.mxu0 %v825
    %881 = vmatprep.subr.bf16.mxu0 %v830
    %882 = vmatpush1.bf16.msra.mxu0 %v829
    %883 = vmatprep.subr.bf16.mxu0 %v834
    %884 = vmatpush1.bf16.msra.mxu0 %v833
    %885 = vmatprep.subr.bf16.mxu0 0
    %886 = vmatpush1.bf16.msra.mxu0 0
    %887 = vmatprep.subr.bf16.mxu0 0
    %888 = vmatpush1.bf16.msra.mxu0 0
    %889 = vmatprep.subr.bf16.mxu0 0
    %890 = vmatpush1.bf16.msra.mxu0 0
    %891 = vmatprep.subr.bf16.mxu0 0
    %892 = vmatpush1.bf16.msra.mxu0 0
    %893 = vmatprep.subr.bf16.mxu0 0
    %894 = vmatpush1.bf16.msra.mxu0 0
    %895 = vmatprep.subr.bf16.mxu0 0
    %896 = vmatpush1.bf16.msra.mxu0 0
    %897 = vmatprep.subr.bf16.mxu0 0
    %898 = vmatpush1.bf16.msra.mxu0 0
    %899 = vmatprep.subr.bf16.mxu0 0
    %900 = vmatpush1.bf16.msra.mxu0 0
    %901 = vmatprep.mubr.bf16.mxu0 0
    %902 = vmatmul.mubr.bf16.gmra.mrb[0].mxu0 %v676
    %v903 = vpop.f32.mrb[0].mxu0
    %v904 = vadd.f32 0.0, %v903
    %v905 = vpop.f32.mrb[0].mxu0
    %v906 = vadd.f32 0.0, %v905
    %v907 = vpop.f32.mrb[0].mxu0
    %v908 = vpop.f32.mrb[0].mxu0
    %909 = vdwg.mxu0
    %910 = vmatprep.subr.bf16.mxu0 %v808
    %911 = vmatpush1.bf16.msra.mxu0 %v807
    %912 = vmatprep.subr.bf16.mxu0 %v812
    %913 = vmatpush1.bf16.msra.mxu0 %v811
    %914 = vmatprep.subr.bf16.mxu0 %v816
    %915 = vmatpush1.bf16.msra.mxu0 %v815
    %916 = vmatprep.subr.bf16.mxu0 %v820
    %917 = vmatpush1.bf16.msra.mxu0 %v819
    %918 = vmatprep.subr.bf16.mxu0 %v824
    %919 = vmatpush1.bf16.msra.mxu0 %v823
    %920 = vmatprep.subr.bf16.mxu0 %v828
    %921 = vmatpush1.bf16.msra.mxu0 %v827
    %922 = vmatprep.subr.bf16.mxu0 %v832
    %923 = vmatpush1.bf16.msra.mxu0 %v831
    %924 = vmatprep.subr.bf16.mxu0 %v836
    %925 = vmatpush1.bf16.msra.mxu0 %v835
    %926 = vmatprep.subr.bf16.mxu0 0
    %927 = vmatpush1.bf16.msra.mxu0 0
    %928 = vmatprep.subr.bf16.mxu0 0
    %929 = vmatpush1.bf16.msra.mxu0 0
    %930 = vmatprep.subr.bf16.mxu0 0
    %931 = vmatpush1.bf16.msra.mxu0 0
    %932 = vmatprep.subr.bf16.mxu0 0
    %933 = vmatpush1.bf16.msra.mxu0 0
    %934 = vmatprep.subr.bf16.mxu0 0
    %935 = vmatpush1.bf16.msra.mxu0 0
    %936 = vmatprep.subr.bf16.mxu0 0
    %937 = vmatpush1.bf16.msra.mxu0 0
    %938 = vmatprep.subr.bf16.mxu0 0
    %939 = vmatpush1.bf16.msra.mxu0 0
    %940 = vmatprep.subr.bf16.mxu0 0
    %941 = vmatpush1.bf16.msra.mxu0 0
    %942 = vmatprep.mubr.bf16.mxu0 0
    %943 = vmatmul.mubr.bf16.gmra.mrb[0].mxu0 %v676
    %v944 = vpop.f32.mrb[0].mxu0
    %v945 = vadd.f32 0.0, %v944
    %v946 = vpop.f32.mrb[0].mxu0
    %v947 = vadd.f32 0.0, %v946
    %v948 = vpop.f32.mrb[0].mxu0
    %v949 = vpop.f32.mrb[0].mxu0
    %950 = vdwg.mxu0
    %v951 = vadd.f32 %v672, %v904
    %v952 = vadd.f32 %v673, %v906
    %v953 = vadd.f32 %v674, %v945
    %v954 = vadd.f32 %v675, %v947
    %v955 = vxor.u32 %v951, 2147483648
    %v956 = vmul.f32 %v955, 1.442695
    %v957 = vpow.pop %v956
    %v958 = vadd.f32 %v957, 1.0
    %v959 = vrcp.pop %v958
    %v960 = vmul.f32 1.0, %v959
    %v961 = vxor.u32 %v952, 2147483648
    %v962 = vmul.f32 %v961, 1.442695
    %v963 = vpow.pop %v962
    %v964 = vadd.f32 %v963, 1.0
    %v965 = vrcp.pop %v964
    %v966 = vmul.f32 1.0, %v965
    %v967 = vtanh.pop %v953
    %v968 = vxor.u32 %v954, 2147483648
    %v969 = vmul.f32 %v968, 1.442695
    %v970 = vpow.pop %v969
    %v971 = vadd.f32 %v970, 1.0
    %v972 = vrcp.pop %v971
    %v973 = vmul.f32 1.0, %v972
    %v974 = vmul.f32 %v966, %v68
    %v975 = vmul.f32 %v960, %v967
    %v976 = vadd.f32 %v974, %v975
    %v977 = vtanh.pop %v976
    %v978 = vmul.f32 %v973, %v977
    %979 = vst [vmem:[%s9] sm:$0xff] %v978
    %s980 = scalar_lea.vmem %s0, 32
    %v981 = vld [vmem:[%s980] sm:$0xff]
    %v982 = vld [vmem:[%s980 + $0x8] sm:$0xff]
    %v983 = vld [vmem:[%s980 + $0x10] sm:$0xff]
    %v984 = vld [vmem:[%s980 + $0x18] sm:$0xff]
    %v985 = vld [vmem:[%s1] sm:$0xff]
    %v986 = vld [vmem:[%s1 + $0x8] sm:$0xff]
    %v987 = vld [vmem:[%s1 + $0x10] sm:$0xff]
    %v988 = vld [vmem:[%s1 + $0x18] sm:$0xff]
    %v989 = vld [vmem:[%s1 + $0x20] sm:$0xff]
    %v990 = vld [vmem:[%s1 + $0x28] sm:$0xff]
    %v991 = vld [vmem:[%s1 + $0x30] sm:$0xff]
    %v992 = vld [vmem:[%s1 + $0x38] sm:$0xff]
    %v993 = vld [vmem:[%s1 + $0x40] sm:$0xff]
    %v994 = vld [vmem:[%s1 + $0x48] sm:$0xff]
    %v995 = vld [vmem:[%s1 + $0x50] sm:$0xff]
    %v996 = vld [vmem:[%s1 + $0x58] sm:$0xff]
    %v997 = vld [vmem:[%s1 + $0x60] sm:$0xff]
    %v998 = vld [vmem:[%s1 + $0x68] sm:$0xff]
    %v999 = vld [vmem:[%s1 + $0x70] sm:$0xff]
    %v1000 = vld [vmem:[%s1 + $0x78] sm:$0xff]
    %v1001 = vld [vmem:[%s1 + $0x80] sm:$0xff]
    %v1002 = vld [vmem:[%s1 + $0x88] sm:$0xff]
    %v1003 = vld [vmem:[%s1 + $0x90] sm:$0xff]
    %v1004 = vld [vmem:[%s1 + $0x98] sm:$0xff]
    %v1005 = vld [vmem:[%s1 + $0xa0] sm:$0xff]
    %v1006 = vld [vmem:[%s1 + $0xa8] sm:$0xff]
    %v1007 = vld [vmem:[%s1 + $0xb0] sm:$0xff]
    %v1008 = vld [vmem:[%s1 + $0xb8] sm:$0xff]
    %v1009 = vld [vmem:[%s1 + $0xc0] sm:$0xff]
    %v1010 = vld [vmem:[%s1 + $0xc8] sm:$0xff]
    %v1011 = vld [vmem:[%s1 + $0xd0] sm:$0xff]
    %v1012 = vld [vmem:[%s1 + $0xd8] sm:$0xff]
    %v1013 = vld [vmem:[%s1 + $0xe0] sm:$0xff]
    %v1014 = vld [vmem:[%s1 + $0xe8] sm:$0xff]
    %v1015 = vld [vmem:[%s1 + $0xf0] sm:$0xff]
    %v1016 = vld [vmem:[%s1 + $0xf8] sm:$0xff]
    %v1049 = vunpack.c.l.b16 %v985
    %v1050 = vunpack.c.h.b16 %v985
    %v1051 = vunpack.c.l.b16 %v986
    %v1052 = vunpack.c.h.b16 %v986
    %v1053 = vunpack.c.l.b16 %v987
    %v1054 = vunpack.c.h.b16 %v987
    %v1055 = vunpack.c.l.b16 %v988
    %v1056 = vunpack.c.h.b16 %v988
    %v1057 = vunpack.c.l.b16 %v989
    %v1058 = vunpack.c.h.b16 %v989
    %v1059 = vunpack.c.l.b16 %v990
    %v1060 = vunpack.c.h.b16 %v990
    %v1061 = vunpack.c.l.b16 %v991
    %v1062 = vunpack.c.h.b16 %v991
    %v1063 = vunpack.c.l.b16 %v992
    %v1064 = vunpack.c.h.b16 %v992
    %v1065 = vunpack.c.l.b16 %v993
    %v1066 = vunpack.c.h.b16 %v993
    %v1067 = vunpack.c.l.b16 %v994
    %v1068 = vunpack.c.h.b16 %v994
    %v1069 = vunpack.c.l.b16 %v995
    %v1070 = vunpack.c.h.b16 %v995
    %v1071 = vunpack.c.l.b16 %v996
    %v1072 = vunpack.c.h.b16 %v996
    %v1073 = vunpack.c.l.b16 %v997
    %v1074 = vunpack.c.h.b16 %v997
    %v1075 = vunpack.c.l.b16 %v998
    %v1076 = vunpack.c.h.b16 %v998
    %v1077 = vunpack.c.l.b16 %v999
    %v1078 = vunpack.c.h.b16 %v999
    %v1079 = vunpack.c.l.b16 %v1000
    %v1080 = vunpack.c.h.b16 %v1000
    %v1081 = vunpack.c.l.b16 %v1001
    %v1082 = vunpack.c.h.b16 %v1001
    %v1083 = vunpack.c.l.b16 %v1002
    %v1084 = vunpack.c.h.b16 %v1002
    %v1085 = vunpack.c.l.b16 %v1003
    %v1086 = vunpack.c.h.b16 %v1003
    %v1087 = vunpack.c.l.b16 %v1004
    %v1088 = vunpack.c.h.b16 %v1004
    %v1089 = vunpack.c.l.b16 %v1005
    %v1090 = vunpack.c.h.b16 %v1005
    %v1091 = vunpack.c.l.b16 %v1006
    %v1092 = vunpack.c.h.b16 %v1006
    %v1093 = vunpack.c.l.b16 %v1007
    %v1094 = vunpack.c.h.b16 %v1007
    %v1095 = vunpack.c.l.b16 %v1008
    %v1096 = vunpack.c.h.b16 %v1008
    %v1097 = vunpack.c.l.b16 %v1009
    %v1098 = vunpack.c.h.b16 %v1009
    %v1099 = vunpack.c.l.b16 %v1010
    %v1100 = vunpack.c.h.b16 %v1010
    %v1101 = vunpack.c.l.b16 %v1011
    %v1102 = vunpack.c.h.b16 %v1011
    %v1103 = vunpack.c.l.b16 %v1012
    %v1104 = vunpack.c.h.b16 %v1012
    %v1105 = vunpack.c.l.b16 %v1013
    %v1106 = vunpack.c.h.b16 %v1013
    %v1107 = vunpack.c.l.b16 %v1014
    %v1108 = vunpack.c.h.b16 %v1014
    %v1109 = vunpack.c.l.b16 %v1015
    %v1110 = vunpack.c.h.b16 %v1015
    %v1111 = vunpack.c.l.b16 %v1016
    %v1112 = vunpack.c.h.b16 %v1016
    %v1113 = vpack.c.b16 %v1053, %v1049
    %v1114 = vpack.c.b16 %v1054, %v1050
    %v1115 = vpack.c.b16 %v1055, %v1051
    %v1116 = vpack.c.b16 %v1056, %v1052
    %v1117 = vpack.c.b16 %v1061, %v1057
    %v1118 = vpack.c.b16 %v1062, %v1058
    %v1119 = vpack.c.b16 %v1063, %v1059
    %v1120 = vpack.c.b16 %v1064, %v1060
    %v1121 = vpack.c.b16 %v1069, %v1065
    %v1122 = vpack.c.b16 %v1070, %v1066
    %v1123 = vpack.c.b16 %v1071, %v1067
    %v1124 = vpack.c.b16 %v1072, %v1068
    %v1125 = vpack.c.b16 %v1077, %v1073
    %v1126 = vpack.c.b16 %v1078, %v1074
    %v1127 = vpack.c.b16 %v1079, %v1075
    %v1128 = vpack.c.b16 %v1080, %v1076
    %v1129 = vpack.c.b16 %v1085, %v1081
    %v1130 = vpack.c.b16 %v1086, %v1082
    %v1131 = vpack.c.b16 %v1087, %v1083
    %v1132 = vpack.c.b16 %v1088, %v1084
    %v1133 = vpack.c.b16 %v1093, %v1089
    %v1134 = vpack.c.b16 %v1094, %v1090
    %v1135 = vpack.c.b16 %v1095, %v1091
    %v1136 = vpack.c.b16 %v1096, %v1092
    %v1137 = vpack.c.b16 %v1101, %v1097
    %v1138 = vpack.c.b16 %v1102, %v1098
    %v1139 = vpack.c.b16 %v1103, %v1099
    %v1140 = vpack.c.b16 %v1104, %v1100
    %v1141 = vpack.c.b16 %v1109, %v1105
    %v1142 = vpack.c.b16 %v1110, %v1106
    %v1143 = vpack.c.b16 %v1111, %v1107
    %v1144 = vpack.c.b16 %v1112, %v1108
    %1177 = vmatprep.subr.bf16.mxu0 %v1114
    %1178 = vmatpush1.bf16.msra.mxu0 %v1113
    %1179 = vmatprep.subr.bf16.mxu0 %v1118
    %1180 = vmatpush1.bf16.msra.mxu0 %v1117
    %1181 = vmatprep.subr.bf16.mxu0 %v1122
    %1182 = vmatpush1.bf16.msra.mxu0 %v1121
    %1183 = vmatprep.subr.bf16.mxu0 %v1126
    %1184 = vmatpush1.bf16.msra.mxu0 %v1125
    %1185 = vmatprep.subr.bf16.mxu0 %v1130
    %1186 = vmatpush1.bf16.msra.mxu0 %v1129
    %1187 = vmatprep.subr.bf16.mxu0 %v1134
    %1188 = vmatpush1.bf16.msra.mxu0 %v1133
    %1189 = vmatprep.subr.bf16.mxu0 %v1138
    %1190 = vmatpush1.bf16.msra.mxu0 %v1137
    %1191 = vmatprep.subr.bf16.mxu0 %v1142
    %1192 = vmatpush1.bf16.msra.mxu0 %v1141
    %1193 = vmatprep.subr.bf16.mxu0 0
    %1194 = vmatpush1.bf16.msra.mxu0 0
    %1195 = vmatprep.subr.bf16.mxu0 0
    %1196 = vmatpush1.bf16.msra.mxu0 0
    %1197 = vmatprep.subr.bf16.mxu0 0
    %1198 = vmatpush1.bf16.msra.mxu0 0
    %1199 = vmatprep.subr.bf16.mxu0 0
    %1200 = vmatpush1.bf16.msra.mxu0 0
    %1201 = vmatprep.subr.bf16.mxu0 0
    %1202 = vmatpush1.bf16.msra.mxu0 0
    %1203 = vmatprep.subr.bf16.mxu0 0
    %1204 = vmatpush1.bf16.msra.mxu0 0
    %1205 = vmatprep.subr.bf16.mxu0 0
    %1206 = vmatpush1.bf16.msra.mxu0 0
    %1207 = vmatprep.subr.bf16.mxu0 0
    %1208 = vmatpush1.bf16.msra.mxu0 0
    %1209 = vmatprep.mubr.bf16.mxu0 0
    %1210 = vmatmul.mubr.bf16.gmra.mrb[0].mxu0 %v376
    %v1211 = vpop.f32.mrb[0].mxu0
    %v1212 = vadd.f32 0.0, %v1211
    %v1213 = vpop.f32.mrb[0].mxu0
    %v1214 = vadd.f32 0.0, %v1213
    %v1215 = vpop.f32.mrb[0].mxu0
    %v1216 = vpop.f32.mrb[0].mxu0
    %1217 = vdwg.mxu0
    %1218 = vmatprep.subr.bf16.mxu0 %v1116
    %1219 = vmatpush1.bf16.msra.mxu0 %v1115
    %1220 = vmatprep.subr.bf16.mxu0 %v1120
    %1221 = vmatpush1.bf16.msra.mxu0 %v1119
    %1222 = vmatprep.subr.bf16.mxu0 %v1124
    %1223 = vmatpush1.bf16.msra.mxu0 %v1123
    %1224 = vmatprep.subr.bf16.mxu0 %v1128
    %1225 = vmatpush1.bf16.msra.mxu0 %v1127
    %1226 = vmatprep.subr.bf16.mxu0 %v1132
    %1227 = vmatpush1.bf16.msra.mxu0 %v1131
    %1228 = vmatprep.subr.bf16.mxu0 %v1136
    %1229 = vmatpush1.bf16.msra.mxu0 %v1135
    %1230 = vmatprep.subr.bf16.mxu0 %v1140
    %1231 = vmatpush1.bf16.msra.mxu0 %v1139
    %1232 = vmatprep.subr.bf16.mxu0 %v1144
    %1233 = vmatpush1.bf16.msra.mxu0 %v1143
    %1234 = vmatprep.subr.bf16.mxu0 0
    %1235 = vmatpush1.bf16.msra.mxu0 0
    %1236 = vmatprep.subr.bf16.mxu0 0
    %1237 = vmatpush1.bf16.msra.mxu0 0
    %1238 = vmatprep.subr.bf16.mxu0 0
    %1239 = vmatpush1.bf16.msra.mxu0 0
    %1240 = vmatprep.subr.bf16.mxu0 0
    %1241 = vmatpush1.bf16.msra.mxu0 0
    %1242 = vmatprep.subr.bf16.mxu0 0
    %1243 = vmatpush1.bf16.msra.mxu0 0
    %1244 = vmatprep.subr.bf16.mxu0 0
    %1245 = vmatpush1.bf16.msra.mxu0 0
    %1246 = vmatprep.subr.bf16.mxu0 0
    %1247 = vmatpush1.bf16.msra.mxu0 0
    %1248 = vmatprep.subr.bf16.mxu0 0
    %1249 = vmatpush1.bf16.msra.mxu0 0
    %1250 = vmatprep.mubr.bf16.mxu0 0
    %1251 = vmatmul.mubr.bf16.gmra.mrb[0].mxu0 %v376
    %v1252 = vpop.f32.mrb[0].mxu0
    %v1253 = vadd.f32 0.0, %v1252
    %v1254 = vpop.f32.mrb[0].mxu0
    %v1255 = vadd.f32 0.0, %v1254
    %v1256 = vpop.f32.mrb[0].mxu0
    %v1257 = vpop.f32.mrb[0].mxu0
    %1258 = vdwg.mxu0
    %v1259 = vadd.f32 %v981, %v1212
    %v1260 = vadd.f32 %v982, %v1214
    %v1261 = vadd.f32 %v983, %v1253
    %v1262 = vadd.f32 %v984, %v1255
    %v1263 = vxor.u32 %v1259, 2147483648
    %v1264 = vmul.f32 %v1263, 1.442695
    %v1265 = vpow.pop %v1264
    %v1266 = vadd.f32 %v1265, 1.0
    %v1267 = vrcp.pop %v1266
    %v1268 = vmul.f32 1.0, %v1267
    %v1269 = vxor.u32 %v1260, 2147483648
    %v1270 = vmul.f32 %v1269, 1.442695
    %v1271 = vpow.pop %v1270
    %v1272 = vadd.f32 %v1271, 1.0
    %v1273 = vrcp.pop %v1272
    %v1274 = vmul.f32 1.0, %v1273
    %v1275 = vtanh.pop %v1261
    %v1276 = vxor.u32 %v1262, 2147483648
    %v1277 = vmul.f32 %v1276, 1.442695
    %v1278 = vpow.pop %v1277
    %v1279 = vadd.f32 %v1278, 1.0
    %v1280 = vrcp.pop %v1279
    %v1281 = vmul.f32 1.0, %v1280
    %v1282 = vmul.f32 %v1274, %v373
    %v1283 = vmul.f32 %v1268, %v1275
    %v1284 = vadd.f32 %v1282, %v1283
    %v1285 = vtanh.pop %v1284
    %v1286 = vmul.f32 %v1281, %v1285
    %v1287 = vpack.c.bf16 %v1286, %v1286
    %v1288 = vld [vmem:[%s2] sm:$0xff]
    %v1289 = vld [vmem:[%s2 + $0x8] sm:$0xff]
    %v1290 = vld [vmem:[%s2 + $0x10] sm:$0xff]
    %v1291 = vld [vmem:[%s2 + $0x18] sm:$0xff]
    %v1292 = vld [vmem:[%s2 + $0x20] sm:$0xff]
    %v1293 = vld [vmem:[%s2 + $0x28] sm:$0xff]
    %v1294 = vld [vmem:[%s2 + $0x30] sm:$0xff]
    %v1295 = vld [vmem:[%s2 + $0x38] sm:$0xff]
    %v1296 = vld [vmem:[%s2 + $0x40] sm:$0xff]
    %v1297 = vld [vmem:[%s2 + $0x48] sm:$0xff]
    %v1298 = vld [vmem:[%s2 + $0x50] sm:$0xff]
    %v1299 = vld [vmem:[%s2 + $0x58] sm:$0xff]
    %v1300 = vld [vmem:[%s2 + $0x60] sm:$0xff]
    %v1301 = vld [vmem:[%s2 + $0x68] sm:$0xff]
    %v1302 = vld [vmem:[%s2 + $0x70] sm:$0xff]
    %v1303 = vld [vmem:[%s2 + $0x78] sm:$0xff]
    %v1304 = vld [vmem:[%s2 + $0x80] sm:$0xff]
    %v1305 = vld [vmem:[%s2 + $0x88] sm:$0xff]
    %v1306 = vld [vmem:[%s2 + $0x90] sm:$0xff]
    %v1307 = vld [vmem:[%s2 + $0x98] sm:$0xff]
    %v1308 = vld [vmem:[%s2 + $0xa0] sm:$0xff]
    %v1309 = vld [vmem:[%s2 + $0xa8] sm:$0xff]
    %v1310 = vld [vmem:[%s2 + $0xb0] sm:$0xff]
    %v1311 = vld [vmem:[%s2 + $0xb8] sm:$0xff]
    %v1312 = vld [vmem:[%s2 + $0xc0] sm:$0xff]
    %v1313 = vld [vmem:[%s2 + $0xc8] sm:$0xff]
    %v1314 = vld [vmem:[%s2 + $0xd0] sm:$0xff]
    %v1315 = vld [vmem:[%s2 + $0xd8] sm:$0xff]
    %v1316 = vld [vmem:[%s2 + $0xe0] sm:$0xff]
    %v1317 = vld [vmem:[%s2 + $0xe8] sm:$0xff]
    %v1318 = vld [vmem:[%s2 + $0xf0] sm:$0xff]
    %v1319 = vld [vmem:[%s2 + $0xf8] sm:$0xff]
    %v1352 = vunpack.c.l.b16 %v1288
    %v1353 = vunpack.c.h.b16 %v1288
    %v1354 = vunpack.c.l.b16 %v1289
    %v1355 = vunpack.c.h.b16 %v1289
    %v1356 = vunpack.c.l.b16 %v1290
    %v1357 = vunpack.c.h.b16 %v1290
    %v1358 = vunpack.c.l.b16 %v1291
    %v1359 = vunpack.c.h.b16 %v1291
    %v1360 = vunpack.c.l.b16 %v1292
    %v1361 = vunpack.c.h.b16 %v1292
    %v1362 = vunpack.c.l.b16 %v1293
    %v1363 = vunpack.c.h.b16 %v1293
    %v1364 = vunpack.c.l.b16 %v1294
    %v1365 = vunpack.c.h.b16 %v1294
    %v1366 = vunpack.c.l.b16 %v1295
    %v1367 = vunpack.c.h.b16 %v1295
    %v1368 = vunpack.c.l.b16 %v1296
    %v1369 = vunpack.c.h.b16 %v1296
    %v1370 = vunpack.c.l.b16 %v1297
    %v1371 = vunpack.c.h.b16 %v1297
    %v1372 = vunpack.c.l.b16 %v1298
    %v1373 = vunpack.c.h.b16 %v1298
    %v1374 = vunpack.c.l.b16 %v1299
    %v1375 = vunpack.c.h.b16 %v1299
    %v1376 = vunpack.c.l.b16 %v1300
    %v1377 = vunpack.c.h.b16 %v1300
    %v1378 = vunpack.c.l.b16 %v1301
    %v1379 = vunpack.c.h.b16 %v1301
    %v1380 = vunpack.c.l.b16 %v1302
    %v1381 = vunpack.c.h.b16 %v1302
    %v1382 = vunpack.c.l.b16 %v1303
    %v1383 = vunpack.c.h.b16 %v1303
    %v1384 = vunpack.c.l.b16 %v1304
    %v1385 = vunpack.c.h.b16 %v1304
    %v1386 = vunpack.c.l.b16 %v1305
    %v1387 = vunpack.c.h.b16 %v1305
    %v1388 = vunpack.c.l.b16 %v1306
    %v1389 = vunpack.c.h.b16 %v1306
    %v1390 = vunpack.c.l.b16 %v1307
    %v1391 = vunpack.c.h.b16 %v1307
    %v1392 = vunpack.c.l.b16 %v1308
    %v1393 = vunpack.c.h.b16 %v1308
    %v1394 = vunpack.c.l.b16 %v1309
    %v1395 = vunpack.c.h.b16 %v1309
    %v1396 = vunpack.c.l.b16 %v1310
    %v1397 = vunpack.c.h.b16 %v1310
    %v1398 = vunpack.c.l.b16 %v1311
    %v1399 = vunpack.c.h.b16 %v1311
    %v1400 = vunpack.c.l.b16 %v1312
    %v1401 = vunpack.c.h.b16 %v1312
    %v1402 = vunpack.c.l.b16 %v1313
    %v1403 = vunpack.c.h.b16 %v1313
    %v1404 = vunpack.c.l.b16 %v1314
    %v1405 = vunpack.c.h.b16 %v1314
    %v1406 = vunpack.c.l.b16 %v1315
    %v1407 = vunpack.c.h.b16 %v1315
    %v1408 = vunpack.c.l.b16 %v1316
    %v1409 = vunpack.c.h.b16 %v1316
    %v1410 = vunpack.c.l.b16 %v1317
    %v1411 = vunpack.c.h.b16 %v1317
    %v1412 = vunpack.c.l.b16 %v1318
    %v1413 = vunpack.c.h.b16 %v1318
    %v1414 = vunpack.c.l.b16 %v1319
    %v1415 = vunpack.c.h.b16 %v1319
    %v1416 = vpack.c.b16 %v1356, %v1352
    %v1417 = vpack.c.b16 %v1357, %v1353
    %v1418 = vpack.c.b16 %v1358, %v1354
    %v1419 = vpack.c.b16 %v1359, %v1355
    %v1420 = vpack.c.b16 %v1364, %v1360
    %v1421 = vpack.c.b16 %v1365, %v1361
    %v1422 = vpack.c.b16 %v1366, %v1362
    %v1423 = vpack.c.b16 %v1367, %v1363
    %v1424 = vpack.c.b16 %v1372, %v1368
    %v1425 = vpack.c.b16 %v1373, %v1369
    %v1426 = vpack.c.b16 %v1374, %v1370
    %v1427 = vpack.c.b16 %v1375, %v1371
    %v1428 = vpack.c.b16 %v1380, %v1376
    %v1429 = vpack.c.b16 %v1381, %v1377
    %v1430 = vpack.c.b16 %v1382, %v1378
    %v1431 = vpack.c.b16 %v1383, %v1379
    %v1432 = vpack.c.b16 %v1388, %v1384
    %v1433 = vpack.c.b16 %v1389, %v1385
    %v1434 = vpack.c.b16 %v1390, %v1386
    %v1435 = vpack.c.b16 %v1391, %v1387
    %v1436 = vpack.c.b16 %v1396, %v1392
    %v1437 = vpack.c.b16 %v1397, %v1393
    %v1438 = vpack.c.b16 %v1398, %v1394
    %v1439 = vpack.c.b16 %v1399, %v1395
    %v1440 = vpack.c.b16 %v1404, %v1400
    %v1441 = vpack.c.b16 %v1405, %v1401
    %v1442 = vpack.c.b16 %v1406, %v1402
    %v1443 = vpack.c.b16 %v1407, %v1403
    %v1444 = vpack.c.b16 %v1412, %v1408
    %v1445 = vpack.c.b16 %v1413, %v1409
    %v1446 = vpack.c.b16 %v1414, %v1410
    %v1447 = vpack.c.b16 %v1415, %v1411
    %1480 = vmatprep.subr.bf16.mxu0 %v1417
    %1481 = vmatpush1.bf16.msra.mxu0 %v1416
    %1482 = vmatprep.subr.bf16.mxu0 %v1421
    %1483 = vmatpush1.bf16.msra.mxu0 %v1420
    %1484 = vmatprep.subr.bf16.mxu0 %v1425
    %1485 = vmatpush1.bf16.msra.mxu0 %v1424
    %1486 = vmatprep.subr.bf16.mxu0 %v1429
    %1487 = vmatpush1.bf16.msra.mxu0 %v1428
    %1488 = vmatprep.subr.bf16.mxu0 %v1433
    %1489 = vmatpush1.bf16.msra.mxu0 %v1432
    %1490 = vmatprep.subr.bf16.mxu0 %v1437
    %1491 = vmatpush1.bf16.msra.mxu0 %v1436
    %1492 = vmatprep.subr.bf16.mxu0 %v1441
    %1493 = vmatpush1.bf16.msra.mxu0 %v1440
    %1494 = vmatprep.subr.bf16.mxu0 %v1445
    %1495 = vmatpush1.bf16.msra.mxu0 %v1444
    %1496 = vmatprep.subr.bf16.mxu0 0
    %1497 = vmatpush1.bf16.msra.mxu0 0
    %1498 = vmatprep.subr.bf16.mxu0 0
    %1499 = vmatpush1.bf16.msra.mxu0 0
    %1500 = vmatprep.subr.bf16.mxu0 0
    %1501 = vmatpush1.bf16.msra.mxu0 0
    %1502 = vmatprep.subr.bf16.mxu0 0
    %1503 = vmatpush1.bf16.msra.mxu0 0
    %1504 = vmatprep.subr.bf16.mxu0 0
    %1505 = vmatpush1.bf16.msra.mxu0 0
    %1506 = vmatprep.subr.bf16.mxu0 0
    %1507 = vmatpush1.bf16.msra.mxu0 0
    %1508 = vmatprep.subr.bf16.mxu0 0
    %1509 = vmatpush1.bf16.msra.mxu0 0
    %1510 = vmatprep.subr.bf16.mxu0 0
    %1511 = vmatpush1.bf16.msra.mxu0 0
    %1512 = vmatprep.mubr.bf16.mxu0 0
    %1513 = vmatmul.mubr.bf16.gmra.mrb[0].mxu0 %v1287
    %v1514 = vpop.f32.mrb[0].mxu0
    %v1515 = vadd.f32 0.0, %v1514
    %v1516 = vpop.f32.mrb[0].mxu0
    %v1517 = vadd.f32 0.0, %v1516
    %v1518 = vpop.f32.mrb[0].mxu0
    %v1519 = vpop.f32.mrb[0].mxu0
    %1520 = vdwg.mxu0
    %1521 = vmatprep.subr.bf16.mxu0 %v1419
    %1522 = vmatpush1.bf16.msra.mxu0 %v1418
    %1523 = vmatprep.subr.bf16.mxu0 %v1423
    %1524 = vmatpush1.bf16.msra.mxu0 %v1422
    %1525 = vmatprep.subr.bf16.mxu0 %v1427
    %1526 = vmatpush1.bf16.msra.mxu0 %v1426
    %1527 = vmatprep.subr.bf16.mxu0 %v1431
    %1528 = vmatpush1.bf16.msra.mxu0 %v1430
    %1529 = vmatprep.subr.bf16.mxu0 %v1435
    %1530 = vmatpush1.bf16.msra.mxu0 %v1434
    %1531 = vmatprep.subr.bf16.mxu0 %v1439
    %1532 = vmatpush1.bf16.msra.mxu0 %v1438
    %1533 = vmatprep.subr.bf16.mxu0 %v1443
    %1534 = vmatpush1.bf16.msra.mxu0 %v1442
    %1535 = vmatprep.subr.bf16.mxu0 %v1447
    %1536 = vmatpush1.bf16.msra.mxu0 %v1446
    %1537 = vmatprep.subr.bf16.mxu0 0
    %1538 = vmatpush1.bf16.msra.mxu0 0
    %1539 = vmatprep.subr.bf16.mxu0 0
    %1540 = vmatpush1.bf16.msra.mxu0 0
    %1541 = vmatprep.subr.bf16.mxu0 0
    %1542 = vmatpush1.bf16.msra.mxu0 0
    %1543 = vmatprep.subr.bf16.mxu0 0
    %1544 = vmatpush1.bf16.msra.mxu0 0
    %1545 = vmatprep.subr.bf16.mxu0 0
    %1546 = vmatpush1.bf16.msra.mxu0 0
    %1547 = vmatprep.subr.bf16.mxu0 0
    %1548 = vmatpush1.bf16.msra.mxu0 0
    %1549 = vmatprep.subr.bf16.mxu0 0
    %1550 = vmatpush1.bf16.msra.mxu0 0
    %1551 = vmatprep.subr.bf16.mxu0 0
    %1552 = vmatpush1.bf16.msra.mxu0 0
    %1553 = vmatprep.mubr.bf16.mxu0 0
    %1554 = vmatmul.mubr.bf16.gmra.mrb[0].mxu0 %v1287
    %v1555 = vpop.f32.mrb[0].mxu0
    %v1556 = vadd.f32 0.0, %v1555
    %v1557 = vpop.f32.mrb[0].mxu0
    %v1558 = vadd.f32 0.0, %v1557
    %v1559 = vpop.f32.mrb[0].mxu0
    %v1560 = vpop.f32.mrb[0].mxu0
    %1561 = vdwg.mxu0
    %v1562 = vadd.f32 %v655, %v1515
    %v1563 = vadd.f32 %v659, %v1517
    %v1564 = vadd.f32 %v663, %v1556
    %v1565 = vadd.f32 %v667, %v1558
    %v1566 = vpack.c.bf16 %v978, %v978
    %v1567 = vld [vmem:[#allocation6] sm:$0xff]
    %v1568 = vld [vmem:[#allocation6 + $0x8] sm:$0xff]
    %v1569 = vld [vmem:[#allocation6 + $0x10] sm:$0xff]
    %v1570 = vld [vmem:[#allocation6 + $0x18] sm:$0xff]
    %v1571 = vld [vmem:[#allocation6 + $0x20] sm:$0xff]
    %v1572 = vld [vmem:[#allocation6 + $0x28] sm:$0xff]
    %v1573 = vld [vmem:[#allocation6 + $0x30] sm:$0xff]
    %v1574 = vld [vmem:[#allocation6 + $0x38] sm:$0xff]
    %v1575 = vld [vmem:[#allocation6 + $0x40] sm:$0xff]
    %v1576 = vld [vmem:[#allocation6 + $0x48] sm:$0xff]
    %v1577 = vld [vmem:[#allocation6 + $0x50] sm:$0xff]
    %v1578 = vld [vmem:[#allocation6 + $0x58] sm:$0xff]
    %v1579 = vld [vmem:[#allocation6 + $0x60] sm:$0xff]
    %v1580 = vld [vmem:[#allocation6 + $0x68] sm:$0xff]
    %v1581 = vld [vmem:[#allocation6 + $0x70] sm:$0xff]
    %v1582 = vld [vmem:[#allocation6 + $0x78] sm:$0xff]
    %v1583 = vld [vmem:[#allocation6 + $0x80] sm:$0xff]
    %v1584 = vld [vmem:[#allocation6 + $0x88] sm:$0xff]
    %v1585 = vld [vmem:[#allocation6 + $0x90] sm:$0xff]
    %v1586 = vld [vmem:[#allocation6 + $0x98] sm:$0xff]
    %v1587 = vld [vmem:[#allocation6 + $0xa0] sm:$0xff]
    %v1588 = vld [vmem:[#allocation6 + $0xa8] sm:$0xff]
    %v1589 = vld [vmem:[#allocation6 + $0xb0] sm:$0xff]
    %v1590 = vld [vmem:[#allocation6 + $0xb8] sm:$0xff]
    %v1591 = vld [vmem:[#allocation6 + $0xc0] sm:$0xff]
    %v1592 = vld [vmem:[#allocation6 + $0xc8] sm:$0xff]
    %v1593 = vld [vmem:[#allocation6 + $0xd0] sm:$0xff]
    %v1594 = vld [vmem:[#allocation6 + $0xd8] sm:$0xff]
    %v1595 = vld [vmem:[#allocation6 + $0xe0] sm:$0xff]
    %v1596 = vld [vmem:[#allocation6 + $0xe8] sm:$0xff]
    %v1597 = vld [vmem:[#allocation6 + $0xf0] sm:$0xff]
    %v1598 = vld [vmem:[#allocation6 + $0xf8] sm:$0xff]
    %v1631 = vunpack.c.l.b16 %v1567
    %v1632 = vunpack.c.h.b16 %v1567
    %v1633 = vunpack.c.l.b16 %v1568
    %v1634 = vunpack.c.h.b16 %v1568
    %v1635 = vunpack.c.l.b16 %v1569
    %v1636 = vunpack.c.h.b16 %v1569
    %v1637 = vunpack.c.l.b16 %v1570
    %v1638 = vunpack.c.h.b16 %v1570
    %v1639 = vunpack.c.l.b16 %v1571
    %v1640 = vunpack.c.h.b16 %v1571
    %v1641 = vunpack.c.l.b16 %v1572
    %v1642 = vunpack.c.h.b16 %v1572
    %v1643 = vunpack.c.l.b16 %v1573
    %v1644 = vunpack.c.h.b16 %v1573
    %v1645 = vunpack.c.l.b16 %v1574
    %v1646 = vunpack.c.h.b16 %v1574
    %v1647 = vunpack.c.l.b16 %v1575
    %v1648 = vunpack.c.h.b16 %v1575
    %v1649 = vunpack.c.l.b16 %v1576
    %v1650 = vunpack.c.h.b16 %v1576
    %v1651 = vunpack.c.l.b16 %v1577
    %v1652 = vunpack.c.h.b16 %v1577
    %v1653 = vunpack.c.l.b16 %v1578
    %v1654 = vunpack.c.h.b16 %v1578
    %v1655 = vunpack.c.l.b16 %v1579
    %v1656 = vunpack.c.h.b16 %v1579
    %v1657 = vunpack.c.l.b16 %v1580
    %v1658 = vunpack.c.h.b16 %v1580
    %v1659 = vunpack.c.l.b16 %v1581
    %v1660 = vunpack.c.h.b16 %v1581
    %v1661 = vunpack.c.l.b16 %v1582
    %v1662 = vunpack.c.h.b16 %v1582
    %v1663 = vunpack.c.l.b16 %v1583
    %v1664 = vunpack.c.h.b16 %v1583
    %v1665 = vunpack.c.l.b16 %v1584
    %v1666 = vunpack.c.h.b16 %v1584
    %v1667 = vunpack.c.l.b16 %v1585
    %v1668 = vunpack.c.h.b16 %v1585
    %v1669 = vunpack.c.l.b16 %v1586
    %v1670 = vunpack.c.h.b16 %v1586
    %v1671 = vunpack.c.l.b16 %v1587
    %v1672 = vunpack.c.h.b16 %v1587
    %v1673 = vunpack.c.l.b16 %v1588
    %v1674 = vunpack.c.h.b16 %v1588
    %v1675 = vunpack.c.l.b16 %v1589
    %v1676 = vunpack.c.h.b16 %v1589
    %v1677 = vunpack.c.l.b16 %v1590
    %v1678 = vunpack.c.h.b16 %v1590
    %v1679 = vunpack.c.l.b16 %v1591
    %v1680 = vunpack.c.h.b16 %v1591
    %v1681 = vunpack.c.l.b16 %v1592
    %v1682 = vunpack.c.h.b16 %v1592
    %v1683 = vunpack.c.l.b16 %v1593
    %v1684 = vunpack.c.h.b16 %v1593
    %v1685 = vunpack.c.l.b16 %v1594
    %v1686 = vunpack.c.h.b16 %v1594
    %v1687 = vunpack.c.l.b16 %v1595
    %v1688 = vunpack.c.h.b16 %v1595
    %v1689 = vunpack.c.l.b16 %v1596
    %v1690 = vunpack.c.h.b16 %v1596
    %v1691 = vunpack.c.l.b16 %v1597
    %v1692 = vunpack.c.h.b16 %v1597
    %v1693 = vunpack.c.l.b16 %v1598
    %v1694 = vunpack.c.h.b16 %v1598
    %v1695 = vpack.c.b16 %v1635, %v1631
    %v1696 = vpack.c.b16 %v1636, %v1632
    %v1697 = vpack.c.b16 %v1637, %v1633
    %v1698 = vpack.c.b16 %v1638, %v1634
    %v1699 = vpack.c.b16 %v1643, %v1639
    %v1700 = vpack.c.b16 %v1644, %v1640
    %v1701 = vpack.c.b16 %v1645, %v1641
    %v1702 = vpack.c.b16 %v1646, %v1642
    %v1703 = vpack.c.b16 %v1651, %v1647
    %v1704 = vpack.c.b16 %v1652, %v1648
    %v1705 = vpack.c.b16 %v1653, %v1649
    %v1706 = vpack.c.b16 %v1654, %v1650
    %v1707 = vpack.c.b16 %v1659, %v1655
    %v1708 = vpack.c.b16 %v1660, %v1656
    %v1709 = vpack.c.b16 %v1661, %v1657
    %v1710 = vpack.c.b16 %v1662, %v1658
    %v1711 = vpack.c.b16 %v1667, %v1663
    %v1712 = vpack.c.b16 %v1668, %v1664
    %v1713 = vpack.c.b16 %v1669, %v1665
    %v1714 = vpack.c.b16 %v1670, %v1666
    %v1715 = vpack.c.b16 %v1675, %v1671
    %v1716 = vpack.c.b16 %v1676, %v1672
    %v1717 = vpack.c.b16 %v1677, %v1673
    %v1718 = vpack.c.b16 %v1678, %v1674
    %v1719 = vpack.c.b16 %v1683, %v1679
    %v1720 = vpack.c.b16 %v1684, %v1680
    %v1721 = vpack.c.b16 %v1685, %v1681
    %v1722 = vpack.c.b16 %v1686, %v1682
    %v1723 = vpack.c.b16 %v1691, %v1687
    %v1724 = vpack.c.b16 %v1692, %v1688
    %v1725 = vpack.c.b16 %v1693, %v1689
    %v1726 = vpack.c.b16 %v1694, %v1690
    %1759 = vmatprep.subr.bf16.mxu0 %v1696
    %1760 = vmatpush1.bf16.msra.mxu0 %v1695
    %1761 = vmatprep.subr.bf16.mxu0 %v1700
    %1762 = vmatpush1.bf16.msra.mxu0 %v1699
    %1763 = vmatprep.subr.bf16.mxu0 %v1704
    %1764 = vmatpush1.bf16.msra.mxu0 %v1703
    %1765 = vmatprep.subr.bf16.mxu0 %v1708
    %1766 = vmatpush1.bf16.msra.mxu0 %v1707
    %1767 = vmatprep.subr.bf16.mxu0 %v1712
    %1768 = vmatpush1.bf16.msra.mxu0 %v1711
    %1769 = vmatprep.subr.bf16.mxu0 %v1716
    %1770 = vmatpush1.bf16.msra.mxu0 %v1715
    %1771 = vmatprep.subr.bf16.mxu0 %v1720
    %1772 = vmatpush1.bf16.msra.mxu0 %v1719
    %1773 = vmatprep.subr.bf16.mxu0 %v1724
    %1774 = vmatpush1.bf16.msra.mxu0 %v1723
    %1775 = vmatprep.subr.bf16.mxu0 0
    %1776 = vmatpush1.bf16.msra.mxu0 0
    %1777 = vmatprep.subr.bf16.mxu0 0
    %1778 = vmatpush1.bf16.msra.mxu0 0
    %1779 = vmatprep.subr.bf16.mxu0 0
    %1780 = vmatpush1.bf16.msra.mxu0 0
    %1781 = vmatprep.subr.bf16.mxu0 0
    %1782 = vmatpush1.bf16.msra.mxu0 0
    %1783 = vmatprep.subr.bf16.mxu0 0
    %1784 = vmatpush1.bf16.msra.mxu0 0
    %1785 = vmatprep.subr.bf16.mxu0 0
    %1786 = vmatpush1.bf16.msra.mxu0 0
    %1787 = vmatprep.subr.bf16.mxu0 0
    %1788 = vmatpush1.bf16.msra.mxu0 0
    %1789 = vmatprep.subr.bf16.mxu0 0
    %1790 = vmatpush1.bf16.msra.mxu0 0
    %1791 = vmatprep.mubr.bf16.mxu0 0
    %1792 = vmatmul.mubr.bf16.gmra.mrb[0].mxu0 %v1566
    %v1793 = vpop.f32.mrb[0].mxu0
    %v1794 = vadd.f32 0.0, %v1793
    %v1795 = vpop.f32.mrb[0].mxu0
    %v1796 = vadd.f32 0.0, %v1795
    %v1797 = vpop.f32.mrb[0].mxu0
    %v1798 = vpop.f32.mrb[0].mxu0
    %1799 = vdwg.mxu0
    %1800 = vmatprep.subr.bf16.mxu0 %v1698
    %1801 = vmatpush1.bf16.msra.mxu0 %v1697
    %1802 = vmatprep.subr.bf16.mxu0 %v1702
    %1803 = vmatpush1.bf16.msra.mxu0 %v1701
    %1804 = vmatprep.subr.bf16.mxu0 %v1706
    %1805 = vmatpush1.bf16.msra.mxu0 %v1705
    %1806 = vmatprep.subr.bf16.mxu0 %v1710
    %1807 = vmatpush1.bf16.msra.mxu0 %v1709
    %1808 = vmatprep.subr.bf16.mxu0 %v1714
    %1809 = vmatpush1.bf16.msra.mxu0 %v1713
    %1810 = vmatprep.subr.bf16.mxu0 %v1718
    %1811 = vmatpush1.bf16.msra.mxu0 %v1717
    %1812 = vmatprep.subr.bf16.mxu0 %v1722
    %1813 = vmatpush1.bf16.msra.mxu0 %v1721
    %1814 = vmatprep.subr.bf16.mxu0 %v1726
    %1815 = vmatpush1.bf16.msra.mxu0 %v1725
    %1816 = vmatprep.subr.bf16.mxu0 0
    %1817 = vmatpush1.bf16.msra.mxu0 0
    %1818 = vmatprep.subr.bf16.mxu0 0
    %1819 = vmatpush1.bf16.msra.mxu0 0
    %1820 = vmatprep.subr.bf16.mxu0 0
    %1821 = vmatpush1.bf16.msra.mxu0 0
    %1822 = vmatprep.subr.bf16.mxu0 0
    %1823 = vmatpush1.bf16.msra.mxu0 0
    %1824 = vmatprep.subr.bf16.mxu0 0
    %1825 = vmatpush1.bf16.msra.mxu0 0
    %1826 = vmatprep.subr.bf16.mxu0 0
    %1827 = vmatpush1.bf16.msra.mxu0 0
    %1828 = vmatprep.subr.bf16.mxu0 0
    %1829 = vmatpush1.bf16.msra.mxu0 0
    %1830 = vmatprep.subr.bf16.mxu0 0
    %1831 = vmatpush1.bf16.msra.mxu0 0
    %1832 = vmatprep.mubr.bf16.mxu0 0
    %1833 = vmatmul.mubr.bf16.gmra.mrb[0].mxu0 %v1566
    %v1834 = vpop.f32.mrb[0].mxu0
    %v1835 = vadd.f32 0.0, %v1834
    %v1836 = vpop.f32.mrb[0].mxu0
    %v1837 = vadd.f32 0.0, %v1836
    %v1838 = vpop.f32.mrb[0].mxu0
    %v1839 = vpop.f32.mrb[0].mxu0
    %1840 = vdwg.mxu0
    %v1841 = vadd.f32 %v1562, %v1794
    %v1842 = vadd.f32 %v1563, %v1796
    %v1843 = vadd.f32 %v1564, %v1835
    %v1844 = vadd.f32 %v1565, %v1837
    %v1845 = vxor.u32 %v1841, 2147483648
    %v1846 = vmul.f32 %v1845, 1.442695
    %v1847 = vpow.pop %v1846
    %v1848 = vadd.f32 %v1847, 1.0
    %v1849 = vrcp.pop %v1848
    %v1850 = vmul.f32 1.0, %v1849
    %v1851 = vxor.u32 %v1842, 2147483648
    %v1852 = vmul.f32 %v1851, 1.442695
    %v1853 = vpow.pop %v1852
    %v1854 = vadd.f32 %v1853, 1.0
    %v1855 = vrcp.pop %v1854
    %v1856 = vmul.f32 1.0, %v1855
    %v1857 = vtanh.pop %v1843
    %v1858 = vxor.u32 %v1844, 2147483648
    %v1859 = vmul.f32 %v1858, 1.442695
    %v1860 = vpow.pop %v1859
    %v1861 = vadd.f32 %v1860, 1.0
    %v1862 = vrcp.pop %v1861
    %v1863 = vmul.f32 1.0, %v1862
    %v1864 = vmul.f32 %v1856, %v976
    %v1865 = vmul.f32 %v1850, %v1857
    %v1866 = vadd.f32 %v1864, %v1865
    %v1867 = vtanh.pop %v1866
    %v1868 = vmul.f32 %v1863, %v1867
    %s1869 = scalar_lea.vmem %s9, 8
    %1870 = vst [vmem:[%s1869] sm:$0xff] %v1868
    %s1871 = scalar_lea.vmem %s0, 64
    %v1872 = vld [vmem:[%s1871] sm:$0xff]
    %v1873 = vld [vmem:[%s1871 + $0x8] sm:$0xff]
    %v1874 = vld [vmem:[%s1871 + $0x10] sm:$0xff]
    %v1875 = vld [vmem:[%s1871 + $0x18] sm:$0xff]
    %v1876 = vld [vmem:[%s1] sm:$0xff]
    %v1877 = vld [vmem:[%s1 + $0x8] sm:$0xff]
    %v1878 = vld [vmem:[%s1 + $0x10] sm:$0xff]
    %v1879 = vld [vmem:[%s1 + $0x18] sm:$0xff]
    %v1880 = vld [vmem:[%s1 + $0x20] sm:$0xff]
    %v1881 = vld [vmem:[%s1 + $0x28] sm:$0xff]
    %v1882 = vld [vmem:[%s1 + $0x30] sm:$0xff]
    %v1883 = vld [vmem:[%s1 + $0x38] sm:$0xff]
    %v1884 = vld [vmem:[%s1 + $0x40] sm:$0xff]
    %v1885 = vld [vmem:[%s1 + $0x48] sm:$0xff]
    %v1886 = vld [vmem:[%s1 + $0x50] sm:$0xff]
    %v1887 = vld [vmem:[%s1 + $0x58] sm:$0xff]
    %v1888 = vld [vmem:[%s1 + $0x60] sm:$0xff]
    %v1889 = vld [vmem:[%s1 + $0x68] sm:$0xff]
    %v1890 = vld [vmem:[%s1 + $0x70] sm:$0xff]
    %v1891 = vld [vmem:[%s1 + $0x78] sm:$0xff]
    %v1892 = vld [vmem:[%s1 + $0x80] sm:$0xff]
    %v1893 = vld [vmem:[%s1 + $0x88] sm:$0xff]
    %v1894 = vld [vmem:[%s1 + $0x90] sm:$0xff]
    %v1895 = vld [vmem:[%s1 + $0x98] sm:$0xff]
    %v1896 = vld [vmem:[%s1 + $0xa0] sm:$0xff]
    %v1897 = vld [vmem:[%s1 + $0xa8] sm:$0xff]
    %v1898 = vld [vmem:[%s1 + $0xb0] sm:$0xff]
    %v1899 = vld [vmem:[%s1 + $0xb8] sm:$0xff]
    %v1900 = vld [vmem:[%s1 + $0xc0] sm:$0xff]
    %v1901 = vld [vmem:[%s1 + $0xc8] sm:$0xff]
    %v1902 = vld [vmem:[%s1 + $0xd0] sm:$0xff]
    %v1903 = vld [vmem:[%s1 + $0xd8] sm:$0xff]
    %v1904 = vld [vmem:[%s1 + $0xe0] sm:$0xff]
    %v1905 = vld [vmem:[%s1 + $0xe8] sm:$0xff]
    %v1906 = vld [vmem:[%s1 + $0xf0] sm:$0xff]
    %v1907 = vld [vmem:[%s1 + $0xf8] sm:$0xff]
    %v1940 = vunpack.c.l.b16 %v1876
    %v1941 = vunpack.c.h.b16 %v1876
    %v1942 = vunpack.c.l.b16 %v1877
    %v1943 = vunpack.c.h.b16 %v1877
    %v1944 = vunpack.c.l.b16 %v1878
    %v1945 = vunpack.c.h.b16 %v1878
    %v1946 = vunpack.c.l.b16 %v1879
    %v1947 = vunpack.c.h.b16 %v1879
    %v1948 = vunpack.c.l.b16 %v1880
    %v1949 = vunpack.c.h.b16 %v1880
    %v1950 = vunpack.c.l.b16 %v1881
    %v1951 = vunpack.c.h.b16 %v1881
    %v1952 = vunpack.c.l.b16 %v1882
    %v1953 = vunpack.c.h.b16 %v1882
    %v1954 = vunpack.c.l.b16 %v1883
    %v1955 = vunpack.c.h.b16 %v1883
    %v1956 = vunpack.c.l.b16 %v1884
    %v1957 = vunpack.c.h.b16 %v1884
    %v1958 = vunpack.c.l.b16 %v1885
    %v1959 = vunpack.c.h.b16 %v1885
    %v1960 = vunpack.c.l.b16 %v1886
    %v1961 = vunpack.c.h.b16 %v1886
    %v1962 = vunpack.c.l.b16 %v1887
    %v1963 = vunpack.c.h.b16 %v1887
    %v1964 = vunpack.c.l.b16 %v1888
    %v1965 = vunpack.c.h.b16 %v1888
    %v1966 = vunpack.c.l.b16 %v1889
    %v1967 = vunpack.c.h.b16 %v1889
    %v1968 = vunpack.c.l.b16 %v1890
    %v1969 = vunpack.c.h.b16 %v1890
    %v1970 = vunpack.c.l.b16 %v1891
    %v1971 = vunpack.c.h.b16 %v1891
    %v1972 = vunpack.c.l.b16 %v1892
    %v1973 = vunpack.c.h.b16 %v1892
    %v1974 = vunpack.c.l.b16 %v1893
    %v1975 = vunpack.c.h.b16 %v1893
    %v1976 = vunpack.c.l.b16 %v1894
    %v1977 = vunpack.c.h.b16 %v1894
    %v1978 = vunpack.c.l.b16 %v1895
    %v1979 = vunpack.c.h.b16 %v1895
    %v1980 = vunpack.c.l.b16 %v1896
    %v1981 = vunpack.c.h.b16 %v1896
    %v1982 = vunpack.c.l.b16 %v1897
    %v1983 = vunpack.c.h.b16 %v1897
    %v1984 = vunpack.c.l.b16 %v1898
    %v1985 = vunpack.c.h.b16 %v1898
    %v1986 = vunpack.c.l.b16 %v1899
    %v1987 = vunpack.c.h.b16 %v1899
    %v1988 = vunpack.c.l.b16 %v1900
    %v1989 = vunpack.c.h.b16 %v1900
    %v1990 = vunpack.c.l.b16 %v1901
    %v1991 = vunpack.c.h.b16 %v1901
    %v1992 = vunpack.c.l.b16 %v1902
    %v1993 = vunpack.c.h.b16 %v1902
    %v1994 = vunpack.c.l.b16 %v1903
    %v1995 = vunpack.c.h.b16 %v1903
    %v1996 = vunpack.c.l.b16 %v1904
    %v1997 = vunpack.c.h.b16 %v1904
    %v1998 = vunpack.c.l.b16 %v1905
    %v1999 = vunpack.c.h.b16 %v1905
    %v2000 = vunpack.c.l.b16 %v1906
    %v2001 = vunpack.c.h.b16 %v1906
    %v2002 = vunpack.c.l.b16 %v1907
    %v2003 = vunpack.c.h.b16 %v1907
    %v2004 = vpack.c.b16 %v1944, %v1940
    %v2005 = vpack.c.b16 %v1945, %v1941
    %v2006 = vpack.c.b16 %v1946, %v1942
    %v2007 = vpack.c.b16 %v1947, %v1943
    %v2008 = vpack.c.b16 %v1952, %v1948
    %v2009 = vpack.c.b16 %v1953, %v1949
    %v2010 = vpack.c.b16 %v1954, %v1950
    %v2011 = vpack.c.b16 %v1955, %v1951
    %v2012 = vpack.c.b16 %v1960, %v1956
    %v2013 = vpack.c.b16 %v1961, %v1957
    %v2014 = vpack.c.b16 %v1962, %v1958
    %v2015 = vpack.c.b16 %v1963, %v1959
    %v2016 = vpack.c.b16 %v1968, %v1964
    %v2017 = vpack.c.b16 %v1969, %v1965
    %v2018 = vpack.c.b16 %v1970, %v1966
    %v2019 = vpack.c.b16 %v1971, %v1967
    %v2020 = vpack.c.b16 %v1976, %v1972
    %v2021 = vpack.c.b16 %v1977, %v1973
    %v2022 = vpack.c.b16 %v1978, %v1974
    %v2023 = vpack.c.b16 %v1979, %v1975
    %v2024 = vpack.c.b16 %v1984, %v1980
    %v2025 = vpack.c.b16 %v1985, %v1981
    %v2026 = vpack.c.b16 %v1986, %v1982
    %v2027 = vpack.c.b16 %v1987, %v1983
    %v2028 = vpack.c.b16 %v1992, %v1988
    %v2029 = vpack.c.b16 %v1993, %v1989
    %v2030 = vpack.c.b16 %v1994, %v1990
    %v2031 = vpack.c.b16 %v1995, %v1991
    %v2032 = vpack.c.b16 %v2000, %v1996
    %v2033 = vpack.c.b16 %v2001, %v1997
    %v2034 = vpack.c.b16 %v2002, %v1998
    %v2035 = vpack.c.b16 %v2003, %v1999
    %2068 = vmatprep.subr.bf16.mxu0 %v2005
    %2069 = vmatpush1.bf16.msra.mxu0 %v2004
    %2070 = vmatprep.subr.bf16.mxu0 %v2009
    %2071 = vmatpush1.bf16.msra.mxu0 %v2008
    %2072 = vmatprep.subr.bf16.mxu0 %v2013
    %2073 = vmatpush1.bf16.msra.mxu0 %v2012
    %2074 = vmatprep.subr.bf16.mxu0 %v2017
    %2075 = vmatpush1.bf16.msra.mxu0 %v2016
    %2076 = vmatprep.subr.bf16.mxu0 %v2021
    %2077 = vmatpush1.bf16.msra.mxu0 %v2020
    %2078 = vmatprep.subr.bf16.mxu0 %v2025
    %2079 = vmatpush1.bf16.msra.mxu0 %v2024
    %2080 = vmatprep.subr.bf16.mxu0 %v2029
    %2081 = vmatpush1.bf16.msra.mxu0 %v2028
    %2082 = vmatprep.subr.bf16.mxu0 %v2033
    %2083 = vmatpush1.bf16.msra.mxu0 %v2032
    %2084 = vmatprep.subr.bf16.mxu0 0
    %2085 = vmatpush1.bf16.msra.mxu0 0
    %2086 = vmatprep.subr.bf16.mxu0 0
    %2087 = vmatpush1.bf16.msra.mxu0 0
    %2088 = vmatprep.subr.bf16.mxu0 0
    %2089 = vmatpush1.bf16.msra.mxu0 0
    %2090 = vmatprep.subr.bf16.mxu0 0
    %2091 = vmatpush1.bf16.msra.mxu0 0
    %2092 = vmatprep.subr.bf16.mxu0 0
    %2093 = vmatpush1.bf16.msra.mxu0 0
    %2094 = vmatprep.subr.bf16.mxu0 0
    %2095 = vmatpush1.bf16.msra.mxu0 0
    %2096 = vmatprep.subr.bf16.mxu0 0
    %2097 = vmatpush1.bf16.msra.mxu0 0
    %2098 = vmatprep.subr.bf16.mxu0 0
    %2099 = vmatpush1.bf16.msra.mxu0 0
    %2100 = vmatprep.mubr.bf16.mxu0 0
    %2101 = vmatmul.mubr.bf16.gmra.mrb[0].mxu0 %v1287
    %v2102 = vpop.f32.mrb[0].mxu0
    %v2103 = vadd.f32 0.0, %v2102
    %v2104 = vpop.f32.mrb[0].mxu0
    %v2105 = vadd.f32 0.0, %v2104
    %v2106 = vpop.f32.mrb[0].mxu0
    %v2107 = vpop.f32.mrb[0].mxu0
    %2108 = vdwg.mxu0
    %2109 = vmatprep.subr.bf16.mxu0 %v2007
    %2110 = vmatpush1.bf16.msra.mxu0 %v2006
    %2111 = vmatprep.subr.bf16.mxu0 %v2011
    %2112 = vmatpush1.bf16.msra.mxu0 %v2010
    %2113 = vmatprep.subr.bf16.mxu0 %v2015
    %2114 = vmatpush1.bf16.msra.mxu0 %v2014
    %2115 = vmatprep.subr.bf16.mxu0 %v2019
    %2116 = vmatpush1.bf16.msra.mxu0 %v2018
    %2117 = vmatprep.subr.bf16.mxu0 %v2023
    %2118 = vmatpush1.bf16.msra.mxu0 %v2022
    %2119 = vmatprep.subr.bf16.mxu0 %v2027
    %2120 = vmatpush1.bf16.msra.mxu0 %v2026
    %2121 = vmatprep.subr.bf16.mxu0 %v2031
    %2122 = vmatpush1.bf16.msra.mxu0 %v2030
    %2123 = vmatprep.subr.bf16.mxu0 %v2035
    %2124 = vmatpush1.bf16.msra.mxu0 %v2034
    %2125 = vmatprep.subr.bf16.mxu0 0
    %2126 = vmatpush1.bf16.msra.mxu0 0
    %2127 = vmatprep.subr.bf16.mxu0 0
    %2128 = vmatpush1.bf16.msra.mxu0 0
    %2129 = vmatprep.subr.bf16.mxu0 0
    %2130 = vmatpush1.bf16.msra.mxu0 0
    %2131 = vmatprep.subr.bf16.mxu0 0
    %2132 = vmatpush1.bf16.msra.mxu0 0
    %2133 = vmatprep.subr.bf16.mxu0 0
    %2134 = vmatpush1.bf16.msra.mxu0 0
    %2135 = vmatprep.subr.bf16.mxu0 0
    %2136 = vmatpush1.bf16.msra.mxu0 0
    %2137 = vmatprep.subr.bf16.mxu0 0
    %2138 = vmatpush1.bf16.msra.mxu0 0
    %2139 = vmatprep.subr.bf16.mxu0 0
    %2140 = vmatpush1.bf16.msra.mxu0 0
    %2141 = vmatprep.mubr.bf16.mxu0 0
    %2142 = vmatmul.mubr.bf16.gmra.mrb[0].mxu0 %v1287
    %v2143 = vpop.f32.mrb[0].mxu0
    %v2144 = vadd.f32 0.0, %v2143
    %v2145 = vpop.f32.mrb[0].mxu0
    %v2146 = vadd.f32 0.0, %v2145
    %v2147 = vpop.f32.mrb[0].mxu0
    %v2148 = vpop.f32.mrb[0].mxu0
    %2149 = vdwg.mxu0
    %v2150 = vadd.f32 %v1872, %v2103
    %v2151 = vadd.f32 %v1873, %v2105
    %v2152 = vadd.f32 %v1874, %v2144
    %v2153 = vadd.f32 %v1875, %v2146
    %v2154 = vxor.u32 %v2150, 2147483648
    %v2155 = vmul.f32 %v2154, 1.442695
    %v2156 = vpow.pop %v2155
    %v2157 = vadd.f32 %v2156, 1.0
    %v2158 = vrcp.pop %v2157
    %v2159 = vmul.f32 1.0, %v2158
    %v2160 = vxor.u32 %v2151, 2147483648
    %v2161 = vmul.f32 %v2160, 1.442695
    %v2162 = vpow.pop %v2161
    %v2163 = vadd.f32 %v2162, 1.0
    %v2164 = vrcp.pop %v2163
    %v2165 = vmul.f32 1.0, %v2164
    %v2166 = vtanh.pop %v2152
    %v2167 = vxor.u32 %v2153, 2147483648
    %v2168 = vmul.f32 %v2167, 1.442695
    %v2169 = vpow.pop %v2168
    %v2170 = vadd.f32 %v2169, 1.0
    %v2171 = vrcp.pop %v2170
    %v2172 = vmul.f32 1.0, %v2171
    %v2173 = vmul.f32 %v2165, %v1284
    %v2174 = vmul.f32 %v2159, %v2166
    %v2175 = vadd.f32 %v2173, %v2174
    %v2176 = vtanh.pop %v2175
    %v2177 = vmul.f32 %v2172, %v2176
    %v2178 = vpack.c.bf16 %v2177, %v2177
    %v2179 = vld [vmem:[%s2] sm:$0xff]
    %v2180 = vld [vmem:[%s2 + $0x8] sm:$0xff]
    %v2181 = vld [vmem:[%s2 + $0x10] sm:$0xff]
    %v2182 = vld [vmem:[%s2 + $0x18] sm:$0xff]
    %v2183 = vld [vmem:[%s2 + $0x20] sm:$0xff]
    %v2184 = vld [vmem:[%s2 + $0x28] sm:$0xff]
    %v2185 = vld [vmem:[%s2 + $0x30] sm:$0xff]
    %v2186 = vld [vmem:[%s2 + $0x38] sm:$0xff]
    %v2187 = vld [vmem:[%s2 + $0x40] sm:$0xff]
    %v2188 = vld [vmem:[%s2 + $0x48] sm:$0xff]
    %v2189 = vld [vmem:[%s2 + $0x50] sm:$0xff]
    %v2190 = vld [vmem:[%s2 + $0x58] sm:$0xff]
    %v2191 = vld [vmem:[%s2 + $0x60] sm:$0xff]
    %v2192 = vld [vmem:[%s2 + $0x68] sm:$0xff]
    %v2193 = vld [vmem:[%s2 + $0x70] sm:$0xff]
    %v2194 = vld [vmem:[%s2 + $0x78] sm:$0xff]
    %v2195 = vld [vmem:[%s2 + $0x80] sm:$0xff]
    %v2196 = vld [vmem:[%s2 + $0x88] sm:$0xff]
    %v2197 = vld [vmem:[%s2 + $0x90] sm:$0xff]
    %v2198 = vld [vmem:[%s2 + $0x98] sm:$0xff]
    %v2199 = vld [vmem:[%s2 + $0xa0] sm:$0xff]
    %v2200 = vld [vmem:[%s2 + $0xa8] sm:$0xff]
    %v2201 = vld [vmem:[%s2 + $0xb0] sm:$0xff]
    %v2202 = vld [vmem:[%s2 + $0xb8] sm:$0xff]
    %v2203 = vld [vmem:[%s2 + $0xc0] sm:$0xff]
    %v2204 = vld [vmem:[%s2 + $0xc8] sm:$0xff]
    %v2205 = vld [vmem:[%s2 + $0xd0] sm:$0xff]
    %v2206 = vld [vmem:[%s2 + $0xd8] sm:$0xff]
    %v2207 = vld [vmem:[%s2 + $0xe0] sm:$0xff]
    %v2208 = vld [vmem:[%s2 + $0xe8] sm:$0xff]
    %v2209 = vld [vmem:[%s2 + $0xf0] sm:$0xff]
    %v2210 = vld [vmem:[%s2 + $0xf8] sm:$0xff]
    %v2243 = vunpack.c.l.b16 %v2179
    %v2244 = vunpack.c.h.b16 %v2179
    %v2245 = vunpack.c.l.b16 %v2180
    %v2246 = vunpack.c.h.b16 %v2180
    %v2247 = vunpack.c.l.b16 %v2181
    %v2248 = vunpack.c.h.b16 %v2181
    %v2249 = vunpack.c.l.b16 %v2182
    %v2250 = vunpack.c.h.b16 %v2182
    %v2251 = vunpack.c.l.b16 %v2183
    %v2252 = vunpack.c.h.b16 %v2183
    %v2253 = vunpack.c.l.b16 %v2184
    %v2254 = vunpack.c.h.b16 %v2184
    %v2255 = vunpack.c.l.b16 %v2185
    %v2256 = vunpack.c.h.b16 %v2185
    %v2257 = vunpack.c.l.b16 %v2186
    %v2258 = vunpack.c.h.b16 %v2186
    %v2259 = vunpack.c.l.b16 %v2187
    %v2260 = vunpack.c.h.b16 %v2187
    %v2261 = vunpack.c.l.b16 %v2188
    %v2262 = vunpack.c.h.b16 %v2188
    %v2263 = vunpack.c.l.b16 %v2189
    %v2264 = vunpack.c.h.b16 %v2189
    %v2265 = vunpack.c.l.b16 %v2190
    %v2266 = vunpack.c.h.b16 %v2190
    %v2267 = vunpack.c.l.b16 %v2191
    %v2268 = vunpack.c.h.b16 %v2191
    %v2269 = vunpack.c.l.b16 %v2192
    %v2270 = vunpack.c.h.b16 %v2192
    %v2271 = vunpack.c.l.b16 %v2193
    %v2272 = vunpack.c.h.b16 %v2193
    %v2273 = vunpack.c.l.b16 %v2194
    %v2274 = vunpack.c.h.b16 %v2194
    %v2275 = vunpack.c.l.b16 %v2195
    %v2276 = vunpack.c.h.b16 %v2195
    %v2277 = vunpack.c.l.b16 %v2196
    %v2278 = vunpack.c.h.b16 %v2196
    %v2279 = vunpack.c.l.b16 %v2197
    %v2280 = vunpack.c.h.b16 %v2197
    %v2281 = vunpack.c.l.b16 %v2198
    %v2282 = vunpack.c.h.b16 %v2198
    %v2283 = vunpack.c.l.b16 %v2199
    %v2284 = vunpack.c.h.b16 %v2199
    %v2285 = vunpack.c.l.b16 %v2200
    %v2286 = vunpack.c.h.b16 %v2200
    %v2287 = vunpack.c.l.b16 %v2201
    %v2288 = vunpack.c.h.b16 %v2201
    %v2289 = vunpack.c.l.b16 %v2202
    %v2290 = vunpack.c.h.b16 %v2202
    %v2291 = vunpack.c.l.b16 %v2203
    %v2292 = vunpack.c.h.b16 %v2203
    %v2293 = vunpack.c.l.b16 %v2204
    %v2294 = vunpack.c.h.b16 %v2204
    %v2295 = vunpack.c.l.b16 %v2205
    %v2296 = vunpack.c.h.b16 %v2205
    %v2297 = vunpack.c.l.b16 %v2206
    %v2298 = vunpack.c.h.b16 %v2206
    %v2299 = vunpack.c.l.b16 %v2207
    %v2300 = vunpack.c.h.b16 %v2207
    %v2301 = vunpack.c.l.b16 %v2208
    %v2302 = vunpack.c.h.b16 %v2208
    %v2303 = vunpack.c.l.b16 %v2209
    %v2304 = vunpack.c.h.b16 %v2209
    %v2305 = vunpack.c.l.b16 %v2210
    %v2306 = vunpack.c.h.b16 %v2210
    %v2307 = vpack.c.b16 %v2247, %v2243
    %v2308 = vpack.c.b16 %v2248, %v2244
    %v2309 = vpack.c.b16 %v2249, %v2245
    %v2310 = vpack.c.b16 %v2250, %v2246
    %v2311 = vpack.c.b16 %v2255, %v2251
    %v2312 = vpack.c.b16 %v2256, %v2252
    %v2313 = vpack.c.b16 %v2257, %v2253
    %v2314 = vpack.c.b16 %v2258, %v2254
    %v2315 = vpack.c.b16 %v2263, %v2259
    %v2316 = vpack.c.b16 %v2264, %v2260
    %v2317 = vpack.c.b16 %v2265, %v2261
    %v2318 = vpack.c.b16 %v2266, %v2262
    %v2319 = vpack.c.b16 %v2271, %v2267
    %v2320 = vpack.c.b16 %v2272, %v2268
    %v2321 = vpack.c.b16 %v2273, %v2269
    %v2322 = vpack.c.b16 %v2274, %v2270
    %v2323 = vpack.c.b16 %v2279, %v2275
    %v2324 = vpack.c.b16 %v2280, %v2276
    %v2325 = vpack.c.b16 %v2281, %v2277
    %v2326 = vpack.c.b16 %v2282, %v2278
    %v2327 = vpack.c.b16 %v2287, %v2283
    %v2328 = vpack.c.b16 %v2288, %v2284
    %v2329 = vpack.c.b16 %v2289, %v2285
    %v2330 = vpack.c.b16 %v2290, %v2286
    %v2331 = vpack.c.b16 %v2295, %v2291
    %v2332 = vpack.c.b16 %v2296, %v2292
    %v2333 = vpack.c.b16 %v2297, %v2293
    %v2334 = vpack.c.b16 %v2298, %v2294
    %v2335 = vpack.c.b16 %v2303, %v2299
    %v2336 = vpack.c.b16 %v2304, %v2300
    %v2337 = vpack.c.b16 %v2305, %v2301
    %v2338 = vpack.c.b16 %v2306, %v2302
    %2371 = vmatprep.subr.bf16.mxu0 %v2308
    %2372 = vmatpush1.bf16.msra.mxu0 %v2307
    %2373 = vmatprep.subr.bf16.mxu0 %v2312
    %2374 = vmatpush1.bf16.msra.mxu0 %v2311
    %2375 = vmatprep.subr.bf16.mxu0 %v2316
    %2376 = vmatpush1.bf16.msra.mxu0 %v2315
    %2377 = vmatprep.subr.bf16.mxu0 %v2320
    %2378 = vmatpush1.bf16.msra.mxu0 %v2319
    %2379 = vmatprep.subr.bf16.mxu0 %v2324
    %2380 = vmatpush1.bf16.msra.mxu0 %v2323
    %2381 = vmatprep.subr.bf16.mxu0 %v2328
    %2382 = vmatpush1.bf16.msra.mxu0 %v2327
    %2383 = vmatprep.subr.bf16.mxu0 %v2332
    %2384 = vmatpush1.bf16.msra.mxu0 %v2331
    %2385 = vmatprep.subr.bf16.mxu0 %v2336
    %2386 = vmatpush1.bf16.msra.mxu0 %v2335
    %2387 = vmatprep.subr.bf16.mxu0 0
    %2388 = vmatpush1.bf16.msra.mxu0 0
    %2389 = vmatprep.subr.bf16.mxu0 0
    %2390 = vmatpush1.bf16.msra.mxu0 0
    %2391 = vmatprep.subr.bf16.mxu0 0
    %2392 = vmatpush1.bf16.msra.mxu0 0
    %2393 = vmatprep.subr.bf16.mxu0 0
    %2394 = vmatpush1.bf16.msra.mxu0 0
    %2395 = vmatprep.subr.bf16.mxu0 0
    %2396 = vmatpush1.bf16.msra.mxu0 0
    %2397 = vmatprep.subr.bf16.mxu0 0
    %2398 = vmatpush1.bf16.msra.mxu0 0
    %2399 = vmatprep.subr.bf16.mxu0 0
    %2400 = vmatpush1.bf16.msra.mxu0 0
    %2401 = vmatprep.subr.bf16.mxu0 0
    %2402 = vmatpush1.bf16.msra.mxu0 0
    %2403 = vmatprep.mubr.bf16.mxu0 0
    %2404 = vmatmul.mubr.bf16.gmra.mrb[0].mxu0 %v2178
    %v2405 = vpop.f32.mrb[0].mxu0
    %v2406 = vadd.f32 0.0, %v2405
    %v2407 = vpop.f32.mrb[0].mxu0
    %v2408 = vadd.f32 0.0, %v2407
    %v2409 = vpop.f32.mrb[0].mxu0
    %v2410 = vpop.f32.mrb[0].mxu0
    %2411 = vdwg.mxu0
    %2412 = vmatprep.subr.bf16.mxu0 %v2310
    %2413 = vmatpush1.bf16.msra.mxu0 %v2309
    %2414 = vmatprep.subr.bf16.mxu0 %v2314
    %2415 = vmatpush1.bf16.msra.mxu0 %v2313
    %2416 = vmatprep.subr.bf16.mxu0 %v2318
    %2417 = vmatpush1.bf16.msra.mxu0 %v2317
    %2418 = vmatprep.subr.bf16.mxu0 %v2322
    %2419 = vmatpush1.bf16.msra.mxu0 %v2321
    %2420 = vmatprep.subr.bf16.mxu0 %v2326
    %2421 = vmatpush1.bf16.msra.mxu0 %v2325
    %2422 = vmatprep.subr.bf16.mxu0 %v2330
    %2423 = vmatpush1.bf16.msra.mxu0 %v2329
    %2424 = vmatprep.subr.bf16.mxu0 %v2334
    %2425 = vmatpush1.bf16.msra.mxu0 %v2333
    %2426 = vmatprep.subr.bf16.mxu0 %v2338
    %2427 = vmatpush1.bf16.msra.mxu0 %v2337
    %2428 = vmatprep.subr.bf16.mxu0 0
    %2429 = vmatpush1.bf16.msra.mxu0 0
    %2430 = vmatprep.subr.bf16.mxu0 0
    %2431 = vmatpush1.bf16.msra.mxu0 0
    %2432 = vmatprep.subr.bf16.mxu0 0
    %2433 = vmatpush1.bf16.msra.mxu0 0
    %2434 = vmatprep.subr.bf16.mxu0 0
    %2435 = vmatpush1.bf16.msra.mxu0 0
    %2436 = vmatprep.subr.bf16.mxu0 0
    %2437 = vmatpush1.bf16.msra.mxu0 0
    %2438 = vmatprep.subr.bf16.mxu0 0
    %2439 = vmatpush1.bf16.msra.mxu0 0
    %2440 = vmatprep.subr.bf16.mxu0 0
    %2441 = vmatpush1.bf16.msra.mxu0 0
    %2442 = vmatprep.subr.bf16.mxu0 0
    %2443 = vmatpush1.bf16.msra.mxu0 0
    %2444 = vmatprep.mubr.bf16.mxu0 0
    %2445 = vmatmul.mubr.bf16.gmra.mrb[0].mxu0 %v2178
    %v2446 = vpop.f32.mrb[0].mxu0
    %v2447 = vadd.f32 0.0, %v2446
    %v2448 = vpop.f32.mrb[0].mxu0
    %v2449 = vadd.f32 0.0, %v2448
    %v2450 = vpop.f32.mrb[0].mxu0
    %v2451 = vpop.f32.mrb[0].mxu0
    %2452 = vdwg.mxu0
    %v2453 = vadd.f32 %v655, %v2406
    %v2454 = vadd.f32 %v659, %v2408
    %v2455 = vadd.f32 %v663, %v2447
    %v2456 = vadd.f32 %v667, %v2449
    %v2457 = vpack.c.bf16 %v1868, %v1868
    %v2458 = vld [vmem:[#allocation6] sm:$0xff]
    %v2459 = vld [vmem:[#allocation6 + $0x8] sm:$0xff]
    %v2460 = vld [vmem:[#allocation6 + $0x10] sm:$0xff]
    %v2461 = vld [vmem:[#allocation6 + $0x18] sm:$0xff]
    %v2462 = vld [vmem:[#allocation6 + $0x20] sm:$0xff]
    %v2463 = vld [vmem:[#allocation6 + $0x28] sm:$0xff]
    %v2464 = vld [vmem:[#allocation6 + $0x30] sm:$0xff]
    %v2465 = vld [vmem:[#allocation6 + $0x38] sm:$0xff]
    %v2466 = vld [vmem:[#allocation6 + $0x40] sm:$0xff]
    %v2467 = vld [vmem:[#allocation6 + $0x48] sm:$0xff]
    %v2468 = vld [vmem:[#allocation6 + $0x50] sm:$0xff]
    %v2469 = vld [vmem:[#allocation6 + $0x58] sm:$0xff]
    %v2470 = vld [vmem:[#allocation6 + $0x60] sm:$0xff]
    %v2471 = vld [vmem:[#allocation6 + $0x68] sm:$0xff]
    %v2472 = vld [vmem:[#allocation6 + $0x70] sm:$0xff]
    %v2473 = vld [vmem:[#allocation6 + $0x78] sm:$0xff]
    %v2474 = vld [vmem:[#allocation6 + $0x80] sm:$0xff]
    %v2475 = vld [vmem:[#allocation6 + $0x88] sm:$0xff]
    %v2476 = vld [vmem:[#allocation6 + $0x90] sm:$0xff]
    %v2477 = vld [vmem:[#allocation6 + $0x98] sm:$0xff]
    %v2478 = vld [vmem:[#allocation6 + $0xa0] sm:$0xff]
    %v2479 = vld [vmem:[#allocation6 + $0xa8] sm:$0xff]
    %v2480 = vld [vmem:[#allocation6 + $0xb0] sm:$0xff]
    %v2481 = vld [vmem:[#allocation6 + $0xb8] sm:$0xff]
    %v2482 = vld [vmem:[#allocation6 + $0xc0] sm:$0xff]
    %v2483 = vld [vmem:[#allocation6 + $0xc8] sm:$0xff]
    %v2484 = vld [vmem:[#allocation6 + $0xd0] sm:$0xff]
    %v2485 = vld [vmem:[#allocation6 + $0xd8] sm:$0xff]
    %v2486 = vld [vmem:[#allocation6 + $0xe0] sm:$0xff]
    %v2487 = vld [vmem:[#allocation6 + $0xe8] sm:$0xff]
    %v2488 = vld [vmem:[#allocation6 + $0xf0] sm:$0xff]
    %v2489 = vld [vmem:[#allocation6 + $0xf8] sm:$0xff]
    %v2522 = vunpack.c.l.b16 %v2458
    %v2523 = vunpack.c.h.b16 %v2458
    %v2524 = vunpack.c.l.b16 %v2459
    %v2525 = vunpack.c.h.b16 %v2459
    %v2526 = vunpack.c.l.b16 %v2460
    %v2527 = vunpack.c.h.b16 %v2460
    %v2528 = vunpack.c.l.b16 %v2461
    %v2529 = vunpack.c.h.b16 %v2461
    %v2530 = vunpack.c.l.b16 %v2462
    %v2531 = vunpack.c.h.b16 %v2462
    %v2532 = vunpack.c.l.b16 %v2463
    %v2533 = vunpack.c.h.b16 %v2463
    %v2534 = vunpack.c.l.b16 %v2464
    %v2535 = vunpack.c.h.b16 %v2464
    %v2536 = vunpack.c.l.b16 %v2465
    %v2537 = vunpack.c.h.b16 %v2465
    %v2538 = vunpack.c.l.b16 %v2466
    %v2539 = vunpack.c.h.b16 %v2466
    %v2540 = vunpack.c.l.b16 %v2467
    %v2541 = vunpack.c.h.b16 %v2467
    %v2542 = vunpack.c.l.b16 %v2468
    %v2543 = vunpack.c.h.b16 %v2468
    %v2544 = vunpack.c.l.b16 %v2469
    %v2545 = vunpack.c.h.b16 %v2469
    %v2546 = vunpack.c.l.b16 %v2470
    %v2547 = vunpack.c.h.b16 %v2470
    %v2548 = vunpack.c.l.b16 %v2471
    %v2549 = vunpack.c.h.b16 %v2471
    %v2550 = vunpack.c.l.b16 %v2472
    %v2551 = vunpack.c.h.b16 %v2472
    %v2552 = vunpack.c.l.b16 %v2473
    %v2553 = vunpack.c.h.b16 %v2473
    %v2554 = vunpack.c.l.b16 %v2474
    %v2555 = vunpack.c.h.b16 %v2474
    %v2556 = vunpack.c.l.b16 %v2475
    %v2557 = vunpack.c.h.b16 %v2475
    %v2558 = vunpack.c.l.b16 %v2476
    %v2559 = vunpack.c.h.b16 %v2476
    %v2560 = vunpack.c.l.b16 %v2477
    %v2561 = vunpack.c.h.b16 %v2477
    %v2562 = vunpack.c.l.b16 %v2478
    %v2563 = vunpack.c.h.b16 %v2478
    %v2564 = vunpack.c.l.b16 %v2479
    %v2565 = vunpack.c.h.b16 %v2479
    %v2566 = vunpack.c.l.b16 %v2480
    %v2567 = vunpack.c.h.b16 %v2480
    %v2568 = vunpack.c.l.b16 %v2481
    %v2569 = vunpack.c.h.b16 %v2481
    %v2570 = vunpack.c.l.b16 %v2482
    %v2571 = vunpack.c.h.b16 %v2482
    %v2572 = vunpack.c.l.b16 %v2483
    %v2573 = vunpack.c.h.b16 %v2483
    %v2574 = vunpack.c.l.b16 %v2484
    %v2575 = vunpack.c.h.b16 %v2484
    %v2576 = vunpack.c.l.b16 %v2485
    %v2577 = vunpack.c.h.b16 %v2485
    %v2578 = vunpack.c.l.b16 %v2486
    %v2579 = vunpack.c.h.b16 %v2486
    %v2580 = vunpack.c.l.b16 %v2487
    %v2581 = vunpack.c.h.b16 %v2487
    %v2582 = vunpack.c.l.b16 %v2488
    %v2583 = vunpack.c.h.b16 %v2488
    %v2584 = vunpack.c.l.b16 %v2489
    %v2585 = vunpack.c.h.b16 %v2489
    %v2586 = vpack.c.b16 %v2526, %v2522
    %v2587 = vpack.c.b16 %v2527, %v2523
    %v2588 = vpack.c.b16 %v2528, %v2524
    %v2589 = vpack.c.b16 %v2529, %v2525
    %v2590 = vpack.c.b16 %v2534, %v2530
    %v2591 = vpack.c.b16 %v2535, %v2531
    %v2592 = vpack.c.b16 %v2536, %v2532
    %v2593 = vpack.c.b16 %v2537, %v2533
    %v2594 = vpack.c.b16 %v2542, %v2538
    %v2595 = vpack.c.b16 %v2543, %v2539
    %v2596 = vpack.c.b16 %v2544, %v2540
    %v2597 = vpack.c.b16 %v2545, %v2541
    %v2598 = vpack.c.b16 %v2550, %v2546
    %v2599 = vpack.c.b16 %v2551, %v2547
    %v2600 = vpack.c.b16 %v2552, %v2548
    %v2601 = vpack.c.b16 %v2553, %v2549
    %v2602 = vpack.c.b16 %v2558, %v2554
    %v2603 = vpack.c.b16 %v2559, %v2555
    %v2604 = vpack.c.b16 %v2560, %v2556
    %v2605 = vpack.c.b16 %v2561, %v2557
    %v2606 = vpack.c.b16 %v2566, %v2562
    %v2607 = vpack.c.b16 %v2567, %v2563
    %v2608 = vpack.c.b16 %v2568, %v2564
    %v2609 = vpack.c.b16 %v2569, %v2565
    %v2610 = vpack.c.b16 %v2574, %v2570
    %v2611 = vpack.c.b16 %v2575, %v2571
    %v2612 = vpack.c.b16 %v2576, %v2572
    %v2613 = vpack.c.b16 %v2577, %v2573
    %v2614 = vpack.c.b16 %v2582, %v2578
    %v2615 = vpack.c.b16 %v2583, %v2579
    %v2616 = vpack.c.b16 %v2584, %v2580
    %v2617 = vpack.c.b16 %v2585, %v2581
    %2650 = vmatprep.subr.bf16.mxu0 %v2587
    %2651 = vmatpush1.bf16.msra.mxu0 %v2586
    %2652 = vmatprep.subr.bf16.mxu0 %v2591
    %2653 = vmatpush1.bf16.msra.mxu0 %v2590
    %2654 = vmatprep.subr.bf16.mxu0 %v2595
    %2655 = vmatpush1.bf16.msra.mxu0 %v2594
    %2656 = vmatprep.subr.bf16.mxu0 %v2599
    %2657 = vmatpush1.bf16.msra.mxu0 %v2598
    %2658 = vmatprep.subr.bf16.mxu0 %v2603
    %2659 = vmatpush1.bf16.msra.mxu0 %v2602
    %2660 = vmatprep.subr.bf16.mxu0 %v2607
    %2661 = vmatpush1.bf16.msra.mxu0 %v2606
    %2662 = vmatprep.subr.bf16.mxu0 %v2611
    %2663 = vmatpush1.bf16.msra.mxu0 %v2610
    %2664 = vmatprep.subr.bf16.mxu0 %v2615
    %2665 = vmatpush1.bf16.msra.mxu0 %v2614
    %2666 = vmatprep.subr.bf16.mxu0 0
    %2667 = vmatpush1.bf16.msra.mxu0 0
    %2668 = vmatprep.subr.bf16.mxu0 0
    %2669 = vmatpush1.bf16.msra.mxu0 0
    %2670 = vmatprep.subr.bf16.mxu0 0
    %2671 = vmatpush1.bf16.msra.mxu0 0
    %2672 = vmatprep.subr.bf16.mxu0 0
    %2673 = vmatpush1.bf16.msra.mxu0 0
    %2674 = vmatprep.subr.bf16.mxu0 0
    %2675 = vmatpush1.bf16.msra.mxu0 0
    %2676 = vmatprep.subr.bf16.mxu0 0
    %2677 = vmatpush1.bf16.msra.mxu0 0
    %2678 = vmatprep.subr.bf16.mxu0 0
    %2679 = vmatpush1.bf16.msra.mxu0 0
    %2680 = vmatprep.subr.bf16.mxu0 0
    %2681 = vmatpush1.bf16.msra.mxu0 0
    %2682 = vmatprep.mubr.bf16.mxu0 0
    %2683 = vmatmul.mubr.bf16.gmra.mrb[0].mxu0 %v2457
    %v2684 = vpop.f32.mrb[0].mxu0
    %v2685 = vadd.f32 0.0, %v2684
    %v2686 = vpop.f32.mrb[0].mxu0
    %v2687 = vadd.f32 0.0, %v2686
    %v2688 = vpop.f32.mrb[0].mxu0
    %v2689 = vpop.f32.mrb[0].mxu0
    %2690 = vdwg.mxu0
    %2691 = vmatprep.subr.bf16.mxu0 %v2589
    %2692 = vmatpush1.bf16.msra.mxu0 %v2588
    %2693 = vmatprep.subr.bf16.mxu0 %v2593
    %2694 = vmatpush1.bf16.msra.mxu0 %v2592
    %2695 = vmatprep.subr.bf16.mxu0 %v2597
    %2696 = vmatpush1.bf16.msra.mxu0 %v2596
    %2697 = vmatprep.subr.bf16.mxu0 %v2601
    %2698 = vmatpush1.bf16.msra.mxu0 %v2600
    %2699 = vmatprep.subr.bf16.mxu0 %v2605
    %2700 = vmatpush1.bf16.msra.mxu0 %v2604
    %2701 = vmatprep.subr.bf16.mxu0 %v2609
    %2702 = vmatpush1.bf16.msra.mxu0 %v2608
    %2703 = vmatprep.subr.bf16.mxu0 %v2613
    %2704 = vmatpush1.bf16.msra.mxu0 %v2612
    %2705 = vmatprep.subr.bf16.mxu0 %v2617
    %2706 = vmatpush1.bf16.msra.mxu0 %v2616
    %2707 = vmatprep.subr.bf16.mxu0 0
    %2708 = vmatpush1.bf16.msra.mxu0 0
    %2709 = vmatprep.subr.bf16.mxu0 0
    %2710 = vmatpush1.bf16.msra.mxu0 0
    %2711 = vmatprep.subr.bf16.mxu0 0
    %2712 = vmatpush1.bf16.msra.mxu0 0
    %2713 = vmatprep.subr.bf16.mxu0 0
    %2714 = vmatpush1.bf16.msra.mxu0 0
    %2715 = vmatprep.subr.bf16.mxu0 0
    %2716 = vmatpush1.bf16.msra.mxu0 0
    %2717 = vmatprep.subr.bf16.mxu0 0
    %2718 = vmatpush1.bf16.msra.mxu0 0
    %2719 = vmatprep.subr.bf16.mxu0 0
    %2720 = vmatpush1.bf16.msra.mxu0 0
    %2721 = vmatprep.subr.bf16.mxu0 0
    %2722 = vmatpush1.bf16.msra.mxu0 0
    %2723 = vmatprep.mubr.bf16.mxu0 0
    %2724 = vmatmul.mubr.bf16.gmra.mrb[0].mxu0 %v2457
    %v2725 = vpop.f32.mrb[0].mxu0
    %v2726 = vadd.f32 0.0, %v2725
    %v2727 = vpop.f32.mrb[0].mxu0
    %v2728 = vadd.f32 0.0, %v2727
    %v2729 = vpop.f32.mrb[0].mxu0
    %v2730 = vpop.f32.mrb[0].mxu0
    %2731 = vdwg.mxu0
    %v2732 = vadd.f32 %v2453, %v2685
    %v2733 = vadd.f32 %v2454, %v2687
    %v2734 = vadd.f32 %v2455, %v2726
    %v2735 = vadd.f32 %v2456, %v2728
    %v2736 = vxor.u32 %v2732, 2147483648
    %v2737 = vmul.f32 %v2736, 1.442695
    %v2738 = vpow.pop %v2737
    %v2739 = vadd.f32 %v2738, 1.0
    %v2740 = vrcp.pop %v2739
    %v2741 = vmul.f32 1.0, %v2740
    %v2742 = vxor.u32 %v2733, 2147483648
    %v2743 = vmul.f32 %v2742, 1.442695
    %v2744 = vpow.pop %v2743
    %v2745 = vadd.f32 %v2744, 1.0
    %v2746 = vrcp.pop %v2745
    %v2747 = vmul.f32 1.0, %v2746
    %v2748 = vtanh.pop %v2734
    %v2749 = vxor.u32 %v2735, 2147483648
    %v2750 = vmul.f32 %v2749, 1.442695
    %v2751 = vpow.pop %v2750
    %v2752 = vadd.f32 %v2751, 1.0
    %v2753 = vrcp.pop %v2752
    %v2754 = vmul.f32 1.0, %v2753
    %v2755 = vmul.f32 %v2747, %v1866
    %v2756 = vmul.f32 %v2741, %v2748
    %v2757 = vadd.f32 %v2755, %v2756
    %v2758 = vtanh.pop %v2757
    %v2759 = vmul.f32 %v2754, %v2758
    %s2760 = scalar_lea.vmem %s9, 16
    %2761 = vst [vmem:[%s2760] sm:$0xff] %v2759
    %s2762 = scalar_lea.vmem %s0, 96
    %v2763 = vld [vmem:[%s2762] sm:$0xff]
    %v2764 = vld [vmem:[%s2762 + $0x8] sm:$0xff]
    %v2765 = vld [vmem:[%s2762 + $0x10] sm:$0xff]
    %v2766 = vld [vmem:[%s2762 + $0x18] sm:$0xff]
    %v2767 = vld [vmem:[%s1] sm:$0xff]
    %v2768 = vld [vmem:[%s1 + $0x8] sm:$0xff]
    %v2769 = vld [vmem:[%s1 + $0x10] sm:$0xff]
    %v2770 = vld [vmem:[%s1 + $0x18] sm:$0xff]
    %v2771 = vld [vmem:[%s1 + $0x20] sm:$0xff]
    %v2772 = vld [vmem:[%s1 + $0x28] sm:$0xff]
    %v2773 = vld [vmem:[%s1 + $0x30] sm:$0xff]
    %v2774 = vld [vmem:[%s1 + $0x38] sm:$0xff]
    %v2775 = vld [vmem:[%s1 + $0x40] sm:$0xff]
    %v2776 = vld [vmem:[%s1 + $0x48] sm:$0xff]
    %v2777 = vld [vmem:[%s1 + $0x50] sm:$0xff]
    %v2778 = vld [vmem:[%s1 + $0x58] sm:$0xff]
    %v2779 = vld [vmem:[%s1 + $0x60] sm:$0xff]
    %v2780 = vld [vmem:[%s1 + $0x68] sm:$0xff]
    %v2781 = vld [vmem:[%s1 + $0x70] sm:$0xff]
    %v2782 = vld [vmem:[%s1 + $0x78] sm:$0xff]
    %v2783 = vld [vmem:[%s1 + $0x80] sm:$0xff]
    %v2784 = vld [vmem:[%s1 + $0x88] sm:$0xff]
    %v2785 = vld [vmem:[%s1 + $0x90] sm:$0xff]
    %v2786 = vld [vmem:[%s1 + $0x98] sm:$0xff]
    %v2787 = vld [vmem:[%s1 + $0xa0] sm:$0xff]
    %v2788 = vld [vmem:[%s1 + $0xa8] sm:$0xff]
    %v2789 = vld [vmem:[%s1 + $0xb0] sm:$0xff]
    %v2790 = vld [vmem:[%s1 + $0xb8] sm:$0xff]
    %v2791 = vld [vmem:[%s1 + $0xc0] sm:$0xff]
    %v2792 = vld [vmem:[%s1 + $0xc8] sm:$0xff]
    %v2793 = vld [vmem:[%s1 + $0xd0] sm:$0xff]
    %v2794 = vld [vmem:[%s1 + $0xd8] sm:$0xff]
    %v2795 = vld [vmem:[%s1 + $0xe0] sm:$0xff]
    %v2796 = vld [vmem:[%s1 + $0xe8] sm:$0xff]
    %v2797 = vld [vmem:[%s1 + $0xf0] sm:$0xff]
    %v2798 = vld [vmem:[%s1 + $0xf8] sm:$0xff]
    %v2831 = vunpack.c.l.b16 %v2767
    %v2832 = vunpack.c.h.b16 %v2767
    %v2833 = vunpack.c.l.b16 %v2768
    %v2834 = vunpack.c.h.b16 %v2768
    %v2835 = vunpack.c.l.b16 %v2769
    %v2836 = vunpack.c.h.b16 %v2769
    %v2837 = vunpack.c.l.b16 %v2770
    %v2838 = vunpack.c.h.b16 %v2770
    %v2839 = vunpack.c.l.b16 %v2771
    %v2840 = vunpack.c.h.b16 %v2771
    %v2841 = vunpack.c.l.b16 %v2772
    %v2842 = vunpack.c.h.b16 %v2772
    %v2843 = vunpack.c.l.b16 %v2773
    %v2844 = vunpack.c.h.b16 %v2773
    %v2845 = vunpack.c.l.b16 %v2774
    %v2846 = vunpack.c.h.b16 %v2774
    %v2847 = vunpack.c.l.b16 %v2775
    %v2848 = vunpack.c.h.b16 %v2775
    %v2849 = vunpack.c.l.b16 %v2776
    %v2850 = vunpack.c.h.b16 %v2776
    %v2851 = vunpack.c.l.b16 %v2777
    %v2852 = vunpack.c.h.b16 %v2777
    %v2853 = vunpack.c.l.b16 %v2778
    %v2854 = vunpack.c.h.b16 %v2778
    %v2855 = vunpack.c.l.b16 %v2779
    %v2856 = vunpack.c.h.b16 %v2779
    %v2857 = vunpack.c.l.b16 %v2780
    %v2858 = vunpack.c.h.b16 %v2780
    %v2859 = vunpack.c.l.b16 %v2781
    %v2860 = vunpack.c.h.b16 %v2781
    %v2861 = vunpack.c.l.b16 %v2782
    %v2862 = vunpack.c.h.b16 %v2782
    %v2863 = vunpack.c.l.b16 %v2783
    %v2864 = vunpack.c.h.b16 %v2783
    %v2865 = vunpack.c.l.b16 %v2784
    %v2866 = vunpack.c.h.b16 %v2784
    %v2867 = vunpack.c.l.b16 %v2785
    %v2868 = vunpack.c.h.b16 %v2785
    %v2869 = vunpack.c.l.b16 %v2786
    %v2870 = vunpack.c.h.b16 %v2786
    %v2871 = vunpack.c.l.b16 %v2787
    %v2872 = vunpack.c.h.b16 %v2787
    %v2873 = vunpack.c.l.b16 %v2788
    %v2874 = vunpack.c.h.b16 %v2788
    %v2875 = vunpack.c.l.b16 %v2789
    %v2876 = vunpack.c.h.b16 %v2789
    %v2877 = vunpack.c.l.b16 %v2790
    %v2878 = vunpack.c.h.b16 %v2790
    %v2879 = vunpack.c.l.b16 %v2791
    %v2880 = vunpack.c.h.b16 %v2791
    %v2881 = vunpack.c.l.b16 %v2792
    %v2882 = vunpack.c.h.b16 %v2792
    %v2883 = vunpack.c.l.b16 %v2793
    %v2884 = vunpack.c.h.b16 %v2793
    %v2885 = vunpack.c.l.b16 %v2794
    %v2886 = vunpack.c.h.b16 %v2794
    %v2887 = vunpack.c.l.b16 %v2795
    %v2888 = vunpack.c.h.b16 %v2795
    %v2889 = vunpack.c.l.b16 %v2796
    %v2890 = vunpack.c.h.b16 %v2796
    %v2891 = vunpack.c.l.b16 %v2797
    %v2892 = vunpack.c.h.b16 %v2797
    %v2893 = vunpack.c.l.b16 %v2798
    %v2894 = vunpack.c.h.b16 %v2798
    %v2895 = vpack.c.b16 %v2835, %v2831
    %v2896 = vpack.c.b16 %v2836, %v2832
    %v2897 = vpack.c.b16 %v2837, %v2833
    %v2898 = vpack.c.b16 %v2838, %v2834
    %v2899 = vpack.c.b16 %v2843, %v2839
    %v2900 = vpack.c.b16 %v2844, %v2840
    %v2901 = vpack.c.b16 %v2845, %v2841
    %v2902 = vpack.c.b16 %v2846, %v2842
    %v2903 = vpack.c.b16 %v2851, %v2847
    %v2904 = vpack.c.b16 %v2852, %v2848
    %v2905 = vpack.c.b16 %v2853, %v2849
    %v2906 = vpack.c.b16 %v2854, %v2850
    %v2907 = vpack.c.b16 %v2859, %v2855
    %v2908 = vpack.c.b16 %v2860, %v2856
    %v2909 = vpack.c.b16 %v2861, %v2857
    %v2910 = vpack.c.b16 %v2862, %v2858
    %v2911 = vpack.c.b16 %v2867, %v2863
    %v2912 = vpack.c.b16 %v2868, %v2864
    %v2913 = vpack.c.b16 %v2869, %v2865
    %v2914 = vpack.c.b16 %v2870, %v2866
    %v2915 = vpack.c.b16 %v2875, %v2871
    %v2916 = vpack.c.b16 %v2876, %v2872
    %v2917 = vpack.c.b16 %v2877, %v2873
    %v2918 = vpack.c.b16 %v2878, %v2874
    %v2919 = vpack.c.b16 %v2883, %v2879
    %v2920 = vpack.c.b16 %v2884, %v2880
    %v2921 = vpack.c.b16 %v2885, %v2881
    %v2922 = vpack.c.b16 %v2886, %v2882
    %v2923 = vpack.c.b16 %v2891, %v2887
    %v2924 = vpack.c.b16 %v2892, %v2888
    %v2925 = vpack.c.b16 %v2893, %v2889
    %v2926 = vpack.c.b16 %v2894, %v2890
    %2959 = vmatprep.subr.bf16.mxu0 %v2896
    %2960 = vmatpush1.bf16.msra.mxu0 %v2895
    %2961 = vmatprep.subr.bf16.mxu0 %v2900
    %2962 = vmatpush1.bf16.msra.mxu0 %v2899
    %2963 = vmatprep.subr.bf16.mxu0 %v2904
    %2964 = vmatpush1.bf16.msra.mxu0 %v2903
    %2965 = vmatprep.subr.bf16.mxu0 %v2908
    %2966 = vmatpush1.bf16.msra.mxu0 %v2907
    %2967 = vmatprep.subr.bf16.mxu0 %v2912
    %2968 = vmatpush1.bf16.msra.mxu0 %v2911
    %2969 = vmatprep.subr.bf16.mxu0 %v2916
    %2970 = vmatpush1.bf16.msra.mxu0 %v2915
    %2971 = vmatprep.subr.bf16.mxu0 %v2920
    %2972 = vmatpush1.bf16.msra.mxu0 %v2919
    %2973 = vmatprep.subr.bf16.mxu0 %v2924
    %2974 = vmatpush1.bf16.msra.mxu0 %v2923
    %2975 = vmatprep.subr.bf16.mxu0 0
    %2976 = vmatpush1.bf16.msra.mxu0 0
    %2977 = vmatprep.subr.bf16.mxu0 0
    %2978 = vmatpush1.bf16.msra.mxu0 0
    %2979 = vmatprep.subr.bf16.mxu0 0
    %2980 = vmatpush1.bf16.msra.mxu0 0
    %2981 = vmatprep.subr.bf16.mxu0 0
    %2982 = vmatpush1.bf16.msra.mxu0 0
    %2983 = vmatprep.subr.bf16.mxu0 0
    %2984 = vmatpush1.bf16.msra.mxu0 0
    %2985 = vmatprep.subr.bf16.mxu0 0
    %2986 = vmatpush1.bf16.msra.mxu0 0
    %2987 = vmatprep.subr.bf16.mxu0 0
    %2988 = vmatpush1.bf16.msra.mxu0 0
    %2989 = vmatprep.subr.bf16.mxu0 0
    %2990 = vmatpush1.bf16.msra.mxu0 0
    %2991 = vmatprep.mubr.bf16.mxu0 0
    %2992 = vmatmul.mubr.bf16.gmra.mrb[0].mxu0 %v2178
    %v2993 = vpop.f32.mrb[0].mxu0
    %v2994 = vadd.f32 0.0, %v2993
    %v2995 = vpop.f32.mrb[0].mxu0
    %v2996 = vadd.f32 0.0, %v2995
    %v2997 = vpop.f32.mrb[0].mxu0
    %v2998 = vpop.f32.mrb[0].mxu0
    %2999 = vdwg.mxu0
    %3000 = vmatprep.subr.bf16.mxu0 %v2898
    %3001 = vmatpush1.bf16.msra.mxu0 %v2897
    %3002 = vmatprep.subr.bf16.mxu0 %v2902
    %3003 = vmatpush1.bf16.msra.mxu0 %v2901
    %3004 = vmatprep.subr.bf16.mxu0 %v2906
    %3005 = vmatpush1.bf16.msra.mxu0 %v2905
    %3006 = vmatprep.subr.bf16.mxu0 %v2910
    %3007 = vmatpush1.bf16.msra.mxu0 %v2909
    %3008 = vmatprep.subr.bf16.mxu0 %v2914
    %3009 = vmatpush1.bf16.msra.mxu0 %v2913
    %3010 = vmatprep.subr.bf16.mxu0 %v2918
    %3011 = vmatpush1.bf16.msra.mxu0 %v2917
    %3012 = vmatprep.subr.bf16.mxu0 %v2922
    %3013 = vmatpush1.bf16.msra.mxu0 %v2921
    %3014 = vmatprep.subr.bf16.mxu0 %v2926
    %3015 = vmatpush1.bf16.msra.mxu0 %v2925
    %3016 = vmatprep.subr.bf16.mxu0 0
    %3017 = vmatpush1.bf16.msra.mxu0 0
    %3018 = vmatprep.subr.bf16.mxu0 0
    %3019 = vmatpush1.bf16.msra.mxu0 0
    %3020 = vmatprep.subr.bf16.mxu0 0
    %3021 = vmatpush1.bf16.msra.mxu0 0
    %3022 = vmatprep.subr.bf16.mxu0 0
    %3023 = vmatpush1.bf16.msra.mxu0 0
    %3024 = vmatprep.subr.bf16.mxu0 0
    %3025 = vmatpush1.bf16.msra.mxu0 0
    %3026 = vmatprep.subr.bf16.mxu0 0
    %3027 = vmatpush1.bf16.msra.mxu0 0
    %3028 = vmatprep.subr.bf16.mxu0 0
    %3029 = vmatpush1.bf16.msra.mxu0 0
    %3030 = vmatprep.subr.bf16.mxu0 0
    %3031 = vmatpush1.bf16.msra.mxu0 0
    %3032 = vmatprep.mubr.bf16.mxu0 0
    %3033 = vmatmul.mubr.bf16.gmra.mrb[0].mxu0 %v2178
    %v3034 = vpop.f32.mrb[0].mxu0
    %v3035 = vadd.f32 0.0, %v3034
    %v3036 = vpop.f32.mrb[0].mxu0
    %v3037 = vadd.f32 0.0, %v3036
    %v3038 = vpop.f32.mrb[0].mxu0
    %v3039 = vpop.f32.mrb[0].mxu0
    %3040 = vdwg.mxu0
    %v3041 = vadd.f32 %v2763, %v2994
    %v3042 = vadd.f32 %v2764, %v2996
    %v3043 = vadd.f32 %v2765, %v3035
    %v3044 = vadd.f32 %v2766, %v3037
    %v3045 = vxor.u32 %v3041, 2147483648
    %v3046 = vmul.f32 %v3045, 1.442695
    %v3047 = vpow.pop %v3046
    %v3048 = vadd.f32 %v3047, 1.0
    %v3049 = vrcp.pop %v3048
    %v3050 = vmul.f32 1.0, %v3049
    %v3051 = vxor.u32 %v3042, 2147483648
    %v3052 = vmul.f32 %v3051, 1.442695
    %v3053 = vpow.pop %v3052
    %v3054 = vadd.f32 %v3053, 1.0
    %v3055 = vrcp.pop %v3054
    %v3056 = vmul.f32 1.0, %v3055
    %v3057 = vtanh.pop %v3043
    %v3058 = vxor.u32 %v3044, 2147483648
    %v3059 = vmul.f32 %v3058, 1.442695
    %v3060 = vpow.pop %v3059
    %v3061 = vadd.f32 %v3060, 1.0
    %v3062 = vrcp.pop %v3061
    %v3063 = vmul.f32 1.0, %v3062
    %v3064 = vmul.f32 %v3056, %v2175
    %v3065 = vmul.f32 %v3050, %v3057
    %v3066 = vadd.f32 %v3064, %v3065
    %v3067 = vtanh.pop %v3066
    %v3068 = vmul.f32 %v3063, %v3067
    %v3069 = vpack.c.bf16 %v3068, %v3068
    %v3070 = vld [vmem:[%s2] sm:$0xff]
    %v3071 = vld [vmem:[%s2 + $0x8] sm:$0xff]
    %v3072 = vld [vmem:[%s2 + $0x10] sm:$0xff]
    %v3073 = vld [vmem:[%s2 + $0x18] sm:$0xff]
    %v3074 = vld [vmem:[%s2 + $0x20] sm:$0xff]
    %v3075 = vld [vmem:[%s2 + $0x28] sm:$0xff]
    %v3076 = vld [vmem:[%s2 + $0x30] sm:$0xff]
    %v3077 = vld [vmem:[%s2 + $0x38] sm:$0xff]
    %v3078 = vld [vmem:[%s2 + $0x40] sm:$0xff]
    %v3079 = vld [vmem:[%s2 + $0x48] sm:$0xff]
    %v3080 = vld [vmem:[%s2 + $0x50] sm:$0xff]
    %v3081 = vld [vmem:[%s2 + $0x58] sm:$0xff]
    %v3082 = vld [vmem:[%s2 + $0x60] sm:$0xff]
    %v3083 = vld [vmem:[%s2 + $0x68] sm:$0xff]
    %v3084 = vld [vmem:[%s2 + $0x70] sm:$0xff]
    %v3085 = vld [vmem:[%s2 + $0x78] sm:$0xff]
    %v3086 = vld [vmem:[%s2 + $0x80] sm:$0xff]
    %v3087 = vld [vmem:[%s2 + $0x88] sm:$0xff]
    %v3088 = vld [vmem:[%s2 + $0x90] sm:$0xff]
    %v3089 = vld [vmem:[%s2 + $0x98] sm:$0xff]
    %v3090 = vld [vmem:[%s2 + $0xa0] sm:$0xff]
    %v3091 = vld [vmem:[%s2 + $0xa8] sm:$0xff]
    %v3092 = vld [vmem:[%s2 + $0xb0] sm:$0xff]
    %v3093 = vld [vmem:[%s2 + $0xb8] sm:$0xff]
    %v3094 = vld [vmem:[%s2 + $0xc0] sm:$0xff]
    %v3095 = vld [vmem:[%s2 + $0xc8] sm:$0xff]
    %v3096 = vld [vmem:[%s2 + $0xd0] sm:$0xff]
    %v3097 = vld [vmem:[%s2 + $0xd8] sm:$0xff]
    %v3098 = vld [vmem:[%s2 + $0xe0] sm:$0xff]
    %v3099 = vld [vmem:[%s2 + $0xe8] sm:$0xff]
    %v3100 = vld [vmem:[%s2 + $0xf0] sm:$0xff]
    %v3101 = vld [vmem:[%s2 + $0xf8] sm:$0xff]
    %v3134 = vunpack.c.l.b16 %v3070
    %v3135 = vunpack.c.h.b16 %v3070
    %v3136 = vunpack.c.l.b16 %v3071
    %v3137 = vunpack.c.h.b16 %v3071
    %v3138 = vunpack.c.l.b16 %v3072
    %v3139 = vunpack.c.h.b16 %v3072
    %v3140 = vunpack.c.l.b16 %v3073
    %v3141 = vunpack.c.h.b16 %v3073
    %v3142 = vunpack.c.l.b16 %v3074
    %v3143 = vunpack.c.h.b16 %v3074
    %v3144 = vunpack.c.l.b16 %v3075
    %v3145 = vunpack.c.h.b16 %v3075
    %v3146 = vunpack.c.l.b16 %v3076
    %v3147 = vunpack.c.h.b16 %v3076
    %v3148 = vunpack.c.l.b16 %v3077
    %v3149 = vunpack.c.h.b16 %v3077
    %v3150 = vunpack.c.l.b16 %v3078
    %v3151 = vunpack.c.h.b16 %v3078
    %v3152 = vunpack.c.l.b16 %v3079
    %v3153 = vunpack.c.h.b16 %v3079
    %v3154 = vunpack.c.l.b16 %v3080
    %v3155 = vunpack.c.h.b16 %v3080
    %v3156 = vunpack.c.l.b16 %v3081
    %v3157 = vunpack.c.h.b16 %v3081
    %v3158 = vunpack.c.l.b16 %v3082
    %v3159 = vunpack.c.h.b16 %v3082
    %v3160 = vunpack.c.l.b16 %v3083
    %v3161 = vunpack.c.h.b16 %v3083
    %v3162 = vunpack.c.l.b16 %v3084
    %v3163 = vunpack.c.h.b16 %v3084
    %v3164 = vunpack.c.l.b16 %v3085
    %v3165 = vunpack.c.h.b16 %v3085
    %v3166 = vunpack.c.l.b16 %v3086
    %v3167 = vunpack.c.h.b16 %v3086
    %v3168 = vunpack.c.l.b16 %v3087
    %v3169 = vunpack.c.h.b16 %v3087
    %v3170 = vunpack.c.l.b16 %v3088
    %v3171 = vunpack.c.h.b16 %v3088
    %v3172 = vunpack.c.l.b16 %v3089
    %v3173 = vunpack.c.h.b16 %v3089
    %v3174 = vunpack.c.l.b16 %v3090
    %v3175 = vunpack.c.h.b16 %v3090
    %v3176 = vunpack.c.l.b16 %v3091
    %v3177 = vunpack.c.h.b16 %v3091
    %v3178 = vunpack.c.l.b16 %v3092
    %v3179 = vunpack.c.h.b16 %v3092
    %v3180 = vunpack.c.l.b16 %v3093
    %v3181 = vunpack.c.h.b16 %v3093
    %v3182 = vunpack.c.l.b16 %v3094
    %v3183 = vunpack.c.h.b16 %v3094
    %v3184 = vunpack.c.l.b16 %v3095
    %v3185 = vunpack.c.h.b16 %v3095
    %v3186 = vunpack.c.l.b16 %v3096
    %v3187 = vunpack.c.h.b16 %v3096
    %v3188 = vunpack.c.l.b16 %v3097
    %v3189 = vunpack.c.h.b16 %v3097
    %v3190 = vunpack.c.l.b16 %v3098
    %v3191 = vunpack.c.h.b16 %v3098
    %v3192 = vunpack.c.l.b16 %v3099
    %v3193 = vunpack.c.h.b16 %v3099
    %v3194 = vunpack.c.l.b16 %v3100
    %v3195 = vunpack.c.h.b16 %v3100
    %v3196 = vunpack.c.l.b16 %v3101
    %v3197 = vunpack.c.h.b16 %v3101
    %v3198 = vpack.c.b16 %v3138, %v3134
    %v3199 = vpack.c.b16 %v3139, %v3135
    %v3200 = vpack.c.b16 %v3140, %v3136
    %v3201 = vpack.c.b16 %v3141, %v3137
    %v3202 = vpack.c.b16 %v3146, %v3142
    %v3203 = vpack.c.b16 %v3147, %v3143
    %v3204 = vpack.c.b16 %v3148, %v3144
    %v3205 = vpack.c.b16 %v3149, %v3145
    %v3206 = vpack.c.b16 %v3154, %v3150
    %v3207 = vpack.c.b16 %v3155, %v3151
    %v3208 = vpack.c.b16 %v3156, %v3152
    %v3209 = vpack.c.b16 %v3157, %v3153
    %v3210 = vpack.c.b16 %v3162, %v3158
    %v3211 = vpack.c.b16 %v3163, %v3159
    %v3212 = vpack.c.b16 %v3164, %v3160
    %v3213 = vpack.c.b16 %v3165, %v3161
    %v3214 = vpack.c.b16 %v3170, %v3166
    %v3215 = vpack.c.b16 %v3171, %v3167
    %v3216 = vpack.c.b16 %v3172, %v3168
    %v3217 = vpack.c.b16 %v3173, %v3169
    %v3218 = vpack.c.b16 %v3178, %v3174
    %v3219 = vpack.c.b16 %v3179, %v3175
    %v3220 = vpack.c.b16 %v3180, %v3176
    %v3221 = vpack.c.b16 %v3181, %v3177
    %v3222 = vpack.c.b16 %v3186, %v3182
    %v3223 = vpack.c.b16 %v3187, %v3183
    %v3224 = vpack.c.b16 %v3188, %v3184
    %v3225 = vpack.c.b16 %v3189, %v3185
    %v3226 = vpack.c.b16 %v3194, %v3190
    %v3227 = vpack.c.b16 %v3195, %v3191
    %v3228 = vpack.c.b16 %v3196, %v3192
    %v3229 = vpack.c.b16 %v3197, %v3193
    %3262 = vmatprep.subr.bf16.mxu0 %v3199
    %3263 = vmatpush1.bf16.msra.mxu0 %v3198
    %3264 = vmatprep.subr.bf16.mxu0 %v3203
    %3265 = vmatpush1.bf16.msra.mxu0 %v3202
    %3266 = vmatprep.subr.bf16.mxu0 %v3207
    %3267 = vmatpush1.bf16.msra.mxu0 %v3206
    %3268 = vmatprep.subr.bf16.mxu0 %v3211
    %3269 = vmatpush1.bf16.msra.mxu0 %v3210
    %3270 = vmatprep.subr.bf16.mxu0 %v3215
    %3271 = vmatpush1.bf16.msra.mxu0 %v3214
    %3272 = vmatprep.subr.bf16.mxu0 %v3219
    %3273 = vmatpush1.bf16.msra.mxu0 %v3218
    %3274 = vmatprep.subr.bf16.mxu0 %v3223
    %3275 = vmatpush1.bf16.msra.mxu0 %v3222
    %3276 = vmatprep.subr.bf16.mxu0 %v3227
    %3277 = vmatpush1.bf16.msra.mxu0 %v3226
    %3278 = vmatprep.subr.bf16.mxu0 0
    %3279 = vmatpush1.bf16.msra.mxu0 0
    %3280 = vmatprep.subr.bf16.mxu0 0
    %3281 = vmatpush1.bf16.msra.mxu0 0
    %3282 = vmatprep.subr.bf16.mxu0 0
    %3283 = vmatpush1.bf16.msra.mxu0 0
    %3284 = vmatprep.subr.bf16.mxu0 0
    %3285 = vmatpush1.bf16.msra.mxu0 0
    %3286 = vmatprep.subr.bf16.mxu0 0
    %3287 = vmatpush1.bf16.msra.mxu0 0
    %3288 = vmatprep.subr.bf16.mxu0 0
    %3289 = vmatpush1.bf16.msra.mxu0 0
    %3290 = vmatprep.subr.bf16.mxu0 0
    %3291 = vmatpush1.bf16.msra.mxu0 0
    %3292 = vmatprep.subr.bf16.mxu0 0
    %3293 = vmatpush1.bf16.msra.mxu0 0
    %3294 = vmatprep.mubr.bf16.mxu0 0
    %3295 = vmatmul.mubr.bf16.gmra.mrb[0].mxu0 %v3069
    %v3296 = vpop.f32.mrb[0].mxu0
    %v3297 = vadd.f32 0.0, %v3296
    %v3298 = vpop.f32.mrb[0].mxu0
    %v3299 = vadd.f32 0.0, %v3298
    %v3300 = vpop.f32.mrb[0].mxu0
    %v3301 = vpop.f32.mrb[0].mxu0
    %3302 = vdwg.mxu0
    %3303 = vmatprep.subr.bf16.mxu0 %v3201
    %3304 = vmatpush1.bf16.msra.mxu0 %v3200
    %3305 = vmatprep.subr.bf16.mxu0 %v3205
    %3306 = vmatpush1.bf16.msra.mxu0 %v3204
    %3307 = vmatprep.subr.bf16.mxu0 %v3209
    %3308 = vmatpush1.bf16.msra.mxu0 %v3208
    %3309 = vmatprep.subr.bf16.mxu0 %v3213
    %3310 = vmatpush1.bf16.msra.mxu0 %v3212
    %3311 = vmatprep.subr.bf16.mxu0 %v3217
    %3312 = vmatpush1.bf16.msra.mxu0 %v3216
    %3313 = vmatprep.subr.bf16.mxu0 %v3221
    %3314 = vmatpush1.bf16.msra.mxu0 %v3220
    %3315 = vmatprep.subr.bf16.mxu0 %v3225
    %3316 = vmatpush1.bf16.msra.mxu0 %v3224
    %3317 = vmatprep.subr.bf16.mxu0 %v3229
    %3318 = vmatpush1.bf16.msra.mxu0 %v3228
    %3319 = vmatprep.subr.bf16.mxu0 0
    %3320 = vmatpush1.bf16.msra.mxu0 0
    %3321 = vmatprep.subr.bf16.mxu0 0
    %3322 = vmatpush1.bf16.msra.mxu0 0
    %3323 = vmatprep.subr.bf16.mxu0 0
    %3324 = vmatpush1.bf16.msra.mxu0 0
    %3325 = vmatprep.subr.bf16.mxu0 0
    %3326 = vmatpush1.bf16.msra.mxu0 0
    %3327 = vmatprep.subr.bf16.mxu0 0
    %3328 = vmatpush1.bf16.msra.mxu0 0
    %3329 = vmatprep.subr.bf16.mxu0 0
    %3330 = vmatpush1.bf16.msra.mxu0 0
    %3331 = vmatprep.subr.bf16.mxu0 0
    %3332 = vmatpush1.bf16.msra.mxu0 0
    %3333 = vmatprep.subr.bf16.mxu0 0
    %3334 = vmatpush1.bf16.msra.mxu0 0
    %3335 = vmatprep.mubr.bf16.mxu0 0
    %3336 = vmatmul.mubr.bf16.gmra.mrb[0].mxu0 %v3069
    %v3337 = vpop.f32.mrb[0].mxu0
    %v3338 = vadd.f32 0.0, %v3337
    %v3339 = vpop.f32.mrb[0].mxu0
    %v3340 = vadd.f32 0.0, %v3339
    %v3341 = vpop.f32.mrb[0].mxu0
    %v3342 = vpop.f32.mrb[0].mxu0
    %3343 = vdwg.mxu0
    %v3344 = vadd.f32 %v655, %v3297
    %v3345 = vadd.f32 %v659, %v3299
    %v3346 = vadd.f32 %v663, %v3338
    %v3347 = vadd.f32 %v667, %v3340
    %v3348 = vpack.c.bf16 %v2759, %v2759
    %v3349 = vld [vmem:[#allocation6] sm:$0xff]
    %v3350 = vld [vmem:[#allocation6 + $0x8] sm:$0xff]
    %v3351 = vld [vmem:[#allocation6 + $0x10] sm:$0xff]
    %v3352 = vld [vmem:[#allocation6 + $0x18] sm:$0xff]
    %v3353 = vld [vmem:[#allocation6 + $0x20] sm:$0xff]
    %v3354 = vld [vmem:[#allocation6 + $0x28] sm:$0xff]
    %v3355 = vld [vmem:[#allocation6 + $0x30] sm:$0xff]
    %v3356 = vld [vmem:[#allocation6 + $0x38] sm:$0xff]
    %v3357 = vld [vmem:[#allocation6 + $0x40] sm:$0xff]
    %v3358 = vld [vmem:[#allocation6 + $0x48] sm:$0xff]
    %v3359 = vld [vmem:[#allocation6 + $0x50] sm:$0xff]
    %v3360 = vld [vmem:[#allocation6 + $0x58] sm:$0xff]
    %v3361 = vld [vmem:[#allocation6 + $0x60] sm:$0xff]
    %v3362 = vld [vmem:[#allocation6 + $0x68] sm:$0xff]
    %v3363 = vld [vmem:[#allocation6 + $0x70] sm:$0xff]
    %v3364 = vld [vmem:[#allocation6 + $0x78] sm:$0xff]
    %v3365 = vld [vmem:[#allocation6 + $0x80] sm:$0xff]
    %v3366 = vld [vmem:[#allocation6 + $0x88] sm:$0xff]
    %v3367 = vld [vmem:[#allocation6 + $0x90] sm:$0xff]
    %v3368 = vld [vmem:[#allocation6 + $0x98] sm:$0xff]
    %v3369 = vld [vmem:[#allocation6 + $0xa0] sm:$0xff]
    %v3370 = vld [vmem:[#allocation6 + $0xa8] sm:$0xff]
    %v3371 = vld [vmem:[#allocation6 + $0xb0] sm:$0xff]
    %v3372 = vld [vmem:[#allocation6 + $0xb8] sm:$0xff]
    %v3373 = vld [vmem:[#allocation6 + $0xc0] sm:$0xff]
    %v3374 = vld [vmem:[#allocation6 + $0xc8] sm:$0xff]
    %v3375 = vld [vmem:[#allocation6 + $0xd0] sm:$0xff]
    %v3376 = vld [vmem:[#allocation6 + $0xd8] sm:$0xff]
    %v3377 = vld [vmem:[#allocation6 + $0xe0] sm:$0xff]
    %v3378 = vld [vmem:[#allocation6 + $0xe8] sm:$0xff]
    %v3379 = vld [vmem:[#allocation6 + $0xf0] sm:$0xff]
    %v3380 = vld [vmem:[#allocation6 + $0xf8] sm:$0xff]
    %v3413 = vunpack.c.l.b16 %v3349
    %v3414 = vunpack.c.h.b16 %v3349
    %v3415 = vunpack.c.l.b16 %v3350
    %v3416 = vunpack.c.h.b16 %v3350
    %v3417 = vunpack.c.l.b16 %v3351
    %v3418 = vunpack.c.h.b16 %v3351
    %v3419 = vunpack.c.l.b16 %v3352
    %v3420 = vunpack.c.h.b16 %v3352
    %v3421 = vunpack.c.l.b16 %v3353
    %v3422 = vunpack.c.h.b16 %v3353
    %v3423 = vunpack.c.l.b16 %v3354
    %v3424 = vunpack.c.h.b16 %v3354
    %v3425 = vunpack.c.l.b16 %v3355
    %v3426 = vunpack.c.h.b16 %v3355
    %v3427 = vunpack.c.l.b16 %v3356
    %v3428 = vunpack.c.h.b16 %v3356
    %v3429 = vunpack.c.l.b16 %v3357
    %v3430 = vunpack.c.h.b16 %v3357
    %v3431 = vunpack.c.l.b16 %v3358
    %v3432 = vunpack.c.h.b16 %v3358
    %v3433 = vunpack.c.l.b16 %v3359
    %v3434 = vunpack.c.h.b16 %v3359
    %v3435 = vunpack.c.l.b16 %v3360
    %v3436 = vunpack.c.h.b16 %v3360
    %v3437 = vunpack.c.l.b16 %v3361
    %v3438 = vunpack.c.h.b16 %v3361
    %v3439 = vunpack.c.l.b16 %v3362
    %v3440 = vunpack.c.h.b16 %v3362
    %v3441 = vunpack.c.l.b16 %v3363
    %v3442 = vunpack.c.h.b16 %v3363
    %v3443 = vunpack.c.l.b16 %v3364
    %v3444 = vunpack.c.h.b16 %v3364
    %v3445 = vunpack.c.l.b16 %v3365
    %v3446 = vunpack.c.h.b16 %v3365
    %v3447 = vunpack.c.l.b16 %v3366
    %v3448 = vunpack.c.h.b16 %v3366
    %v3449 = vunpack.c.l.b16 %v3367
    %v3450 = vunpack.c.h.b16 %v3367
    %v3451 = vunpack.c.l.b16 %v3368
    %v3452 = vunpack.c.h.b16 %v3368
    %v3453 = vunpack.c.l.b16 %v3369
    %v3454 = vunpack.c.h.b16 %v3369
    %v3455 = vunpack.c.l.b16 %v3370
    %v3456 = vunpack.c.h.b16 %v3370
    %v3457 = vunpack.c.l.b16 %v3371
    %v3458 = vunpack.c.h.b16 %v3371
    %v3459 = vunpack.c.l.b16 %v3372
    %v3460 = vunpack.c.h.b16 %v3372
    %v3461 = vunpack.c.l.b16 %v3373
    %v3462 = vunpack.c.h.b16 %v3373
    %v3463 = vunpack.c.l.b16 %v3374
    %v3464 = vunpack.c.h.b16 %v3374
    %v3465 = vunpack.c.l.b16 %v3375
    %v3466 = vunpack.c.h.b16 %v3375
    %v3467 = vunpack.c.l.b16 %v3376
    %v3468 = vunpack.c.h.b16 %v3376
    %v3469 = vunpack.c.l.b16 %v3377
    %v3470 = vunpack.c.h.b16 %v3377
    %v3471 = vunpack.c.l.b16 %v3378
    %v3472 = vunpack.c.h.b16 %v3378
    %v3473 = vunpack.c.l.b16 %v3379
    %v3474 = vunpack.c.h.b16 %v3379
    %v3475 = vunpack.c.l.b16 %v3380
    %v3476 = vunpack.c.h.b16 %v3380
    %v3477 = vpack.c.b16 %v3417, %v3413
    %v3478 = vpack.c.b16 %v3418, %v3414
    %v3479 = vpack.c.b16 %v3419, %v3415
    %v3480 = vpack.c.b16 %v3420, %v3416
    %v3481 = vpack.c.b16 %v3425, %v3421
    %v3482 = vpack.c.b16 %v3426, %v3422
    %v3483 = vpack.c.b16 %v3427, %v3423
    %v3484 = vpack.c.b16 %v3428, %v3424
    %v3485 = vpack.c.b16 %v3433, %v3429
    %v3486 = vpack.c.b16 %v3434, %v3430
    %v3487 = vpack.c.b16 %v3435, %v3431
    %v3488 = vpack.c.b16 %v3436, %v3432
    %v3489 = vpack.c.b16 %v3441, %v3437
    %v3490 = vpack.c.b16 %v3442, %v3438
    %v3491 = vpack.c.b16 %v3443, %v3439
    %v3492 = vpack.c.b16 %v3444, %v3440
    %v3493 = vpack.c.b16 %v3449, %v3445
    %v3494 = vpack.c.b16 %v3450, %v3446
    %v3495 = vpack.c.b16 %v3451, %v3447
    %v3496 = vpack.c.b16 %v3452, %v3448
    %v3497 = vpack.c.b16 %v3457, %v3453
    %v3498 = vpack.c.b16 %v3458, %v3454
    %v3499 = vpack.c.b16 %v3459, %v3455
    %v3500 = vpack.c.b16 %v3460, %v3456
    %v3501 = vpack.c.b16 %v3465, %v3461
    %v3502 = vpack.c.b16 %v3466, %v3462
    %v3503 = vpack.c.b16 %v3467, %v3463
    %v3504 = vpack.c.b16 %v3468, %v3464
    %v3505 = vpack.c.b16 %v3473, %v3469
    %v3506 = vpack.c.b16 %v3474, %v3470
    %v3507 = vpack.c.b16 %v3475, %v3471
    %v3508 = vpack.c.b16 %v3476, %v3472
    %3541 = vmatprep.subr.bf16.mxu0 %v3478
    %3542 = vmatpush1.bf16.msra.mxu0 %v3477
    %3543 = vmatprep.subr.bf16.mxu0 %v3482
    %3544 = vmatpush1.bf16.msra.mxu0 %v3481
    %3545 = vmatprep.subr.bf16.mxu0 %v3486
    %3546 = vmatpush1.bf16.msra.mxu0 %v3485
    %3547 = vmatprep.subr.bf16.mxu0 %v3490
    %3548 = vmatpush1.bf16.msra.mxu0 %v3489
    %3549 = vmatprep.subr.bf16.mxu0 %v3494
    %3550 = vmatpush1.bf16.msra.mxu0 %v3493
    %3551 = vmatprep.subr.bf16.mxu0 %v3498
    %3552 = vmatpush1.bf16.msra.mxu0 %v3497
    %3553 = vmatprep.subr.bf16.mxu0 %v3502
    %3554 = vmatpush1.bf16.msra.mxu0 %v3501
    %3555 = vmatprep.subr.bf16.mxu0 %v3506
    %3556 = vmatpush1.bf16.msra.mxu0 %v3505
    %3557 = vmatprep.subr.bf16.mxu0 0
    %3558 = vmatpush1.bf16.msra.mxu0 0
    %3559 = vmatprep.subr.bf16.mxu0 0
    %3560 = vmatpush1.bf16.msra.mxu0 0
    %3561 = vmatprep.subr.bf16.mxu0 0
    %3562 = vmatpush1.bf16.msra.mxu0 0
    %3563 = vmatprep.subr.bf16.mxu0 0
    %3564 = vmatpush1.bf16.msra.mxu0 0
    %3565 = vmatprep.subr.bf16.mxu0 0
    %3566 = vmatpush1.bf16.msra.mxu0 0
    %3567 = vmatprep.subr.bf16.mxu0 0
    %3568 = vmatpush1.bf16.msra.mxu0 0
    %3569 = vmatprep.subr.bf16.mxu0 0
    %3570 = vmatpush1.bf16.msra.mxu0 0
    %3571 = vmatprep.subr.bf16.mxu0 0
    %3572 = vmatpush1.bf16.msra.mxu0 0
    %3573 = vmatprep.mubr.bf16.mxu0 0
    %3574 = vmatmul.mubr.bf16.gmra.mrb[0].mxu0 %v3348
    %v3575 = vpop.f32.mrb[0].mxu0
    %v3576 = vadd.f32 0.0, %v3575
    %v3577 = vpop.f32.mrb[0].mxu0
    %v3578 = vadd.f32 0.0, %v3577
    %v3579 = vpop.f32.mrb[0].mxu0
    %v3580 = vpop.f32.mrb[0].mxu0
    %3581 = vdwg.mxu0
    %3582 = vmatprep.subr.bf16.mxu0 %v3480
    %3583 = vmatpush1.bf16.msra.mxu0 %v3479
    %3584 = vmatprep.subr.bf16.mxu0 %v3484
    %3585 = vmatpush1.bf16.msra.mxu0 %v3483
    %3586 = vmatprep.subr.bf16.mxu0 %v3488
    %3587 = vmatpush1.bf16.msra.mxu0 %v3487
    %3588 = vmatprep.subr.bf16.mxu0 %v3492
    %3589 = vmatpush1.bf16.msra.mxu0 %v3491
    %3590 = vmatprep.subr.bf16.mxu0 %v3496
    %3591 = vmatpush1.bf16.msra.mxu0 %v3495
    %3592 = vmatprep.subr.bf16.mxu0 %v3500
    %3593 = vmatpush1.bf16.msra.mxu0 %v3499
    %3594 = vmatprep.subr.bf16.mxu0 %v3504
    %3595 = vmatpush1.bf16.msra.mxu0 %v3503
    %3596 = vmatprep.subr.bf16.mxu0 %v3508
    %3597 = vmatpush1.bf16.msra.mxu0 %v3507
    %3598 = vmatprep.subr.bf16.mxu0 0
    %3599 = vmatpush1.bf16.msra.mxu0 0
    %3600 = vmatprep.subr.bf16.mxu0 0
    %3601 = vmatpush1.bf16.msra.mxu0 0
    %3602 = vmatprep.subr.bf16.mxu0 0
    %3603 = vmatpush1.bf16.msra.mxu0 0
    %3604 = vmatprep.subr.bf16.mxu0 0
    %3605 = vmatpush1.bf16.msra.mxu0 0
    %3606 = vmatprep.subr.bf16.mxu0 0
    %3607 = vmatpush1.bf16.msra.mxu0 0
    %3608 = vmatprep.subr.bf16.mxu0 0
    %3609 = vmatpush1.bf16.msra.mxu0 0
    %3610 = vmatprep.subr.bf16.mxu0 0
    %3611 = vmatpush1.bf16.msra.mxu0 0
    %3612 = vmatprep.subr.bf16.mxu0 0
    %3613 = vmatpush1.bf16.msra.mxu0 0
    %3614 = vmatprep.mubr.bf16.mxu0 0
    %3615 = vmatmul.mubr.bf16.gmra.mrb[0].mxu0 %v3348
    %v3616 = vpop.f32.mrb[0].mxu0
    %v3617 = vadd.f32 0.0, %v3616
    %v3618 = vpop.f32.mrb[0].mxu0
    %v3619 = vadd.f32 0.0, %v3618
    %v3620 = vpop.f32.mrb[0].mxu0
    %v3621 = vpop.f32.mrb[0].mxu0
    %3622 = vdwg.mxu0
    %v3623 = vadd.f32 %v3344, %v3576
    %v3624 = vadd.f32 %v3345, %v3578
    %v3625 = vadd.f32 %v3346, %v3617
    %v3626 = vadd.f32 %v3347, %v3619
    %v3627 = vxor.u32 %v3623, 2147483648
    %v3628 = vmul.f32 %v3627, 1.442695
    %v3629 = vpow.pop %v3628
    %v3630 = vadd.f32 %v3629, 1.0
    %v3631 = vrcp.pop %v3630
    %v3632 = vmul.f32 1.0, %v3631
    %v3633 = vxor.u32 %v3624, 2147483648
    %v3634 = vmul.f32 %v3633, 1.442695
    %v3635 = vpow.pop %v3634
    %v3636 = vadd.f32 %v3635, 1.0
    %v3637 = vrcp.pop %v3636
    %v3638 = vmul.f32 1.0, %v3637
    %v3639 = vtanh.pop %v3625
    %v3640 = vxor.u32 %v3626, 2147483648
    %v3641 = vmul.f32 %v3640, 1.442695
    %v3642 = vpow.pop %v3641
    %v3643 = vadd.f32 %v3642, 1.0
    %v3644 = vrcp.pop %v3643
    %v3645 = vmul.f32 1.0, %v3644
    %v3646 = vmul.f32 %v3638, %v2757
    %v3647 = vmul.f32 %v3632, %v3639
    %v3648 = vadd.f32 %v3646, %v3647
    %v3649 = vtanh.pop %v3648
    %v3650 = vmul.f32 %v3645, %v3649
    %s3651 = scalar_lea.vmem %s9, 24
    %3652 = vst [vmem:[%s3651] sm:$0xff] %v3650
    %s3653 = scalar_lea.vmem %s0, 128
    %v3654 = vld [vmem:[%s3653] sm:$0xff]
    %v3655 = vld [vmem:[%s3653 + $0x8] sm:$0xff]
    %v3656 = vld [vmem:[%s3653 + $0x10] sm:$0xff]
    %v3657 = vld [vmem:[%s3653 + $0x18] sm:$0xff]
    %v3658 = vld [vmem:[%s1] sm:$0xff]
    %v3659 = vld [vmem:[%s1 + $0x8] sm:$0xff]
    %v3660 = vld [vmem:[%s1 + $0x10] sm:$0xff]
    %v3661 = vld [vmem:[%s1 + $0x18] sm:$0xff]
    %v3662 = vld [vmem:[%s1 + $0x20] sm:$0xff]
    %v3663 = vld [vmem:[%s1 + $0x28] sm:$0xff]
    %v3664 = vld [vmem:[%s1 + $0x30] sm:$0xff]
    %v3665 = vld [vmem:[%s1 + $0x38] sm:$0xff]
    %v3666 = vld [vmem:[%s1 + $0x40] sm:$0xff]
    %v3667 = vld [vmem:[%s1 + $0x48] sm:$0xff]
    %v3668 = vld [vmem:[%s1 + $0x50] sm:$0xff]
    %v3669 = vld [vmem:[%s1 + $0x58] sm:$0xff]
    %v3670 = vld [vmem:[%s1 + $0x60] sm:$0xff]
    %v3671 = vld [vmem:[%s1 + $0x68] sm:$0xff]
    %v3672 = vld [vmem:[%s1 + $0x70] sm:$0xff]
    %v3673 = vld [vmem:[%s1 + $0x78] sm:$0xff]
    %v3674 = vld [vmem:[%s1 + $0x80] sm:$0xff]
    %v3675 = vld [vmem:[%s1 + $0x88] sm:$0xff]
    %v3676 = vld [vmem:[%s1 + $0x90] sm:$0xff]
    %v3677 = vld [vmem:[%s1 + $0x98] sm:$0xff]
    %v3678 = vld [vmem:[%s1 + $0xa0] sm:$0xff]
    %v3679 = vld [vmem:[%s1 + $0xa8] sm:$0xff]
    %v3680 = vld [vmem:[%s1 + $0xb0] sm:$0xff]
    %v3681 = vld [vmem:[%s1 + $0xb8] sm:$0xff]
    %v3682 = vld [vmem:[%s1 + $0xc0] sm:$0xff]
    %v3683 = vld [vmem:[%s1 + $0xc8] sm:$0xff]
    %v3684 = vld [vmem:[%s1 + $0xd0] sm:$0xff]
    %v3685 = vld [vmem:[%s1 + $0xd8] sm:$0xff]
    %v3686 = vld [vmem:[%s1 + $0xe0] sm:$0xff]
    %v3687 = vld [vmem:[%s1 + $0xe8] sm:$0xff]
    %v3688 = vld [vmem:[%s1 + $0xf0] sm:$0xff]
    %v3689 = vld [vmem:[%s1 + $0xf8] sm:$0xff]
    %v3722 = vunpack.c.l.b16 %v3658
    %v3723 = vunpack.c.h.b16 %v3658
    %v3724 = vunpack.c.l.b16 %v3659
    %v3725 = vunpack.c.h.b16 %v3659
    %v3726 = vunpack.c.l.b16 %v3660
    %v3727 = vunpack.c.h.b16 %v3660
    %v3728 = vunpack.c.l.b16 %v3661
    %v3729 = vunpack.c.h.b16 %v3661
    %v3730 = vunpack.c.l.b16 %v3662
    %v3731 = vunpack.c.h.b16 %v3662
    %v3732 = vunpack.c.l.b16 %v3663
    %v3733 = vunpack.c.h.b16 %v3663
    %v3734 = vunpack.c.l.b16 %v3664
    %v3735 = vunpack.c.h.b16 %v3664
    %v3736 = vunpack.c.l.b16 %v3665
    %v3737 = vunpack.c.h.b16 %v3665
    %v3738 = vunpack.c.l.b16 %v3666
    %v3739 = vunpack.c.h.b16 %v3666
    %v3740 = vunpack.c.l.b16 %v3667
    %v3741 = vunpack.c.h.b16 %v3667
    %v3742 = vunpack.c.l.b16 %v3668
    %v3743 = vunpack.c.h.b16 %v3668
    %v3744 = vunpack.c.l.b16 %v3669
    %v3745 = vunpack.c.h.b16 %v3669
    %v3746 = vunpack.c.l.b16 %v3670
    %v3747 = vunpack.c.h.b16 %v3670
    %v3748 = vunpack.c.l.b16 %v3671
    %v3749 = vunpack.c.h.b16 %v3671
    %v3750 = vunpack.c.l.b16 %v3672
    %v3751 = vunpack.c.h.b16 %v3672
    %v3752 = vunpack.c.l.b16 %v3673
    %v3753 = vunpack.c.h.b16 %v3673
    %v3754 = vunpack.c.l.b16 %v3674
    %v3755 = vunpack.c.h.b16 %v3674
    %v3756 = vunpack.c.l.b16 %v3675
    %v3757 = vunpack.c.h.b16 %v3675
    %v3758 = vunpack.c.l.b16 %v3676
    %v3759 = vunpack.c.h.b16 %v3676
    %v3760 = vunpack.c.l.b16 %v3677
    %v3761 = vunpack.c.h.b16 %v3677
    %v3762 = vunpack.c.l.b16 %v3678
    %v3763 = vunpack.c.h.b16 %v3678
    %v3764 = vunpack.c.l.b16 %v3679
    %v3765 = vunpack.c.h.b16 %v3679
    %v3766 = vunpack.c.l.b16 %v3680
    %v3767 = vunpack.c.h.b16 %v3680
    %v3768 = vunpack.c.l.b16 %v3681
    %v3769 = vunpack.c.h.b16 %v3681
    %v3770 = vunpack.c.l.b16 %v3682
    %v3771 = vunpack.c.h.b16 %v3682
    %v3772 = vunpack.c.l.b16 %v3683
    %v3773 = vunpack.c.h.b16 %v3683
    %v3774 = vunpack.c.l.b16 %v3684
    %v3775 = vunpack.c.h.b16 %v3684
    %v3776 = vunpack.c.l.b16 %v3685
    %v3777 = vunpack.c.h.b16 %v3685
    %v3778 = vunpack.c.l.b16 %v3686
    %v3779 = vunpack.c.h.b16 %v3686
    %v3780 = vunpack.c.l.b16 %v3687
    %v3781 = vunpack.c.h.b16 %v3687
    %v3782 = vunpack.c.l.b16 %v3688
    %v3783 = vunpack.c.h.b16 %v3688
    %v3784 = vunpack.c.l.b16 %v3689
    %v3785 = vunpack.c.h.b16 %v3689
    %v3786 = vpack.c.b16 %v3726, %v3722
    %v3787 = vpack.c.b16 %v3727, %v3723
    %v3788 = vpack.c.b16 %v3728, %v3724
    %v3789 = vpack.c.b16 %v3729, %v3725
    %v3790 = vpack.c.b16 %v3734, %v3730
    %v3791 = vpack.c.b16 %v3735, %v3731
    %v3792 = vpack.c.b16 %v3736, %v3732
    %v3793 = vpack.c.b16 %v3737, %v3733
    %v3794 = vpack.c.b16 %v3742, %v3738
    %v3795 = vpack.c.b16 %v3743, %v3739
    %v3796 = vpack.c.b16 %v3744, %v3740
    %v3797 = vpack.c.b16 %v3745, %v3741
    %v3798 = vpack.c.b16 %v3750, %v3746
    %v3799 = vpack.c.b16 %v3751, %v3747
    %v3800 = vpack.c.b16 %v3752, %v3748
    %v3801 = vpack.c.b16 %v3753, %v3749
    %v3802 = vpack.c.b16 %v3758, %v3754
    %v3803 = vpack.c.b16 %v3759, %v3755
    %v3804 = vpack.c.b16 %v3760, %v3756
    %v3805 = vpack.c.b16 %v3761, %v3757
    %v3806 = vpack.c.b16 %v3766, %v3762
    %v3807 = vpack.c.b16 %v3767, %v3763
    %v3808 = vpack.c.b16 %v3768, %v3764
    %v3809 = vpack.c.b16 %v3769, %v3765
    %v3810 = vpack.c.b16 %v3774, %v3770
    %v3811 = vpack.c.b16 %v3775, %v3771
    %v3812 = vpack.c.b16 %v3776, %v3772
    %v3813 = vpack.c.b16 %v3777, %v3773
    %v3814 = vpack.c.b16 %v3782, %v3778
    %v3815 = vpack.c.b16 %v3783, %v3779
    %v3816 = vpack.c.b16 %v3784, %v3780
    %v3817 = vpack.c.b16 %v3785, %v3781
    %3850 = vmatprep.subr.bf16.mxu0 %v3787
    %3851 = vmatpush1.bf16.msra.mxu0 %v3786
    %3852 = vmatprep.subr.bf16.mxu0 %v3791
    %3853 = vmatpush1.bf16.msra.mxu0 %v3790
    %3854 = vmatprep.subr.bf16.mxu0 %v3795
    %3855 = vmatpush1.bf16.msra.mxu0 %v3794
    %3856 = vmatprep.subr.bf16.mxu0 %v3799
    %3857 = vmatpush1.bf16.msra.mxu0 %v3798
    %3858 = vmatprep.subr.bf16.mxu0 %v3803
    %3859 = vmatpush1.bf16.msra.mxu0 %v3802
    %3860 = vmatprep.subr.bf16.mxu0 %v3807
    %3861 = vmatpush1.bf16.msra.mxu0 %v3806
    %3862 = vmatprep.subr.bf16.mxu0 %v3811
    %3863 = vmatpush1.bf16.msra.mxu0 %v3810
    %3864 = vmatprep.subr.bf16.mxu0 %v3815
    %3865 = vmatpush1.bf16.msra.mxu0 %v3814
    %3866 = vmatprep.subr.bf16.mxu0 0
    %3867 = vmatpush1.bf16.msra.mxu0 0
    %3868 = vmatprep.subr.bf16.mxu0 0
    %3869 = vmatpush1.bf16.msra.mxu0 0
    %3870 = vmatprep.subr.bf16.mxu0 0
    %3871 = vmatpush1.bf16.msra.mxu0 0
    %3872 = vmatprep.subr.bf16.mxu0 0
    %3873 = vmatpush1.bf16.msra.mxu0 0
    %3874 = vmatprep.subr.bf16.mxu0 0
    %3875 = vmatpush1.bf16.msra.mxu0 0
    %3876 = vmatprep.subr.bf16.mxu0 0
    %3877 = vmatpush1.bf16.msra.mxu0 0
    %3878 = vmatprep.subr.bf16.mxu0 0
    %3879 = vmatpush1.bf16.msra.mxu0 0
    %3880 = vmatprep.subr.bf16.mxu0 0
    %3881 = vmatpush1.bf16.msra.mxu0 0
    %3882 = vmatprep.mubr.bf16.mxu0 0
    %3883 = vmatmul.mubr.bf16.gmra.mrb[0].mxu0 %v3069
    %v3884 = vpop.f32.mrb[0].mxu0
    %v3885 = vadd.f32 0.0, %v3884
    %v3886 = vpop.f32.mrb[0].mxu0
    %v3887 = vadd.f32 0.0, %v3886
    %v3888 = vpop.f32.mrb[0].mxu0
    %v3889 = vpop.f32.mrb[0].mxu0
    %3890 = vdwg.mxu0
    %3891 = vmatprep.subr.bf16.mxu0 %v3789
    %3892 = vmatpush1.bf16.msra.mxu0 %v3788
    %3893 = vmatprep.subr.bf16.mxu0 %v3793
    %3894 = vmatpush1.bf16.msra.mxu0 %v3792
    %3895 = vmatprep.subr.bf16.mxu0 %v3797
    %3896 = vmatpush1.bf16.msra.mxu0 %v3796
    %3897 = vmatprep.subr.bf16.mxu0 %v3801
    %3898 = vmatpush1.bf16.msra.mxu0 %v3800
    %3899 = vmatprep.subr.bf16.mxu0 %v3805
    %3900 = vmatpush1.bf16.msra.mxu0 %v3804
    %3901 = vmatprep.subr.bf16.mxu0 %v3809
    %3902 = vmatpush1.bf16.msra.mxu0 %v3808
    %3903 = vmatprep.subr.bf16.mxu0 %v3813
    %3904 = vmatpush1.bf16.msra.mxu0 %v3812
    %3905 = vmatprep.subr.bf16.mxu0 %v3817
    %3906 = vmatpush1.bf16.msra.mxu0 %v3816
    %3907 = vmatprep.subr.bf16.mxu0 0
    %3908 = vmatpush1.bf16.msra.mxu0 0
    %3909 = vmatprep.subr.bf16.mxu0 0
    %3910 = vmatpush1.bf16.msra.mxu0 0
    %3911 = vmatprep.subr.bf16.mxu0 0
    %3912 = vmatpush1.bf16.msra.mxu0 0
    %3913 = vmatprep.subr.bf16.mxu0 0
    %3914 = vmatpush1.bf16.msra.mxu0 0
    %3915 = vmatprep.subr.bf16.mxu0 0
    %3916 = vmatpush1.bf16.msra.mxu0 0
    %3917 = vmatprep.subr.bf16.mxu0 0
    %3918 = vmatpush1.bf16.msra.mxu0 0
    %3919 = vmatprep.subr.bf16.mxu0 0
    %3920 = vmatpush1.bf16.msra.mxu0 0
    %3921 = vmatprep.subr.bf16.mxu0 0
    %3922 = vmatpush1.bf16.msra.mxu0 0
    %3923 = vmatprep.mubr.bf16.mxu0 0
    %3924 = vmatmul.mubr.bf16.gmra.mrb[0].mxu0 %v3069
    %v3925 = vpop.f32.mrb[0].mxu0
    %v3926 = vadd.f32 0.0, %v3925
    %v3927 = vpop.f32.mrb[0].mxu0
    %v3928 = vadd.f32 0.0, %v3927
    %v3929 = vpop.f32.mrb[0].mxu0
    %v3930 = vpop.f32.mrb[0].mxu0
    %3931 = vdwg.mxu0
    %v3932 = vadd.f32 %v3654, %v3885
    %v3933 = vadd.f32 %v3655, %v3887
    %v3934 = vadd.f32 %v3656, %v3926
    %v3935 = vadd.f32 %v3657, %v3928
    %v3936 = vxor.u32 %v3932, 2147483648
    %v3937 = vmul.f32 %v3936, 1.442695
    %v3938 = vpow.pop %v3937
    %v3939 = vadd.f32 %v3938, 1.0
    %v3940 = vrcp.pop %v3939
    %v3941 = vmul.f32 1.0, %v3940
    %v3942 = vxor.u32 %v3933, 2147483648
    %v3943 = vmul.f32 %v3942, 1.442695
    %v3944 = vpow.pop %v3943
    %v3945 = vadd.f32 %v3944, 1.0
    %v3946 = vrcp.pop %v3945
    %v3947 = vmul.f32 1.0, %v3946
    %v3948 = vtanh.pop %v3934
    %v3949 = vxor.u32 %v3935, 2147483648
    %v3950 = vmul.f32 %v3949, 1.442695
    %v3951 = vpow.pop %v3950
    %v3952 = vadd.f32 %v3951, 1.0
    %v3953 = vrcp.pop %v3952
    %v3954 = vmul.f32 1.0, %v3953
    %v3955 = vmul.f32 %v3947, %v3066
    %v3956 = vmul.f32 %v3941, %v3948
    %v3957 = vadd.f32 %v3955, %v3956
    %v3958 = vtanh.pop %v3957
    %v3959 = vmul.f32 %v3954, %v3958
    %v3960 = vpack.c.bf16 %v3959, %v3959
    %v3961 = vld [vmem:[%s2] sm:$0xff]
    %v3962 = vld [vmem:[%s2 + $0x8] sm:$0xff]
    %v3963 = vld [vmem:[%s2 + $0x10] sm:$0xff]
    %v3964 = vld [vmem:[%s2 + $0x18] sm:$0xff]
    %v3965 = vld [vmem:[%s2 + $0x20] sm:$0xff]
    %v3966 = vld [vmem:[%s2 + $0x28] sm:$0xff]
    %v3967 = vld [vmem:[%s2 + $0x30] sm:$0xff]
    %v3968 = vld [vmem:[%s2 + $0x38] sm:$0xff]
    %v3969 = vld [vmem:[%s2 + $0x40] sm:$0xff]
    %v3970 = vld [vmem:[%s2 + $0x48] sm:$0xff]
    %v3971 = vld [vmem:[%s2 + $0x50] sm:$0xff]
    %v3972 = vld [vmem:[%s2 + $0x58] sm:$0xff]
    %v3973 = vld [vmem:[%s2 + $0x60] sm:$0xff]
    %v3974 = vld [vmem:[%s2 + $0x68] sm:$0xff]
    %v3975 = vld [vmem:[%s2 + $0x70] sm:$0xff]
    %v3976 = vld [vmem:[%s2 + $0x78] sm:$0xff]
    %v3977 = vld [vmem:[%s2 + $0x80] sm:$0xff]
    %v3978 = vld [vmem:[%s2 + $0x88] sm:$0xff]
    %v3979 = vld [vmem:[%s2 + $0x90] sm:$0xff]
    %v3980 = vld [vmem:[%s2 + $0x98] sm:$0xff]
    %v3981 = vld [vmem:[%s2 + $0xa0] sm:$0xff]
    %v3982 = vld [vmem:[%s2 + $0xa8] sm:$0xff]
    %v3983 = vld [vmem:[%s2 + $0xb0] sm:$0xff]
    %v3984 = vld [vmem:[%s2 + $0xb8] sm:$0xff]
    %v3985 = vld [vmem:[%s2 + $0xc0] sm:$0xff]
    %v3986 = vld [vmem:[%s2 + $0xc8] sm:$0xff]
    %v3987 = vld [vmem:[%s2 + $0xd0] sm:$0xff]
    %v3988 = vld [vmem:[%s2 + $0xd8] sm:$0xff]
    %v3989 = vld [vmem:[%s2 + $0xe0] sm:$0xff]
    %v3990 = vld [vmem:[%s2 + $0xe8] sm:$0xff]
    %v3991 = vld [vmem:[%s2 + $0xf0] sm:$0xff]
    %v3992 = vld [vmem:[%s2 + $0xf8] sm:$0xff]
    %v4025 = vunpack.c.l.b16 %v3961
    %v4026 = vunpack.c.h.b16 %v3961
    %v4027 = vunpack.c.l.b16 %v3962
    %v4028 = vunpack.c.h.b16 %v3962
    %v4029 = vunpack.c.l.b16 %v3963
    %v4030 = vunpack.c.h.b16 %v3963
    %v4031 = vunpack.c.l.b16 %v3964
    %v4032 = vunpack.c.h.b16 %v3964
    %v4033 = vunpack.c.l.b16 %v3965
    %v4034 = vunpack.c.h.b16 %v3965
    %v4035 = vunpack.c.l.b16 %v3966
    %v4036 = vunpack.c.h.b16 %v3966
    %v4037 = vunpack.c.l.b16 %v3967
    %v4038 = vunpack.c.h.b16 %v3967
    %v4039 = vunpack.c.l.b16 %v3968
    %v4040 = vunpack.c.h.b16 %v3968
    %v4041 = vunpack.c.l.b16 %v3969
    %v4042 = vunpack.c.h.b16 %v3969
    %v4043 = vunpack.c.l.b16 %v3970
    %v4044 = vunpack.c.h.b16 %v3970
    %v4045 = vunpack.c.l.b16 %v3971
    %v4046 = vunpack.c.h.b16 %v3971
    %v4047 = vunpack.c.l.b16 %v3972
    %v4048 = vunpack.c.h.b16 %v3972
    %v4049 = vunpack.c.l.b16 %v3973
    %v4050 = vunpack.c.h.b16 %v3973
    %v4051 = vunpack.c.l.b16 %v3974
    %v4052 = vunpack.c.h.b16 %v3974
    %v4053 = vunpack.c.l.b16 %v3975
    %v4054 = vunpack.c.h.b16 %v3975
    %v4055 = vunpack.c.l.b16 %v3976
    %v4056 = vunpack.c.h.b16 %v3976
    %v4057 = vunpack.c.l.b16 %v3977
    %v4058 = vunpack.c.h.b16 %v3977
    %v4059 = vunpack.c.l.b16 %v3978
    %v4060 = vunpack.c.h.b16 %v3978
    %v4061 = vunpack.c.l.b16 %v3979
    %v4062 = vunpack.c.h.b16 %v3979
    %v4063 = vunpack.c.l.b16 %v3980
    %v4064 = vunpack.c.h.b16 %v3980
    %v4065 = vunpack.c.l.b16 %v3981
    %v4066 = vunpack.c.h.b16 %v3981
    %v4067 = vunpack.c.l.b16 %v3982
    %v4068 = vunpack.c.h.b16 %v3982
    %v4069 = vunpack.c.l.b16 %v3983
    %v4070 = vunpack.c.h.b16 %v3983
    %v4071 = vunpack.c.l.b16 %v3984
    %v4072 = vunpack.c.h.b16 %v3984
    %v4073 = vunpack.c.l.b16 %v3985
    %v4074 = vunpack.c.h.b16 %v3985
    %v4075 = vunpack.c.l.b16 %v3986
    %v4076 = vunpack.c.h.b16 %v3986
    %v4077 = vunpack.c.l.b16 %v3987
    %v4078 = vunpack.c.h.b16 %v3987
    %v4079 = vunpack.c.l.b16 %v3988
    %v4080 = vunpack.c.h.b16 %v3988
    %v4081 = vunpack.c.l.b16 %v3989
    %v4082 = vunpack.c.h.b16 %v3989
    %v4083 = vunpack.c.l.b16 %v3990
    %v4084 = vunpack.c.h.b16 %v3990
    %v4085 = vunpack.c.l.b16 %v3991
    %v4086 = vunpack.c.h.b16 %v3991
    %v4087 = vunpack.c.l.b16 %v3992
    %v4088 = vunpack.c.h.b16 %v3992
    %v4089 = vpack.c.b16 %v4029, %v4025
    %v4090 = vpack.c.b16 %v4030, %v4026
    %v4091 = vpack.c.b16 %v4031, %v4027
    %v4092 = vpack.c.b16 %v4032, %v4028
    %v4093 = vpack.c.b16 %v4037, %v4033
    %v4094 = vpack.c.b16 %v4038, %v4034
    %v4095 = vpack.c.b16 %v4039, %v4035
    %v4096 = vpack.c.b16 %v4040, %v4036
    %v4097 = vpack.c.b16 %v4045, %v4041
    %v4098 = vpack.c.b16 %v4046, %v4042
    %v4099 = vpack.c.b16 %v4047, %v4043
    %v4100 = vpack.c.b16 %v4048, %v4044
    %v4101 = vpack.c.b16 %v4053, %v4049
    %v4102 = vpack.c.b16 %v4054, %v4050
    %v4103 = vpack.c.b16 %v4055, %v4051
    %v4104 = vpack.c.b16 %v4056, %v4052
    %v4105 = vpack.c.b16 %v4061, %v4057
    %v4106 = vpack.c.b16 %v4062, %v4058
    %v4107 = vpack.c.b16 %v4063, %v4059
    %v4108 = vpack.c.b16 %v4064, %v4060
    %v4109 = vpack.c.b16 %v4069, %v4065
    %v4110 = vpack.c.b16 %v4070, %v4066
    %v4111 = vpack.c.b16 %v4071, %v4067
    %v4112 = vpack.c.b16 %v4072, %v4068
    %v4113 = vpack.c.b16 %v4077, %v4073
    %v4114 = vpack.c.b16 %v4078, %v4074
    %v4115 = vpack.c.b16 %v4079, %v4075
    %v4116 = vpack.c.b16 %v4080, %v4076
    %v4117 = vpack.c.b16 %v4085, %v4081
    %v4118 = vpack.c.b16 %v4086, %v4082
    %v4119 = vpack.c.b16 %v4087, %v4083
    %v4120 = vpack.c.b16 %v4088, %v4084
    %4153 = vmatprep.subr.bf16.mxu0 %v4090
    %4154 = vmatpush1.bf16.msra.mxu0 %v4089
    %4155 = vmatprep.subr.bf16.mxu0 %v4094
    %4156 = vmatpush1.bf16.msra.mxu0 %v4093
    %4157 = vmatprep.subr.bf16.mxu0 %v4098
    %4158 = vmatpush1.bf16.msra.mxu0 %v4097
    %4159 = vmatprep.subr.bf16.mxu0 %v4102
    %4160 = vmatpush1.bf16.msra.mxu0 %v4101
    %4161 = vmatprep.subr.bf16.mxu0 %v4106
    %4162 = vmatpush1.bf16.msra.mxu0 %v4105
    %4163 = vmatprep.subr.bf16.mxu0 %v4110
    %4164 = vmatpush1.bf16.msra.mxu0 %v4109
    %4165 = vmatprep.subr.bf16.mxu0 %v4114
    %4166 = vmatpush1.bf16.msra.mxu0 %v4113
    %4167 = vmatprep.subr.bf16.mxu0 %v4118
    %4168 = vmatpush1.bf16.msra.mxu0 %v4117
    %4169 = vmatprep.subr.bf16.mxu0 0
    %4170 = vmatpush1.bf16.msra.mxu0 0
    %4171 = vmatprep.subr.bf16.mxu0 0
    %4172 = vmatpush1.bf16.msra.mxu0 0
    %4173 = vmatprep.subr.bf16.mxu0 0
    %4174 = vmatpush1.bf16.msra.mxu0 0
    %4175 = vmatprep.subr.bf16.mxu0 0
    %4176 = vmatpush1.bf16.msra.mxu0 0
    %4177 = vmatprep.subr.bf16.mxu0 0
    %4178 = vmatpush1.bf16.msra.mxu0 0
    %4179 = vmatprep.subr.bf16.mxu0 0
    %4180 = vmatpush1.bf16.msra.mxu0 0
    %4181 = vmatprep.subr.bf16.mxu0 0
    %4182 = vmatpush1.bf16.msra.mxu0 0
    %4183 = vmatprep.subr.bf16.mxu0 0
    %4184 = vmatpush1.bf16.msra.mxu0 0
    %4185 = vmatprep.mubr.bf16.mxu0 0
    %4186 = vmatmul.mubr.bf16.gmra.mrb[0].mxu0 %v3960
    %v4187 = vpop.f32.mrb[0].mxu0
    %v4188 = vadd.f32 0.0, %v4187
    %v4189 = vpop.f32.mrb[0].mxu0
    %v4190 = vadd.f32 0.0, %v4189
    %v4191 = vpop.f32.mrb[0].mxu0
    %v4192 = vpop.f32.mrb[0].mxu0
    %4193 = vdwg.mxu0
    %4194 = vmatprep.subr.bf16.mxu0 %v4092
    %4195 = vmatpush1.bf16.msra.mxu0 %v4091
    %4196 = vmatprep.subr.bf16.mxu0 %v4096
    %4197 = vmatpush1.bf16.msra.mxu0 %v4095
    %4198 = vmatprep.subr.bf16.mxu0 %v4100
    %4199 = vmatpush1.bf16.msra.mxu0 %v4099
    %4200 = vmatprep.subr.bf16.mxu0 %v4104
    %4201 = vmatpush1.bf16.msra.mxu0 %v4103
    %4202 = vmatprep.subr.bf16.mxu0 %v4108
    %4203 = vmatpush1.bf16.msra.mxu0 %v4107
    %4204 = vmatprep.subr.bf16.mxu0 %v4112
    %4205 = vmatpush1.bf16.msra.mxu0 %v4111
    %4206 = vmatprep.subr.bf16.mxu0 %v4116
    %4207 = vmatpush1.bf16.msra.mxu0 %v4115
    %4208 = vmatprep.subr.bf16.mxu0 %v4120
    %4209 = vmatpush1.bf16.msra.mxu0 %v4119
    %4210 = vmatprep.subr.bf16.mxu0 0
    %4211 = vmatpush1.bf16.msra.mxu0 0
    %4212 = vmatprep.subr.bf16.mxu0 0
    %4213 = vmatpush1.bf16.msra.mxu0 0
    %4214 = vmatprep.subr.bf16.mxu0 0
    %4215 = vmatpush1.bf16.msra.mxu0 0
    %4216 = vmatprep.subr.bf16.mxu0 0
    %4217 = vmatpush1.bf16.msra.mxu0 0
    %4218 = vmatprep.subr.bf16.mxu0 0
    %4219 = vmatpush1.bf16.msra.mxu0 0
    %4220 = vmatprep.subr.bf16.mxu0 0
    %4221 = vmatpush1.bf16.msra.mxu0 0
    %4222 = vmatprep.subr.bf16.mxu0 0
    %4223 = vmatpush1.bf16.msra.mxu0 0
    %4224 = vmatprep.subr.bf16.mxu0 0
    %4225 = vmatpush1.bf16.msra.mxu0 0
    %4226 = vmatprep.mubr.bf16.mxu0 0
    %4227 = vmatmul.mubr.bf16.gmra.mrb[0].mxu0 %v3960
    %v4228 = vpop.f32.mrb[0].mxu0
    %v4229 = vadd.f32 0.0, %v4228
    %v4230 = vpop.f32.mrb[0].mxu0
    %v4231 = vadd.f32 0.0, %v4230
    %v4232 = vpop.f32.mrb[0].mxu0
    %v4233 = vpop.f32.mrb[0].mxu0
    %4234 = vdwg.mxu0
    %v4235 = vadd.f32 %v655, %v4188
    %v4236 = vadd.f32 %v659, %v4190
    %v4237 = vadd.f32 %v663, %v4229
    %v4238 = vadd.f32 %v667, %v4231
    %v4239 = vpack.c.bf16 %v3650, %v3650
    %v4240 = vld [vmem:[#allocation6] sm:$0xff]
    %v4241 = vld [vmem:[#allocation6 + $0x8] sm:$0xff]
    %v4242 = vld [vmem:[#allocation6 + $0x10] sm:$0xff]
    %v4243 = vld [vmem:[#allocation6 + $0x18] sm:$0xff]
    %v4244 = vld [vmem:[#allocation6 + $0x20] sm:$0xff]
    %v4245 = vld [vmem:[#allocation6 + $0x28] sm:$0xff]
    %v4246 = vld [vmem:[#allocation6 + $0x30] sm:$0xff]
    %v4247 = vld [vmem:[#allocation6 + $0x38] sm:$0xff]
    %v4248 = vld [vmem:[#allocation6 + $0x40] sm:$0xff]
    %v4249 = vld [vmem:[#allocation6 + $0x48] sm:$0xff]
    %v4250 = vld [vmem:[#allocation6 + $0x50] sm:$0xff]
    %v4251 = vld [vmem:[#allocation6 + $0x58] sm:$0xff]
    %v4252 = vld [vmem:[#allocation6 + $0x60] sm:$0xff]
    %v4253 = vld [vmem:[#allocation6 + $0x68] sm:$0xff]
    %v4254 = vld [vmem:[#allocation6 + $0x70] sm:$0xff]
    %v4255 = vld [vmem:[#allocation6 + $0x78] sm:$0xff]
    %v4256 = vld [vmem:[#allocation6 + $0x80] sm:$0xff]
    %v4257 = vld [vmem:[#allocation6 + $0x88] sm:$0xff]
    %v4258 = vld [vmem:[#allocation6 + $0x90] sm:$0xff]
    %v4259 = vld [vmem:[#allocation6 + $0x98] sm:$0xff]
    %v4260 = vld [vmem:[#allocation6 + $0xa0] sm:$0xff]
    %v4261 = vld [vmem:[#allocation6 + $0xa8] sm:$0xff]
    %v4262 = vld [vmem:[#allocation6 + $0xb0] sm:$0xff]
    %v4263 = vld [vmem:[#allocation6 + $0xb8] sm:$0xff]
    %v4264 = vld [vmem:[#allocation6 + $0xc0] sm:$0xff]
    %v4265 = vld [vmem:[#allocation6 + $0xc8] sm:$0xff]
    %v4266 = vld [vmem:[#allocation6 + $0xd0] sm:$0xff]
    %v4267 = vld [vmem:[#allocation6 + $0xd8] sm:$0xff]
    %v4268 = vld [vmem:[#allocation6 + $0xe0] sm:$0xff]
    %v4269 = vld [vmem:[#allocation6 + $0xe8] sm:$0xff]
    %v4270 = vld [vmem:[#allocation6 + $0xf0] sm:$0xff]
    %v4271 = vld [vmem:[#allocation6 + $0xf8] sm:$0xff]
    %v4304 = vunpack.c.l.b16 %v4240
    %v4305 = vunpack.c.h.b16 %v4240
    %v4306 = vunpack.c.l.b16 %v4241
    %v4307 = vunpack.c.h.b16 %v4241
    %v4308 = vunpack.c.l.b16 %v4242
    %v4309 = vunpack.c.h.b16 %v4242
    %v4310 = vunpack.c.l.b16 %v4243
    %v4311 = vunpack.c.h.b16 %v4243
    %v4312 = vunpack.c.l.b16 %v4244
    %v4313 = vunpack.c.h.b16 %v4244
    %v4314 = vunpack.c.l.b16 %v4245
    %v4315 = vunpack.c.h.b16 %v4245
    %v4316 = vunpack.c.l.b16 %v4246
    %v4317 = vunpack.c.h.b16 %v4246
    %v4318 = vunpack.c.l.b16 %v4247
    %v4319 = vunpack.c.h.b16 %v4247
    %v4320 = vunpack.c.l.b16 %v4248
    %v4321 = vunpack.c.h.b16 %v4248
    %v4322 = vunpack.c.l.b16 %v4249
    %v4323 = vunpack.c.h.b16 %v4249
    %v4324 = vunpack.c.l.b16 %v4250
    %v4325 = vunpack.c.h.b16 %v4250
    %v4326 = vunpack.c.l.b16 %v4251
    %v4327 = vunpack.c.h.b16 %v4251
    %v4328 = vunpack.c.l.b16 %v4252
    %v4329 = vunpack.c.h.b16 %v4252
    %v4330 = vunpack.c.l.b16 %v4253
    %v4331 = vunpack.c.h.b16 %v4253
    %v4332 = vunpack.c.l.b16 %v4254
    %v4333 = vunpack.c.h.b16 %v4254
    %v4334 = vunpack.c.l.b16 %v4255
    %v4335 = vunpack.c.h.b16 %v4255
    %v4336 = vunpack.c.l.b16 %v4256
    %v4337 = vunpack.c.h.b16 %v4256
    %v4338 = vunpack.c.l.b16 %v4257
    %v4339 = vunpack.c.h.b16 %v4257
    %v4340 = vunpack.c.l.b16 %v4258
    %v4341 = vunpack.c.h.b16 %v4258
    %v4342 = vunpack.c.l.b16 %v4259
    %v4343 = vunpack.c.h.b16 %v4259
    %v4344 = vunpack.c.l.b16 %v4260
    %v4345 = vunpack.c.h.b16 %v4260
    %v4346 = vunpack.c.l.b16 %v4261
    %v4347 = vunpack.c.h.b16 %v4261
    %v4348 = vunpack.c.l.b16 %v4262
    %v4349 = vunpack.c.h.b16 %v4262
    %v4350 = vunpack.c.l.b16 %v4263
    %v4351 = vunpack.c.h.b16 %v4263
    %v4352 = vunpack.c.l.b16 %v4264
    %v4353 = vunpack.c.h.b16 %v4264
    %v4354 = vunpack.c.l.b16 %v4265
    %v4355 = vunpack.c.h.b16 %v4265
    %v4356 = vunpack.c.l.b16 %v4266
    %v4357 = vunpack.c.h.b16 %v4266
    %v4358 = vunpack.c.l.b16 %v4267
    %v4359 = vunpack.c.h.b16 %v4267
    %v4360 = vunpack.c.l.b16 %v4268
    %v4361 = vunpack.c.h.b16 %v4268
    %v4362 = vunpack.c.l.b16 %v4269
    %v4363 = vunpack.c.h.b16 %v4269
    %v4364 = vunpack.c.l.b16 %v4270
    %v4365 = vunpack.c.h.b16 %v4270
    %v4366 = vunpack.c.l.b16 %v4271
    %v4367 = vunpack.c.h.b16 %v4271
    %v4368 = vpack.c.b16 %v4308, %v4304
    %v4369 = vpack.c.b16 %v4309, %v4305
    %v4370 = vpack.c.b16 %v4310, %v4306
    %v4371 = vpack.c.b16 %v4311, %v4307
    %v4372 = vpack.c.b16 %v4316, %v4312
    %v4373 = vpack.c.b16 %v4317, %v4313
    %v4374 = vpack.c.b16 %v4318, %v4314
    %v4375 = vpack.c.b16 %v4319, %v4315
    %v4376 = vpack.c.b16 %v4324, %v4320
    %v4377 = vpack.c.b16 %v4325, %v4321
    %v4378 = vpack.c.b16 %v4326, %v4322
    %v4379 = vpack.c.b16 %v4327, %v4323
    %v4380 = vpack.c.b16 %v4332, %v4328
    %v4381 = vpack.c.b16 %v4333, %v4329
    %v4382 = vpack.c.b16 %v4334, %v4330
    %v4383 = vpack.c.b16 %v4335, %v4331
    %v4384 = vpack.c.b16 %v4340, %v4336
    %v4385 = vpack.c.b16 %v4341, %v4337
    %v4386 = vpack.c.b16 %v4342, %v4338
    %v4387 = vpack.c.b16 %v4343, %v4339
    %v4388 = vpack.c.b16 %v4348, %v4344
    %v4389 = vpack.c.b16 %v4349, %v4345
    %v4390 = vpack.c.b16 %v4350, %v4346
    %v4391 = vpack.c.b16 %v4351, %v4347
    %v4392 = vpack.c.b16 %v4356, %v4352
    %v4393 = vpack.c.b16 %v4357, %v4353
    %v4394 = vpack.c.b16 %v4358, %v4354
    %v4395 = vpack.c.b16 %v4359, %v4355
    %v4396 = vpack.c.b16 %v4364, %v4360
    %v4397 = vpack.c.b16 %v4365, %v4361
    %v4398 = vpack.c.b16 %v4366, %v4362
    %v4399 = vpack.c.b16 %v4367, %v4363
    %4432 = vmatprep.subr.bf16.mxu0 %v4369
    %4433 = vmatpush1.bf16.msra.mxu0 %v4368
    %4434 = vmatprep.subr.bf16.mxu0 %v4373
    %4435 = vmatpush1.bf16.msra.mxu0 %v4372
    %4436 = vmatprep.subr.bf16.mxu0 %v4377
    %4437 = vmatpush1.bf16.msra.mxu0 %v4376
    %4438 = vmatprep.subr.bf16.mxu0 %v4381
    %4439 = vmatpush1.bf16.msra.mxu0 %v4380
    %4440 = vmatprep.subr.bf16.mxu0 %v4385
    %4441 = vmatpush1.bf16.msra.mxu0 %v4384
    %4442 = vmatprep.subr.bf16.mxu0 %v4389
    %4443 = vmatpush1.bf16.msra.mxu0 %v4388
    %4444 = vmatprep.subr.bf16.mxu0 %v4393
    %4445 = vmatpush1.bf16.msra.mxu0 %v4392
    %4446 = vmatprep.subr.bf16.mxu0 %v4397
    %4447 = vmatpush1.bf16.msra.mxu0 %v4396
    %4448 = vmatprep.subr.bf16.mxu0 0
    %4449 = vmatpush1.bf16.msra.mxu0 0
    %4450 = vmatprep.subr.bf16.mxu0 0
    %4451 = vmatpush1.bf16.msra.mxu0 0
    %4452 = vmatprep.subr.bf16.mxu0 0
    %4453 = vmatpush1.bf16.msra.mxu0 0
    %4454 = vmatprep.subr.bf16.mxu0 0
    %4455 = vmatpush1.bf16.msra.mxu0 0
    %4456 = vmatprep.subr.bf16.mxu0 0
    %4457 = vmatpush1.bf16.msra.mxu0 0
    %4458 = vmatprep.subr.bf16.mxu0 0
    %4459 = vmatpush1.bf16.msra.mxu0 0
    %4460 = vmatprep.subr.bf16.mxu0 0
    %4461 = vmatpush1.bf16.msra.mxu0 0
    %4462 = vmatprep.subr.bf16.mxu0 0
    %4463 = vmatpush1.bf16.msra.mxu0 0
    %4464 = vmatprep.mubr.bf16.mxu0 0
    %4465 = vmatmul.mubr.bf16.gmra.mrb[0].mxu0 %v4239
    %v4466 = vpop.f32.mrb[0].mxu0
    %v4467 = vadd.f32 0.0, %v4466
    %v4468 = vpop.f32.mrb[0].mxu0
    %v4469 = vadd.f32 0.0, %v4468
    %v4470 = vpop.f32.mrb[0].mxu0
    %v4471 = vpop.f32.mrb[0].mxu0
    %4472 = vdwg.mxu0
    %4473 = vmatprep.subr.bf16.mxu0 %v4371
    %4474 = vmatpush1.bf16.msra.mxu0 %v4370
    %4475 = vmatprep.subr.bf16.mxu0 %v4375
    %4476 = vmatpush1.bf16.msra.mxu0 %v4374
    %4477 = vmatprep.subr.bf16.mxu0 %v4379
    %4478 = vmatpush1.bf16.msra.mxu0 %v4378
    %4479 = vmatprep.subr.bf16.mxu0 %v4383
    %4480 = vmatpush1.bf16.msra.mxu0 %v4382
    %4481 = vmatprep.subr.bf16.mxu0 %v4387
    %4482 = vmatpush1.bf16.msra.mxu0 %v4386
    %4483 = vmatprep.subr.bf16.mxu0 %v4391
    %4484 = vmatpush1.bf16.msra.mxu0 %v4390
    %4485 = vmatprep.subr.bf16.mxu0 %v4395
    %4486 = vmatpush1.bf16.msra.mxu0 %v4394
    %4487 = vmatprep.subr.bf16.mxu0 %v4399
    %4488 = vmatpush1.bf16.msra.mxu0 %v4398
    %4489 = vmatprep.subr.bf16.mxu0 0
    %4490 = vmatpush1.bf16.msra.mxu0 0
    %4491 = vmatprep.subr.bf16.mxu0 0
    %4492 = vmatpush1.bf16.msra.mxu0 0
    %4493 = vmatprep.subr.bf16.mxu0 0
    %4494 = vmatpush1.bf16.msra.mxu0 0
    %4495 = vmatprep.subr.bf16.mxu0 0
    %4496 = vmatpush1.bf16.msra.mxu0 0
    %4497 = vmatprep.subr.bf16.mxu0 0
    %4498 = vmatpush1.bf16.msra.mxu0 0
    %4499 = vmatprep.subr.bf16.mxu0 0
    %4500 = vmatpush1.bf16.msra.mxu0 0
    %4501 = vmatprep.subr.bf16.mxu0 0
    %4502 = vmatpush1.bf16.msra.mxu0 0
    %4503 = vmatprep.subr.bf16.mxu0 0
    %4504 = vmatpush1.bf16.msra.mxu0 0
    %4505 = vmatprep.mubr.bf16.mxu0 0
    %4506 = vmatmul.mubr.bf16.gmra.mrb[0].mxu0 %v4239
    %v4507 = vpop.f32.mrb[0].mxu0
    %v4508 = vadd.f32 0.0, %v4507
    %v4509 = vpop.f32.mrb[0].mxu0
    %v4510 = vadd.f32 0.0, %v4509
    %v4511 = vpop.f32.mrb[0].mxu0
    %v4512 = vpop.f32.mrb[0].mxu0
    %4513 = vdwg.mxu0
    %v4514 = vadd.f32 %v4235, %v4467
    %v4515 = vadd.f32 %v4236, %v4469
    %v4516 = vadd.f32 %v4237, %v4508
    %v4517 = vadd.f32 %v4238, %v4510
    %v4518 = vxor.u32 %v4514, 2147483648
    %v4519 = vmul.f32 %v4518, 1.442695
    %v4520 = vpow.pop %v4519
    %v4521 = vadd.f32 %v4520, 1.0
    %v4522 = vrcp.pop %v4521
    %v4523 = vmul.f32 1.0, %v4522
    %v4524 = vxor.u32 %v4515, 2147483648
    %v4525 = vmul.f32 %v4524, 1.442695
    %v4526 = vpow.pop %v4525
    %v4527 = vadd.f32 %v4526, 1.0
    %v4528 = vrcp.pop %v4527
    %v4529 = vmul.f32 1.0, %v4528
    %v4530 = vtanh.pop %v4516
    %v4531 = vxor.u32 %v4517, 2147483648
    %v4532 = vmul.f32 %v4531, 1.442695
    %v4533 = vpow.pop %v4532
    %v4534 = vadd.f32 %v4533, 1.0
    %v4535 = vrcp.pop %v4534
    %v4536 = vmul.f32 1.0, %v4535
    %v4537 = vmul.f32 %v4529, %v3648
    %v4538 = vmul.f32 %v4523, %v4530
    %v4539 = vadd.f32 %v4537, %v4538
    %v4540 = vtanh.pop %v4539
    %v4541 = vmul.f32 %v4536, %v4540
    %s4542 = scalar_lea.vmem %s9, 32
    %4543 = vst [vmem:[%s4542] sm:$0xff] %v4541
    %s4544 = scalar_lea.vmem %s0, 160
    %v4545 = vld [vmem:[%s4544] sm:$0xff]
    %v4546 = vld [vmem:[%s4544 + $0x8] sm:$0xff]
    %v4547 = vld [vmem:[%s4544 + $0x10] sm:$0xff]
    %v4548 = vld [vmem:[%s4544 + $0x18] sm:$0xff]
    %v4549 = vld [vmem:[%s1] sm:$0xff]
    %v4550 = vld [vmem:[%s1 + $0x8] sm:$0xff]
    %v4551 = vld [vmem:[%s1 + $0x10] sm:$0xff]
    %v4552 = vld [vmem:[%s1 + $0x18] sm:$0xff]
    %v4553 = vld [vmem:[%s1 + $0x20] sm:$0xff]
    %v4554 = vld [vmem:[%s1 + $0x28] sm:$0xff]
    %v4555 = vld [vmem:[%s1 + $0x30] sm:$0xff]
    %v4556 = vld [vmem:[%s1 + $0x38] sm:$0xff]
    %v4557 = vld [vmem:[%s1 + $0x40] sm:$0xff]
    %v4558 = vld [vmem:[%s1 + $0x48] sm:$0xff]
    %v4559 = vld [vmem:[%s1 + $0x50] sm:$0xff]
    %v4560 = vld [vmem:[%s1 + $0x58] sm:$0xff]
    %v4561 = vld [vmem:[%s1 + $0x60] sm:$0xff]
    %v4562 = vld [vmem:[%s1 + $0x68] sm:$0xff]
    %v4563 = vld [vmem:[%s1 + $0x70] sm:$0xff]
    %v4564 = vld [vmem:[%s1 + $0x78] sm:$0xff]
    %v4565 = vld [vmem:[%s1 + $0x80] sm:$0xff]
    %v4566 = vld [vmem:[%s1 + $0x88] sm:$0xff]
    %v4567 = vld [vmem:[%s1 + $0x90] sm:$0xff]
    %v4568 = vld [vmem:[%s1 + $0x98] sm:$0xff]
    %v4569 = vld [vmem:[%s1 + $0xa0] sm:$0xff]
    %v4570 = vld [vmem:[%s1 + $0xa8] sm:$0xff]
    %v4571 = vld [vmem:[%s1 + $0xb0] sm:$0xff]
    %v4572 = vld [vmem:[%s1 + $0xb8] sm:$0xff]
    %v4573 = vld [vmem:[%s1 + $0xc0] sm:$0xff]
    %v4574 = vld [vmem:[%s1 + $0xc8] sm:$0xff]
    %v4575 = vld [vmem:[%s1 + $0xd0] sm:$0xff]
    %v4576 = vld [vmem:[%s1 + $0xd8] sm:$0xff]
    %v4577 = vld [vmem:[%s1 + $0xe0] sm:$0xff]
    %v4578 = vld [vmem:[%s1 + $0xe8] sm:$0xff]
    %v4579 = vld [vmem:[%s1 + $0xf0] sm:$0xff]
    %v4580 = vld [vmem:[%s1 + $0xf8] sm:$0xff]
    %v4613 = vunpack.c.l.b16 %v4549
    %v4614 = vunpack.c.h.b16 %v4549
    %v4615 = vunpack.c.l.b16 %v4550
    %v4616 = vunpack.c.h.b16 %v4550
    %v4617 = vunpack.c.l.b16 %v4551
    %v4618 = vunpack.c.h.b16 %v4551
    %v4619 = vunpack.c.l.b16 %v4552
    %v4620 = vunpack.c.h.b16 %v4552
    %v4621 = vunpack.c.l.b16 %v4553
    %v4622 = vunpack.c.h.b16 %v4553
    %v4623 = vunpack.c.l.b16 %v4554
    %v4624 = vunpack.c.h.b16 %v4554
    %v4625 = vunpack.c.l.b16 %v4555
    %v4626 = vunpack.c.h.b16 %v4555
    %v4627 = vunpack.c.l.b16 %v4556
    %v4628 = vunpack.c.h.b16 %v4556
    %v4629 = vunpack.c.l.b16 %v4557
    %v4630 = vunpack.c.h.b16 %v4557
    %v4631 = vunpack.c.l.b16 %v4558
    %v4632 = vunpack.c.h.b16 %v4558
    %v4633 = vunpack.c.l.b16 %v4559
    %v4634 = vunpack.c.h.b16 %v4559
    %v4635 = vunpack.c.l.b16 %v4560
    %v4636 = vunpack.c.h.b16 %v4560
    %v4637 = vunpack.c.l.b16 %v4561
    %v4638 = vunpack.c.h.b16 %v4561
    %v4639 = vunpack.c.l.b16 %v4562
    %v4640 = vunpack.c.h.b16 %v4562
    %v4641 = vunpack.c.l.b16 %v4563
    %v4642 = vunpack.c.h.b16 %v4563
    %v4643 = vunpack.c.l.b16 %v4564
    %v4644 = vunpack.c.h.b16 %v4564
    %v4645 = vunpack.c.l.b16 %v4565
    %v4646 = vunpack.c.h.b16 %v4565
    %v4647 = vunpack.c.l.b16 %v4566
    %v4648 = vunpack.c.h.b16 %v4566
    %v4649 = vunpack.c.l.b16 %v4567
    %v4650 = vunpack.c.h.b16 %v4567
    %v4651 = vunpack.c.l.b16 %v4568
    %v4652 = vunpack.c.h.b16 %v4568
    %v4653 = vunpack.c.l.b16 %v4569
    %v4654 = vunpack.c.h.b16 %v4569
    %v4655 = vunpack.c.l.b16 %v4570
    %v4656 = vunpack.c.h.b16 %v4570
    %v4657 = vunpack.c.l.b16 %v4571
    %v4658 = vunpack.c.h.b16 %v4571
    %v4659 = vunpack.c.l.b16 %v4572
    %v4660 = vunpack.c.h.b16 %v4572
    %v4661 = vunpack.c.l.b16 %v4573
    %v4662 = vunpack.c.h.b16 %v4573
    %v4663 = vunpack.c.l.b16 %v4574
    %v4664 = vunpack.c.h.b16 %v4574
    %v4665 = vunpack.c.l.b16 %v4575
    %v4666 = vunpack.c.h.b16 %v4575
    %v4667 = vunpack.c.l.b16 %v4576
    %v4668 = vunpack.c.h.b16 %v4576
    %v4669 = vunpack.c.l.b16 %v4577
    %v4670 = vunpack.c.h.b16 %v4577
    %v4671 = vunpack.c.l.b16 %v4578
    %v4672 = vunpack.c.h.b16 %v4578
    %v4673 = vunpack.c.l.b16 %v4579
    %v4674 = vunpack.c.h.b16 %v4579
    %v4675 = vunpack.c.l.b16 %v4580
    %v4676 = vunpack.c.h.b16 %v4580
    %v4677 = vpack.c.b16 %v4617, %v4613
    %v4678 = vpack.c.b16 %v4618, %v4614
    %v4679 = vpack.c.b16 %v4619, %v4615
    %v4680 = vpack.c.b16 %v4620, %v4616
    %v4681 = vpack.c.b16 %v4625, %v4621
    %v4682 = vpack.c.b16 %v4626, %v4622
    %v4683 = vpack.c.b16 %v4627, %v4623
    %v4684 = vpack.c.b16 %v4628, %v4624
    %v4685 = vpack.c.b16 %v4633, %v4629
    %v4686 = vpack.c.b16 %v4634, %v4630
    %v4687 = vpack.c.b16 %v4635, %v4631
    %v4688 = vpack.c.b16 %v4636, %v4632
    %v4689 = vpack.c.b16 %v4641, %v4637
    %v4690 = vpack.c.b16 %v4642, %v4638
    %v4691 = vpack.c.b16 %v4643, %v4639
    %v4692 = vpack.c.b16 %v4644, %v4640
    %v4693 = vpack.c.b16 %v4649, %v4645
    %v4694 = vpack.c.b16 %v4650, %v4646
    %v4695 = vpack.c.b16 %v4651, %v4647
    %v4696 = vpack.c.b16 %v4652, %v4648
    %v4697 = vpack.c.b16 %v4657, %v4653
    %v4698 = vpack.c.b16 %v4658, %v4654
    %v4699 = vpack.c.b16 %v4659, %v4655
    %v4700 = vpack.c.b16 %v4660, %v4656
    %v4701 = vpack.c.b16 %v4665, %v4661
    %v4702 = vpack.c.b16 %v4666, %v4662
    %v4703 = vpack.c.b16 %v4667, %v4663
    %v4704 = vpack.c.b16 %v4668, %v4664
    %v4705 = vpack.c.b16 %v4673, %v4669
    %v4706 = vpack.c.b16 %v4674, %v4670
    %v4707 = vpack.c.b16 %v4675, %v4671
    %v4708 = vpack.c.b16 %v4676, %v4672
    %4741 = vmatprep.subr.bf16.mxu0 %v4678
    %4742 = vmatpush1.bf16.msra.mxu0 %v4677
    %4743 = vmatprep.subr.bf16.mxu0 %v4682
    %4744 = vmatpush1.bf16.msra.mxu0 %v4681
    %4745 = vmatprep.subr.bf16.mxu0 %v4686
    %4746 = vmatpush1.bf16.msra.mxu0 %v4685
    %4747 = vmatprep.subr.bf16.mxu0 %v4690
    %4748 = vmatpush1.bf16.msra.mxu0 %v4689
    %4749 = vmatprep.subr.bf16.mxu0 %v4694
    %4750 = vmatpush1.bf16.msra.mxu0 %v4693
    %4751 = vmatprep.subr.bf16.mxu0 %v4698
    %4752 = vmatpush1.bf16.msra.mxu0 %v4697
    %4753 = vmatprep.subr.bf16.mxu0 %v4702
    %4754 = vmatpush1.bf16.msra.mxu0 %v4701
    %4755 = vmatprep.subr.bf16.mxu0 %v4706
    %4756 = vmatpush1.bf16.msra.mxu0 %v4705
    %4757 = vmatprep.subr.bf16.mxu0 0
    %4758 = vmatpush1.bf16.msra.mxu0 0
    %4759 = vmatprep.subr.bf16.mxu0 0
    %4760 = vmatpush1.bf16.msra.mxu0 0
    %4761 = vmatprep.subr.bf16.mxu0 0
    %4762 = vmatpush1.bf16.msra.mxu0 0
    %4763 = vmatprep.subr.bf16.mxu0 0
    %4764 = vmatpush1.bf16.msra.mxu0 0
    %4765 = vmatprep.subr.bf16.mxu0 0
    %4766 = vmatpush1.bf16.msra.mxu0 0
    %4767 = vmatprep.subr.bf16.mxu0 0
    %4768 = vmatpush1.bf16.msra.mxu0 0
    %4769 = vmatprep.subr.bf16.mxu0 0
    %4770 = vmatpush1.bf16.msra.mxu0 0
    %4771 = vmatprep.subr.bf16.mxu0 0
    %4772 = vmatpush1.bf16.msra.mxu0 0
    %4773 = vmatprep.mubr.bf16.mxu0 0
    %4774 = vmatmul.mubr.bf16.gmra.mrb[0].mxu0 %v3960
    %v4775 = vpop.f32.mrb[0].mxu0
    %v4776 = vadd.f32 0.0, %v4775
    %v4777 = vpop.f32.mrb[0].mxu0
    %v4778 = vadd.f32 0.0, %v4777
    %v4779 = vpop.f32.mrb[0].mxu0
    %v4780 = vpop.f32.mrb[0].mxu0
    %4781 = vdwg.mxu0
    %4782 = vmatprep.subr.bf16.mxu0 %v4680
    %4783 = vmatpush1.bf16.msra.mxu0 %v4679
    %4784 = vmatprep.subr.bf16.mxu0 %v4684
    %4785 = vmatpush1.bf16.msra.mxu0 %v4683
    %4786 = vmatprep.subr.bf16.mxu0 %v4688
    %4787 = vmatpush1.bf16.msra.mxu0 %v4687
    %4788 = vmatprep.subr.bf16.mxu0 %v4692
    %4789 = vmatpush1.bf16.msra.mxu0 %v4691
    %4790 = vmatprep.subr.bf16.mxu0 %v4696
    %4791 = vmatpush1.bf16.msra.mxu0 %v4695
    %4792 = vmatprep.subr.bf16.mxu0 %v4700
    %4793 = vmatpush1.bf16.msra.mxu0 %v4699
    %4794 = vmatprep.subr.bf16.mxu0 %v4704
    %4795 = vmatpush1.bf16.msra.mxu0 %v4703
    %4796 = vmatprep.subr.bf16.mxu0 %v4708
    %4797 = vmatpush1.bf16.msra.mxu0 %v4707
    %4798 = vmatprep.subr.bf16.mxu0 0
    %4799 = vmatpush1.bf16.msra.mxu0 0
    %4800 = vmatprep.subr.bf16.mxu0 0
    %4801 = vmatpush1.bf16.msra.mxu0 0
    %4802 = vmatprep.subr.bf16.mxu0 0
    %4803 = vmatpush1.bf16.msra.mxu0 0
    %4804 = vmatprep.subr.bf16.mxu0 0
    %4805 = vmatpush1.bf16.msra.mxu0 0
    %4806 = vmatprep.subr.bf16.mxu0 0
    %4807 = vmatpush1.bf16.msra.mxu0 0
    %4808 = vmatprep.subr.bf16.mxu0 0
    %4809 = vmatpush1.bf16.msra.mxu0 0
    %4810 = vmatprep.subr.bf16.mxu0 0
    %4811 = vmatpush1.bf16.msra.mxu0 0
    %4812 = vmatprep.subr.bf16.mxu0 0
    %4813 = vmatpush1.bf16.msra.mxu0 0
    %4814 = vmatprep.mubr.bf16.mxu0 0
    %4815 = vmatmul.mubr.bf16.gmra.mrb[0].mxu0 %v3960
    %v4816 = vpop.f32.mrb[0].mxu0
    %v4817 = vadd.f32 0.0, %v4816
    %v4818 = vpop.f32.mrb[0].mxu0
    %v4819 = vadd.f32 0.0, %v4818
    %v4820 = vpop.f32.mrb[0].mxu0
    %v4821 = vpop.f32.mrb[0].mxu0
    %4822 = vdwg.mxu0
    %v4823 = vadd.f32 %v4545, %v4776
    %v4824 = vadd.f32 %v4546, %v4778
    %v4825 = vadd.f32 %v4547, %v4817
    %v4826 = vadd.f32 %v4548, %v4819
    %v4827 = vxor.u32 %v4823, 2147483648
    %v4828 = vmul.f32 %v4827, 1.442695
    %v4829 = vpow.pop %v4828
    %v4830 = vadd.f32 %v4829, 1.0
    %v4831 = vrcp.pop %v4830
    %v4832 = vmul.f32 1.0, %v4831
    %v4833 = vxor.u32 %v4824, 2147483648
    %v4834 = vmul.f32 %v4833, 1.442695
    %v4835 = vpow.pop %v4834
    %v4836 = vadd.f32 %v4835, 1.0
    %v4837 = vrcp.pop %v4836
    %v4838 = vmul.f32 1.0, %v4837
    %v4839 = vtanh.pop %v4825
    %v4840 = vxor.u32 %v4826, 2147483648
    %v4841 = vmul.f32 %v4840, 1.442695
    %v4842 = vpow.pop %v4841
    %v4843 = vadd.f32 %v4842, 1.0
    %v4844 = vrcp.pop %v4843
    %v4845 = vmul.f32 1.0, %v4844
    %v4846 = vmul.f32 %v4838, %v3957
    %v4847 = vmul.f32 %v4832, %v4839
    %v4848 = vadd.f32 %v4846, %v4847
    %v4849 = vtanh.pop %v4848
    %v4850 = vmul.f32 %v4845, %v4849
    %v4851 = vpack.c.bf16 %v4850, %v4850
    %v4852 = vld [vmem:[%s2] sm:$0xff]
    %v4853 = vld [vmem:[%s2 + $0x8] sm:$0xff]
    %v4854 = vld [vmem:[%s2 + $0x10] sm:$0xff]
    %v4855 = vld [vmem:[%s2 + $0x18] sm:$0xff]
    %v4856 = vld [vmem:[%s2 + $0x20] sm:$0xff]
    %v4857 = vld [vmem:[%s2 + $0x28] sm:$0xff]
    %v4858 = vld [vmem:[%s2 + $0x30] sm:$0xff]
    %v4859 = vld [vmem:[%s2 + $0x38] sm:$0xff]
    %v4860 = vld [vmem:[%s2 + $0x40] sm:$0xff]
    %v4861 = vld [vmem:[%s2 + $0x48] sm:$0xff]
    %v4862 = vld [vmem:[%s2 + $0x50] sm:$0xff]
    %v4863 = vld [vmem:[%s2 + $0x58] sm:$0xff]
    %v4864 = vld [vmem:[%s2 + $0x60] sm:$0xff]
    %v4865 = vld [vmem:[%s2 + $0x68] sm:$0xff]
    %v4866 = vld [vmem:[%s2 + $0x70] sm:$0xff]
    %v4867 = vld [vmem:[%s2 + $0x78] sm:$0xff]
    %v4868 = vld [vmem:[%s2 + $0x80] sm:$0xff]
    %v4869 = vld [vmem:[%s2 + $0x88] sm:$0xff]
    %v4870 = vld [vmem:[%s2 + $0x90] sm:$0xff]
    %v4871 = vld [vmem:[%s2 + $0x98] sm:$0xff]
    %v4872 = vld [vmem:[%s2 + $0xa0] sm:$0xff]
    %v4873 = vld [vmem:[%s2 + $0xa8] sm:$0xff]
    %v4874 = vld [vmem:[%s2 + $0xb0] sm:$0xff]
    %v4875 = vld [vmem:[%s2 + $0xb8] sm:$0xff]
    %v4876 = vld [vmem:[%s2 + $0xc0] sm:$0xff]
    %v4877 = vld [vmem:[%s2 + $0xc8] sm:$0xff]
    %v4878 = vld [vmem:[%s2 + $0xd0] sm:$0xff]
    %v4879 = vld [vmem:[%s2 + $0xd8] sm:$0xff]
    %v4880 = vld [vmem:[%s2 + $0xe0] sm:$0xff]
    %v4881 = vld [vmem:[%s2 + $0xe8] sm:$0xff]
    %v4882 = vld [vmem:[%s2 + $0xf0] sm:$0xff]
    %v4883 = vld [vmem:[%s2 + $0xf8] sm:$0xff]
    %v4916 = vunpack.c.l.b16 %v4852
    %v4917 = vunpack.c.h.b16 %v4852
    %v4918 = vunpack.c.l.b16 %v4853
    %v4919 = vunpack.c.h.b16 %v4853
    %v4920 = vunpack.c.l.b16 %v4854
    %v4921 = vunpack.c.h.b16 %v4854
    %v4922 = vunpack.c.l.b16 %v4855
    %v4923 = vunpack.c.h.b16 %v4855
    %v4924 = vunpack.c.l.b16 %v4856
    %v4925 = vunpack.c.h.b16 %v4856
    %v4926 = vunpack.c.l.b16 %v4857
    %v4927 = vunpack.c.h.b16 %v4857
    %v4928 = vunpack.c.l.b16 %v4858
    %v4929 = vunpack.c.h.b16 %v4858
    %v4930 = vunpack.c.l.b16 %v4859
    %v4931 = vunpack.c.h.b16 %v4859
    %v4932 = vunpack.c.l.b16 %v4860
    %v4933 = vunpack.c.h.b16 %v4860
    %v4934 = vunpack.c.l.b16 %v4861
    %v4935 = vunpack.c.h.b16 %v4861
    %v4936 = vunpack.c.l.b16 %v4862
    %v4937 = vunpack.c.h.b16 %v4862
    %v4938 = vunpack.c.l.b16 %v4863
    %v4939 = vunpack.c.h.b16 %v4863
    %v4940 = vunpack.c.l.b16 %v4864
    %v4941 = vunpack.c.h.b16 %v4864
    %v4942 = vunpack.c.l.b16 %v4865
    %v4943 = vunpack.c.h.b16 %v4865
    %v4944 = vunpack.c.l.b16 %v4866
    %v4945 = vunpack.c.h.b16 %v4866
    %v4946 = vunpack.c.l.b16 %v4867
    %v4947 = vunpack.c.h.b16 %v4867
    %v4948 = vunpack.c.l.b16 %v4868
    %v4949 = vunpack.c.h.b16 %v4868
    %v4950 = vunpack.c.l.b16 %v4869
    %v4951 = vunpack.c.h.b16 %v4869
    %v4952 = vunpack.c.l.b16 %v4870
    %v4953 = vunpack.c.h.b16 %v4870
    %v4954 = vunpack.c.l.b16 %v4871
    %v4955 = vunpack.c.h.b16 %v4871
    %v4956 = vunpack.c.l.b16 %v4872
    %v4957 = vunpack.c.h.b16 %v4872
    %v4958 = vunpack.c.l.b16 %v4873
    %v4959 = vunpack.c.h.b16 %v4873
    %v4960 = vunpack.c.l.b16 %v4874
    %v4961 = vunpack.c.h.b16 %v4874
    %v4962 = vunpack.c.l.b16 %v4875
    %v4963 = vunpack.c.h.b16 %v4875
    %v4964 = vunpack.c.l.b16 %v4876
    %v4965 = vunpack.c.h.b16 %v4876
    %v4966 = vunpack.c.l.b16 %v4877
    %v4967 = vunpack.c.h.b16 %v4877
    %v4968 = vunpack.c.l.b16 %v4878
    %v4969 = vunpack.c.h.b16 %v4878
    %v4970 = vunpack.c.l.b16 %v4879
    %v4971 = vunpack.c.h.b16 %v4879
    %v4972 = vunpack.c.l.b16 %v4880
    %v4973 = vunpack.c.h.b16 %v4880
    %v4974 = vunpack.c.l.b16 %v4881
    %v4975 = vunpack.c.h.b16 %v4881
    %v4976 = vunpack.c.l.b16 %v4882
    %v4977 = vunpack.c.h.b16 %v4882
    %v4978 = vunpack.c.l.b16 %v4883
    %v4979 = vunpack.c.h.b16 %v4883
    %v4980 = vpack.c.b16 %v4920, %v4916
    %v4981 = vpack.c.b16 %v4921, %v4917
    %v4982 = vpack.c.b16 %v4922, %v4918
    %v4983 = vpack.c.b16 %v4923, %v4919
    %v4984 = vpack.c.b16 %v4928, %v4924
    %v4985 = vpack.c.b16 %v4929, %v4925
    %v4986 = vpack.c.b16 %v4930, %v4926
    %v4987 = vpack.c.b16 %v4931, %v4927
    %v4988 = vpack.c.b16 %v4936, %v4932
    %v4989 = vpack.c.b16 %v4937, %v4933
    %v4990 = vpack.c.b16 %v4938, %v4934
    %v4991 = vpack.c.b16 %v4939, %v4935
    %v4992 = vpack.c.b16 %v4944, %v4940
    %v4993 = vpack.c.b16 %v4945, %v4941
    %v4994 = vpack.c.b16 %v4946, %v4942
    %v4995 = vpack.c.b16 %v4947, %v4943
    %v4996 = vpack.c.b16 %v4952, %v4948
    %v4997 = vpack.c.b16 %v4953, %v4949
    %v4998 = vpack.c.b16 %v4954, %v4950
    %v4999 = vpack.c.b16 %v4955, %v4951
    %v5000 = vpack.c.b16 %v4960, %v4956
    %v5001 = vpack.c.b16 %v4961, %v4957
    %v5002 = vpack.c.b16 %v4962, %v4958
    %v5003 = vpack.c.b16 %v4963, %v4959
    %v5004 = vpack.c.b16 %v4968, %v4964
    %v5005 = vpack.c.b16 %v4969, %v4965
    %v5006 = vpack.c.b16 %v4970, %v4966
    %v5007 = vpack.c.b16 %v4971, %v4967
    %v5008 = vpack.c.b16 %v4976, %v4972
    %v5009 = vpack.c.b16 %v4977, %v4973
    %v5010 = vpack.c.b16 %v4978, %v4974
    %v5011 = vpack.c.b16 %v4979, %v4975
    %5044 = vmatprep.subr.bf16.mxu0 %v4981
    %5045 = vmatpush1.bf16.msra.mxu0 %v4980
    %5046 = vmatprep.subr.bf16.mxu0 %v4985
    %5047 = vmatpush1.bf16.msra.mxu0 %v4984
    %5048 = vmatprep.subr.bf16.mxu0 %v4989
    %5049 = vmatpush1.bf16.msra.mxu0 %v4988
    %5050 = vmatprep.subr.bf16.mxu0 %v4993
    %5051 = vmatpush1.bf16.msra.mxu0 %v4992
    %5052 = vmatprep.subr.bf16.mxu0 %v4997
    %5053 = vmatpush1.bf16.msra.mxu0 %v4996
    %5054 = vmatprep.subr.bf16.mxu0 %v5001
    %5055 = vmatpush1.bf16.msra.mxu0 %v5000
    %5056 = vmatprep.subr.bf16.mxu0 %v5005
    %5057 = vmatpush1.bf16.msra.mxu0 %v5004
    %5058 = vmatprep.subr.bf16.mxu0 %v5009
    %5059 = vmatpush1.bf16.msra.mxu0 %v5008
    %5060 = vmatprep.subr.bf16.mxu0 0
    %5061 = vmatpush1.bf16.msra.mxu0 0
    %5062 = vmatprep.subr.bf16.mxu0 0
    %5063 = vmatpush1.bf16.msra.mxu0 0
    %5064 = vmatprep.subr.bf16.mxu0 0
    %5065 = vmatpush1.bf16.msra.mxu0 0
    %5066 = vmatprep.subr.bf16.mxu0 0
    %5067 = vmatpush1.bf16.msra.mxu0 0
    %5068 = vmatprep.subr.bf16.mxu0 0
    %5069 = vmatpush1.bf16.msra.mxu0 0
    %5070 = vmatprep.subr.bf16.mxu0 0
    %5071 = vmatpush1.bf16.msra.mxu0 0
    %5072 = vmatprep.subr.bf16.mxu0 0
    %5073 = vmatpush1.bf16.msra.mxu0 0
    %5074 = vmatprep.subr.bf16.mxu0 0
    %5075 = vmatpush1.bf16.msra.mxu0 0
    %5076 = vmatprep.mubr.bf16.mxu0 0
    %5077 = vmatmul.mubr.bf16.gmra.mrb[0].mxu0 %v4851
    %v5078 = vpop.f32.mrb[0].mxu0
    %v5079 = vadd.f32 0.0, %v5078
    %v5080 = vpop.f32.mrb[0].mxu0
    %v5081 = vadd.f32 0.0, %v5080
    %v5082 = vpop.f32.mrb[0].mxu0
    %v5083 = vpop.f32.mrb[0].mxu0
    %5084 = vdwg.mxu0
    %5085 = vmatprep.subr.bf16.mxu0 %v4983
    %5086 = vmatpush1.bf16.msra.mxu0 %v4982
    %5087 = vmatprep.subr.bf16.mxu0 %v4987
    %5088 = vmatpush1.bf16.msra.mxu0 %v4986
    %5089 = vmatprep.subr.bf16.mxu0 %v4991
    %5090 = vmatpush1.bf16.msra.mxu0 %v4990
    %5091 = vmatprep.subr.bf16.mxu0 %v4995
    %5092 = vmatpush1.bf16.msra.mxu0 %v4994
    %5093 = vmatprep.subr.bf16.mxu0 %v4999
    %5094 = vmatpush1.bf16.msra.mxu0 %v4998
    %5095 = vmatprep.subr.bf16.mxu0 %v5003
    %5096 = vmatpush1.bf16.msra.mxu0 %v5002
    %5097 = vmatprep.subr.bf16.mxu0 %v5007
    %5098 = vmatpush1.bf16.msra.mxu0 %v5006
    %5099 = vmatprep.subr.bf16.mxu0 %v5011
    %5100 = vmatpush1.bf16.msra.mxu0 %v5010
    %5101 = vmatprep.subr.bf16.mxu0 0
    %5102 = vmatpush1.bf16.msra.mxu0 0
    %5103 = vmatprep.subr.bf16.mxu0 0
    %5104 = vmatpush1.bf16.msra.mxu0 0
    %5105 = vmatprep.subr.bf16.mxu0 0
    %5106 = vmatpush1.bf16.msra.mxu0 0
    %5107 = vmatprep.subr.bf16.mxu0 0
    %5108 = vmatpush1.bf16.msra.mxu0 0
    %5109 = vmatprep.subr.bf16.mxu0 0
    %5110 = vmatpush1.bf16.msra.mxu0 0
    %5111 = vmatprep.subr.bf16.mxu0 0
    %5112 = vmatpush1.bf16.msra.mxu0 0
    %5113 = vmatprep.subr.bf16.mxu0 0
    %5114 = vmatpush1.bf16.msra.mxu0 0
    %5115 = vmatprep.subr.bf16.mxu0 0
    %5116 = vmatpush1.bf16.msra.mxu0 0
    %5117 = vmatprep.mubr.bf16.mxu0 0
    %5118 = vmatmul.mubr.bf16.gmra.mrb[0].mxu0 %v4851
    %v5119 = vpop.f32.mrb[0].mxu0
    %v5120 = vadd.f32 0.0, %v5119
    %v5121 = vpop.f32.mrb[0].mxu0
    %v5122 = vadd.f32 0.0, %v5121
    %v5123 = vpop.f32.mrb[0].mxu0
    %v5124 = vpop.f32.mrb[0].mxu0
    %5125 = vdwg.mxu0
    %v5126 = vadd.f32 %v655, %v5079
    %v5127 = vadd.f32 %v659, %v5081
    %v5128 = vadd.f32 %v663, %v5120
    %v5129 = vadd.f32 %v667, %v5122
    %v5130 = vpack.c.bf16 %v4541, %v4541
    %v5131 = vld [vmem:[#allocation6] sm:$0xff]
    %v5132 = vld [vmem:[#allocation6 + $0x8] sm:$0xff]
    %v5133 = vld [vmem:[#allocation6 + $0x10] sm:$0xff]
    %v5134 = vld [vmem:[#allocation6 + $0x18] sm:$0xff]
    %v5135 = vld [vmem:[#allocation6 + $0x20] sm:$0xff]
    %v5136 = vld [vmem:[#allocation6 + $0x28] sm:$0xff]
    %v5137 = vld [vmem:[#allocation6 + $0x30] sm:$0xff]
    %v5138 = vld [vmem:[#allocation6 + $0x38] sm:$0xff]
    %v5139 = vld [vmem:[#allocation6 + $0x40] sm:$0xff]
    %v5140 = vld [vmem:[#allocation6 + $0x48] sm:$0xff]
    %v5141 = vld [vmem:[#allocation6 + $0x50] sm:$0xff]
    %v5142 = vld [vmem:[#allocation6 + $0x58] sm:$0xff]
    %v5143 = vld [vmem:[#allocation6 + $0x60] sm:$0xff]
    %v5144 = vld [vmem:[#allocation6 + $0x68] sm:$0xff]
    %v5145 = vld [vmem:[#allocation6 + $0x70] sm:$0xff]
    %v5146 = vld [vmem:[#allocation6 + $0x78] sm:$0xff]
    %v5147 = vld [vmem:[#allocation6 + $0x80] sm:$0xff]
    %v5148 = vld [vmem:[#allocation6 + $0x88] sm:$0xff]
    %v5149 = vld [vmem:[#allocation6 + $0x90] sm:$0xff]
    %v5150 = vld [vmem:[#allocation6 + $0x98] sm:$0xff]
    %v5151 = vld [vmem:[#allocation6 + $0xa0] sm:$0xff]
    %v5152 = vld [vmem:[#allocation6 + $0xa8] sm:$0xff]
    %v5153 = vld [vmem:[#allocation6 + $0xb0] sm:$0xff]
    %v5154 = vld [vmem:[#allocation6 + $0xb8] sm:$0xff]
    %v5155 = vld [vmem:[#allocation6 + $0xc0] sm:$0xff]
    %v5156 = vld [vmem:[#allocation6 + $0xc8] sm:$0xff]
    %v5157 = vld [vmem:[#allocation6 + $0xd0] sm:$0xff]
    %v5158 = vld [vmem:[#allocation6 + $0xd8] sm:$0xff]
    %v5159 = vld [vmem:[#allocation6 + $0xe0] sm:$0xff]
    %v5160 = vld [vmem:[#allocation6 + $0xe8] sm:$0xff]
    %v5161 = vld [vmem:[#allocation6 + $0xf0] sm:$0xff]
    %v5162 = vld [vmem:[#allocation6 + $0xf8] sm:$0xff]
    %v5195 = vunpack.c.l.b16 %v5131
    %v5196 = vunpack.c.h.b16 %v5131
    %v5197 = vunpack.c.l.b16 %v5132
    %v5198 = vunpack.c.h.b16 %v5132
    %v5199 = vunpack.c.l.b16 %v5133
    %v5200 = vunpack.c.h.b16 %v5133
    %v5201 = vunpack.c.l.b16 %v5134
    %v5202 = vunpack.c.h.b16 %v5134
    %v5203 = vunpack.c.l.b16 %v5135
    %v5204 = vunpack.c.h.b16 %v5135
    %v5205 = vunpack.c.l.b16 %v5136
    %v5206 = vunpack.c.h.b16 %v5136
    %v5207 = vunpack.c.l.b16 %v5137
    %v5208 = vunpack.c.h.b16 %v5137
    %v5209 = vunpack.c.l.b16 %v5138
    %v5210 = vunpack.c.h.b16 %v5138
    %v5211 = vunpack.c.l.b16 %v5139
    %v5212 = vunpack.c.h.b16 %v5139
    %v5213 = vunpack.c.l.b16 %v5140
    %v5214 = vunpack.c.h.b16 %v5140
    %v5215 = vunpack.c.l.b16 %v5141
    %v5216 = vunpack.c.h.b16 %v5141
    %v5217 = vunpack.c.l.b16 %v5142
    %v5218 = vunpack.c.h.b16 %v5142
    %v5219 = vunpack.c.l.b16 %v5143
    %v5220 = vunpack.c.h.b16 %v5143
    %v5221 = vunpack.c.l.b16 %v5144
    %v5222 = vunpack.c.h.b16 %v5144
    %v5223 = vunpack.c.l.b16 %v5145
    %v5224 = vunpack.c.h.b16 %v5145
    %v5225 = vunpack.c.l.b16 %v5146
    %v5226 = vunpack.c.h.b16 %v5146
    %v5227 = vunpack.c.l.b16 %v5147
    %v5228 = vunpack.c.h.b16 %v5147
    %v5229 = vunpack.c.l.b16 %v5148
    %v5230 = vunpack.c.h.b16 %v5148
    %v5231 = vunpack.c.l.b16 %v5149
    %v5232 = vunpack.c.h.b16 %v5149
    %v5233 = vunpack.c.l.b16 %v5150
    %v5234 = vunpack.c.h.b16 %v5150
    %v5235 = vunpack.c.l.b16 %v5151
    %v5236 = vunpack.c.h.b16 %v5151
    %v5237 = vunpack.c.l.b16 %v5152
    %v5238 = vunpack.c.h.b16 %v5152
    %v5239 = vunpack.c.l.b16 %v5153
    %v5240 = vunpack.c.h.b16 %v5153
    %v5241 = vunpack.c.l.b16 %v5154
    %v5242 = vunpack.c.h.b16 %v5154
    %v5243 = vunpack.c.l.b16 %v5155
    %v5244 = vunpack.c.h.b16 %v5155
    %v5245 = vunpack.c.l.b16 %v5156
    %v5246 = vunpack.c.h.b16 %v5156
    %v5247 = vunpack.c.l.b16 %v5157
    %v5248 = vunpack.c.h.b16 %v5157
    %v5249 = vunpack.c.l.b16 %v5158
    %v5250 = vunpack.c.h.b16 %v5158
    %v5251 = vunpack.c.l.b16 %v5159
    %v5252 = vunpack.c.h.b16 %v5159
    %v5253 = vunpack.c.l.b16 %v5160
    %v5254 = vunpack.c.h.b16 %v5160
    %v5255 = vunpack.c.l.b16 %v5161
    %v5256 = vunpack.c.h.b16 %v5161
    %v5257 = vunpack.c.l.b16 %v5162
    %v5258 = vunpack.c.h.b16 %v5162
    %v5259 = vpack.c.b16 %v5199, %v5195
    %v5260 = vpack.c.b16 %v5200, %v5196
    %v5261 = vpack.c.b16 %v5201, %v5197
    %v5262 = vpack.c.b16 %v5202, %v5198
    %v5263 = vpack.c.b16 %v5207, %v5203
    %v5264 = vpack.c.b16 %v5208, %v5204
    %v5265 = vpack.c.b16 %v5209, %v5205
    %v5266 = vpack.c.b16 %v5210, %v5206
    %v5267 = vpack.c.b16 %v5215, %v5211
    %v5268 = vpack.c.b16 %v5216, %v5212
    %v5269 = vpack.c.b16 %v5217, %v5213
    %v5270 = vpack.c.b16 %v5218, %v5214
    %v5271 = vpack.c.b16 %v5223, %v5219
    %v5272 = vpack.c.b16 %v5224, %v5220
    %v5273 = vpack.c.b16 %v5225, %v5221
    %v5274 = vpack.c.b16 %v5226, %v5222
    %v5275 = vpack.c.b16 %v5231, %v5227
    %v5276 = vpack.c.b16 %v5232, %v5228
    %v5277 = vpack.c.b16 %v5233, %v5229
    %v5278 = vpack.c.b16 %v5234, %v5230
    %v5279 = vpack.c.b16 %v5239, %v5235
    %v5280 = vpack.c.b16 %v5240, %v5236
    %v5281 = vpack.c.b16 %v5241, %v5237
    %v5282 = vpack.c.b16 %v5242, %v5238
    %v5283 = vpack.c.b16 %v5247, %v5243
    %v5284 = vpack.c.b16 %v5248, %v5244
    %v5285 = vpack.c.b16 %v5249, %v5245
    %v5286 = vpack.c.b16 %v5250, %v5246
    %v5287 = vpack.c.b16 %v5255, %v5251
    %v5288 = vpack.c.b16 %v5256, %v5252
    %v5289 = vpack.c.b16 %v5257, %v5253
    %v5290 = vpack.c.b16 %v5258, %v5254
    %5323 = vmatprep.subr.bf16.mxu0 %v5260
    %5324 = vmatpush1.bf16.msra.mxu0 %v5259
    %5325 = vmatprep.subr.bf16.mxu0 %v5264
    %5326 = vmatpush1.bf16.msra.mxu0 %v5263
    %5327 = vmatprep.subr.bf16.mxu0 %v5268
    %5328 = vmatpush1.bf16.msra.mxu0 %v5267
    %5329 = vmatprep.subr.bf16.mxu0 %v5272
    %5330 = vmatpush1.bf16.msra.mxu0 %v5271
    %5331 = vmatprep.subr.bf16.mxu0 %v5276
    %5332 = vmatpush1.bf16.msra.mxu0 %v5275
    %5333 = vmatprep.subr.bf16.mxu0 %v5280
    %5334 = vmatpush1.bf16.msra.mxu0 %v5279
    %5335 = vmatprep.subr.bf16.mxu0 %v5284
    %5336 = vmatpush1.bf16.msra.mxu0 %v5283
    %5337 = vmatprep.subr.bf16.mxu0 %v5288
    %5338 = vmatpush1.bf16.msra.mxu0 %v5287
    %5339 = vmatprep.subr.bf16.mxu0 0
    %5340 = vmatpush1.bf16.msra.mxu0 0
    %5341 = vmatprep.subr.bf16.mxu0 0
    %5342 = vmatpush1.bf16.msra.mxu0 0
    %5343 = vmatprep.subr.bf16.mxu0 0
    %5344 = vmatpush1.bf16.msra.mxu0 0
    %5345 = vmatprep.subr.bf16.mxu0 0
    %5346 = vmatpush1.bf16.msra.mxu0 0
    %5347 = vmatprep.subr.bf16.mxu0 0
    %5348 = vmatpush1.bf16.msra.mxu0 0
    %5349 = vmatprep.subr.bf16.mxu0 0
    %5350 = vmatpush1.bf16.msra.mxu0 0
    %5351 = vmatprep.subr.bf16.mxu0 0
    %5352 = vmatpush1.bf16.msra.mxu0 0
    %5353 = vmatprep.subr.bf16.mxu0 0
    %5354 = vmatpush1.bf16.msra.mxu0 0
    %5355 = vmatprep.mubr.bf16.mxu0 0
    %5356 = vmatmul.mubr.bf16.gmra.mrb[0].mxu0 %v5130
    %v5357 = vpop.f32.mrb[0].mxu0
    %v5358 = vadd.f32 0.0, %v5357
    %v5359 = vpop.f32.mrb[0].mxu0
    %v5360 = vadd.f32 0.0, %v5359
    %v5361 = vpop.f32.mrb[0].mxu0
    %v5362 = vpop.f32.mrb[0].mxu0
    %5363 = vdwg.mxu0
    %5364 = vmatprep.subr.bf16.mxu0 %v5262
    %5365 = vmatpush1.bf16.msra.mxu0 %v5261
    %5366 = vmatprep.subr.bf16.mxu0 %v5266
    %5367 = vmatpush1.bf16.msra.mxu0 %v5265
    %5368 = vmatprep.subr.bf16.mxu0 %v5270
    %5369 = vmatpush1.bf16.msra.mxu0 %v5269
    %5370 = vmatprep.subr.bf16.mxu0 %v5274
    %5371 = vmatpush1.bf16.msra.mxu0 %v5273
    %5372 = vmatprep.subr.bf16.mxu0 %v5278
    %5373 = vmatpush1.bf16.msra.mxu0 %v5277
    %5374 = vmatprep.subr.bf16.mxu0 %v5282
    %5375 = vmatpush1.bf16.msra.mxu0 %v5281
    %5376 = vmatprep.subr.bf16.mxu0 %v5286
    %5377 = vmatpush1.bf16.msra.mxu0 %v5285
    %5378 = vmatprep.subr.bf16.mxu0 %v5290
    %5379 = vmatpush1.bf16.msra.mxu0 %v5289
    %5380 = vmatprep.subr.bf16.mxu0 0
    %5381 = vmatpush1.bf16.msra.mxu0 0
    %5382 = vmatprep.subr.bf16.mxu0 0
    %5383 = vmatpush1.bf16.msra.mxu0 0
    %5384 = vmatprep.subr.bf16.mxu0 0
    %5385 = vmatpush1.bf16.msra.mxu0 0
    %5386 = vmatprep.subr.bf16.mxu0 0
    %5387 = vmatpush1.bf16.msra.mxu0 0
    %5388 = vmatprep.subr.bf16.mxu0 0
    %5389 = vmatpush1.bf16.msra.mxu0 0
    %5390 = vmatprep.subr.bf16.mxu0 0
    %5391 = vmatpush1.bf16.msra.mxu0 0
    %5392 = vmatprep.subr.bf16.mxu0 0
    %5393 = vmatpush1.bf16.msra.mxu0 0
    %5394 = vmatprep.subr.bf16.mxu0 0
    %5395 = vmatpush1.bf16.msra.mxu0 0
    %5396 = vmatprep.mubr.bf16.mxu0 0
    %5397 = vmatmul.mubr.bf16.gmra.mrb[0].mxu0 %v5130
    %v5398 = vpop.f32.mrb[0].mxu0
    %v5399 = vadd.f32 0.0, %v5398
    %v5400 = vpop.f32.mrb[0].mxu0
    %v5401 = vadd.f32 0.0, %v5400
    %v5402 = vpop.f32.mrb[0].mxu0
    %v5403 = vpop.f32.mrb[0].mxu0
    %5404 = vdwg.mxu0
    %v5405 = vadd.f32 %v5126, %v5358
    %v5406 = vadd.f32 %v5127, %v5360
    %v5407 = vadd.f32 %v5128, %v5399
    %v5408 = vadd.f32 %v5129, %v5401
    %v5409 = vxor.u32 %v5405, 2147483648
    %v5410 = vmul.f32 %v5409, 1.442695
    %v5411 = vpow.pop %v5410
    %v5412 = vadd.f32 %v5411, 1.0
    %v5413 = vrcp.pop %v5412
    %v5414 = vmul.f32 1.0, %v5413
    %v5415 = vxor.u32 %v5406, 2147483648
    %v5416 = vmul.f32 %v5415, 1.442695
    %v5417 = vpow.pop %v5416
    %v5418 = vadd.f32 %v5417, 1.0
    %v5419 = vrcp.pop %v5418
    %v5420 = vmul.f32 1.0, %v5419
    %v5421 = vtanh.pop %v5407
    %v5422 = vxor.u32 %v5408, 2147483648
    %v5423 = vmul.f32 %v5422, 1.442695
    %v5424 = vpow.pop %v5423
    %v5425 = vadd.f32 %v5424, 1.0
    %v5426 = vrcp.pop %v5425
    %v5427 = vmul.f32 1.0, %v5426
    %v5428 = vmul.f32 %v5420, %v4539
    %v5429 = vmul.f32 %v5414, %v5421
    %v5430 = vadd.f32 %v5428, %v5429
    %v5431 = vtanh.pop %v5430
    %v5432 = vmul.f32 %v5427, %v5431
    %s5433 = scalar_lea.vmem %s9, 40
    %5434 = vst [vmem:[%s5433] sm:$0xff] %v5432
    %s5435 = scalar_lea.vmem %s0, 192
    %v5436 = vld [vmem:[%s5435] sm:$0xff]
    %v5437 = vld [vmem:[%s5435 + $0x8] sm:$0xff]
    %v5438 = vld [vmem:[%s5435 + $0x10] sm:$0xff]
    %v5439 = vld [vmem:[%s5435 + $0x18] sm:$0xff]
    %v5440 = vld [vmem:[%s1] sm:$0xff]
    %v5441 = vld [vmem:[%s1 + $0x8] sm:$0xff]
    %v5442 = vld [vmem:[%s1 + $0x10] sm:$0xff]
    %v5443 = vld [vmem:[%s1 + $0x18] sm:$0xff]
    %v5444 = vld [vmem:[%s1 + $0x20] sm:$0xff]
    %v5445 = vld [vmem:[%s1 + $0x28] sm:$0xff]
    %v5446 = vld [vmem:[%s1 + $0x30] sm:$0xff]
    %v5447 = vld [vmem:[%s1 + $0x38] sm:$0xff]
    %v5448 = vld [vmem:[%s1 + $0x40] sm:$0xff]
    %v5449 = vld [vmem:[%s1 + $0x48] sm:$0xff]
    %v5450 = vld [vmem:[%s1 + $0x50] sm:$0xff]
    %v5451 = vld [vmem:[%s1 + $0x58] sm:$0xff]
    %v5452 = vld [vmem:[%s1 + $0x60] sm:$0xff]
    %v5453 = vld [vmem:[%s1 + $0x68] sm:$0xff]
    %v5454 = vld [vmem:[%s1 + $0x70] sm:$0xff]
    %v5455 = vld [vmem:[%s1 + $0x78] sm:$0xff]
    %v5456 = vld [vmem:[%s1 + $0x80] sm:$0xff]
    %v5457 = vld [vmem:[%s1 + $0x88] sm:$0xff]
    %v5458 = vld [vmem:[%s1 + $0x90] sm:$0xff]
    %v5459 = vld [vmem:[%s1 + $0x98] sm:$0xff]
    %v5460 = vld [vmem:[%s1 + $0xa0] sm:$0xff]
    %v5461 = vld [vmem:[%s1 + $0xa8] sm:$0xff]
    %v5462 = vld [vmem:[%s1 + $0xb0] sm:$0xff]
    %v5463 = vld [vmem:[%s1 + $0xb8] sm:$0xff]
    %v5464 = vld [vmem:[%s1 + $0xc0] sm:$0xff]
    %v5465 = vld [vmem:[%s1 + $0xc8] sm:$0xff]
    %v5466 = vld [vmem:[%s1 + $0xd0] sm:$0xff]
    %v5467 = vld [vmem:[%s1 + $0xd8] sm:$0xff]
    %v5468 = vld [vmem:[%s1 + $0xe0] sm:$0xff]
    %v5469 = vld [vmem:[%s1 + $0xe8] sm:$0xff]
    %v5470 = vld [vmem:[%s1 + $0xf0] sm:$0xff]
    %v5471 = vld [vmem:[%s1 + $0xf8] sm:$0xff]
    %v5504 = vunpack.c.l.b16 %v5440
    %v5505 = vunpack.c.h.b16 %v5440
    %v5506 = vunpack.c.l.b16 %v5441
    %v5507 = vunpack.c.h.b16 %v5441
    %v5508 = vunpack.c.l.b16 %v5442
    %v5509 = vunpack.c.h.b16 %v5442
    %v5510 = vunpack.c.l.b16 %v5443
    %v5511 = vunpack.c.h.b16 %v5443
    %v5512 = vunpack.c.l.b16 %v5444
    %v5513 = vunpack.c.h.b16 %v5444
    %v5514 = vunpack.c.l.b16 %v5445
    %v5515 = vunpack.c.h.b16 %v5445
    %v5516 = vunpack.c.l.b16 %v5446
    %v5517 = vunpack.c.h.b16 %v5446
    %v5518 = vunpack.c.l.b16 %v5447
    %v5519 = vunpack.c.h.b16 %v5447
    %v5520 = vunpack.c.l.b16 %v5448
    %v5521 = vunpack.c.h.b16 %v5448
    %v5522 = vunpack.c.l.b16 %v5449
    %v5523 = vunpack.c.h.b16 %v5449
    %v5524 = vunpack.c.l.b16 %v5450
    %v5525 = vunpack.c.h.b16 %v5450
    %v5526 = vunpack.c.l.b16 %v5451
    %v5527 = vunpack.c.h.b16 %v5451
    %v5528 = vunpack.c.l.b16 %v5452
    %v5529 = vunpack.c.h.b16 %v5452
    %v5530 = vunpack.c.l.b16 %v5453
    %v5531 = vunpack.c.h.b16 %v5453
    %v5532 = vunpack.c.l.b16 %v5454
    %v5533 = vunpack.c.h.b16 %v5454
    %v5534 = vunpack.c.l.b16 %v5455
    %v5535 = vunpack.c.h.b16 %v5455
    %v5536 = vunpack.c.l.b16 %v5456
    %v5537 = vunpack.c.h.b16 %v5456
    %v5538 = vunpack.c.l.b16 %v5457
    %v5539 = vunpack.c.h.b16 %v5457
    %v5540 = vunpack.c.l.b16 %v5458
    %v5541 = vunpack.c.h.b16 %v5458
    %v5542 = vunpack.c.l.b16 %v5459
    %v5543 = vunpack.c.h.b16 %v5459
    %v5544 = vunpack.c.l.b16 %v5460
    %v5545 = vunpack.c.h.b16 %v5460
    %v5546 = vunpack.c.l.b16 %v5461
    %v5547 = vunpack.c.h.b16 %v5461
    %v5548 = vunpack.c.l.b16 %v5462
    %v5549 = vunpack.c.h.b16 %v5462
    %v5550 = vunpack.c.l.b16 %v5463
    %v5551 = vunpack.c.h.b16 %v5463
    %v5552 = vunpack.c.l.b16 %v5464
    %v5553 = vunpack.c.h.b16 %v5464
    %v5554 = vunpack.c.l.b16 %v5465
    %v5555 = vunpack.c.h.b16 %v5465
    %v5556 = vunpack.c.l.b16 %v5466
    %v5557 = vunpack.c.h.b16 %v5466
    %v5558 = vunpack.c.l.b16 %v5467
    %v5559 = vunpack.c.h.b16 %v5467
    %v5560 = vunpack.c.l.b16 %v5468
    %v5561 = vunpack.c.h.b16 %v5468
    %v5562 = vunpack.c.l.b16 %v5469
    %v5563 = vunpack.c.h.b16 %v5469
    %v5564 = vunpack.c.l.b16 %v5470
    %v5565 = vunpack.c.h.b16 %v5470
    %v5566 = vunpack.c.l.b16 %v5471
    %v5567 = vunpack.c.h.b16 %v5471
    %v5568 = vpack.c.b16 %v5508, %v5504
    %v5569 = vpack.c.b16 %v5509, %v5505
    %v5570 = vpack.c.b16 %v5510, %v5506
    %v5571 = vpack.c.b16 %v5511, %v5507
    %v5572 = vpack.c.b16 %v5516, %v5512
    %v5573 = vpack.c.b16 %v5517, %v5513
    %v5574 = vpack.c.b16 %v5518, %v5514
    %v5575 = vpack.c.b16 %v5519, %v5515
    %v5576 = vpack.c.b16 %v5524, %v5520
    %v5577 = vpack.c.b16 %v5525, %v5521
    %v5578 = vpack.c.b16 %v5526, %v5522
    %v5579 = vpack.c.b16 %v5527, %v5523
    %v5580 = vpack.c.b16 %v5532, %v5528
    %v5581 = vpack.c.b16 %v5533, %v5529
    %v5582 = vpack.c.b16 %v5534, %v5530
    %v5583 = vpack.c.b16 %v5535, %v5531
    %v5584 = vpack.c.b16 %v5540, %v5536
    %v5585 = vpack.c.b16 %v5541, %v5537
    %v5586 = vpack.c.b16 %v5542, %v5538
    %v5587 = vpack.c.b16 %v5543, %v5539
    %v5588 = vpack.c.b16 %v5548, %v5544
    %v5589 = vpack.c.b16 %v5549, %v5545
    %v5590 = vpack.c.b16 %v5550, %v5546
    %v5591 = vpack.c.b16 %v5551, %v5547
    %v5592 = vpack.c.b16 %v5556, %v5552
    %v5593 = vpack.c.b16 %v5557, %v5553
    %v5594 = vpack.c.b16 %v5558, %v5554
    %v5595 = vpack.c.b16 %v5559, %v5555
    %v5596 = vpack.c.b16 %v5564, %v5560
    %v5597 = vpack.c.b16 %v5565, %v5561
    %v5598 = vpack.c.b16 %v5566, %v5562
    %v5599 = vpack.c.b16 %v5567, %v5563
    %5632 = vmatprep.subr.bf16.mxu0 %v5569
    %5633 = vmatpush1.bf16.msra.mxu0 %v5568
    %5634 = vmatprep.subr.bf16.mxu0 %v5573
    %5635 = vmatpush1.bf16.msra.mxu0 %v5572
    %5636 = vmatprep.subr.bf16.mxu0 %v5577
    %5637 = vmatpush1.bf16.msra.mxu0 %v5576
    %5638 = vmatprep.subr.bf16.mxu0 %v5581
    %5639 = vmatpush1.bf16.msra.mxu0 %v5580
    %5640 = vmatprep.subr.bf16.mxu0 %v5585
    %5641 = vmatpush1.bf16.msra.mxu0 %v5584
    %5642 = vmatprep.subr.bf16.mxu0 %v5589
    %5643 = vmatpush1.bf16.msra.mxu0 %v5588
    %5644 = vmatprep.subr.bf16.mxu0 %v5593
    %5645 = vmatpush1.bf16.msra.mxu0 %v5592
    %5646 = vmatprep.subr.bf16.mxu0 %v5597
    %5647 = vmatpush1.bf16.msra.mxu0 %v5596
    %5648 = vmatprep.subr.bf16.mxu0 0
    %5649 = vmatpush1.bf16.msra.mxu0 0
    %5650 = vmatprep.subr.bf16.mxu0 0
    %5651 = vmatpush1.bf16.msra.mxu0 0
    %5652 = vmatprep.subr.bf16.mxu0 0
    %5653 = vmatpush1.bf16.msra.mxu0 0
    %5654 = vmatprep.subr.bf16.mxu0 0
    %5655 = vmatpush1.bf16.msra.mxu0 0
    %5656 = vmatprep.subr.bf16.mxu0 0
    %5657 = vmatpush1.bf16.msra.mxu0 0
    %5658 = vmatprep.subr.bf16.mxu0 0
    %5659 = vmatpush1.bf16.msra.mxu0 0
    %5660 = vmatprep.subr.bf16.mxu0 0
    %5661 = vmatpush1.bf16.msra.mxu0 0
    %5662 = vmatprep.subr.bf16.mxu0 0
    %5663 = vmatpush1.bf16.msra.mxu0 0
    %5664 = vmatprep.mubr.bf16.mxu0 0
    %5665 = vmatmul.mubr.bf16.gmra.mrb[0].mxu0 %v4851
    %v5666 = vpop.f32.mrb[0].mxu0
    %v5667 = vadd.f32 0.0, %v5666
    %v5668 = vpop.f32.mrb[0].mxu0
    %v5669 = vadd.f32 0.0, %v5668
    %v5670 = vpop.f32.mrb[0].mxu0
    %v5671 = vpop.f32.mrb[0].mxu0
    %5672 = vdwg.mxu0
    %5673 = vmatprep.subr.bf16.mxu0 %v5571
    %5674 = vmatpush1.bf16.msra.mxu0 %v5570
    %5675 = vmatprep.subr.bf16.mxu0 %v5575
    %5676 = vmatpush1.bf16.msra.mxu0 %v5574
    %5677 = vmatprep.subr.bf16.mxu0 %v5579
    %5678 = vmatpush1.bf16.msra.mxu0 %v5578
    %5679 = vmatprep.subr.bf16.mxu0 %v5583
    %5680 = vmatpush1.bf16.msra.mxu0 %v5582
    %5681 = vmatprep.subr.bf16.mxu0 %v5587
    %5682 = vmatpush1.bf16.msra.mxu0 %v5586
    %5683 = vmatprep.subr.bf16.mxu0 %v5591
    %5684 = vmatpush1.bf16.msra.mxu0 %v5590
    %5685 = vmatprep.subr.bf16.mxu0 %v5595
    %5686 = vmatpush1.bf16.msra.mxu0 %v5594
    %5687 = vmatprep.subr.bf16.mxu0 %v5599
    %5688 = vmatpush1.bf16.msra.mxu0 %v5598
    %5689 = vmatprep.subr.bf16.mxu0 0
    %5690 = vmatpush1.bf16.msra.mxu0 0
    %5691 = vmatprep.subr.bf16.mxu0 0
    %5692 = vmatpush1.bf16.msra.mxu0 0
    %5693 = vmatprep.subr.bf16.mxu0 0
    %5694 = vmatpush1.bf16.msra.mxu0 0
    %5695 = vmatprep.subr.bf16.mxu0 0
    %5696 = vmatpush1.bf16.msra.mxu0 0
    %5697 = vmatprep.subr.bf16.mxu0 0
    %5698 = vmatpush1.bf16.msra.mxu0 0
    %5699 = vmatprep.subr.bf16.mxu0 0
    %5700 = vmatpush1.bf16.msra.mxu0 0
    %5701 = vmatprep.subr.bf16.mxu0 0
    %5702 = vmatpush1.bf16.msra.mxu0 0
    %5703 = vmatprep.subr.bf16.mxu0 0
    %5704 = vmatpush1.bf16.msra.mxu0 0
    %5705 = vmatprep.mubr.bf16.mxu0 0
    %5706 = vmatmul.mubr.bf16.gmra.mrb[0].mxu0 %v4851
    %v5707 = vpop.f32.mrb[0].mxu0
    %v5708 = vadd.f32 0.0, %v5707
    %v5709 = vpop.f32.mrb[0].mxu0
    %v5710 = vadd.f32 0.0, %v5709
    %v5711 = vpop.f32.mrb[0].mxu0
    %v5712 = vpop.f32.mrb[0].mxu0
    %5713 = vdwg.mxu0
    %v5714 = vadd.f32 %v5436, %v5667
    %v5715 = vadd.f32 %v5437, %v5669
    %v5716 = vadd.f32 %v5438, %v5708
    %v5717 = vadd.f32 %v5439, %v5710
    %v5718 = vxor.u32 %v5714, 2147483648
    %v5719 = vmul.f32 %v5718, 1.442695
    %v5720 = vpow.pop %v5719
    %v5721 = vadd.f32 %v5720, 1.0
    %v5722 = vrcp.pop %v5721
    %v5723 = vmul.f32 1.0, %v5722
    %v5724 = vxor.u32 %v5715, 2147483648
    %v5725 = vmul.f32 %v5724, 1.442695
    %v5726 = vpow.pop %v5725
    %v5727 = vadd.f32 %v5726, 1.0
    %v5728 = vrcp.pop %v5727
    %v5729 = vmul.f32 1.0, %v5728
    %v5730 = vtanh.pop %v5716
    %v5731 = vxor.u32 %v5717, 2147483648
    %v5732 = vmul.f32 %v5731, 1.442695
    %v5733 = vpow.pop %v5732
    %v5734 = vadd.f32 %v5733, 1.0
    %v5735 = vrcp.pop %v5734
    %v5736 = vmul.f32 1.0, %v5735
    %v5737 = vmul.f32 %v5729, %v4848
    %v5738 = vmul.f32 %v5723, %v5730
    %v5739 = vadd.f32 %v5737, %v5738
    %v5740 = vtanh.pop %v5739
    %v5741 = vmul.f32 %v5736, %v5740
    %v5742 = vpack.c.bf16 %v5741, %v5741
    %v5743 = vld [vmem:[%s2] sm:$0xff]
    %v5744 = vld [vmem:[%s2 + $0x8] sm:$0xff]
    %v5745 = vld [vmem:[%s2 + $0x10] sm:$0xff]
    %v5746 = vld [vmem:[%s2 + $0x18] sm:$0xff]
    %v5747 = vld [vmem:[%s2 + $0x20] sm:$0xff]
    %v5748 = vld [vmem:[%s2 + $0x28] sm:$0xff]
    %v5749 = vld [vmem:[%s2 + $0x30] sm:$0xff]
    %v5750 = vld [vmem:[%s2 + $0x38] sm:$0xff]
    %v5751 = vld [vmem:[%s2 + $0x40] sm:$0xff]
    %v5752 = vld [vmem:[%s2 + $0x48] sm:$0xff]
    %v5753 = vld [vmem:[%s2 + $0x50] sm:$0xff]
    %v5754 = vld [vmem:[%s2 + $0x58] sm:$0xff]
    %v5755 = vld [vmem:[%s2 + $0x60] sm:$0xff]
    %v5756 = vld [vmem:[%s2 + $0x68] sm:$0xff]
    %v5757 = vld [vmem:[%s2 + $0x70] sm:$0xff]
    %v5758 = vld [vmem:[%s2 + $0x78] sm:$0xff]
    %v5759 = vld [vmem:[%s2 + $0x80] sm:$0xff]
    %v5760 = vld [vmem:[%s2 + $0x88] sm:$0xff]
    %v5761 = vld [vmem:[%s2 + $0x90] sm:$0xff]
    %v5762 = vld [vmem:[%s2 + $0x98] sm:$0xff]
    %v5763 = vld [vmem:[%s2 + $0xa0] sm:$0xff]
    %v5764 = vld [vmem:[%s2 + $0xa8] sm:$0xff]
    %v5765 = vld [vmem:[%s2 + $0xb0] sm:$0xff]
    %v5766 = vld [vmem:[%s2 + $0xb8] sm:$0xff]
    %v5767 = vld [vmem:[%s2 + $0xc0] sm:$0xff]
    %v5768 = vld [vmem:[%s2 + $0xc8] sm:$0xff]
    %v5769 = vld [vmem:[%s2 + $0xd0] sm:$0xff]
    %v5770 = vld [vmem:[%s2 + $0xd8] sm:$0xff]
    %v5771 = vld [vmem:[%s2 + $0xe0] sm:$0xff]
    %v5772 = vld [vmem:[%s2 + $0xe8] sm:$0xff]
    %v5773 = vld [vmem:[%s2 + $0xf0] sm:$0xff]
    %v5774 = vld [vmem:[%s2 + $0xf8] sm:$0xff]
    %v5807 = vunpack.c.l.b16 %v5743
    %v5808 = vunpack.c.h.b16 %v5743
    %v5809 = vunpack.c.l.b16 %v5744
    %v5810 = vunpack.c.h.b16 %v5744
    %v5811 = vunpack.c.l.b16 %v5745
    %v5812 = vunpack.c.h.b16 %v5745
    %v5813 = vunpack.c.l.b16 %v5746
    %v5814 = vunpack.c.h.b16 %v5746
    %v5815 = vunpack.c.l.b16 %v5747
    %v5816 = vunpack.c.h.b16 %v5747
    %v5817 = vunpack.c.l.b16 %v5748
    %v5818 = vunpack.c.h.b16 %v5748
    %v5819 = vunpack.c.l.b16 %v5749
    %v5820 = vunpack.c.h.b16 %v5749
    %v5821 = vunpack.c.l.b16 %v5750
    %v5822 = vunpack.c.h.b16 %v5750
    %v5823 = vunpack.c.l.b16 %v5751
    %v5824 = vunpack.c.h.b16 %v5751
    %v5825 = vunpack.c.l.b16 %v5752
    %v5826 = vunpack.c.h.b16 %v5752
    %v5827 = vunpack.c.l.b16 %v5753
    %v5828 = vunpack.c.h.b16 %v5753
    %v5829 = vunpack.c.l.b16 %v5754
    %v5830 = vunpack.c.h.b16 %v5754
    %v5831 = vunpack.c.l.b16 %v5755
    %v5832 = vunpack.c.h.b16 %v5755
    %v5833 = vunpack.c.l.b16 %v5756
    %v5834 = vunpack.c.h.b16 %v5756
    %v5835 = vunpack.c.l.b16 %v5757
    %v5836 = vunpack.c.h.b16 %v5757
    %v5837 = vunpack.c.l.b16 %v5758
    %v5838 = vunpack.c.h.b16 %v5758
    %v5839 = vunpack.c.l.b16 %v5759
    %v5840 = vunpack.c.h.b16 %v5759
    %v5841 = vunpack.c.l.b16 %v5760
    %v5842 = vunpack.c.h.b16 %v5760
    %v5843 = vunpack.c.l.b16 %v5761
    %v5844 = vunpack.c.h.b16 %v5761
    %v5845 = vunpack.c.l.b16 %v5762
    %v5846 = vunpack.c.h.b16 %v5762
    %v5847 = vunpack.c.l.b16 %v5763
    %v5848 = vunpack.c.h.b16 %v5763
    %v5849 = vunpack.c.l.b16 %v5764
    %v5850 = vunpack.c.h.b16 %v5764
    %v5851 = vunpack.c.l.b16 %v5765
    %v5852 = vunpack.c.h.b16 %v5765
    %v5853 = vunpack.c.l.b16 %v5766
    %v5854 = vunpack.c.h.b16 %v5766
    %v5855 = vunpack.c.l.b16 %v5767
    %v5856 = vunpack.c.h.b16 %v5767
    %v5857 = vunpack.c.l.b16 %v5768
    %v5858 = vunpack.c.h.b16 %v5768
    %v5859 = vunpack.c.l.b16 %v5769
    %v5860 = vunpack.c.h.b16 %v5769
    %v5861 = vunpack.c.l.b16 %v5770
    %v5862 = vunpack.c.h.b16 %v5770
    %v5863 = vunpack.c.l.b16 %v5771
    %v5864 = vunpack.c.h.b16 %v5771
    %v5865 = vunpack.c.l.b16 %v5772
    %v5866 = vunpack.c.h.b16 %v5772
    %v5867 = vunpack.c.l.b16 %v5773
    %v5868 = vunpack.c.h.b16 %v5773
    %v5869 = vunpack.c.l.b16 %v5774
    %v5870 = vunpack.c.h.b16 %v5774
    %v5871 = vpack.c.b16 %v5811, %v5807
    %v5872 = vpack.c.b16 %v5812, %v5808
    %v5873 = vpack.c.b16 %v5813, %v5809
    %v5874 = vpack.c.b16 %v5814, %v5810
    %v5875 = vpack.c.b16 %v5819, %v5815
    %v5876 = vpack.c.b16 %v5820, %v5816
    %v5877 = vpack.c.b16 %v5821, %v5817
    %v5878 = vpack.c.b16 %v5822, %v5818
    %v5879 = vpack.c.b16 %v5827, %v5823
    %v5880 = vpack.c.b16 %v5828, %v5824
    %v5881 = vpack.c.b16 %v5829, %v5825
    %v5882 = vpack.c.b16 %v5830, %v5826
    %v5883 = vpack.c.b16 %v5835, %v5831
    %v5884 = vpack.c.b16 %v5836, %v5832
    %v5885 = vpack.c.b16 %v5837, %v5833
    %v5886 = vpack.c.b16 %v5838, %v5834
    %v5887 = vpack.c.b16 %v5843, %v5839
    %v5888 = vpack.c.b16 %v5844, %v5840
    %v5889 = vpack.c.b16 %v5845, %v5841
    %v5890 = vpack.c.b16 %v5846, %v5842
    %v5891 = vpack.c.b16 %v5851, %v5847
    %v5892 = vpack.c.b16 %v5852, %v5848
    %v5893 = vpack.c.b16 %v5853, %v5849
    %v5894 = vpack.c.b16 %v5854, %v5850
    %v5895 = vpack.c.b16 %v5859, %v5855
    %v5896 = vpack.c.b16 %v5860, %v5856
    %v5897 = vpack.c.b16 %v5861, %v5857
    %v5898 = vpack.c.b16 %v5862, %v5858
    %v5899 = vpack.c.b16 %v5867, %v5863
    %v5900 = vpack.c.b16 %v5868, %v5864
    %v5901 = vpack.c.b16 %v5869, %v5865
    %v5902 = vpack.c.b16 %v5870, %v5866
    %5935 = vmatprep.subr.bf16.mxu0 %v5872
    %5936 = vmatpush1.bf16.msra.mxu0 %v5871
    %5937 = vmatprep.subr.bf16.mxu0 %v5876
    %5938 = vmatpush1.bf16.msra.mxu0 %v5875
    %5939 = vmatprep.subr.bf16.mxu0 %v5880
    %5940 = vmatpush1.bf16.msra.mxu0 %v5879
    %5941 = vmatprep.subr.bf16.mxu0 %v5884
    %5942 = vmatpush1.bf16.msra.mxu0 %v5883
    %5943 = vmatprep.subr.bf16.mxu0 %v5888
    %5944 = vmatpush1.bf16.msra.mxu0 %v5887
    %5945 = vmatprep.subr.bf16.mxu0 %v5892
    %5946 = vmatpush1.bf16.msra.mxu0 %v5891
    %5947 = vmatprep.subr.bf16.mxu0 %v5896
    %5948 = vmatpush1.bf16.msra.mxu0 %v5895
    %5949 = vmatprep.subr.bf16.mxu0 %v5900
    %5950 = vmatpush1.bf16.msra.mxu0 %v5899
    %5951 = vmatprep.subr.bf16.mxu0 0
    %5952 = vmatpush1.bf16.msra.mxu0 0
    %5953 = vmatprep.subr.bf16.mxu0 0
    %5954 = vmatpush1.bf16.msra.mxu0 0
    %5955 = vmatprep.subr.bf16.mxu0 0
    %5956 = vmatpush1.bf16.msra.mxu0 0
    %5957 = vmatprep.subr.bf16.mxu0 0
    %5958 = vmatpush1.bf16.msra.mxu0 0
    %5959 = vmatprep.subr.bf16.mxu0 0
    %5960 = vmatpush1.bf16.msra.mxu0 0
    %5961 = vmatprep.subr.bf16.mxu0 0
    %5962 = vmatpush1.bf16.msra.mxu0 0
    %5963 = vmatprep.subr.bf16.mxu0 0
    %5964 = vmatpush1.bf16.msra.mxu0 0
    %5965 = vmatprep.subr.bf16.mxu0 0
    %5966 = vmatpush1.bf16.msra.mxu0 0
    %5967 = vmatprep.mubr.bf16.mxu0 0
    %5968 = vmatmul.mubr.bf16.gmra.mrb[0].mxu0 %v5742
    %v5969 = vpop.f32.mrb[0].mxu0
    %v5970 = vadd.f32 0.0, %v5969
    %v5971 = vpop.f32.mrb[0].mxu0
    %v5972 = vadd.f32 0.0, %v5971
    %v5973 = vpop.f32.mrb[0].mxu0
    %v5974 = vpop.f32.mrb[0].mxu0
    %5975 = vdwg.mxu0
    %5976 = vmatprep.subr.bf16.mxu0 %v5874
    %5977 = vmatpush1.bf16.msra.mxu0 %v5873
    %5978 = vmatprep.subr.bf16.mxu0 %v5878
    %5979 = vmatpush1.bf16.msra.mxu0 %v5877
    %5980 = vmatprep.subr.bf16.mxu0 %v5882
    %5981 = vmatpush1.bf16.msra.mxu0 %v5881
    %5982 = vmatprep.subr.bf16.mxu0 %v5886
    %5983 = vmatpush1.bf16.msra.mxu0 %v5885
    %5984 = vmatprep.subr.bf16.mxu0 %v5890
    %5985 = vmatpush1.bf16.msra.mxu0 %v5889
    %5986 = vmatprep.subr.bf16.mxu0 %v5894
    %5987 = vmatpush1.bf16.msra.mxu0 %v5893
    %5988 = vmatprep.subr.bf16.mxu0 %v5898
    %5989 = vmatpush1.bf16.msra.mxu0 %v5897
    %5990 = vmatprep.subr.bf16.mxu0 %v5902
    %5991 = vmatpush1.bf16.msra.mxu0 %v5901
    %5992 = vmatprep.subr.bf16.mxu0 0
    %5993 = vmatpush1.bf16.msra.mxu0 0
    %5994 = vmatprep.subr.bf16.mxu0 0
    %5995 = vmatpush1.bf16.msra.mxu0 0
    %5996 = vmatprep.subr.bf16.mxu0 0
    %5997 = vmatpush1.bf16.msra.mxu0 0
    %5998 = vmatprep.subr.bf16.mxu0 0
    %5999 = vmatpush1.bf16.msra.mxu0 0
    %6000 = vmatprep.subr.bf16.mxu0 0
    %6001 = vmatpush1.bf16.msra.mxu0 0
    %6002 = vmatprep.subr.bf16.mxu0 0
    %6003 = vmatpush1.bf16.msra.mxu0 0
    %6004 = vmatprep.subr.bf16.mxu0 0
    %6005 = vmatpush1.bf16.msra.mxu0 0
    %6006 = vmatprep.subr.bf16.mxu0 0
    %6007 = vmatpush1.bf16.msra.mxu0 0
    %6008 = vmatprep.mubr.bf16.mxu0 0
    %6009 = vmatmul.mubr.bf16.gmra.mrb[0].mxu0 %v5742
    %v6010 = vpop.f32.mrb[0].mxu0
    %v6011 = vadd.f32 0.0, %v6010
    %v6012 = vpop.f32.mrb[0].mxu0
    %v6013 = vadd.f32 0.0, %v6012
    %v6014 = vpop.f32.mrb[0].mxu0
    %v6015 = vpop.f32.mrb[0].mxu0
    %6016 = vdwg.mxu0
    %v6017 = vadd.f32 %v655, %v5970
    %v6018 = vadd.f32 %v659, %v5972
    %v6019 = vadd.f32 %v663, %v6011
    %v6020 = vadd.f32 %v667, %v6013
    %v6021 = vpack.c.bf16 %v5432, %v5432
    %v6022 = vld [vmem:[#allocation6] sm:$0xff]
    %v6023 = vld [vmem:[#allocation6 + $0x8] sm:$0xff]
    %v6024 = vld [vmem:[#allocation6 + $0x10] sm:$0xff]
    %v6025 = vld [vmem:[#allocation6 + $0x18] sm:$0xff]
    %v6026 = vld [vmem:[#allocation6 + $0x20] sm:$0xff]
    %v6027 = vld [vmem:[#allocation6 + $0x28] sm:$0xff]
    %v6028 = vld [vmem:[#allocation6 + $0x30] sm:$0xff]
    %v6029 = vld [vmem:[#allocation6 + $0x38] sm:$0xff]
    %v6030 = vld [vmem:[#allocation6 + $0x40] sm:$0xff]
    %v6031 = vld [vmem:[#allocation6 + $0x48] sm:$0xff]
    %v6032 = vld [vmem:[#allocation6 + $0x50] sm:$0xff]
    %v6033 = vld [vmem:[#allocation6 + $0x58] sm:$0xff]
    %v6034 = vld [vmem:[#allocation6 + $0x60] sm:$0xff]
    %v6035 = vld [vmem:[#allocation6 + $0x68] sm:$0xff]
    %v6036 = vld [vmem:[#allocation6 + $0x70] sm:$0xff]
    %v6037 = vld [vmem:[#allocation6 + $0x78] sm:$0xff]
    %v6038 = vld [vmem:[#allocation6 + $0x80] sm:$0xff]
    %v6039 = vld [vmem:[#allocation6 + $0x88] sm:$0xff]
    %v6040 = vld [vmem:[#allocation6 + $0x90] sm:$0xff]
    %v6041 = vld [vmem:[#allocation6 + $0x98] sm:$0xff]
    %v6042 = vld [vmem:[#allocation6 + $0xa0] sm:$0xff]
    %v6043 = vld [vmem:[#allocation6 + $0xa8] sm:$0xff]
    %v6044 = vld [vmem:[#allocation6 + $0xb0] sm:$0xff]
    %v6045 = vld [vmem:[#allocation6 + $0xb8] sm:$0xff]
    %v6046 = vld [vmem:[#allocation6 + $0xc0] sm:$0xff]
    %v6047 = vld [vmem:[#allocation6 + $0xc8] sm:$0xff]
    %v6048 = vld [vmem:[#allocation6 + $0xd0] sm:$0xff]
    %v6049 = vld [vmem:[#allocation6 + $0xd8] sm:$0xff]
    %v6050 = vld [vmem:[#allocation6 + $0xe0] sm:$0xff]
    %v6051 = vld [vmem:[#allocation6 + $0xe8] sm:$0xff]
    %v6052 = vld [vmem:[#allocation6 + $0xf0] sm:$0xff]
    %v6053 = vld [vmem:[#allocation6 + $0xf8] sm:$0xff]
    %v6086 = vunpack.c.l.b16 %v6022
    %v6087 = vunpack.c.h.b16 %v6022
    %v6088 = vunpack.c.l.b16 %v6023
    %v6089 = vunpack.c.h.b16 %v6023
    %v6090 = vunpack.c.l.b16 %v6024
    %v6091 = vunpack.c.h.b16 %v6024
    %v6092 = vunpack.c.l.b16 %v6025
    %v6093 = vunpack.c.h.b16 %v6025
    %v6094 = vunpack.c.l.b16 %v6026
    %v6095 = vunpack.c.h.b16 %v6026
    %v6096 = vunpack.c.l.b16 %v6027
    %v6097 = vunpack.c.h.b16 %v6027
    %v6098 = vunpack.c.l.b16 %v6028
    %v6099 = vunpack.c.h.b16 %v6028
    %v6100 = vunpack.c.l.b16 %v6029
    %v6101 = vunpack.c.h.b16 %v6029
    %v6102 = vunpack.c.l.b16 %v6030
    %v6103 = vunpack.c.h.b16 %v6030
    %v6104 = vunpack.c.l.b16 %v6031
    %v6105 = vunpack.c.h.b16 %v6031
    %v6106 = vunpack.c.l.b16 %v6032
    %v6107 = vunpack.c.h.b16 %v6032
    %v6108 = vunpack.c.l.b16 %v6033
    %v6109 = vunpack.c.h.b16 %v6033
    %v6110 = vunpack.c.l.b16 %v6034
    %v6111 = vunpack.c.h.b16 %v6034
    %v6112 = vunpack.c.l.b16 %v6035
    %v6113 = vunpack.c.h.b16 %v6035
    %v6114 = vunpack.c.l.b16 %v6036
    %v6115 = vunpack.c.h.b16 %v6036
    %v6116 = vunpack.c.l.b16 %v6037
    %v6117 = vunpack.c.h.b16 %v6037
    %v6118 = vunpack.c.l.b16 %v6038
    %v6119 = vunpack.c.h.b16 %v6038
    %v6120 = vunpack.c.l.b16 %v6039
    %v6121 = vunpack.c.h.b16 %v6039
    %v6122 = vunpack.c.l.b16 %v6040
    %v6123 = vunpack.c.h.b16 %v6040
    %v6124 = vunpack.c.l.b16 %v6041
    %v6125 = vunpack.c.h.b16 %v6041
    %v6126 = vunpack.c.l.b16 %v6042
    %v6127 = vunpack.c.h.b16 %v6042
    %v6128 = vunpack.c.l.b16 %v6043
    %v6129 = vunpack.c.h.b16 %v6043
    %v6130 = vunpack.c.l.b16 %v6044
    %v6131 = vunpack.c.h.b16 %v6044
    %v6132 = vunpack.c.l.b16 %v6045
    %v6133 = vunpack.c.h.b16 %v6045
    %v6134 = vunpack.c.l.b16 %v6046
    %v6135 = vunpack.c.h.b16 %v6046
    %v6136 = vunpack.c.l.b16 %v6047
    %v6137 = vunpack.c.h.b16 %v6047
    %v6138 = vunpack.c.l.b16 %v6048
    %v6139 = vunpack.c.h.b16 %v6048
    %v6140 = vunpack.c.l.b16 %v6049
    %v6141 = vunpack.c.h.b16 %v6049
    %v6142 = vunpack.c.l.b16 %v6050
    %v6143 = vunpack.c.h.b16 %v6050
    %v6144 = vunpack.c.l.b16 %v6051
    %v6145 = vunpack.c.h.b16 %v6051
    %v6146 = vunpack.c.l.b16 %v6052
    %v6147 = vunpack.c.h.b16 %v6052
    %v6148 = vunpack.c.l.b16 %v6053
    %v6149 = vunpack.c.h.b16 %v6053
    %v6150 = vpack.c.b16 %v6090, %v6086
    %v6151 = vpack.c.b16 %v6091, %v6087
    %v6152 = vpack.c.b16 %v6092, %v6088
    %v6153 = vpack.c.b16 %v6093, %v6089
    %v6154 = vpack.c.b16 %v6098, %v6094
    %v6155 = vpack.c.b16 %v6099, %v6095
    %v6156 = vpack.c.b16 %v6100, %v6096
    %v6157 = vpack.c.b16 %v6101, %v6097
    %v6158 = vpack.c.b16 %v6106, %v6102
    %v6159 = vpack.c.b16 %v6107, %v6103
    %v6160 = vpack.c.b16 %v6108, %v6104
    %v6161 = vpack.c.b16 %v6109, %v6105
    %v6162 = vpack.c.b16 %v6114, %v6110
    %v6163 = vpack.c.b16 %v6115, %v6111
    %v6164 = vpack.c.b16 %v6116, %v6112
    %v6165 = vpack.c.b16 %v6117, %v6113
    %v6166 = vpack.c.b16 %v6122, %v6118
    %v6167 = vpack.c.b16 %v6123, %v6119
    %v6168 = vpack.c.b16 %v6124, %v6120
    %v6169 = vpack.c.b16 %v6125, %v6121
    %v6170 = vpack.c.b16 %v6130, %v6126
    %v6171 = vpack.c.b16 %v6131, %v6127
    %v6172 = vpack.c.b16 %v6132, %v6128
    %v6173 = vpack.c.b16 %v6133, %v6129
    %v6174 = vpack.c.b16 %v6138, %v6134
    %v6175 = vpack.c.b16 %v6139, %v6135
    %v6176 = vpack.c.b16 %v6140, %v6136
    %v6177 = vpack.c.b16 %v6141, %v6137
    %v6178 = vpack.c.b16 %v6146, %v6142
    %v6179 = vpack.c.b16 %v6147, %v6143
    %v6180 = vpack.c.b16 %v6148, %v6144
    %v6181 = vpack.c.b16 %v6149, %v6145
    %6214 = vmatprep.subr.bf16.mxu0 %v6151
    %6215 = vmatpush1.bf16.msra.mxu0 %v6150
    %6216 = vmatprep.subr.bf16.mxu0 %v6155
    %6217 = vmatpush1.bf16.msra.mxu0 %v6154
    %6218 = vmatprep.subr.bf16.mxu0 %v6159
    %6219 = vmatpush1.bf16.msra.mxu0 %v6158
    %6220 = vmatprep.subr.bf16.mxu0 %v6163
    %6221 = vmatpush1.bf16.msra.mxu0 %v6162
    %6222 = vmatprep.subr.bf16.mxu0 %v6167
    %6223 = vmatpush1.bf16.msra.mxu0 %v6166
    %6224 = vmatprep.subr.bf16.mxu0 %v6171
    %6225 = vmatpush1.bf16.msra.mxu0 %v6170
    %6226 = vmatprep.subr.bf16.mxu0 %v6175
    %6227 = vmatpush1.bf16.msra.mxu0 %v6174
    %6228 = vmatprep.subr.bf16.mxu0 %v6179
    %6229 = vmatpush1.bf16.msra.mxu0 %v6178
    %6230 = vmatprep.subr.bf16.mxu0 0
    %6231 = vmatpush1.bf16.msra.mxu0 0
    %6232 = vmatprep.subr.bf16.mxu0 0
    %6233 = vmatpush1.bf16.msra.mxu0 0
    %6234 = vmatprep.subr.bf16.mxu0 0
    %6235 = vmatpush1.bf16.msra.mxu0 0
    %6236 = vmatprep.subr.bf16.mxu0 0
    %6237 = vmatpush1.bf16.msra.mxu0 0
    %6238 = vmatprep.subr.bf16.mxu0 0
    %6239 = vmatpush1.bf16.msra.mxu0 0
    %6240 = vmatprep.subr.bf16.mxu0 0
    %6241 = vmatpush1.bf16.msra.mxu0 0
    %6242 = vmatprep.subr.bf16.mxu0 0
    %6243 = vmatpush1.bf16.msra.mxu0 0
    %6244 = vmatprep.subr.bf16.mxu0 0
    %6245 = vmatpush1.bf16.msra.mxu0 0
    %6246 = vmatprep.mubr.bf16.mxu0 0
    %6247 = vmatmul.mubr.bf16.gmra.mrb[0].mxu0 %v6021
    %v6248 = vpop.f32.mrb[0].mxu0
    %v6249 = vadd.f32 0.0, %v6248
    %v6250 = vpop.f32.mrb[0].mxu0
    %v6251 = vadd.f32 0.0, %v6250
    %v6252 = vpop.f32.mrb[0].mxu0
    %v6253 = vpop.f32.mrb[0].mxu0
    %6254 = vdwg.mxu0
    %6255 = vmatprep.subr.bf16.mxu0 %v6153
    %6256 = vmatpush1.bf16.msra.mxu0 %v6152
    %6257 = vmatprep.subr.bf16.mxu0 %v6157
    %6258 = vmatpush1.bf16.msra.mxu0 %v6156
    %6259 = vmatprep.subr.bf16.mxu0 %v6161
    %6260 = vmatpush1.bf16.msra.mxu0 %v6160
    %6261 = vmatprep.subr.bf16.mxu0 %v6165
    %6262 = vmatpush1.bf16.msra.mxu0 %v6164
    %6263 = vmatprep.subr.bf16.mxu0 %v6169
    %6264 = vmatpush1.bf16.msra.mxu0 %v6168
    %6265 = vmatprep.subr.bf16.mxu0 %v6173
    %6266 = vmatpush1.bf16.msra.mxu0 %v6172
    %6267 = vmatprep.subr.bf16.mxu0 %v6177
    %6268 = vmatpush1.bf16.msra.mxu0 %v6176
    %6269 = vmatprep.subr.bf16.mxu0 %v6181
    %6270 = vmatpush1.bf16.msra.mxu0 %v6180
    %6271 = vmatprep.subr.bf16.mxu0 0
    %6272 = vmatpush1.bf16.msra.mxu0 0
    %6273 = vmatprep.subr.bf16.mxu0 0
    %6274 = vmatpush1.bf16.msra.mxu0 0
    %6275 = vmatprep.subr.bf16.mxu0 0
    %6276 = vmatpush1.bf16.msra.mxu0 0
    %6277 = vmatprep.subr.bf16.mxu0 0
    %6278 = vmatpush1.bf16.msra.mxu0 0
    %6279 = vmatprep.subr.bf16.mxu0 0
    %6280 = vmatpush1.bf16.msra.mxu0 0
    %6281 = vmatprep.subr.bf16.mxu0 0
    %6282 = vmatpush1.bf16.msra.mxu0 0
    %6283 = vmatprep.subr.bf16.mxu0 0
    %6284 = vmatpush1.bf16.msra.mxu0 0
    %6285 = vmatprep.subr.bf16.mxu0 0
    %6286 = vmatpush1.bf16.msra.mxu0 0
    %6287 = vmatprep.mubr.bf16.mxu0 0
    %6288 = vmatmul.mubr.bf16.gmra.mrb[0].mxu0 %v6021
    %v6289 = vpop.f32.mrb[0].mxu0
    %v6290 = vadd.f32 0.0, %v6289
    %v6291 = vpop.f32.mrb[0].mxu0
    %v6292 = vadd.f32 0.0, %v6291
    %v6293 = vpop.f32.mrb[0].mxu0
    %v6294 = vpop.f32.mrb[0].mxu0
    %6295 = vdwg.mxu0
    %v6296 = vadd.f32 %v6017, %v6249
    %v6297 = vadd.f32 %v6018, %v6251
    %v6298 = vadd.f32 %v6019, %v6290
    %v6299 = vadd.f32 %v6020, %v6292
    %v6300 = vxor.u32 %v6296, 2147483648
    %v6301 = vmul.f32 %v6300, 1.442695
    %v6302 = vpow.pop %v6301
    %v6303 = vadd.f32 %v6302, 1.0
    %v6304 = vrcp.pop %v6303
    %v6305 = vmul.f32 1.0, %v6304
    %v6306 = vxor.u32 %v6297, 2147483648
    %v6307 = vmul.f32 %v6306, 1.442695
    %v6308 = vpow.pop %v6307
    %v6309 = vadd.f32 %v6308, 1.0
    %v6310 = vrcp.pop %v6309
    %v6311 = vmul.f32 1.0, %v6310
    %v6312 = vtanh.pop %v6298
    %v6313 = vxor.u32 %v6299, 2147483648
    %v6314 = vmul.f32 %v6313, 1.442695
    %v6315 = vpow.pop %v6314
    %v6316 = vadd.f32 %v6315, 1.0
    %v6317 = vrcp.pop %v6316
    %v6318 = vmul.f32 1.0, %v6317
    %v6319 = vmul.f32 %v6311, %v5430
    %v6320 = vmul.f32 %v6305, %v6312
    %v6321 = vadd.f32 %v6319, %v6320
    %v6322 = vtanh.pop %v6321
    %v6323 = vmul.f32 %v6318, %v6322
    %s6324 = scalar_lea.vmem %s9, 48
    %6325 = vst [vmem:[%s6324] sm:$0xff] %v6323
    %s6326 = scalar_lea.vmem %s0, 224
    %v6327 = vld [vmem:[%s6326] sm:$0xff]
    %v6328 = vld [vmem:[%s6326 + $0x8] sm:$0xff]
    %v6329 = vld [vmem:[%s6326 + $0x10] sm:$0xff]
    %v6330 = vld [vmem:[%s6326 + $0x18] sm:$0xff]
    %v6331 = vld [vmem:[%s1] sm:$0xff]
    %v6332 = vld [vmem:[%s1 + $0x8] sm:$0xff]
    %v6333 = vld [vmem:[%s1 + $0x10] sm:$0xff]
    %v6334 = vld [vmem:[%s1 + $0x18] sm:$0xff]
    %v6335 = vld [vmem:[%s1 + $0x20] sm:$0xff]
    %v6336 = vld [vmem:[%s1 + $0x28] sm:$0xff]
    %v6337 = vld [vmem:[%s1 + $0x30] sm:$0xff]
    %v6338 = vld [vmem:[%s1 + $0x38] sm:$0xff]
    %v6339 = vld [vmem:[%s1 + $0x40] sm:$0xff]
    %v6340 = vld [vmem:[%s1 + $0x48] sm:$0xff]
    %v6341 = vld [vmem:[%s1 + $0x50] sm:$0xff]
    %v6342 = vld [vmem:[%s1 + $0x58] sm:$0xff]
    %v6343 = vld [vmem:[%s1 + $0x60] sm:$0xff]
    %v6344 = vld [vmem:[%s1 + $0x68] sm:$0xff]
    %v6345 = vld [vmem:[%s1 + $0x70] sm:$0xff]
    %v6346 = vld [vmem:[%s1 + $0x78] sm:$0xff]
    %v6347 = vld [vmem:[%s1 + $0x80] sm:$0xff]
    %v6348 = vld [vmem:[%s1 + $0x88] sm:$0xff]
    %v6349 = vld [vmem:[%s1 + $0x90] sm:$0xff]
    %v6350 = vld [vmem:[%s1 + $0x98] sm:$0xff]
    %v6351 = vld [vmem:[%s1 + $0xa0] sm:$0xff]
    %v6352 = vld [vmem:[%s1 + $0xa8] sm:$0xff]
    %v6353 = vld [vmem:[%s1 + $0xb0] sm:$0xff]
    %v6354 = vld [vmem:[%s1 + $0xb8] sm:$0xff]
    %v6355 = vld [vmem:[%s1 + $0xc0] sm:$0xff]
    %v6356 = vld [vmem:[%s1 + $0xc8] sm:$0xff]
    %v6357 = vld [vmem:[%s1 + $0xd0] sm:$0xff]
    %v6358 = vld [vmem:[%s1 + $0xd8] sm:$0xff]
    %v6359 = vld [vmem:[%s1 + $0xe0] sm:$0xff]
    %v6360 = vld [vmem:[%s1 + $0xe8] sm:$0xff]
    %v6361 = vld [vmem:[%s1 + $0xf0] sm:$0xff]
    %v6362 = vld [vmem:[%s1 + $0xf8] sm:$0xff]
    %v6395 = vunpack.c.l.b16 %v6331
    %v6396 = vunpack.c.h.b16 %v6331
    %v6397 = vunpack.c.l.b16 %v6332
    %v6398 = vunpack.c.h.b16 %v6332
    %v6399 = vunpack.c.l.b16 %v6333
    %v6400 = vunpack.c.h.b16 %v6333
    %v6401 = vunpack.c.l.b16 %v6334
    %v6402 = vunpack.c.h.b16 %v6334
    %v6403 = vunpack.c.l.b16 %v6335
    %v6404 = vunpack.c.h.b16 %v6335
    %v6405 = vunpack.c.l.b16 %v6336
    %v6406 = vunpack.c.h.b16 %v6336
    %v6407 = vunpack.c.l.b16 %v6337
    %v6408 = vunpack.c.h.b16 %v6337
    %v6409 = vunpack.c.l.b16 %v6338
    %v6410 = vunpack.c.h.b16 %v6338
    %v6411 = vunpack.c.l.b16 %v6339
    %v6412 = vunpack.c.h.b16 %v6339
    %v6413 = vunpack.c.l.b16 %v6340
    %v6414 = vunpack.c.h.b16 %v6340
    %v6415 = vunpack.c.l.b16 %v6341
    %v6416 = vunpack.c.h.b16 %v6341
    %v6417 = vunpack.c.l.b16 %v6342
    %v6418 = vunpack.c.h.b16 %v6342
    %v6419 = vunpack.c.l.b16 %v6343
    %v6420 = vunpack.c.h.b16 %v6343
    %v6421 = vunpack.c.l.b16 %v6344
    %v6422 = vunpack.c.h.b16 %v6344
    %v6423 = vunpack.c.l.b16 %v6345
    %v6424 = vunpack.c.h.b16 %v6345
    %v6425 = vunpack.c.l.b16 %v6346
    %v6426 = vunpack.c.h.b16 %v6346
    %v6427 = vunpack.c.l.b16 %v6347
    %v6428 = vunpack.c.h.b16 %v6347
    %v6429 = vunpack.c.l.b16 %v6348
    %v6430 = vunpack.c.h.b16 %v6348
    %v6431 = vunpack.c.l.b16 %v6349
    %v6432 = vunpack.c.h.b16 %v6349
    %v6433 = vunpack.c.l.b16 %v6350
    %v6434 = vunpack.c.h.b16 %v6350
    %v6435 = vunpack.c.l.b16 %v6351
    %v6436 = vunpack.c.h.b16 %v6351
    %v6437 = vunpack.c.l.b16 %v6352
    %v6438 = vunpack.c.h.b16 %v6352
    %v6439 = vunpack.c.l.b16 %v6353
    %v6440 = vunpack.c.h.b16 %v6353
    %v6441 = vunpack.c.l.b16 %v6354
    %v6442 = vunpack.c.h.b16 %v6354
    %v6443 = vunpack.c.l.b16 %v6355
    %v6444 = vunpack.c.h.b16 %v6355
    %v6445 = vunpack.c.l.b16 %v6356
    %v6446 = vunpack.c.h.b16 %v6356
    %v6447 = vunpack.c.l.b16 %v6357
    %v6448 = vunpack.c.h.b16 %v6357
    %v6449 = vunpack.c.l.b16 %v6358
    %v6450 = vunpack.c.h.b16 %v6358
    %v6451 = vunpack.c.l.b16 %v6359
    %v6452 = vunpack.c.h.b16 %v6359
    %v6453 = vunpack.c.l.b16 %v6360
    %v6454 = vunpack.c.h.b16 %v6360
    %v6455 = vunpack.c.l.b16 %v6361
    %v6456 = vunpack.c.h.b16 %v6361
    %v6457 = vunpack.c.l.b16 %v6362
    %v6458 = vunpack.c.h.b16 %v6362
    %v6459 = vpack.c.b16 %v6399, %v6395
    %v6460 = vpack.c.b16 %v6400, %v6396
    %v6461 = vpack.c.b16 %v6401, %v6397
    %v6462 = vpack.c.b16 %v6402, %v6398
    %v6463 = vpack.c.b16 %v6407, %v6403
    %v6464 = vpack.c.b16 %v6408, %v6404
    %v6465 = vpack.c.b16 %v6409, %v6405
    %v6466 = vpack.c.b16 %v6410, %v6406
    %v6467 = vpack.c.b16 %v6415, %v6411
    %v6468 = vpack.c.b16 %v6416, %v6412
    %v6469 = vpack.c.b16 %v6417, %v6413
    %v6470 = vpack.c.b16 %v6418, %v6414
    %v6471 = vpack.c.b16 %v6423, %v6419
    %v6472 = vpack.c.b16 %v6424, %v6420
    %v6473 = vpack.c.b16 %v6425, %v6421
    %v6474 = vpack.c.b16 %v6426, %v6422
    %v6475 = vpack.c.b16 %v6431, %v6427
    %v6476 = vpack.c.b16 %v6432, %v6428
    %v6477 = vpack.c.b16 %v6433, %v6429
    %v6478 = vpack.c.b16 %v6434, %v6430
    %v6479 = vpack.c.b16 %v6439, %v6435
    %v6480 = vpack.c.b16 %v6440, %v6436
    %v6481 = vpack.c.b16 %v6441, %v6437
    %v6482 = vpack.c.b16 %v6442, %v6438
    %v6483 = vpack.c.b16 %v6447, %v6443
    %v6484 = vpack.c.b16 %v6448, %v6444
    %v6485 = vpack.c.b16 %v6449, %v6445
    %v6486 = vpack.c.b16 %v6450, %v6446
    %v6487 = vpack.c.b16 %v6455, %v6451
    %v6488 = vpack.c.b16 %v6456, %v6452
    %v6489 = vpack.c.b16 %v6457, %v6453
    %v6490 = vpack.c.b16 %v6458, %v6454
    %6523 = vmatprep.subr.bf16.mxu0 %v6460
    %6524 = vmatpush1.bf16.msra.mxu0 %v6459
    %6525 = vmatprep.subr.bf16.mxu0 %v6464
    %6526 = vmatpush1.bf16.msra.mxu0 %v6463
    %6527 = vmatprep.subr.bf16.mxu0 %v6468
    %6528 = vmatpush1.bf16.msra.mxu0 %v6467
    %6529 = vmatprep.subr.bf16.mxu0 %v6472
    %6530 = vmatpush1.bf16.msra.mxu0 %v6471
    %6531 = vmatprep.subr.bf16.mxu0 %v6476
    %6532 = vmatpush1.bf16.msra.mxu0 %v6475
    %6533 = vmatprep.subr.bf16.mxu0 %v6480
    %6534 = vmatpush1.bf16.msra.mxu0 %v6479
    %6535 = vmatprep.subr.bf16.mxu0 %v6484
    %6536 = vmatpush1.bf16.msra.mxu0 %v6483
    %6537 = vmatprep.subr.bf16.mxu0 %v6488
    %6538 = vmatpush1.bf16.msra.mxu0 %v6487
    %6539 = vmatprep.subr.bf16.mxu0 0
    %6540 = vmatpush1.bf16.msra.mxu0 0
    %6541 = vmatprep.subr.bf16.mxu0 0
    %6542 = vmatpush1.bf16.msra.mxu0 0
    %6543 = vmatprep.subr.bf16.mxu0 0
    %6544 = vmatpush1.bf16.msra.mxu0 0
    %6545 = vmatprep.subr.bf16.mxu0 0
    %6546 = vmatpush1.bf16.msra.mxu0 0
    %6547 = vmatprep.subr.bf16.mxu0 0
    %6548 = vmatpush1.bf16.msra.mxu0 0
    %6549 = vmatprep.subr.bf16.mxu0 0
    %6550 = vmatpush1.bf16.msra.mxu0 0
    %6551 = vmatprep.subr.bf16.mxu0 0
    %6552 = vmatpush1.bf16.msra.mxu0 0
    %6553 = vmatprep.subr.bf16.mxu0 0
    %6554 = vmatpush1.bf16.msra.mxu0 0
    %6555 = vmatprep.mubr.bf16.mxu0 0
    %6556 = vmatmul.mubr.bf16.gmra.mrb[0].mxu0 %v5742
    %v6557 = vpop.f32.mrb[0].mxu0
    %v6558 = vadd.f32 0.0, %v6557
    %v6559 = vpop.f32.mrb[0].mxu0
    %v6560 = vadd.f32 0.0, %v6559
    %v6561 = vpop.f32.mrb[0].mxu0
    %v6562 = vpop.f32.mrb[0].mxu0
    %6563 = vdwg.mxu0
    %6564 = vmatprep.subr.bf16.mxu0 %v6462
    %6565 = vmatpush1.bf16.msra.mxu0 %v6461
    %6566 = vmatprep.subr.bf16.mxu0 %v6466
    %6567 = vmatpush1.bf16.msra.mxu0 %v6465
    %6568 = vmatprep.subr.bf16.mxu0 %v6470
    %6569 = vmatpush1.bf16.msra.mxu0 %v6469
    %6570 = vmatprep.subr.bf16.mxu0 %v6474
    %6571 = vmatpush1.bf16.msra.mxu0 %v6473
    %6572 = vmatprep.subr.bf16.mxu0 %v6478
    %6573 = vmatpush1.bf16.msra.mxu0 %v6477
    %6574 = vmatprep.subr.bf16.mxu0 %v6482
    %6575 = vmatpush1.bf16.msra.mxu0 %v6481
    %6576 = vmatprep.subr.bf16.mxu0 %v6486
    %6577 = vmatpush1.bf16.msra.mxu0 %v6485
    %6578 = vmatprep.subr.bf16.mxu0 %v6490
    %6579 = vmatpush1.bf16.msra.mxu0 %v6489
    %6580 = vmatprep.subr.bf16.mxu0 0
    %6581 = vmatpush1.bf16.msra.mxu0 0
    %6582 = vmatprep.subr.bf16.mxu0 0
    %6583 = vmatpush1.bf16.msra.mxu0 0
    %6584 = vmatprep.subr.bf16.mxu0 0
    %6585 = vmatpush1.bf16.msra.mxu0 0
    %6586 = vmatprep.subr.bf16.mxu0 0
    %6587 = vmatpush1.bf16.msra.mxu0 0
    %6588 = vmatprep.subr.bf16.mxu0 0
    %6589 = vmatpush1.bf16.msra.mxu0 0
    %6590 = vmatprep.subr.bf16.mxu0 0
    %6591 = vmatpush1.bf16.msra.mxu0 0
    %6592 = vmatprep.subr.bf16.mxu0 0
    %6593 = vmatpush1.bf16.msra.mxu0 0
    %6594 = vmatprep.subr.bf16.mxu0 0
    %6595 = vmatpush1.bf16.msra.mxu0 0
    %6596 = vmatprep.mubr.bf16.mxu0 0
    %6597 = vmatmul.mubr.bf16.gmra.mrb[0].mxu0 %v5742
    %v6598 = vpop.f32.mrb[0].mxu0
    %v6599 = vadd.f32 0.0, %v6598
    %v6600 = vpop.f32.mrb[0].mxu0
    %v6601 = vadd.f32 0.0, %v6600
    %v6602 = vpop.f32.mrb[0].mxu0
    %v6603 = vpop.f32.mrb[0].mxu0
    %6604 = vdwg.mxu0
    %v6605 = vadd.f32 %v6327, %v6558
    %v6606 = vadd.f32 %v6328, %v6560
    %v6607 = vadd.f32 %v6329, %v6599
    %v6608 = vadd.f32 %v6330, %v6601
    %v6609 = vxor.u32 %v6605, 2147483648
    %v6610 = vmul.f32 %v6609, 1.442695
    %v6611 = vpow.pop %v6610
    %v6612 = vadd.f32 %v6611, 1.0
    %v6613 = vrcp.pop %v6612
    %v6614 = vmul.f32 1.0, %v6613
    %v6615 = vxor.u32 %v6606, 2147483648
    %v6616 = vmul.f32 %v6615, 1.442695
    %v6617 = vpow.pop %v6616
    %v6618 = vadd.f32 %v6617, 1.0
    %v6619 = vrcp.pop %v6618
    %v6620 = vmul.f32 1.0, %v6619
    %v6621 = vtanh.pop %v6607
    %v6622 = vxor.u32 %v6608, 2147483648
    %v6623 = vmul.f32 %v6622, 1.442695
    %v6624 = vpow.pop %v6623
    %v6625 = vadd.f32 %v6624, 1.0
    %v6626 = vrcp.pop %v6625
    %v6627 = vmul.f32 1.0, %v6626
    %v6628 = vmul.f32 %v6620, %v5739
    %v6629 = vmul.f32 %v6614, %v6621
    %v6630 = vadd.f32 %v6628, %v6629
    %v6631 = vtanh.pop %v6630
    %v6632 = vmul.f32 %v6627, %v6631
    %v6633 = vpack.c.bf16 %v6632, %v6632
    %v6634 = vld [vmem:[%s2] sm:$0xff]
    %v6635 = vld [vmem:[%s2 + $0x8] sm:$0xff]
    %v6636 = vld [vmem:[%s2 + $0x10] sm:$0xff]
    %v6637 = vld [vmem:[%s2 + $0x18] sm:$0xff]
    %v6638 = vld [vmem:[%s2 + $0x20] sm:$0xff]
    %v6639 = vld [vmem:[%s2 + $0x28] sm:$0xff]
    %v6640 = vld [vmem:[%s2 + $0x30] sm:$0xff]
    %v6641 = vld [vmem:[%s2 + $0x38] sm:$0xff]
    %v6642 = vld [vmem:[%s2 + $0x40] sm:$0xff]
    %v6643 = vld [vmem:[%s2 + $0x48] sm:$0xff]
    %v6644 = vld [vmem:[%s2 + $0x50] sm:$0xff]
    %v6645 = vld [vmem:[%s2 + $0x58] sm:$0xff]
    %v6646 = vld [vmem:[%s2 + $0x60] sm:$0xff]
    %v6647 = vld [vmem:[%s2 + $0x68] sm:$0xff]
    %v6648 = vld [vmem:[%s2 + $0x70] sm:$0xff]
    %v6649 = vld [vmem:[%s2 + $0x78] sm:$0xff]
    %v6650 = vld [vmem:[%s2 + $0x80] sm:$0xff]
    %v6651 = vld [vmem:[%s2 + $0x88] sm:$0xff]
    %v6652 = vld [vmem:[%s2 + $0x90] sm:$0xff]
    %v6653 = vld [vmem:[%s2 + $0x98] sm:$0xff]
    %v6654 = vld [vmem:[%s2 + $0xa0] sm:$0xff]
    %v6655 = vld [vmem:[%s2 + $0xa8] sm:$0xff]
    %v6656 = vld [vmem:[%s2 + $0xb0] sm:$0xff]
    %v6657 = vld [vmem:[%s2 + $0xb8] sm:$0xff]
    %v6658 = vld [vmem:[%s2 + $0xc0] sm:$0xff]
    %v6659 = vld [vmem:[%s2 + $0xc8] sm:$0xff]
    %v6660 = vld [vmem:[%s2 + $0xd0] sm:$0xff]
    %v6661 = vld [vmem:[%s2 + $0xd8] sm:$0xff]
    %v6662 = vld [vmem:[%s2 + $0xe0] sm:$0xff]
    %v6663 = vld [vmem:[%s2 + $0xe8] sm:$0xff]
    %v6664 = vld [vmem:[%s2 + $0xf0] sm:$0xff]
    %v6665 = vld [vmem:[%s2 + $0xf8] sm:$0xff]
    %v6698 = vunpack.c.l.b16 %v6634
    %v6699 = vunpack.c.h.b16 %v6634
    %v6700 = vunpack.c.l.b16 %v6635
    %v6701 = vunpack.c.h.b16 %v6635
    %v6702 = vunpack.c.l.b16 %v6636
    %v6703 = vunpack.c.h.b16 %v6636
    %v6704 = vunpack.c.l.b16 %v6637
    %v6705 = vunpack.c.h.b16 %v6637
    %v6706 = vunpack.c.l.b16 %v6638
    %v6707 = vunpack.c.h.b16 %v6638
    %v6708 = vunpack.c.l.b16 %v6639
    %v6709 = vunpack.c.h.b16 %v6639
    %v6710 = vunpack.c.l.b16 %v6640
    %v6711 = vunpack.c.h.b16 %v6640
    %v6712 = vunpack.c.l.b16 %v6641
    %v6713 = vunpack.c.h.b16 %v6641
    %v6714 = vunpack.c.l.b16 %v6642
    %v6715 = vunpack.c.h.b16 %v6642
    %v6716 = vunpack.c.l.b16 %v6643
    %v6717 = vunpack.c.h.b16 %v6643
    %v6718 = vunpack.c.l.b16 %v6644
    %v6719 = vunpack.c.h.b16 %v6644
    %v6720 = vunpack.c.l.b16 %v6645
    %v6721 = vunpack.c.h.b16 %v6645
    %v6722 = vunpack.c.l.b16 %v6646
    %v6723 = vunpack.c.h.b16 %v6646
    %v6724 = vunpack.c.l.b16 %v6647
    %v6725 = vunpack.c.h.b16 %v6647
    %v6726 = vunpack.c.l.b16 %v6648
    %v6727 = vunpack.c.h.b16 %v6648
    %v6728 = vunpack.c.l.b16 %v6649
    %v6729 = vunpack.c.h.b16 %v6649
    %v6730 = vunpack.c.l.b16 %v6650
    %v6731 = vunpack.c.h.b16 %v6650
    %v6732 = vunpack.c.l.b16 %v6651
    %v6733 = vunpack.c.h.b16 %v6651
    %v6734 = vunpack.c.l.b16 %v6652
    %v6735 = vunpack.c.h.b16 %v6652
    %v6736 = vunpack.c.l.b16 %v6653
    %v6737 = vunpack.c.h.b16 %v6653
    %v6738 = vunpack.c.l.b16 %v6654
    %v6739 = vunpack.c.h.b16 %v6654
    %v6740 = vunpack.c.l.b16 %v6655
    %v6741 = vunpack.c.h.b16 %v6655
    %v6742 = vunpack.c.l.b16 %v6656
    %v6743 = vunpack.c.h.b16 %v6656
    %v6744 = vunpack.c.l.b16 %v6657
    %v6745 = vunpack.c.h.b16 %v6657
    %v6746 = vunpack.c.l.b16 %v6658
    %v6747 = vunpack.c.h.b16 %v6658
    %v6748 = vunpack.c.l.b16 %v6659
    %v6749 = vunpack.c.h.b16 %v6659
    %v6750 = vunpack.c.l.b16 %v6660
    %v6751 = vunpack.c.h.b16 %v6660
    %v6752 = vunpack.c.l.b16 %v6661
    %v6753 = vunpack.c.h.b16 %v6661
    %v6754 = vunpack.c.l.b16 %v6662
    %v6755 = vunpack.c.h.b16 %v6662
    %v6756 = vunpack.c.l.b16 %v6663
    %v6757 = vunpack.c.h.b16 %v6663
    %v6758 = vunpack.c.l.b16 %v6664
    %v6759 = vunpack.c.h.b16 %v6664
    %v6760 = vunpack.c.l.b16 %v6665
    %v6761 = vunpack.c.h.b16 %v6665
    %v6762 = vpack.c.b16 %v6702, %v6698
    %v6763 = vpack.c.b16 %v6703, %v6699
    %v6764 = vpack.c.b16 %v6704, %v6700
    %v6765 = vpack.c.b16 %v6705, %v6701
    %v6766 = vpack.c.b16 %v6710, %v6706
    %v6767 = vpack.c.b16 %v6711, %v6707
    %v6768 = vpack.c.b16 %v6712, %v6708
    %v6769 = vpack.c.b16 %v6713, %v6709
    %v6770 = vpack.c.b16 %v6718, %v6714
    %v6771 = vpack.c.b16 %v6719, %v6715
    %v6772 = vpack.c.b16 %v6720, %v6716
    %v6773 = vpack.c.b16 %v6721, %v6717
    %v6774 = vpack.c.b16 %v6726, %v6722
    %v6775 = vpack.c.b16 %v6727, %v6723
    %v6776 = vpack.c.b16 %v6728, %v6724
    %v6777 = vpack.c.b16 %v6729, %v6725
    %v6778 = vpack.c.b16 %v6734, %v6730
    %v6779 = vpack.c.b16 %v6735, %v6731
    %v6780 = vpack.c.b16 %v6736, %v6732
    %v6781 = vpack.c.b16 %v6737, %v6733
    %v6782 = vpack.c.b16 %v6742, %v6738
    %v6783 = vpack.c.b16 %v6743, %v6739
    %v6784 = vpack.c.b16 %v6744, %v6740
    %v6785 = vpack.c.b16 %v6745, %v6741
    %v6786 = vpack.c.b16 %v6750, %v6746
    %v6787 = vpack.c.b16 %v6751, %v6747
    %v6788 = vpack.c.b16 %v6752, %v6748
    %v6789 = vpack.c.b16 %v6753, %v6749
    %v6790 = vpack.c.b16 %v6758, %v6754
    %v6791 = vpack.c.b16 %v6759, %v6755
    %v6792 = vpack.c.b16 %v6760, %v6756
    %v6793 = vpack.c.b16 %v6761, %v6757
    %6826 = vmatprep.subr.bf16.mxu0 %v6763
    %6827 = vmatpush1.bf16.msra.mxu0 %v6762
    %6828 = vmatprep.subr.bf16.mxu0 %v6767
    %6829 = vmatpush1.bf16.msra.mxu0 %v6766
    %6830 = vmatprep.subr.bf16.mxu0 %v6771
    %6831 = vmatpush1.bf16.msra.mxu0 %v6770
    %6832 = vmatprep.subr.bf16.mxu0 %v6775
    %6833 = vmatpush1.bf16.msra.mxu0 %v6774
    %6834 = vmatprep.subr.bf16.mxu0 %v6779
    %6835 = vmatpush1.bf16.msra.mxu0 %v6778
    %6836 = vmatprep.subr.bf16.mxu0 %v6783
    %6837 = vmatpush1.bf16.msra.mxu0 %v6782
    %6838 = vmatprep.subr.bf16.mxu0 %v6787
    %6839 = vmatpush1.bf16.msra.mxu0 %v6786
    %6840 = vmatprep.subr.bf16.mxu0 %v6791
    %6841 = vmatpush1.bf16.msra.mxu0 %v6790
    %6842 = vmatprep.subr.bf16.mxu0 0
    %6843 = vmatpush1.bf16.msra.mxu0 0
    %6844 = vmatprep.subr.bf16.mxu0 0
    %6845 = vmatpush1.bf16.msra.mxu0 0
    %6846 = vmatprep.subr.bf16.mxu0 0
    %6847 = vmatpush1.bf16.msra.mxu0 0
    %6848 = vmatprep.subr.bf16.mxu0 0
    %6849 = vmatpush1.bf16.msra.mxu0 0
    %6850 = vmatprep.subr.bf16.mxu0 0
    %6851 = vmatpush1.bf16.msra.mxu0 0
    %6852 = vmatprep.subr.bf16.mxu0 0
    %6853 = vmatpush1.bf16.msra.mxu0 0
    %6854 = vmatprep.subr.bf16.mxu0 0
    %6855 = vmatpush1.bf16.msra.mxu0 0
    %6856 = vmatprep.subr.bf16.mxu0 0
    %6857 = vmatpush1.bf16.msra.mxu0 0
    %6858 = vmatprep.mubr.bf16.mxu0 0
    %6859 = vmatmul.mubr.bf16.gmra.mrb[0].mxu0 %v6633
    %v6860 = vpop.f32.mrb[0].mxu0
    %v6861 = vadd.f32 0.0, %v6860
    %v6862 = vpop.f32.mrb[0].mxu0
    %v6863 = vadd.f32 0.0, %v6862
    %v6864 = vpop.f32.mrb[0].mxu0
    %v6865 = vpop.f32.mrb[0].mxu0
    %6866 = vdwg.mxu0
    %6867 = vmatprep.subr.bf16.mxu0 %v6765
    %6868 = vmatpush1.bf16.msra.mxu0 %v6764
    %6869 = vmatprep.subr.bf16.mxu0 %v6769
    %6870 = vmatpush1.bf16.msra.mxu0 %v6768
    %6871 = vmatprep.subr.bf16.mxu0 %v6773
    %6872 = vmatpush1.bf16.msra.mxu0 %v6772
    %6873 = vmatprep.subr.bf16.mxu0 %v6777
    %6874 = vmatpush1.bf16.msra.mxu0 %v6776
    %6875 = vmatprep.subr.bf16.mxu0 %v6781
    %6876 = vmatpush1.bf16.msra.mxu0 %v6780
    %6877 = vmatprep.subr.bf16.mxu0 %v6785
    %6878 = vmatpush1.bf16.msra.mxu0 %v6784
    %6879 = vmatprep.subr.bf16.mxu0 %v6789
    %6880 = vmatpush1.bf16.msra.mxu0 %v6788
    %6881 = vmatprep.subr.bf16.mxu0 %v6793
    %6882 = vmatpush1.bf16.msra.mxu0 %v6792
    %6883 = vmatprep.subr.bf16.mxu0 0
    %6884 = vmatpush1.bf16.msra.mxu0 0
    %6885 = vmatprep.subr.bf16.mxu0 0
    %6886 = vmatpush1.bf16.msra.mxu0 0
    %6887 = vmatprep.subr.bf16.mxu0 0
    %6888 = vmatpush1.bf16.msra.mxu0 0
    %6889 = vmatprep.subr.bf16.mxu0 0
    %6890 = vmatpush1.bf16.msra.mxu0 0
    %6891 = vmatprep.subr.bf16.mxu0 0
    %6892 = vmatpush1.bf16.msra.mxu0 0
    %6893 = vmatprep.subr.bf16.mxu0 0
    %6894 = vmatpush1.bf16.msra.mxu0 0
    %6895 = vmatprep.subr.bf16.mxu0 0
    %6896 = vmatpush1.bf16.msra.mxu0 0
    %6897 = vmatprep.subr.bf16.mxu0 0
    %6898 = vmatpush1.bf16.msra.mxu0 0
    %6899 = vmatprep.mubr.bf16.mxu0 0
    %6900 = vmatmul.mubr.bf16.gmra.mrb[0].mxu0 %v6633
    %v6901 = vpop.f32.mrb[0].mxu0
    %v6902 = vadd.f32 0.0, %v6901
    %v6903 = vpop.f32.mrb[0].mxu0
    %v6904 = vadd.f32 0.0, %v6903
    %v6905 = vpop.f32.mrb[0].mxu0
    %v6906 = vpop.f32.mrb[0].mxu0
    %6907 = vdwg.mxu0
    %v6908 = vadd.f32 %v655, %v6861
    %v6909 = vadd.f32 %v659, %v6863
    %v6910 = vadd.f32 %v663, %v6902
    %v6911 = vadd.f32 %v667, %v6904
    %v6912 = vpack.c.bf16 %v6323, %v6323
    %v6913 = vld [vmem:[#allocation6] sm:$0xff]
    %v6914 = vld [vmem:[#allocation6 + $0x8] sm:$0xff]
    %v6915 = vld [vmem:[#allocation6 + $0x10] sm:$0xff]
    %v6916 = vld [vmem:[#allocation6 + $0x18] sm:$0xff]
    %v6917 = vld [vmem:[#allocation6 + $0x20] sm:$0xff]
    %v6918 = vld [vmem:[#allocation6 + $0x28] sm:$0xff]
    %v6919 = vld [vmem:[#allocation6 + $0x30] sm:$0xff]
    %v6920 = vld [vmem:[#allocation6 + $0x38] sm:$0xff]
    %v6921 = vld [vmem:[#allocation6 + $0x40] sm:$0xff]
    %v6922 = vld [vmem:[#allocation6 + $0x48] sm:$0xff]
    %v6923 = vld [vmem:[#allocation6 + $0x50] sm:$0xff]
    %v6924 = vld [vmem:[#allocation6 + $0x58] sm:$0xff]
    %v6925 = vld [vmem:[#allocation6 + $0x60] sm:$0xff]
    %v6926 = vld [vmem:[#allocation6 + $0x68] sm:$0xff]
    %v6927 = vld [vmem:[#allocation6 + $0x70] sm:$0xff]
    %v6928 = vld [vmem:[#allocation6 + $0x78] sm:$0xff]
    %v6929 = vld [vmem:[#allocation6 + $0x80] sm:$0xff]
    %v6930 = vld [vmem:[#allocation6 + $0x88] sm:$0xff]
    %v6931 = vld [vmem:[#allocation6 + $0x90] sm:$0xff]
    %v6932 = vld [vmem:[#allocation6 + $0x98] sm:$0xff]
    %v6933 = vld [vmem:[#allocation6 + $0xa0] sm:$0xff]
    %v6934 = vld [vmem:[#allocation6 + $0xa8] sm:$0xff]
    %v6935 = vld [vmem:[#allocation6 + $0xb0] sm:$0xff]
    %v6936 = vld [vmem:[#allocation6 + $0xb8] sm:$0xff]
    %v6937 = vld [vmem:[#allocation6 + $0xc0] sm:$0xff]
    %v6938 = vld [vmem:[#allocation6 + $0xc8] sm:$0xff]
    %v6939 = vld [vmem:[#allocation6 + $0xd0] sm:$0xff]
    %v6940 = vld [vmem:[#allocation6 + $0xd8] sm:$0xff]
    %v6941 = vld [vmem:[#allocation6 + $0xe0] sm:$0xff]
    %v6942 = vld [vmem:[#allocation6 + $0xe8] sm:$0xff]
    %v6943 = vld [vmem:[#allocation6 + $0xf0] sm:$0xff]
    %v6944 = vld [vmem:[#allocation6 + $0xf8] sm:$0xff]
    %v6977 = vunpack.c.l.b16 %v6913
    %v6978 = vunpack.c.h.b16 %v6913
    %v6979 = vunpack.c.l.b16 %v6914
    %v6980 = vunpack.c.h.b16 %v6914
    %v6981 = vunpack.c.l.b16 %v6915
    %v6982 = vunpack.c.h.b16 %v6915
    %v6983 = vunpack.c.l.b16 %v6916
    %v6984 = vunpack.c.h.b16 %v6916
    %v6985 = vunpack.c.l.b16 %v6917
    %v6986 = vunpack.c.h.b16 %v6917
    %v6987 = vunpack.c.l.b16 %v6918
    %v6988 = vunpack.c.h.b16 %v6918
    %v6989 = vunpack.c.l.b16 %v6919
    %v6990 = vunpack.c.h.b16 %v6919
    %v6991 = vunpack.c.l.b16 %v6920
    %v6992 = vunpack.c.h.b16 %v6920
    %v6993 = vunpack.c.l.b16 %v6921
    %v6994 = vunpack.c.h.b16 %v6921
    %v6995 = vunpack.c.l.b16 %v6922
    %v6996 = vunpack.c.h.b16 %v6922
    %v6997 = vunpack.c.l.b16 %v6923
    %v6998 = vunpack.c.h.b16 %v6923
    %v6999 = vunpack.c.l.b16 %v6924
    %v7000 = vunpack.c.h.b16 %v6924
    %v7001 = vunpack.c.l.b16 %v6925
    %v7002 = vunpack.c.h.b16 %v6925
    %v7003 = vunpack.c.l.b16 %v6926
    %v7004 = vunpack.c.h.b16 %v6926
    %v7005 = vunpack.c.l.b16 %v6927
    %v7006 = vunpack.c.h.b16 %v6927
    %v7007 = vunpack.c.l.b16 %v6928
    %v7008 = vunpack.c.h.b16 %v6928
    %v7009 = vunpack.c.l.b16 %v6929
    %v7010 = vunpack.c.h.b16 %v6929
    %v7011 = vunpack.c.l.b16 %v6930
    %v7012 = vunpack.c.h.b16 %v6930
    %v7013 = vunpack.c.l.b16 %v6931
    %v7014 = vunpack.c.h.b16 %v6931
    %v7015 = vunpack.c.l.b16 %v6932
    %v7016 = vunpack.c.h.b16 %v6932
    %v7017 = vunpack.c.l.b16 %v6933
    %v7018 = vunpack.c.h.b16 %v6933
    %v7019 = vunpack.c.l.b16 %v6934
    %v7020 = vunpack.c.h.b16 %v6934
    %v7021 = vunpack.c.l.b16 %v6935
    %v7022 = vunpack.c.h.b16 %v6935
    %v7023 = vunpack.c.l.b16 %v6936
    %v7024 = vunpack.c.h.b16 %v6936
    %v7025 = vunpack.c.l.b16 %v6937
    %v7026 = vunpack.c.h.b16 %v6937
    %v7027 = vunpack.c.l.b16 %v6938
    %v7028 = vunpack.c.h.b16 %v6938
    %v7029 = vunpack.c.l.b16 %v6939
    %v7030 = vunpack.c.h.b16 %v6939
    %v7031 = vunpack.c.l.b16 %v6940
    %v7032 = vunpack.c.h.b16 %v6940
    %v7033 = vunpack.c.l.b16 %v6941
    %v7034 = vunpack.c.h.b16 %v6941
    %v7035 = vunpack.c.l.b16 %v6942
    %v7036 = vunpack.c.h.b16 %v6942
    %v7037 = vunpack.c.l.b16 %v6943
    %v7038 = vunpack.c.h.b16 %v6943
    %v7039 = vunpack.c.l.b16 %v6944
    %v7040 = vunpack.c.h.b16 %v6944
    %v7041 = vpack.c.b16 %v6981, %v6977
    %v7042 = vpack.c.b16 %v6982, %v6978
    %v7043 = vpack.c.b16 %v6983, %v6979
    %v7044 = vpack.c.b16 %v6984, %v6980
    %v7045 = vpack.c.b16 %v6989, %v6985
    %v7046 = vpack.c.b16 %v6990, %v6986
    %v7047 = vpack.c.b16 %v6991, %v6987
    %v7048 = vpack.c.b16 %v6992, %v6988
    %v7049 = vpack.c.b16 %v6997, %v6993
    %v7050 = vpack.c.b16 %v6998, %v6994
    %v7051 = vpack.c.b16 %v6999, %v6995
    %v7052 = vpack.c.b16 %v7000, %v6996
    %v7053 = vpack.c.b16 %v7005, %v7001
    %v7054 = vpack.c.b16 %v7006, %v7002
    %v7055 = vpack.c.b16 %v7007, %v7003
    %v7056 = vpack.c.b16 %v7008, %v7004
    %v7057 = vpack.c.b16 %v7013, %v7009
    %v7058 = vpack.c.b16 %v7014, %v7010
    %v7059 = vpack.c.b16 %v7015, %v7011
    %v7060 = vpack.c.b16 %v7016, %v7012
    %v7061 = vpack.c.b16 %v7021, %v7017
    %v7062 = vpack.c.b16 %v7022, %v7018
    %v7063 = vpack.c.b16 %v7023, %v7019
    %v7064 = vpack.c.b16 %v7024, %v7020
    %v7065 = vpack.c.b16 %v7029, %v7025
    %v7066 = vpack.c.b16 %v7030, %v7026
    %v7067 = vpack.c.b16 %v7031, %v7027
    %v7068 = vpack.c.b16 %v7032, %v7028
    %v7069 = vpack.c.b16 %v7037, %v7033
    %v7070 = vpack.c.b16 %v7038, %v7034
    %v7071 = vpack.c.b16 %v7039, %v7035
    %v7072 = vpack.c.b16 %v7040, %v7036
    %7105 = vmatprep.subr.bf16.mxu0 %v7042
    %7106 = vmatpush1.bf16.msra.mxu0 %v7041
    %7107 = vmatprep.subr.bf16.mxu0 %v7046
    %7108 = vmatpush1.bf16.msra.mxu0 %v7045
    %7109 = vmatprep.subr.bf16.mxu0 %v7050
    %7110 = vmatpush1.bf16.msra.mxu0 %v7049
    %7111 = vmatprep.subr.bf16.mxu0 %v7054
    %7112 = vmatpush1.bf16.msra.mxu0 %v7053
    %7113 = vmatprep.subr.bf16.mxu0 %v7058
    %7114 = vmatpush1.bf16.msra.mxu0 %v7057
    %7115 = vmatprep.subr.bf16.mxu0 %v7062
    %7116 = vmatpush1.bf16.msra.mxu0 %v7061
    %7117 = vmatprep.subr.bf16.mxu0 %v7066
    %7118 = vmatpush1.bf16.msra.mxu0 %v7065
    %7119 = vmatprep.subr.bf16.mxu0 %v7070
    %7120 = vmatpush1.bf16.msra.mxu0 %v7069
    %7121 = vmatprep.subr.bf16.mxu0 0
    %7122 = vmatpush1.bf16.msra.mxu0 0
    %7123 = vmatprep.subr.bf16.mxu0 0
    %7124 = vmatpush1.bf16.msra.mxu0 0
    %7125 = vmatprep.subr.bf16.mxu0 0
    %7126 = vmatpush1.bf16.msra.mxu0 0
    %7127 = vmatprep.subr.bf16.mxu0 0
    %7128 = vmatpush1.bf16.msra.mxu0 0
    %7129 = vmatprep.subr.bf16.mxu0 0
    %7130 = vmatpush1.bf16.msra.mxu0 0
    %7131 = vmatprep.subr.bf16.mxu0 0
    %7132 = vmatpush1.bf16.msra.mxu0 0
    %7133 = vmatprep.subr.bf16.mxu0 0
    %7134 = vmatpush1.bf16.msra.mxu0 0
    %7135 = vmatprep.subr.bf16.mxu0 0
    %7136 = vmatpush1.bf16.msra.mxu0 0
    %7137 = vmatprep.mubr.bf16.mxu0 0
    %7138 = vmatmul.mubr.bf16.gmra.mrb[0].mxu0 %v6912
    %v7139 = vpop.f32.mrb[0].mxu0
    %v7140 = vadd.f32 0.0, %v7139
    %v7141 = vpop.f32.mrb[0].mxu0
    %v7142 = vadd.f32 0.0, %v7141
    %v7143 = vpop.f32.mrb[0].mxu0
    %v7144 = vpop.f32.mrb[0].mxu0
    %7145 = vdwg.mxu0
    %7146 = vmatprep.subr.bf16.mxu0 %v7044
    %7147 = vmatpush1.bf16.msra.mxu0 %v7043
    %7148 = vmatprep.subr.bf16.mxu0 %v7048
    %7149 = vmatpush1.bf16.msra.mxu0 %v7047
    %7150 = vmatprep.subr.bf16.mxu0 %v7052
    %7151 = vmatpush1.bf16.msra.mxu0 %v7051
    %7152 = vmatprep.subr.bf16.mxu0 %v7056
    %7153 = vmatpush1.bf16.msra.mxu0 %v7055
    %7154 = vmatprep.subr.bf16.mxu0 %v7060
    %7155 = vmatpush1.bf16.msra.mxu0 %v7059
    %7156 = vmatprep.subr.bf16.mxu0 %v7064
    %7157 = vmatpush1.bf16.msra.mxu0 %v7063
    %7158 = vmatprep.subr.bf16.mxu0 %v7068
    %7159 = vmatpush1.bf16.msra.mxu0 %v7067
    %7160 = vmatprep.subr.bf16.mxu0 %v7072
    %7161 = vmatpush1.bf16.msra.mxu0 %v7071
    %7162 = vmatprep.subr.bf16.mxu0 0
    %7163 = vmatpush1.bf16.msra.mxu0 0
    %7164 = vmatprep.subr.bf16.mxu0 0
    %7165 = vmatpush1.bf16.msra.mxu0 0
    %7166 = vmatprep.subr.bf16.mxu0 0
    %7167 = vmatpush1.bf16.msra.mxu0 0
    %7168 = vmatprep.subr.bf16.mxu0 0
    %7169 = vmatpush1.bf16.msra.mxu0 0
    %7170 = vmatprep.subr.bf16.mxu0 0
    %7171 = vmatpush1.bf16.msra.mxu0 0
    %7172 = vmatprep.subr.bf16.mxu0 0
    %7173 = vmatpush1.bf16.msra.mxu0 0
    %7174 = vmatprep.subr.bf16.mxu0 0
    %7175 = vmatpush1.bf16.msra.mxu0 0
    %7176 = vmatprep.subr.bf16.mxu0 0
    %7177 = vmatpush1.bf16.msra.mxu0 0
    %7178 = vmatprep.mubr.bf16.mxu0 0
    %7179 = vmatmul.mubr.bf16.gmra.mrb[0].mxu0 %v6912
    %v7180 = vpop.f32.mrb[0].mxu0
    %v7181 = vadd.f32 0.0, %v7180
    %v7182 = vpop.f32.mrb[0].mxu0
    %v7183 = vadd.f32 0.0, %v7182
    %v7184 = vpop.f32.mrb[0].mxu0
    %v7185 = vpop.f32.mrb[0].mxu0
    %7186 = vdwg.mxu0
    %v7187 = vadd.f32 %v6908, %v7140
    %v7188 = vadd.f32 %v6909, %v7142
    %v7189 = vadd.f32 %v6910, %v7181
    %v7190 = vadd.f32 %v6911, %v7183
    %v7191 = vxor.u32 %v7187, 2147483648
    %v7192 = vmul.f32 %v7191, 1.442695
    %v7193 = vpow.pop %v7192
    %v7194 = vadd.f32 %v7193, 1.0
    %v7195 = vrcp.pop %v7194
    %v7196 = vmul.f32 1.0, %v7195
    %v7197 = vxor.u32 %v7188, 2147483648
    %v7198 = vmul.f32 %v7197, 1.442695
    %v7199 = vpow.pop %v7198
    %v7200 = vadd.f32 %v7199, 1.0
    %v7201 = vrcp.pop %v7200
    %v7202 = vmul.f32 1.0, %v7201
    %v7203 = vtanh.pop %v7189
    %v7204 = vxor.u32 %v7190, 2147483648
    %v7205 = vmul.f32 %v7204, 1.442695
    %v7206 = vpow.pop %v7205
    %v7207 = vadd.f32 %v7206, 1.0
    %v7208 = vrcp.pop %v7207
    %v7209 = vmul.f32 1.0, %v7208
    %v7210 = vmul.f32 %v7202, %v6321
    %v7211 = vmul.f32 %v7196, %v7203
    %v7212 = vadd.f32 %v7210, %v7211
    %v7213 = vtanh.pop %v7212
    %v7214 = vmul.f32 %v7209, %v7213
    %s7215 = scalar_lea.vmem %s9, 56
    %7216 = vst [vmem:[%s7215] sm:$0xff] %v7214
    %7217 = vst [vmem:[#allocation2] sm:$0xff] %v6632
    %7218 = vst [vmem:[#allocation3] sm:$0xff] %v6630
    %7219 = vst [vmem:[#allocation4] sm:$0xff] %v7214
    %7220 = vst [vmem:[#allocation5] sm:$0xff] %v7212
    // Predicated region
    $region46: #{language_model_forward.4} parent=1 // pred_check
      %p7221 = pneg %p52
    $region47: #{language_model_forward.4} parent=1 // pred_check_branch
      %7223 = sbr.rel (%p7221) target = $region49
    $region48: #{language_model_forward.4} parent=1 // pred_region
      %7224 = vst [vmem:[%s10] sm:$0xff] %v6632
      %7225 = vst [vmem:[%s11] sm:$0xff] %v6630
      %7226 = vst [vmem:[%s12] sm:$0xff] %v7214
      %7227 = vst [vmem:[%s13] sm:$0xff] %v7212
    $region49: #{language_model_forward.4} parent=1 // pred_fallthru
      _
    // Predicated region
    $region50: #{language_model_forward.4} parent=1 // pred_check
      _
    $region51: #{language_model_forward.4} parent=1 // pred_check_branch
      %7229 = sbr.rel (0) target = $region53
    $region52: #{language_model_forward.4} parent=1 // pred_region
      _
    $region53: #{language_model_forward.4} parent=1 // pred_fallthru
      _
    // Predicated region
    $region54: #{language_model_forward.4} parent=1 // pred_check
      _
    $region55: #{language_model_forward.4} parent=1 // pred_check_branch
      %7231 = sbr.rel (0) target = $region57
    $region56: #{language_model_forward.4} parent=1 // pred_region
      _
    $region57: #{language_model_forward.4} parent=1 // pred_fallthru
      _
    // Predicated region
    $region58: #{language_model_forward.4} parent=1 // pred_check
      _
    $region59: #{language_model_forward.4} parent=1 // pred_check_branch
      %7233 = sbr.rel (0) target = $region61
    $region60: #{language_model_forward.4} parent=1 // pred_region
      _
    $region61: #{language_model_forward.4} parent=1 // pred_fallthru
      _
    // Predicated region
    $region62: #{language_model_forward.4} parent=1 // pred_check
      _
    $region63: #{language_model_forward.4} parent=1 // pred_check_branch
      %7235 = sbr.rel (0) target = $region65
    $region64: #{language_model_forward.4} parent=1 // pred_region
      _
    $region65: #{language_model_forward.4} parent=1 // pred_fallthru
      _
    // Predicated region
    $region66: #{language_model_forward.4} parent=1 // pred_check
      _
    $region67: #{language_model_forward.4} parent=1 // pred_check_branch
      %7237 = sbr.rel (0) target = $region69
    $region68: #{language_model_forward.4} parent=1 // pred_region
      _
    $region69: #{language_model_forward.4} parent=1 // pred_fallthru
      _
    // Predicated region
    $region70: #{language_model_forward.4} parent=1 // pred_check
      _
    $region71: #{language_model_forward.4} parent=1 // pred_check_branch
      %7239 = sbr.rel (0) target = $region73
    $region72: #{language_model_forward.4} parent=1 // pred_region
      _
    $region73: #{language_model_forward.4} parent=1 // pred_fallthru
      _
    // Predicated region
    $region74: #{language_model_forward.4} parent=1 // pred_check
      _
    $region75: #{language_model_forward.4} parent=1 // pred_check_branch
      %7241 = sbr.rel (0) target = $region77
    $region76: #{language_model_forward.4} parent=1 // pred_region
      _
    $region77: #{language_model_forward.4} parent=1 // pred_fallthru
      _
    // Predicated region
    $region78: #{language_model_forward.4} parent=1 // pred_check
      _
    $region79: #{language_model_forward.4} parent=1 // pred_check_branch
      %7243 = sbr.rel (0) target = $region81
    $region80: #{language_model_forward.4} parent=1 // pred_region
      _
    $region81: #{language_model_forward.4} parent=1 // pred_fallthru
      _
    // Predicated region
    $region82: #{language_model_forward.4} parent=1 // pred_check
      _
    $region83: #{language_model_forward.4} parent=1 // pred_check_branch
      %7245 = sbr.rel (0) target = $region85
    $region84: #{language_model_forward.4} parent=1 // pred_region
      _
    $region85: #{language_model_forward.4} parent=1 // pred_fallthru
      _
    // Predicated region
    $region86: #{language_model_forward.4} parent=1 // pred_check
      _
    $region87: #{language_model_forward.4} parent=1 // pred_check_branch
      %7247 = sbr.rel (0) target = $region89
    $region88: #{language_model_forward.4} parent=1 // pred_region
      _
    $region89: #{language_model_forward.4} parent=1 // pred_fallthru
      _
    %7248 = vsyncpa [#allocation7], 1

</llo_original>
